<compile_context>
chip_gen: v7x
topology: tpu7x:2x2x1
jax: 0.10.0
libtpu: 0.0.40
codegen_flags: <defaults>
</compile_context>

<pallas_src>
import math

import numpy as np
import jax
import jax.numpy as jnp
from jax import lax
from jax.experimental import pallas as pl
from jax.experimental.pallas import tpu as pltpu

# ----------------------------- configuration --------------------------------
STATE_DIM = 16          # Critic(state_dim=...)
HIDDEN    = 32          # hidden_dim
EXPANSION = 2
INNER     = HIDDEN * EXPANSION
DEPTH     = 6           # mlp_depth
STREAMS   = 4           # SimBa num_residual_streams
DIM_PRED  = 1
BATCH     = 16

RSM_EPS = 1e-5
RMS_EPS = float(jnp.finfo(jnp.float32).eps)   # nn.RMSNorm default eps (None)

_S, _H = STREAMS, HIDDEN
_T = STREAMS + 2            # (S+1) alpha columns + 1 beta column
_SH = _S * _H               # 128  (lane-dense stream state width)
_ST = _S * _T               # 24   (per-row alpha/beta coefficient count)


# ----------------------------- shared math -----------------------------------
def _rms_norm(x, gamma):
    ms = jnp.mean(x * x, axis=-1, keepdims=True)
    return x * lax.rsqrt(ms + RMS_EPS) * gamma


# --------------------- host-built structural constants -----------------------
def _build_consts():
    """Block-structured constant matrices used by the lane-dense kernel."""
    # consts slab (128, 192):
    #   [:,   0:128]  MEANBD : block-diag of (H,H) full(1/H)  -> per-stream mean
    #                 of squares, broadcast back to every lane of its block.
    #   [:, 128:160]  FOLD   : vstack of 4x eye(H)            -> sum over the 4
    #                 stream blocks (stream mixing / reduce_stream).
    #   [0:32,160:192] ONES_H: full(1/H)                      -> lane-mean
    #                 broadcast for the branch / final RMSNorm.
    meanbd = np.kron(np.eye(_S, dtype=np.float32),
                     np.full((_H, _H), 1.0 / _H, np.float32))
    fold = np.tile(np.eye(_H, dtype=np.float32), (_S, 1))
    ones_h = np.full((_H, _H), 1.0 / _H, np.float32)
    consts = np.zeros((_SH, _SH + 2 * _H), np.float32)
    consts[:, :_SH] = meanbd
    consts[:, _SH:_SH + _H] = fold
    consts[:_H, _SH + _H:_SH + 2 * _H] = ones_h

    # GCOMB (24, 768): maps the per-row ab coefficients (stream-major
    # [alpha_0..alpha_S, beta] x 4 streams) to six 128-wide lane-broadcast
    # groups: groups 0..3 -> alpha column g+1 (new stream g), group 4 -> alpha
    # column 0 (branch input), group 5 -> beta.
    gcomb = np.zeros((_ST, 6 * _SH), np.float32)
    col_of_group = [1, 2, 3, 4, 0, _T - 1]
    for g in range(6):
        t = col_of_group[g]
        for s in range(_S):
            gcomb[s * _T + t, g * _SH + s * _H: g * _SH + (s + 1) * _H] = 1.0
    return jnp.asarray(consts), jnp.asarray(gcomb)


# ------------------------ host-side parameter folding ------------------------
def prepare_params(params):
    """Fold / pack module parameters into kernel-friendly slabs.  Run ONCE."""
    (rsm_mean, rsm_var, w_in, b_in,
     hc_gamma, st_alpha, dyn_alpha, a_scale, st_beta, dyn_beta, b_scale,
     br_gamma, w1, b1, w2, b2,
     fin_gamma, w_head, b_head) = params

    # --- RSMNorm (inference) folded into proj_in, pre-tiled for the 4 streams
    rsm_scale = 1.0 / jnp.maximum(jnp.sqrt(rsm_var), RSM_EPS)             # (1, D)
    w_in_fold = rsm_scale.reshape(-1, 1) * w_in                           # (D, H)
    b_in_fold = b_in - (rsm_mean * rsm_scale) @ w_in                      # (1, H)
    w_in4 = jnp.tile(w_in_fold, (1, _S))                                  # (D, 128)
    b_in4 = jnp.tile(b_in_fold, (1, _S))                                  # (1, 128)

    # --- misc slab (2, 128): row0 = b_in4, row1 = [fin_gamma | w_head | b_head]
    misc = jnp.zeros((2, _SH), jnp.float32)
    misc = misc.at[0, :].set(b_in4[0])
    misc = misc.at[1, :_H].set(fin_gamma[0])
    misc = misc.at[1, _H:2 * _H].set(w_head[:, 0])
    misc = misc.at[1, 2 * _H].set(b_head[0, 0])

    # --- per-layer dynamic alpha/beta projection, block-diag over the 4 streams
    dyn_ab = jnp.concatenate([dyn_alpha, jnp.swapaxes(dyn_beta, 1, 2)], axis=-1)
    dyn_bd = jnp.zeros((DEPTH, _SH, _ST), jnp.float32)
    for s in range(_S):
        dyn_bd = dyn_bd.at[:, s * _H:(s + 1) * _H, s * _T:(s + 1) * _T].set(dyn_ab)

    # --- per-layer scalar/vector slab (L, 6, 128)
    ab_scale = jnp.tile(
        jnp.concatenate(
            [jnp.broadcast_to(a_scale[:, :, None], (DEPTH, 1, _S + 1)),
             b_scale[:, :, None]], axis=-1),
        (1, 1, _S)).reshape(DEPTH, _ST)
    ab_static = jnp.concatenate(
        [st_alpha, jnp.swapaxes(st_beta, 1, 2)], axis=-1).reshape(DEPTH, _ST)

    lvecs = jnp.zeros((DEPTH, 6, _SH), jnp.float32)
    lvecs = lvecs.at[:, 0, :].set(jnp.tile(hc_gamma[:, 0, :], (1, _S)))   # gamma tiled
    lvecs = lvecs.at[:, 1, :_H].set(br_gamma[:, 0, :])
    lvecs = lvecs.at[:, 2, :_ST].set(ab_scale)
    lvecs = lvecs.at[:, 3, :_ST].set(ab_static)
    lvecs = lvecs.at[:, 4, :INNER].set(b1[:, 0, :])
    lvecs = lvecs.at[:, 5, :].set(jnp.tile(b2[:, 0, :], (1, _S)))         # b2 tiled

    # --- second branch linear pre-tiled across the 4 stream blocks
    w2t = jnp.tile(w2, (1, 1, _S))                                        # (L, I, 128)

    consts, gcomb = _build_consts()
    return (w_in4, misc, consts, gcomb, dyn_bd, w1, w2t, lvecs)


# ----------------------------- Pallas kernel ---------------------------------
def critic_kernel(x_ref, w_in_ref, misc_ref, consts_ref, gcomb_ref,
                  dyn_ref, w1_ref, w2_ref, lvec_ref, out_ref):
    f32 = jnp.float32

    meanbd = consts_ref[:, 0:_SH]                    # (128, 128)
    fold   = consts_ref[:, _SH:_SH + _H]             # (128, 32)
    ones_h = consts_ref[0:_H, _SH + _H:_SH + 2 * _H] # (32, 32)
    gcomb  = gcomb_ref[...]                          # (24, 768)

    # proj_in (RSMNorm folded) already tiled to the 4 lane blocks == expand_stream
    st = jnp.dot(x_ref[...], w_in_ref[...],
                 preferred_element_type=f32) + misc_ref[0:1, :]           # (B, 128)

    for l in range(DEPTH):
        lv   = lvec_ref[l]                           # (6, 128)
        gam  = lv[0:1, :]                            # hc RMSNorm gamma (tiled)
        brg  = lv[1:2, 0:_H]                         # branch RMSNorm gamma
        absc = lv[2:3, 0:_ST]                        # dyn alpha/beta scales
        abst = lv[3:4, 0:_ST]                        # static alpha/beta
        b1   = lv[4:5, 0:INNER]
        b2t  = lv[5:6, :]
        dyn  = dyn_ref[l]                            # (128, 24) block-diag
        w1   = w1_ref[l]                             # (32, 64)
        w2t  = w2_ref[l]                             # (64, 128) tiled

        # ---- width connection: one norm + one projection for all 4 streams ----
        msb    = jnp.dot(st * st, meanbd, preferred_element_type=f32)     # (B,128)
        normed = st * lax.rsqrt(msb + RMS_EPS) * gam
        ab     = jnp.tanh(jnp.dot(normed, dyn, preferred_element_type=f32))
        ab     = ab * absc + abst                                          # (B,24)
        abb    = jnp.dot(ab, gcomb, preferred_element_type=f32)            # (B,768)

        # groups 0..3: new streams, group 4: branch input, group 5: beta
        mixes = [jnp.dot(st * abb[:, g * _SH:(g + 1) * _SH], fold,
                         preferred_element_type=f32) for g in range(_S + 1)]
        new_st    = jnp.concatenate(mixes[:_S], axis=1)                    # (B,128)
        branch_in = mixes[_S]                                              # (B,32)
        beta_b    = abb[:, (_S + 1) * _SH:(_S + 2) * _SH]                  # (B,128)

        # ---- branch: RMSNorm -> Linear(H,I) -> ReluSquared -> Linear(I,H) ----
        bms = jnp.dot(branch_in * branch_in, ones_h, preferred_element_type=f32)
        bn  = branch_in * lax.rsqrt(bms + RMS_EPS) * brg
        u   = jnp.dot(bn, w1, preferred_element_type=f32) + b1             # (B,64)
        r   = jnp.maximum(u, 0.0)
        v4  = jnp.dot(r * r, w2t, preferred_element_type=f32) + b2t        # (B,128)

        # ---- depth connection (beta-weighted branch output added per stream) --
        st = new_st + v4 * beta_b

    # --- reduce_stream (sum) -> final RMSNorm -> value head ---
    hsum = jnp.dot(st, fold, preferred_element_type=f32)                   # (B,32)
    fms  = jnp.dot(hsum * hsum, ones_h, preferred_element_type=f32)
    ho   = hsum * lax.rsqrt(fms + RMS_EPS) * misc_ref[1:2, 0:_H]
    val  = jnp.sum(ho * misc_ref[1:2, _H:2 * _H], axis=1, keepdims=True)
    out_ref[...] = val + misc_ref[1:2, 2 * _H:2 * _H + 1]


def critic_forward(x, prep):
    """Single resident pallas_call: no grid, everything lives in VMEM."""
    vmem = pltpu.MemorySpace.VMEM
    n_in = 1 + len(prep)
    return pl.pallas_call(
        critic_kernel,
        out_shape=jax.ShapeDtypeStruct((x.shape[0], DIM_PRED), jnp.float32),
        in_specs=[pl.BlockSpec(memory_space=vmem)] * n_in,
        out_specs=pl.BlockSpec(memory_space=vmem),
    )(x, *prep)


# ----------------------- plain-JAX reference (module math) -------------------
def _critic_ref(x, params):
    """Faithful per-stream reference of the PyTorch forward (eval mode)."""
    (rsm_mean, rsm_var, w_in, b_in,
     hc_gamma, st_alpha, dyn_alpha, a_scale, st_beta, dyn_beta, b_scale,
     br_gamma, w1, b1, w2, b2,
     fin_gamma, w_head, b_head) = params
    f32 = jnp.float32

    xn = (x - rsm_mean) / jnp.maximum(jnp.sqrt(rsm_var), RSM_EPS)
    h = jnp.dot(xn, w_in, preferred_element_type=f32) + b_in
    streams = [h] * STREAMS

    for l in range(DEPTH):
        g_hc = hc_gamma[l]
        normed = [_rms_norm(s, g_hc) for s in streams]
        dyn_a = [jnp.tanh(jnp.dot(n, dyn_alpha[l], preferred_element_type=f32))
                 for n in normed]
        dyn_b = [jnp.tanh(jnp.sum(n * dyn_beta[l], axis=-1, keepdims=True))
                 for n in normed]

        mix = []
        for t in range(STREAMS + 1):
            acc = jnp.zeros_like(h)
            for s in range(STREAMS):
                alpha_st = dyn_a[s][:, t:t + 1] * a_scale[l, 0] + st_alpha[l, s, t]
                acc = acc + alpha_st * streams[s]
            mix.append(acc)
        branch_in, new_streams = mix[0], mix[1:]

        bn = _rms_norm(branch_in, br_gamma[l])
        pre = jnp.dot(bn, w1[l], preferred_element_type=f32) + b1[l]
        u = jnp.sign(pre) * jnp.maximum(pre, 0.0) ** 2
        v = jnp.dot(u, w2[l], preferred_element_type=f32) + b2[l]

        streams = []
        for s in range(STREAMS):
            beta_s = dyn_b[s] * b_scale[l, 0] + st_beta[l, 0, s]
            streams.append(new_streams[s] + v * beta_s)

    hsum = streams[0]
    for s in range(1, STREAMS):
        hsum = hsum + streams[s]
    ho = _rms_norm(hsum, fin_gamma)
    return jnp.dot(ho, w_head, preferred_element_type=f32) + b_head


# ----------------------------- parameters ------------------------------------
def init_params(key):
    ks = list(jax.random.split(key, 10))

    def uni(k, shape, fan_in):
        bound = 1.0 / math.sqrt(fan_in)
        return jax.random.uniform(k, shape, jnp.float32, -bound, bound)

    # RSMNorm buffers (module __init__: zero mean, unit variance)
    rsm_mean = jnp.zeros((1, STATE_DIM), jnp.float32)
    rsm_var = jnp.ones((1, STATE_DIM), jnp.float32)

    # SimBa proj_in (stored as (in, out); PyTorch stores (out, in) and does x @ W.T)
    w_in = uni(ks[0], (STATE_DIM, HIDDEN), STATE_DIM)
    b_in = uni(ks[1], (1, HIDDEN), STATE_DIM)

    # HyperConnections (stacked over depth)
    hc_gamma = jnp.ones((DEPTH, 1, HIDDEN), jnp.float32)
    eye = jnp.eye(STREAMS, dtype=jnp.float32)
    st_alpha = jnp.stack(
        [jnp.concatenate(
            [jax.nn.one_hot(l % STREAMS, STREAMS, dtype=jnp.float32)[:, None], eye],
            axis=1)
         for l in range(DEPTH)], axis=0)                        # (L, S, S+1)
    # torch init is zeros for the dynamic projections; use small deterministic
    # values so the dynamic (tanh) path is numerically exercised.
    dyn_alpha = 0.02 * jax.random.normal(ks[2], (DEPTH, HIDDEN, STREAMS + 1), jnp.float32)
    a_scale = jnp.full((DEPTH, 1), 1e-2, jnp.float32)
    st_beta = jnp.ones((DEPTH, 1, STREAMS), jnp.float32)
    dyn_beta = 0.02 * jax.random.normal(ks[3], (DEPTH, 1, HIDDEN), jnp.float32)
    b_scale = jnp.full((DEPTH, 1), 1e-2, jnp.float32)

    # SimBa residual branch: RMSNorm -> Linear(H,I) -> ReluSquared -> Linear(I,H)
    br_gamma = jnp.ones((DEPTH, 1, HIDDEN), jnp.float32)
    w1 = uni(ks[4], (DEPTH, HIDDEN, INNER), HIDDEN)
    b1 = uni(ks[5], (DEPTH, 1, INNER), HIDDEN)
    w2 = uni(ks[6], (DEPTH, INNER, HIDDEN), INNER)
    b2 = uni(ks[7], (DEPTH, 1, HIDDEN), INNER)

    fin_gamma = jnp.ones((1, HIDDEN), jnp.float32)
    w_head = uni(ks[8], (HIDDEN, DIM_PRED), HIDDEN)
    b_head = uni(ks[9], (1, DIM_PRED), HIDDEN)

    return (rsm_mean, rsm_var, w_in, b_in,
            hc_gamma, st_alpha, dyn_alpha, a_scale, st_beta, dyn_beta, b_scale,
            br_gamma, w1, b1, w2, b2,
            fin_gamma, w_head, b_head)


# --------------------------------- main ---------------------------------------
if __name__ == "__main__":
    key = jax.random.PRNGKey(0)
    k_param, k_x = jax.random.split(key)
    params = init_params(k_param)
    x = jax.random.normal(k_x, (BATCH, STATE_DIM), jnp.float32)

    # Parameter folding hoisted out of the per-call path: run ONCE, reuse.
    prep = jax.block_until_ready(prepare_params(params))

    forward = jax.jit(critic_forward)
    value = jax.block_until_ready(forward(x, prep))
    assert value.shape == (BATCH, DIM_PRED)

    # plain-JAX reference (original per-stream module math) correctness check.
    # Tolerance tightened 10x vs. previous version; bounded by the TPU f32
    # matmul precision mode rather than by the algorithmic rewrites.
    ref = _critic_ref(x, params)
    assert bool(jnp.allclose(value, ref, rtol=5e-3, atol=1e-3)), "mismatch vs reference"

    print("KERNEL_OK")
</pallas_src>

<mosaic_0001>
module attributes {stable_mosaic.version = 11 : i64} {
  func.func @critic_kernel(%arg0: memref<16x16xf32, #tpu.memory_space<vmem>>, %arg1: memref<16x128xf32, #tpu.memory_space<vmem>>, %arg2: memref<2x128xf32, #tpu.memory_space<vmem>>, %arg3: memref<128x192xf32, #tpu.memory_space<vmem>>, %arg4: memref<24x768xf32, #tpu.memory_space<vmem>>, %arg5: memref<6x128x24xf32, #tpu.memory_space<vmem>>, %arg6: memref<6x32x64xf32, #tpu.memory_space<vmem>>, %arg7: memref<6x64x128xf32, #tpu.memory_space<vmem>>, %arg8: memref<6x6x128xf32, #tpu.memory_space<vmem>>, %arg9: memref<16x1xf32, #tpu.memory_space<vmem>>) attributes {dimension_semantics = [], scalar_prefetch = 0 : i64, scratch_operands = 0 : i64, tpu.core_type = #tpu.core_type<tc>} {
    %c0 = arith.constant 0 : index
    %c0_0 = arith.constant 0 : index
    %0 = vector.load %arg3[%c0, %c0_0] : memref<128x192xf32, #tpu.memory_space<vmem>>, vector<128x128xf32>
    %c0_1 = arith.constant 0 : index
    %c128 = arith.constant 128 : index
    %1 = vector.load %arg3[%c0_1, %c128] : memref<128x192xf32, #tpu.memory_space<vmem>>, vector<128x32xf32>
    %c0_2 = arith.constant 0 : index
    %c160 = arith.constant 160 : index
    %2 = vector.load %arg3[%c0_2, %c160] : memref<128x192xf32, #tpu.memory_space<vmem>>, vector<32x32xf32>
    %c0_3 = arith.constant 0 : index
    %c0_4 = arith.constant 0 : index
    %3 = vector.load %arg4[%c0_3, %c0_4] : memref<24x768xf32, #tpu.memory_space<vmem>>, vector<24x768xf32>
    %c0_5 = arith.constant 0 : index
    %c0_6 = arith.constant 0 : index
    %4 = vector.load %arg0[%c0_5, %c0_6] : memref<16x16xf32, #tpu.memory_space<vmem>>, vector<16x16xf32>
    %c0_7 = arith.constant 0 : index
    %c0_8 = arith.constant 0 : index
    %5 = vector.load %arg1[%c0_7, %c0_8] : memref<16x128xf32, #tpu.memory_space<vmem>>, vector<16x128xf32>
    %cst = arith.constant dense<0.000000e+00> : vector<16x128xf32>
    %6 = tpu.matmul %4, %5, %cst {dimension_numbers = #tpu.dot_dimension_numbers<[1], [0], [0], [1], [0, 0, 1, 1], [], []>} : vector<16x16xf32>, vector<16x128xf32>, vector<16x128xf32> -> vector<16x128xf32>
    %c0_9 = arith.constant 0 : index
    %c0_10 = arith.constant 0 : index
    %7 = vector.load %arg2[%c0_9, %c0_10] : memref<2x128xf32, #tpu.memory_space<vmem>>, vector<1x128xf32>
    %8 = vector.broadcast %7 : vector<1x128xf32> to vector<16x128xf32>
    %9 = arith.addf %6, %8 : vector<16x128xf32>
    %c0_11 = arith.constant 0 : index
    %c0_12 = arith.constant 0 : index
    %c0_13 = arith.constant 0 : index
    %10 = vector.load %arg8[%c0_11, %c0_12, %c0_13] : memref<6x6x128xf32, #tpu.memory_space<vmem>>, vector<1x6x128xf32>
    %11 = vector.shape_cast %10 : vector<1x6x128xf32> to vector<6x128xf32>
    %12 = vector.extract_strided_slice %11 {offsets = [0, 0], sizes = [1, 128], strides = [1, 1]} : vector<6x128xf32> to vector<1x128xf32>
    %13 = vector.extract_strided_slice %11 {offsets = [1, 0], sizes = [1, 32], strides = [1, 1]} : vector<6x128xf32> to vector<1x32xf32>
    %14 = vector.extract_strided_slice %11 {offsets = [2, 0], sizes = [1, 24], strides = [1, 1]} : vector<6x128xf32> to vector<1x24xf32>
    %15 = vector.extract_strided_slice %11 {offsets = [3, 0], sizes = [1, 24], strides = [1, 1]} : vector<6x128xf32> to vector<1x24xf32>
    %16 = vector.extract_strided_slice %11 {offsets = [4, 0], sizes = [1, 64], strides = [1, 1]} : vector<6x128xf32> to vector<1x64xf32>
    %17 = vector.extract_strided_slice %11 {offsets = [5, 0], sizes = [1, 128], strides = [1, 1]} : vector<6x128xf32> to vector<1x128xf32>
    %c0_14 = arith.constant 0 : index
    %c0_15 = arith.constant 0 : index
    %c0_16 = arith.constant 0 : index
    %18 = vector.load %arg5[%c0_14, %c0_15, %c0_16] : memref<6x128x24xf32, #tpu.memory_space<vmem>>, vector<1x128x24xf32>
    %19 = vector.shape_cast %18 : vector<1x128x24xf32> to vector<128x24xf32>
    %c0_17 = arith.constant 0 : index
    %c0_18 = arith.constant 0 : index
    %c0_19 = arith.constant 0 : index
    %20 = vector.load %arg6[%c0_17, %c0_18, %c0_19] : memref<6x32x64xf32, #tpu.memory_space<vmem>>, vector<1x32x64xf32>
    %21 = vector.shape_cast %20 : vector<1x32x64xf32> to vector<32x64xf32>
    %c0_20 = arith.constant 0 : index
    %c0_21 = arith.constant 0 : index
    %c0_22 = arith.constant 0 : index
    %22 = vector.load %arg7[%c0_20, %c0_21, %c0_22] : memref<6x64x128xf32, #tpu.memory_space<vmem>>, vector<1x64x128xf32>
    %23 = vector.shape_cast %22 : vector<1x64x128xf32> to vector<64x128xf32>
    %24 = arith.mulf %9, %9 : vector<16x128xf32>
    %cst_23 = arith.constant dense<0.000000e+00> : vector<16x128xf32>
    %25 = tpu.matmul %24, %0, %cst_23 {dimension_numbers = #tpu.dot_dimension_numbers<[1], [0], [0], [1], [0, 0, 1, 1], [], []>} : vector<16x128xf32>, vector<128x128xf32>, vector<16x128xf32> -> vector<16x128xf32>
    %cst_24 = arith.constant 1.1920929E-7 : f32
    %26 = vector.broadcast %cst_24 : f32 to vector<16x128xf32>
    %27 = arith.addf %25, %26 : vector<16x128xf32>
    %28 = math.rsqrt %27 : vector<16x128xf32>
    %29 = arith.mulf %9, %28 : vector<16x128xf32>
    %30 = vector.broadcast %12 : vector<1x128xf32> to vector<16x128xf32>
    %31 = arith.mulf %29, %30 : vector<16x128xf32>
    %cst_25 = arith.constant dense<0.000000e+00> : vector<16x24xf32>
    %32 = tpu.matmul %31, %19, %cst_25 {dimension_numbers = #tpu.dot_dimension_numbers<[1], [0], [0], [1], [0, 0, 1, 1], [], []>} : vector<16x128xf32>, vector<128x24xf32>, vector<16x24xf32> -> vector<16x24xf32>
    %33 = math.tanh %32 : vector<16x24xf32>
    %34 = vector.broadcast %14 : vector<1x24xf32> to vector<16x24xf32>
    %35 = arith.mulf %33, %34 : vector<16x24xf32>
    %36 = vector.broadcast %15 : vector<1x24xf32> to vector<16x24xf32>
    %37 = arith.addf %35, %36 : vector<16x24xf32>
    %cst_26 = arith.constant dense<0.000000e+00> : vector<16x768xf32>
    %38 = tpu.matmul %37, %3, %cst_26 {dimension_numbers = #tpu.dot_dimension_numbers<[1], [0], [0], [1], [0, 0, 1, 1], [], []>} : vector<16x24xf32>, vector<24x768xf32>, vector<16x768xf32> -> vector<16x768xf32>
    %39 = vector.extract_strided_slice %38 {offsets = [0, 0], sizes = [16, 128], strides = [1, 1]} : vector<16x768xf32> to vector<16x128xf32>
    %40 = arith.mulf %9, %39 : vector<16x128xf32>
    %cst_27 = arith.constant dense<0.000000e+00> : vector<16x32xf32>
    %41 = tpu.matmul %40, %1, %cst_27 {dimension_numbers = #tpu.dot_dimension_numbers<[1], [0], [0], [1], [0, 0, 1, 1], [], []>} : vector<16x128xf32>, vector<128x32xf32>, vector<16x32xf32> -> vector<16x32xf32>
    %42 = vector.extract_strided_slice %38 {offsets = [0, 128], sizes = [16, 128], strides = [1, 1]} : vector<16x768xf32> to vector<16x128xf32>
    %43 = arith.mulf %9, %42 : vector<16x128xf32>
    %cst_28 = arith.constant dense<0.000000e+00> : vector<16x32xf32>
    %44 = tpu.matmul %43, %1, %cst_28 {dimension_numbers = #tpu.dot_dimension_numbers<[1], [0], [0], [1], [0, 0, 1, 1], [], []>} : vector<16x128xf32>, vector<128x32xf32>, vector<16x32xf32> -> vector<16x32xf32>
    %45 = vector.extract_strided_slice %38 {offsets = [0, 256], sizes = [16, 128], strides = [1, 1]} : vector<16x768xf32> to vector<16x128xf32>
    %46 = arith.mulf %9, %45 : vector<16x128xf32>
    %cst_29 = arith.constant dense<0.000000e+00> : vector<16x32xf32>
    %47 = tpu.matmul %46, %1, %cst_29 {dimension_numbers = #tpu.dot_dimension_numbers<[1], [0], [0], [1], [0, 0, 1, 1], [], []>} : vector<16x128xf32>, vector<128x32xf32>, vector<16x32xf32> -> vector<16x32xf32>
    %48 = vector.extract_strided_slice %38 {offsets = [0, 384], sizes = [16, 128], strides = [1, 1]} : vector<16x768xf32> to vector<16x128xf32>
    %49 = arith.mulf %9, %48 : vector<16x128xf32>
    %cst_30 = arith.constant dense<0.000000e+00> : vector<16x32xf32>
    %50 = tpu.matmul %49, %1, %cst_30 {dimension_numbers = #tpu.dot_dimension_numbers<[1], [0], [0], [1], [0, 0, 1, 1], [], []>} : vector<16x128xf32>, vector<128x32xf32>, vector<16x32xf32> -> vector<16x32xf32>
    %51 = vector.extract_strided_slice %38 {offsets = [0, 512], sizes = [16, 128], strides = [1, 1]} : vector<16x768xf32> to vector<16x128xf32>
    %52 = arith.mulf %9, %51 : vector<16x128xf32>
    %cst_31 = arith.constant dense<0.000000e+00> : vector<16x32xf32>
    %53 = tpu.matmul %52, %1, %cst_31 {dimension_numbers = #tpu.dot_dimension_numbers<[1], [0], [0], [1], [0, 0, 1, 1], [], []>} : vector<16x128xf32>, vector<128x32xf32>, vector<16x32xf32> -> vector<16x32xf32>
    %54 = tpu.concatenate %41, %44, %47, %50 in 1 : vector<16x32xf32>, vector<16x32xf32>, vector<16x32xf32>, vector<16x32xf32> -> vector<16x128xf32>
    %55 = vector.extract_strided_slice %38 {offsets = [0, 640], sizes = [16, 128], strides = [1, 1]} : vector<16x768xf32> to vector<16x128xf32>
    %56 = arith.mulf %53, %53 : vector<16x32xf32>
    %cst_32 = arith.constant dense<0.000000e+00> : vector<16x32xf32>
    %57 = tpu.matmul %56, %2, %cst_32 {dimension_numbers = #tpu.dot_dimension_numbers<[1], [0], [0], [1], [0, 0, 1, 1], [], []>} : vector<16x32xf32>, vector<32x32xf32>, vector<16x32xf32> -> vector<16x32xf32>
    %cst_33 = arith.constant 1.1920929E-7 : f32
    %58 = vector.broadcast %cst_33 : f32 to vector<16x32xf32>
    %59 = arith.addf %57, %58 : vector<16x32xf32>
    %60 = math.rsqrt %59 : vector<16x32xf32>
    %61 = arith.mulf %53, %60 : vector<16x32xf32>
    %62 = vector.broadcast %13 : vector<1x32xf32> to vector<16x32xf32>
    %63 = arith.mulf %61, %62 : vector<16x32xf32>
    %cst_34 = arith.constant dense<0.000000e+00> : vector<16x64xf32>
    %64 = tpu.matmul %63, %21, %cst_34 {dimension_numbers = #tpu.dot_dimension_numbers<[1], [0], [0], [1], [0, 0, 1, 1], [], []>} : vector<16x32xf32>, vector<32x64xf32>, vector<16x64xf32> -> vector<16x64xf32>
    %65 = vector.broadcast %16 : vector<1x64xf32> to vector<16x64xf32>
    %66 = arith.addf %64, %65 : vector<16x64xf32>
    %cst_35 = arith.constant 0.000000e+00 : f32
    %67 = vector.broadcast %cst_35 : f32 to vector<16x64xf32>
    %68 = arith.maximumf %66, %67 : vector<16x64xf32>
    %69 = arith.mulf %68, %68 : vector<16x64xf32>
    %cst_36 = arith.constant dense<0.000000e+00> : vector<16x128xf32>
    %70 = tpu.matmul %69, %23, %cst_36 {dimension_numbers = #tpu.dot_dimension_numbers<[1], [0], [0], [1], [0, 0, 1, 1], [], []>} : vector<16x64xf32>, vector<64x128xf32>, vector<16x128xf32> -> vector<16x128xf32>
    %71 = vector.broadcast %17 : vector<1x128xf32> to vector<16x128xf32>
    %72 = arith.addf %70, %71 : vector<16x128xf32>
    %73 = arith.mulf %72, %55 : vector<16x128xf32>
    %74 = arith.addf %54, %73 : vector<16x128xf32>
    %c1 = arith.constant 1 : index
    %c0_37 = arith.constant 0 : index
    %c0_38 = arith.constant 0 : index
    %75 = vector.load %arg8[%c1, %c0_37, %c0_38] : memref<6x6x128xf32, #tpu.memory_space<vmem>>, vector<1x6x128xf32>
    %76 = vector.shape_cast %75 : vector<1x6x128xf32> to vector<6x128xf32>
    %77 = vector.extract_strided_slice %76 {offsets = [0, 0], sizes = [1, 128], strides = [1, 1]} : vector<6x128xf32> to vector<1x128xf32>
    %78 = vector.extract_strided_slice %76 {offsets = [1, 0], sizes = [1, 32], strides = [1, 1]} : vector<6x128xf32> to vector<1x32xf32>
    %79 = vector.extract_strided_slice %76 {offsets = [2, 0], sizes = [1, 24], strides = [1, 1]} : vector<6x128xf32> to vector<1x24xf32>
    %80 = vector.extract_strided_slice %76 {offsets = [3, 0], sizes = [1, 24], strides = [1, 1]} : vector<6x128xf32> to vector<1x24xf32>
    %81 = vector.extract_strided_slice %76 {offsets = [4, 0], sizes = [1, 64], strides = [1, 1]} : vector<6x128xf32> to vector<1x64xf32>
    %82 = vector.extract_strided_slice %76 {offsets = [5, 0], sizes = [1, 128], strides = [1, 1]} : vector<6x128xf32> to vector<1x128xf32>
    %c1_39 = arith.constant 1 : index
    %c0_40 = arith.constant 0 : index
    %c0_41 = arith.constant 0 : index
    %83 = vector.load %arg5[%c1_39, %c0_40, %c0_41] : memref<6x128x24xf32, #tpu.memory_space<vmem>>, vector<1x128x24xf32>
    %84 = vector.shape_cast %83 : vector<1x128x24xf32> to vector<128x24xf32>
    %c1_42 = arith.constant 1 : index
    %c0_43 = arith.constant 0 : index
    %c0_44 = arith.constant 0 : index
    %85 = vector.load %arg6[%c1_42, %c0_43, %c0_44] : memref<6x32x64xf32, #tpu.memory_space<vmem>>, vector<1x32x64xf32>
    %86 = vector.shape_cast %85 : vector<1x32x64xf32> to vector<32x64xf32>
    %c1_45 = arith.constant 1 : index
    %c0_46 = arith.constant 0 : index
    %c0_47 = arith.constant 0 : index
    %87 = vector.load %arg7[%c1_45, %c0_46, %c0_47] : memref<6x64x128xf32, #tpu.memory_space<vmem>>, vector<1x64x128xf32>
    %88 = vector.shape_cast %87 : vector<1x64x128xf32> to vector<64x128xf32>
    %89 = arith.mulf %74, %74 : vector<16x128xf32>
    %cst_48 = arith.constant dense<0.000000e+00> : vector<16x128xf32>
    %90 = tpu.matmul %89, %0, %cst_48 {dimension_numbers = #tpu.dot_dimension_numbers<[1], [0], [0], [1], [0, 0, 1, 1], [], []>} : vector<16x128xf32>, vector<128x128xf32>, vector<16x128xf32> -> vector<16x128xf32>
    %cst_49 = arith.constant 1.1920929E-7 : f32
    %91 = vector.broadcast %cst_49 : f32 to vector<16x128xf32>
    %92 = arith.addf %90, %91 : vector<16x128xf32>
    %93 = math.rsqrt %92 : vector<16x128xf32>
    %94 = arith.mulf %74, %93 : vector<16x128xf32>
    %95 = vector.broadcast %77 : vector<1x128xf32> to vector<16x128xf32>
    %96 = arith.mulf %94, %95 : vector<16x128xf32>
    %cst_50 = arith.constant dense<0.000000e+00> : vector<16x24xf32>
    %97 = tpu.matmul %96, %84, %cst_50 {dimension_numbers = #tpu.dot_dimension_numbers<[1], [0], [0], [1], [0, 0, 1, 1], [], []>} : vector<16x128xf32>, vector<128x24xf32>, vector<16x24xf32> -> vector<16x24xf32>
    %98 = math.tanh %97 : vector<16x24xf32>
    %99 = vector.broadcast %79 : vector<1x24xf32> to vector<16x24xf32>
    %100 = arith.mulf %98, %99 : vector<16x24xf32>
    %101 = vector.broadcast %80 : vector<1x24xf32> to vector<16x24xf32>
    %102 = arith.addf %100, %101 : vector<16x24xf32>
    %cst_51 = arith.constant dense<0.000000e+00> : vector<16x768xf32>
    %103 = tpu.matmul %102, %3, %cst_51 {dimension_numbers = #tpu.dot_dimension_numbers<[1], [0], [0], [1], [0, 0, 1, 1], [], []>} : vector<16x24xf32>, vector<24x768xf32>, vector<16x768xf32> -> vector<16x768xf32>
    %104 = vector.extract_strided_slice %103 {offsets = [0, 0], sizes = [16, 128], strides = [1, 1]} : vector<16x768xf32> to vector<16x128xf32>
    %105 = arith.mulf %74, %104 : vector<16x128xf32>
    %cst_52 = arith.constant dense<0.000000e+00> : vector<16x32xf32>
    %106 = tpu.matmul %105, %1, %cst_52 {dimension_numbers = #tpu.dot_dimension_numbers<[1], [0], [0], [1], [0, 0, 1, 1], [], []>} : vector<16x128xf32>, vector<128x32xf32>, vector<16x32xf32> -> vector<16x32xf32>
    %107 = vector.extract_strided_slice %103 {offsets = [0, 128], sizes = [16, 128], strides = [1, 1]} : vector<16x768xf32> to vector<16x128xf32>
    %108 = arith.mulf %74, %107 : vector<16x128xf32>
    %cst_53 = arith.constant dense<0.000000e+00> : vector<16x32xf32>
    %109 = tpu.matmul %108, %1, %cst_53 {dimension_numbers = #tpu.dot_dimension_numbers<[1], [0], [0], [1], [0, 0, 1, 1], [], []>} : vector<16x128xf32>, vector<128x32xf32>, vector<16x32xf32> -> vector<16x32xf32>
    %110 = vector.extract_strided_slice %103 {offsets = [0, 256], sizes = [16, 128], strides = [1, 1]} : vector<16x768xf32> to vector<16x128xf32>
    %111 = arith.mulf %74, %110 : vector<16x128xf32>
    %cst_54 = arith.constant dense<0.000000e+00> : vector<16x32xf32>
    %112 = tpu.matmul %111, %1, %cst_54 {dimension_numbers = #tpu.dot_dimension_numbers<[1], [0], [0], [1], [0, 0, 1, 1], [], []>} : vector<16x128xf32>, vector<128x32xf32>, vector<16x32xf32> -> vector<16x32xf32>
    %113 = vector.extract_strided_slice %103 {offsets = [0, 384], sizes = [16, 128], strides = [1, 1]} : vector<16x768xf32> to vector<16x128xf32>
    %114 = arith.mulf %74, %113 : vector<16x128xf32>
    %cst_55 = arith.constant dense<0.000000e+00> : vector<16x32xf32>
    %115 = tpu.matmul %114, %1, %cst_55 {dimension_numbers = #tpu.dot_dimension_numbers<[1], [0], [0], [1], [0, 0, 1, 1], [], []>} : vector<16x128xf32>, vector<128x32xf32>, vector<16x32xf32> -> vector<16x32xf32>
    %116 = vector.extract_strided_slice %103 {offsets = [0, 512], sizes = [16, 128], strides = [1, 1]} : vector<16x768xf32> to vector<16x128xf32>
    %117 = arith.mulf %74, %116 : vector<16x128xf32>
    %cst_56 = arith.constant dense<0.000000e+00> : vector<16x32xf32>
    %118 = tpu.matmul %117, %1, %cst_56 {dimension_numbers = #tpu.dot_dimension_numbers<[1], [0], [0], [1], [0, 0, 1, 1], [], []>} : vector<16x128xf32>, vector<128x32xf32>, vector<16x32xf32> -> vector<16x32xf32>
    %119 = tpu.concatenate %106, %109, %112, %115 in 1 : vector<16x32xf32>, vector<16x32xf32>, vector<16x32xf32>, vector<16x32xf32> -> vector<16x128xf32>
    %120 = vector.extract_strided_slice %103 {offsets = [0, 640], sizes = [16, 128], strides = [1, 1]} : vector<16x768xf32> to vector<16x128xf32>
    %121 = arith.mulf %118, %118 : vector<16x32xf32>
    %cst_57 = arith.constant dense<0.000000e+00> : vector<16x32xf32>
    %122 = tpu.matmul %121, %2, %cst_57 {dimension_numbers = #tpu.dot_dimension_numbers<[1], [0], [0], [1], [0, 0, 1, 1], [], []>} : vector<16x32xf32>, vector<32x32xf32>, vector<16x32xf32> -> vector<16x32xf32>
    %cst_58 = arith.constant 1.1920929E-7 : f32
    %123 = vector.broadcast %cst_58 : f32 to vector<16x32xf32>
    %124 = arith.addf %122, %123 : vector<16x32xf32>
    %125 = math.rsqrt %124 : vector<16x32xf32>
    %126 = arith.mulf %118, %125 : vector<16x32xf32>
    %127 = vector.broadcast %78 : vector<1x32xf32> to vector<16x32xf32>
    %128 = arith.mulf %126, %127 : vector<16x32xf32>
    %cst_59 = arith.constant dense<0.000000e+00> : vector<16x64xf32>
    %129 = tpu.matmul %128, %86, %cst_59 {dimension_numbers = #tpu.dot_dimension_numbers<[1], [0], [0], [1], [0, 0, 1, 1], [], []>} : vector<16x32xf32>, vector<32x64xf32>, vector<16x64xf32> -> vector<16x64xf32>
    %130 = vector.broadcast %81 : vector<1x64xf32> to vector<16x64xf32>
    %131 = arith.addf %129, %130 : vector<16x64xf32>
    %cst_60 = arith.constant 0.000000e+00 : f32
    %132 = vector.broadcast %cst_60 : f32 to vector<16x64xf32>
    %133 = arith.maximumf %131, %132 : vector<16x64xf32>
    %134 = arith.mulf %133, %133 : vector<16x64xf32>
    %cst_61 = arith.constant dense<0.000000e+00> : vector<16x128xf32>
    %135 = tpu.matmul %134, %88, %cst_61 {dimension_numbers = #tpu.dot_dimension_numbers<[1], [0], [0], [1], [0, 0, 1, 1], [], []>} : vector<16x64xf32>, vector<64x128xf32>, vector<16x128xf32> -> vector<16x128xf32>
    %136 = vector.broadcast %82 : vector<1x128xf32> to vector<16x128xf32>
    %137 = arith.addf %135, %136 : vector<16x128xf32>
    %138 = arith.mulf %137, %120 : vector<16x128xf32>
    %139 = arith.addf %119, %138 : vector<16x128xf32>
    %c2 = arith.constant 2 : index
    %c0_62 = arith.constant 0 : index
    %c0_63 = arith.constant 0 : index
    %140 = vector.load %arg8[%c2, %c0_62, %c0_63] : memref<6x6x128xf32, #tpu.memory_space<vmem>>, vector<1x6x128xf32>
    %141 = vector.shape_cast %140 : vector<1x6x128xf32> to vector<6x128xf32>
    %142 = vector.extract_strided_slice %141 {offsets = [0, 0], sizes = [1, 128], strides = [1, 1]} : vector<6x128xf32> to vector<1x128xf32>
    %143 = vector.extract_strided_slice %141 {offsets = [1, 0], sizes = [1, 32], strides = [1, 1]} : vector<6x128xf32> to vector<1x32xf32>
    %144 = vector.extract_strided_slice %141 {offsets = [2, 0], sizes = [1, 24], strides = [1, 1]} : vector<6x128xf32> to vector<1x24xf32>
    %145 = vector.extract_strided_slice %141 {offsets = [3, 0], sizes = [1, 24], strides = [1, 1]} : vector<6x128xf32> to vector<1x24xf32>
    %146 = vector.extract_strided_slice %141 {offsets = [4, 0], sizes = [1, 64], strides = [1, 1]} : vector<6x128xf32> to vector<1x64xf32>
    %147 = vector.extract_strided_slice %141 {offsets = [5, 0], sizes = [1, 128], strides = [1, 1]} : vector<6x128xf32> to vector<1x128xf32>
    %c2_64 = arith.constant 2 : index
    %c0_65 = arith.constant 0 : index
    %c0_66 = arith.constant 0 : index
    %148 = vector.load %arg5[%c2_64, %c0_65, %c0_66] : memref<6x128x24xf32, #tpu.memory_space<vmem>>, vector<1x128x24xf32>
    %149 = vector.shape_cast %148 : vector<1x128x24xf32> to vector<128x24xf32>
    %c2_67 = arith.constant 2 : index
    %c0_68 = arith.constant 0 : index
    %c0_69 = arith.constant 0 : index
    %150 = vector.load %arg6[%c2_67, %c0_68, %c0_69] : memref<6x32x64xf32, #tpu.memory_space<vmem>>, vector<1x32x64xf32>
    %151 = vector.shape_cast %150 : vector<1x32x64xf32> to vector<32x64xf32>
    %c2_70 = arith.constant 2 : index
    %c0_71 = arith.constant 0 : index
    %c0_72 = arith.constant 0 : index
    %152 = vector.load %arg7[%c2_70, %c0_71, %c0_72] : memref<6x64x128xf32, #tpu.memory_space<vmem>>, vector<1x64x128xf32>
    %153 = vector.shape_cast %152 : vector<1x64x128xf32> to vector<64x128xf32>
    %154 = arith.mulf %139, %139 : vector<16x128xf32>
    %cst_73 = arith.constant dense<0.000000e+00> : vector<16x128xf32>
    %155 = tpu.matmul %154, %0, %cst_73 {dimension_numbers = #tpu.dot_dimension_numbers<[1], [0], [0], [1], [0, 0, 1, 1], [], []>} : vector<16x128xf32>, vector<128x128xf32>, vector<16x128xf32> -> vector<16x128xf32>
    %cst_74 = arith.constant 1.1920929E-7 : f32
    %156 = vector.broadcast %cst_74 : f32 to vector<16x128xf32>
    %157 = arith.addf %155, %156 : vector<16x128xf32>
    %158 = math.rsqrt %157 : vector<16x128xf32>
    %159 = arith.mulf %139, %158 : vector<16x128xf32>
    %160 = vector.broadcast %142 : vector<1x128xf32> to vector<16x128xf32>
    %161 = arith.mulf %159, %160 : vector<16x128xf32>
    %cst_75 = arith.constant dense<0.000000e+00> : vector<16x24xf32>
    %162 = tpu.matmul %161, %149, %cst_75 {dimension_numbers = #tpu.dot_dimension_numbers<[1], [0], [0], [1], [0, 0, 1, 1], [], []>} : vector<16x128xf32>, vector<128x24xf32>, vector<16x24xf32> -> vector<16x24xf32>
    %163 = math.tanh %162 : vector<16x24xf32>
    %164 = vector.broadcast %144 : vector<1x24xf32> to vector<16x24xf32>
    %165 = arith.mulf %163, %164 : vector<16x24xf32>
    %166 = vector.broadcast %145 : vector<1x24xf32> to vector<16x24xf32>
    %167 = arith.addf %165, %166 : vector<16x24xf32>
    %cst_76 = arith.constant dense<0.000000e+00> : vector<16x768xf32>
    %168 = tpu.matmul %167, %3, %cst_76 {dimension_numbers = #tpu.dot_dimension_numbers<[1], [0], [0], [1], [0, 0, 1, 1], [], []>} : vector<16x24xf32>, vector<24x768xf32>, vector<16x768xf32> -> vector<16x768xf32>
    %169 = vector.extract_strided_slice %168 {offsets = [0, 0], sizes = [16, 128], strides = [1, 1]} : vector<16x768xf32> to vector<16x128xf32>
    %170 = arith.mulf %139, %169 : vector<16x128xf32>
    %cst_77 = arith.constant dense<0.000000e+00> : vector<16x32xf32>
    %171 = tpu.matmul %170, %1, %cst_77 {dimension_numbers = #tpu.dot_dimension_numbers<[1], [0], [0], [1], [0, 0, 1, 1], [], []>} : vector<16x128xf32>, vector<128x32xf32>, vector<16x32xf32> -> vector<16x32xf32>
    %172 = vector.extract_strided_slice %168 {offsets = [0, 128], sizes = [16, 128], strides = [1, 1]} : vector<16x768xf32> to vector<16x128xf32>
    %173 = arith.mulf %139, %172 : vector<16x128xf32>
    %cst_78 = arith.constant dense<0.000000e+00> : vector<16x32xf32>
    %174 = tpu.matmul %173, %1, %cst_78 {dimension_numbers = #tpu.dot_dimension_numbers<[1], [0], [0], [1], [0, 0, 1, 1], [], []>} : vector<16x128xf32>, vector<128x32xf32>, vector<16x32xf32> -> vector<16x32xf32>
    %175 = vector.extract_strided_slice %168 {offsets = [0, 256], sizes = [16, 128], strides = [1, 1]} : vector<16x768xf32> to vector<16x128xf32>
    %176 = arith.mulf %139, %175 : vector<16x128xf32>
    %cst_79 = arith.constant dense<0.000000e+00> : vector<16x32xf32>
    %177 = tpu.matmul %176, %1, %cst_79 {dimension_numbers = #tpu.dot_dimension_numbers<[1], [0], [0], [1], [0, 0, 1, 1], [], []>} : vector<16x128xf32>, vector<128x32xf32>, vector<16x32xf32> -> vector<16x32xf32>
    %178 = vector.extract_strided_slice %168 {offsets = [0, 384], sizes = [16, 128], strides = [1, 1]} : vector<16x768xf32> to vector<16x128xf32>
    %179 = arith.mulf %139, %178 : vector<16x128xf32>
    %cst_80 = arith.constant dense<0.000000e+00> : vector<16x32xf32>
    %180 = tpu.matmul %179, %1, %cst_80 {dimension_numbers = #tpu.dot_dimension_numbers<[1], [0], [0], [1], [0, 0, 1, 1], [], []>} : vector<16x128xf32>, vector<128x32xf32>, vector<16x32xf32> -> vector<16x32xf32>
    %181 = vector.extract_strided_slice %168 {offsets = [0, 512], sizes = [16, 128], strides = [1, 1]} : vector<16x768xf32> to vector<16x128xf32>
    %182 = arith.mulf %139, %181 : vector<16x128xf32>
    %cst_81 = arith.constant dense<0.000000e+00> : vector<16x32xf32>
    %183 = tpu.matmul %182, %1, %cst_81 {dimension_numbers = #tpu.dot_dimension_numbers<[1], [0], [0], [1], [0, 0, 1, 1], [], []>} : vector<16x128xf32>, vector<128x32xf32>, vector<16x32xf32> -> vector<16x32xf32>
    %184 = tpu.concatenate %171, %174, %177, %180 in 1 : vector<16x32xf32>, vector<16x32xf32>, vector<16x32xf32>, vector<16x32xf32> -> vector<16x128xf32>
    %185 = vector.extract_strided_slice %168 {offsets = [0, 640], sizes = [16, 128], strides = [1, 1]} : vector<16x768xf32> to vector<16x128xf32>
    %186 = arith.mulf %183, %183 : vector<16x32xf32>
    %cst_82 = arith.constant dense<0.000000e+00> : vector<16x32xf32>
    %187 = tpu.matmul %186, %2, %cst_82 {dimension_numbers = #tpu.dot_dimension_numbers<[1], [0], [0], [1], [0, 0, 1, 1], [], []>} : vector<16x32xf32>, vector<32x32xf32>, vector<16x32xf32> -> vector<16x32xf32>
    %cst_83 = arith.constant 1.1920929E-7 : f32
    %188 = vector.broadcast %cst_83 : f32 to vector<16x32xf32>
    %189 = arith.addf %187, %188 : vector<16x32xf32>
    %190 = math.rsqrt %189 : vector<16x32xf32>
    %191 = arith.mulf %183, %190 : vector<16x32xf32>
    %192 = vector.broadcast %143 : vector<1x32xf32> to vector<16x32xf32>
    %193 = arith.mulf %191, %192 : vector<16x32xf32>
    %cst_84 = arith.constant dense<0.000000e+00> : vector<16x64xf32>
    %194 = tpu.matmul %193, %151, %cst_84 {dimension_numbers = #tpu.dot_dimension_numbers<[1], [0], [0], [1], [0, 0, 1, 1], [], []>} : vector<16x32xf32>, vector<32x64xf32>, vector<16x64xf32> -> vector<16x64xf32>
    %195 = vector.broadcast %146 : vector<1x64xf32> to vector<16x64xf32>
    %196 = arith.addf %194, %195 : vector<16x64xf32>
    %cst_85 = arith.constant 0.000000e+00 : f32
    %197 = vector.broadcast %cst_85 : f32 to vector<16x64xf32>
    %198 = arith.maximumf %196, %197 : vector<16x64xf32>
    %199 = arith.mulf %198, %198 : vector<16x64xf32>
    %cst_86 = arith.constant dense<0.000000e+00> : vector<16x128xf32>
    %200 = tpu.matmul %199, %153, %cst_86 {dimension_numbers = #tpu.dot_dimension_numbers<[1], [0], [0], [1], [0, 0, 1, 1], [], []>} : vector<16x64xf32>, vector<64x128xf32>, vector<16x128xf32> -> vector<16x128xf32>
    %201 = vector.broadcast %147 : vector<1x128xf32> to vector<16x128xf32>
    %202 = arith.addf %200, %201 : vector<16x128xf32>
    %203 = arith.mulf %202, %185 : vector<16x128xf32>
    %204 = arith.addf %184, %203 : vector<16x128xf32>
    %c3 = arith.constant 3 : index
    %c0_87 = arith.constant 0 : index
    %c0_88 = arith.constant 0 : index
    %205 = vector.load %arg8[%c3, %c0_87, %c0_88] : memref<6x6x128xf32, #tpu.memory_space<vmem>>, vector<1x6x128xf32>
    %206 = vector.shape_cast %205 : vector<1x6x128xf32> to vector<6x128xf32>
    %207 = vector.extract_strided_slice %206 {offsets = [0, 0], sizes = [1, 128], strides = [1, 1]} : vector<6x128xf32> to vector<1x128xf32>
    %208 = vector.extract_strided_slice %206 {offsets = [1, 0], sizes = [1, 32], strides = [1, 1]} : vector<6x128xf32> to vector<1x32xf32>
    %209 = vector.extract_strided_slice %206 {offsets = [2, 0], sizes = [1, 24], strides = [1, 1]} : vector<6x128xf32> to vector<1x24xf32>
    %210 = vector.extract_strided_slice %206 {offsets = [3, 0], sizes = [1, 24], strides = [1, 1]} : vector<6x128xf32> to vector<1x24xf32>
    %211 = vector.extract_strided_slice %206 {offsets = [4, 0], sizes = [1, 64], strides = [1, 1]} : vector<6x128xf32> to vector<1x64xf32>
    %212 = vector.extract_strided_slice %206 {offsets = [5, 0], sizes = [1, 128], strides = [1, 1]} : vector<6x128xf32> to vector<1x128xf32>
    %c3_89 = arith.constant 3 : index
    %c0_90 = arith.constant 0 : index
    %c0_91 = arith.constant 0 : index
    %213 = vector.load %arg5[%c3_89, %c0_90, %c0_91] : memref<6x128x24xf32, #tpu.memory_space<vmem>>, vector<1x128x24xf32>
    %214 = vector.shape_cast %213 : vector<1x128x24xf32> to vector<128x24xf32>
    %c3_92 = arith.constant 3 : index
    %c0_93 = arith.constant 0 : index
    %c0_94 = arith.constant 0 : index
    %215 = vector.load %arg6[%c3_92, %c0_93, %c0_94] : memref<6x32x64xf32, #tpu.memory_space<vmem>>, vector<1x32x64xf32>
    %216 = vector.shape_cast %215 : vector<1x32x64xf32> to vector<32x64xf32>
    %c3_95 = arith.constant 3 : index
    %c0_96 = arith.constant 0 : index
    %c0_97 = arith.constant 0 : index
    %217 = vector.load %arg7[%c3_95, %c0_96, %c0_97] : memref<6x64x128xf32, #tpu.memory_space<vmem>>, vector<1x64x128xf32>
    %218 = vector.shape_cast %217 : vector<1x64x128xf32> to vector<64x128xf32>
    %219 = arith.mulf %204, %204 : vector<16x128xf32>
    %cst_98 = arith.constant dense<0.000000e+00> : vector<16x128xf32>
    %220 = tpu.matmul %219, %0, %cst_98 {dimension_numbers = #tpu.dot_dimension_numbers<[1], [0], [0], [1], [0, 0, 1, 1], [], []>} : vector<16x128xf32>, vector<128x128xf32>, vector<16x128xf32> -> vector<16x128xf32>
    %cst_99 = arith.constant 1.1920929E-7 : f32
    %221 = vector.broadcast %cst_99 : f32 to vector<16x128xf32>
    %222 = arith.addf %220, %221 : vector<16x128xf32>
    %223 = math.rsqrt %222 : vector<16x128xf32>
    %224 = arith.mulf %204, %223 : vector<16x128xf32>
    %225 = vector.broadcast %207 : vector<1x128xf32> to vector<16x128xf32>
    %226 = arith.mulf %224, %225 : vector<16x128xf32>
    %cst_100 = arith.constant dense<0.000000e+00> : vector<16x24xf32>
    %227 = tpu.matmul %226, %214, %cst_100 {dimension_numbers = #tpu.dot_dimension_numbers<[1], [0], [0], [1], [0, 0, 1, 1], [], []>} : vector<16x128xf32>, vector<128x24xf32>, vector<16x24xf32> -> vector<16x24xf32>
    %228 = math.tanh %227 : vector<16x24xf32>
    %229 = vector.broadcast %209 : vector<1x24xf32> to vector<16x24xf32>
    %230 = arith.mulf %228, %229 : vector<16x24xf32>
    %231 = vector.broadcast %210 : vector<1x24xf32> to vector<16x24xf32>
    %232 = arith.addf %230, %231 : vector<16x24xf32>
    %cst_101 = arith.constant dense<0.000000e+00> : vector<16x768xf32>
    %233 = tpu.matmul %232, %3, %cst_101 {dimension_numbers = #tpu.dot_dimension_numbers<[1], [0], [0], [1], [0, 0, 1, 1], [], []>} : vector<16x24xf32>, vector<24x768xf32>, vector<16x768xf32> -> vector<16x768xf32>
    %234 = vector.extract_strided_slice %233 {offsets = [0, 0], sizes = [16, 128], strides = [1, 1]} : vector<16x768xf32> to vector<16x128xf32>
    %235 = arith.mulf %204, %234 : vector<16x128xf32>
    %cst_102 = arith.constant dense<0.000000e+00> : vector<16x32xf32>
    %236 = tpu.matmul %235, %1, %cst_102 {dimension_numbers = #tpu.dot_dimension_numbers<[1], [0], [0], [1], [0, 0, 1, 1], [], []>} : vector<16x128xf32>, vector<128x32xf32>, vector<16x32xf32> -> vector<16x32xf32>
    %237 = vector.extract_strided_slice %233 {offsets = [0, 128], sizes = [16, 128], strides = [1, 1]} : vector<16x768xf32> to vector<16x128xf32>
    %238 = arith.mulf %204, %237 : vector<16x128xf32>
    %cst_103 = arith.constant dense<0.000000e+00> : vector<16x32xf32>
    %239 = tpu.matmul %238, %1, %cst_103 {dimension_numbers = #tpu.dot_dimension_numbers<[1], [0], [0], [1], [0, 0, 1, 1], [], []>} : vector<16x128xf32>, vector<128x32xf32>, vector<16x32xf32> -> vector<16x32xf32>
    %240 = vector.extract_strided_slice %233 {offsets = [0, 256], sizes = [16, 128], strides = [1, 1]} : vector<16x768xf32> to vector<16x128xf32>
    %241 = arith.mulf %204, %240 : vector<16x128xf32>
    %cst_104 = arith.constant dense<0.000000e+00> : vector<16x32xf32>
    %242 = tpu.matmul %241, %1, %cst_104 {dimension_numbers = #tpu.dot_dimension_numbers<[1], [0], [0], [1], [0, 0, 1, 1], [], []>} : vector<16x128xf32>, vector<128x32xf32>, vector<16x32xf32> -> vector<16x32xf32>
    %243 = vector.extract_strided_slice %233 {offsets = [0, 384], sizes = [16, 128], strides = [1, 1]} : vector<16x768xf32> to vector<16x128xf32>
    %244 = arith.mulf %204, %243 : vector<16x128xf32>
    %cst_105 = arith.constant dense<0.000000e+00> : vector<16x32xf32>
    %245 = tpu.matmul %244, %1, %cst_105 {dimension_numbers = #tpu.dot_dimension_numbers<[1], [0], [0], [1], [0, 0, 1, 1], [], []>} : vector<16x128xf32>, vector<128x32xf32>, vector<16x32xf32> -> vector<16x32xf32>
    %246 = vector.extract_strided_slice %233 {offsets = [0, 512], sizes = [16, 128], strides = [1, 1]} : vector<16x768xf32> to vector<16x128xf32>
    %247 = arith.mulf %204, %246 : vector<16x128xf32>
    %cst_106 = arith.constant dense<0.000000e+00> : vector<16x32xf32>
    %248 = tpu.matmul %247, %1, %cst_106 {dimension_numbers = #tpu.dot_dimension_numbers<[1], [0], [0], [1], [0, 0, 1, 1], [], []>} : vector<16x128xf32>, vector<128x32xf32>, vector<16x32xf32> -> vector<16x32xf32>
    %249 = tpu.concatenate %236, %239, %242, %245 in 1 : vector<16x32xf32>, vector<16x32xf32>, vector<16x32xf32>, vector<16x32xf32> -> vector<16x128xf32>
    %250 = vector.extract_strided_slice %233 {offsets = [0, 640], sizes = [16, 128], strides = [1, 1]} : vector<16x768xf32> to vector<16x128xf32>
    %251 = arith.mulf %248, %248 : vector<16x32xf32>
    %cst_107 = arith.constant dense<0.000000e+00> : vector<16x32xf32>
    %252 = tpu.matmul %251, %2, %cst_107 {dimension_numbers = #tpu.dot_dimension_numbers<[1], [0], [0], [1], [0, 0, 1, 1], [], []>} : vector<16x32xf32>, vector<32x32xf32>, vector<16x32xf32> -> vector<16x32xf32>
    %cst_108 = arith.constant 1.1920929E-7 : f32
    %253 = vector.broadcast %cst_108 : f32 to vector<16x32xf32>
    %254 = arith.addf %252, %253 : vector<16x32xf32>
    %255 = math.rsqrt %254 : vector<16x32xf32>
    %256 = arith.mulf %248, %255 : vector<16x32xf32>
    %257 = vector.broadcast %208 : vector<1x32xf32> to vector<16x32xf32>
    %258 = arith.mulf %256, %257 : vector<16x32xf32>
    %cst_109 = arith.constant dense<0.000000e+00> : vector<16x64xf32>
    %259 = tpu.matmul %258, %216, %cst_109 {dimension_numbers = #tpu.dot_dimension_numbers<[1], [0], [0], [1], [0, 0, 1, 1], [], []>} : vector<16x32xf32>, vector<32x64xf32>, vector<16x64xf32> -> vector<16x64xf32>
    %260 = vector.broadcast %211 : vector<1x64xf32> to vector<16x64xf32>
    %261 = arith.addf %259, %260 : vector<16x64xf32>
    %cst_110 = arith.constant 0.000000e+00 : f32
    %262 = vector.broadcast %cst_110 : f32 to vector<16x64xf32>
    %263 = arith.maximumf %261, %262 : vector<16x64xf32>
    %264 = arith.mulf %263, %263 : vector<16x64xf32>
    %cst_111 = arith.constant dense<0.000000e+00> : vector<16x128xf32>
    %265 = tpu.matmul %264, %218, %cst_111 {dimension_numbers = #tpu.dot_dimension_numbers<[1], [0], [0], [1], [0, 0, 1, 1], [], []>} : vector<16x64xf32>, vector<64x128xf32>, vector<16x128xf32> -> vector<16x128xf32>
    %266 = vector.broadcast %212 : vector<1x128xf32> to vector<16x128xf32>
    %267 = arith.addf %265, %266 : vector<16x128xf32>
    %268 = arith.mulf %267, %250 : vector<16x128xf32>
    %269 = arith.addf %249, %268 : vector<16x128xf32>
    %c4 = arith.constant 4 : index
    %c0_112 = arith.constant 0 : index
    %c0_113 = arith.constant 0 : index
    %270 = vector.load %arg8[%c4, %c0_112, %c0_113] : memref<6x6x128xf32, #tpu.memory_space<vmem>>, vector<1x6x128xf32>
    %271 = vector.shape_cast %270 : vector<1x6x128xf32> to vector<6x128xf32>
    %272 = vector.extract_strided_slice %271 {offsets = [0, 0], sizes = [1, 128], strides = [1, 1]} : vector<6x128xf32> to vector<1x128xf32>
    %273 = vector.extract_strided_slice %271 {offsets = [1, 0], sizes = [1, 32], strides = [1, 1]} : vector<6x128xf32> to vector<1x32xf32>
    %274 = vector.extract_strided_slice %271 {offsets = [2, 0], sizes = [1, 24], strides = [1, 1]} : vector<6x128xf32> to vector<1x24xf32>
    %275 = vector.extract_strided_slice %271 {offsets = [3, 0], sizes = [1, 24], strides = [1, 1]} : vector<6x128xf32> to vector<1x24xf32>
    %276 = vector.extract_strided_slice %271 {offsets = [4, 0], sizes = [1, 64], strides = [1, 1]} : vector<6x128xf32> to vector<1x64xf32>
    %277 = vector.extract_strided_slice %271 {offsets = [5, 0], sizes = [1, 128], strides = [1, 1]} : vector<6x128xf32> to vector<1x128xf32>
    %c4_114 = arith.constant 4 : index
    %c0_115 = arith.constant 0 : index
    %c0_116 = arith.constant 0 : index
    %278 = vector.load %arg5[%c4_114, %c0_115, %c0_116] : memref<6x128x24xf32, #tpu.memory_space<vmem>>, vector<1x128x24xf32>
    %279 = vector.shape_cast %278 : vector<1x128x24xf32> to vector<128x24xf32>
    %c4_117 = arith.constant 4 : index
    %c0_118 = arith.constant 0 : index
    %c0_119 = arith.constant 0 : index
    %280 = vector.load %arg6[%c4_117, %c0_118, %c0_119] : memref<6x32x64xf32, #tpu.memory_space<vmem>>, vector<1x32x64xf32>
    %281 = vector.shape_cast %280 : vector<1x32x64xf32> to vector<32x64xf32>
    %c4_120 = arith.constant 4 : index
    %c0_121 = arith.constant 0 : index
    %c0_122 = arith.constant 0 : index
    %282 = vector.load %arg7[%c4_120, %c0_121, %c0_122] : memref<6x64x128xf32, #tpu.memory_space<vmem>>, vector<1x64x128xf32>
    %283 = vector.shape_cast %282 : vector<1x64x128xf32> to vector<64x128xf32>
    %284 = arith.mulf %269, %269 : vector<16x128xf32>
    %cst_123 = arith.constant dense<0.000000e+00> : vector<16x128xf32>
    %285 = tpu.matmul %284, %0, %cst_123 {dimension_numbers = #tpu.dot_dimension_numbers<[1], [0], [0], [1], [0, 0, 1, 1], [], []>} : vector<16x128xf32>, vector<128x128xf32>, vector<16x128xf32> -> vector<16x128xf32>
    %cst_124 = arith.constant 1.1920929E-7 : f32
    %286 = vector.broadcast %cst_124 : f32 to vector<16x128xf32>
    %287 = arith.addf %285, %286 : vector<16x128xf32>
    %288 = math.rsqrt %287 : vector<16x128xf32>
    %289 = arith.mulf %269, %288 : vector<16x128xf32>
    %290 = vector.broadcast %272 : vector<1x128xf32> to vector<16x128xf32>
    %291 = arith.mulf %289, %290 : vector<16x128xf32>
    %cst_125 = arith.constant dense<0.000000e+00> : vector<16x24xf32>
    %292 = tpu.matmul %291, %279, %cst_125 {dimension_numbers = #tpu.dot_dimension_numbers<[1], [0], [0], [1], [0, 0, 1, 1], [], []>} : vector<16x128xf32>, vector<128x24xf32>, vector<16x24xf32> -> vector<16x24xf32>
    %293 = math.tanh %292 : vector<16x24xf32>
    %294 = vector.broadcast %274 : vector<1x24xf32> to vector<16x24xf32>
    %295 = arith.mulf %293, %294 : vector<16x24xf32>
    %296 = vector.broadcast %275 : vector<1x24xf32> to vector<16x24xf32>
    %297 = arith.addf %295, %296 : vector<16x24xf32>
    %cst_126 = arith.constant dense<0.000000e+00> : vector<16x768xf32>
    %298 = tpu.matmul %297, %3, %cst_126 {dimension_numbers = #tpu.dot_dimension_numbers<[1], [0], [0], [1], [0, 0, 1, 1], [], []>} : vector<16x24xf32>, vector<24x768xf32>, vector<16x768xf32> -> vector<16x768xf32>
    %299 = vector.extract_strided_slice %298 {offsets = [0, 0], sizes = [16, 128], strides = [1, 1]} : vector<16x768xf32> to vector<16x128xf32>
    %300 = arith.mulf %269, %299 : vector<16x128xf32>
    %cst_127 = arith.constant dense<0.000000e+00> : vector<16x32xf32>
    %301 = tpu.matmul %300, %1, %cst_127 {dimension_numbers = #tpu.dot_dimension_numbers<[1], [0], [0], [1], [0, 0, 1, 1], [], []>} : vector<16x128xf32>, vector<128x32xf32>, vector<16x32xf32> -> vector<16x32xf32>
    %302 = vector.extract_strided_slice %298 {offsets = [0, 128], sizes = [16, 128], strides = [1, 1]} : vector<16x768xf32> to vector<16x128xf32>
    %303 = arith.mulf %269, %302 : vector<16x128xf32>
    %cst_128 = arith.constant dense<0.000000e+00> : vector<16x32xf32>
    %304 = tpu.matmul %303, %1, %cst_128 {dimension_numbers = #tpu.dot_dimension_numbers<[1], [0], [0], [1], [0, 0, 1, 1], [], []>} : vector<16x128xf32>, vector<128x32xf32>, vector<16x32xf32> -> vector<16x32xf32>
    %305 = vector.extract_strided_slice %298 {offsets = [0, 256], sizes = [16, 128], strides = [1, 1]} : vector<16x768xf32> to vector<16x128xf32>
    %306 = arith.mulf %269, %305 : vector<16x128xf32>
    %cst_129 = arith.constant dense<0.000000e+00> : vector<16x32xf32>
    %307 = tpu.matmul %306, %1, %cst_129 {dimension_numbers = #tpu.dot_dimension_numbers<[1], [0], [0], [1], [0, 0, 1, 1], [], []>} : vector<16x128xf32>, vector<128x32xf32>, vector<16x32xf32> -> vector<16x32xf32>
    %308 = vector.extract_strided_slice %298 {offsets = [0, 384], sizes = [16, 128], strides = [1, 1]} : vector<16x768xf32> to vector<16x128xf32>
    %309 = arith.mulf %269, %308 : vector<16x128xf32>
    %cst_130 = arith.constant dense<0.000000e+00> : vector<16x32xf32>
    %310 = tpu.matmul %309, %1, %cst_130 {dimension_numbers = #tpu.dot_dimension_numbers<[1], [0], [0], [1], [0, 0, 1, 1], [], []>} : vector<16x128xf32>, vector<128x32xf32>, vector<16x32xf32> -> vector<16x32xf32>
    %311 = vector.extract_strided_slice %298 {offsets = [0, 512], sizes = [16, 128], strides = [1, 1]} : vector<16x768xf32> to vector<16x128xf32>
    %312 = arith.mulf %269, %311 : vector<16x128xf32>
    %cst_131 = arith.constant dense<0.000000e+00> : vector<16x32xf32>
    %313 = tpu.matmul %312, %1, %cst_131 {dimension_numbers = #tpu.dot_dimension_numbers<[1], [0], [0], [1], [0, 0, 1, 1], [], []>} : vector<16x128xf32>, vector<128x32xf32>, vector<16x32xf32> -> vector<16x32xf32>
    %314 = tpu.concatenate %301, %304, %307, %310 in 1 : vector<16x32xf32>, vector<16x32xf32>, vector<16x32xf32>, vector<16x32xf32> -> vector<16x128xf32>
    %315 = vector.extract_strided_slice %298 {offsets = [0, 640], sizes = [16, 128], strides = [1, 1]} : vector<16x768xf32> to vector<16x128xf32>
    %316 = arith.mulf %313, %313 : vector<16x32xf32>
    %cst_132 = arith.constant dense<0.000000e+00> : vector<16x32xf32>
    %317 = tpu.matmul %316, %2, %cst_132 {dimension_numbers = #tpu.dot_dimension_numbers<[1], [0], [0], [1], [0, 0, 1, 1], [], []>} : vector<16x32xf32>, vector<32x32xf32>, vector<16x32xf32> -> vector<16x32xf32>
    %cst_133 = arith.constant 1.1920929E-7 : f32
    %318 = vector.broadcast %cst_133 : f32 to vector<16x32xf32>
    %319 = arith.addf %317, %318 : vector<16x32xf32>
    %320 = math.rsqrt %319 : vector<16x32xf32>
    %321 = arith.mulf %313, %320 : vector<16x32xf32>
    %322 = vector.broadcast %273 : vector<1x32xf32> to vector<16x32xf32>
    %323 = arith.mulf %321, %322 : vector<16x32xf32>
    %cst_134 = arith.constant dense<0.000000e+00> : vector<16x64xf32>
    %324 = tpu.matmul %323, %281, %cst_134 {dimension_numbers = #tpu.dot_dimension_numbers<[1], [0], [0], [1], [0, 0, 1, 1], [], []>} : vector<16x32xf32>, vector<32x64xf32>, vector<16x64xf32> -> vector<16x64xf32>
    %325 = vector.broadcast %276 : vector<1x64xf32> to vector<16x64xf32>
    %326 = arith.addf %324, %325 : vector<16x64xf32>
    %cst_135 = arith.constant 0.000000e+00 : f32
    %327 = vector.broadcast %cst_135 : f32 to vector<16x64xf32>
    %328 = arith.maximumf %326, %327 : vector<16x64xf32>
    %329 = arith.mulf %328, %328 : vector<16x64xf32>
    %cst_136 = arith.constant dense<0.000000e+00> : vector<16x128xf32>
    %330 = tpu.matmul %329, %283, %cst_136 {dimension_numbers = #tpu.dot_dimension_numbers<[1], [0], [0], [1], [0, 0, 1, 1], [], []>} : vector<16x64xf32>, vector<64x128xf32>, vector<16x128xf32> -> vector<16x128xf32>
    %331 = vector.broadcast %277 : vector<1x128xf32> to vector<16x128xf32>
    %332 = arith.addf %330, %331 : vector<16x128xf32>
    %333 = arith.mulf %332, %315 : vector<16x128xf32>
    %334 = arith.addf %314, %333 : vector<16x128xf32>
    %c5 = arith.constant 5 : index
    %c0_137 = arith.constant 0 : index
    %c0_138 = arith.constant 0 : index
    %335 = vector.load %arg8[%c5, %c0_137, %c0_138] : memref<6x6x128xf32, #tpu.memory_space<vmem>>, vector<1x6x128xf32>
    %336 = vector.shape_cast %335 : vector<1x6x128xf32> to vector<6x128xf32>
    %337 = vector.extract_strided_slice %336 {offsets = [0, 0], sizes = [1, 128], strides = [1, 1]} : vector<6x128xf32> to vector<1x128xf32>
    %338 = vector.extract_strided_slice %336 {offsets = [1, 0], sizes = [1, 32], strides = [1, 1]} : vector<6x128xf32> to vector<1x32xf32>
    %339 = vector.extract_strided_slice %336 {offsets = [2, 0], sizes = [1, 24], strides = [1, 1]} : vector<6x128xf32> to vector<1x24xf32>
    %340 = vector.extract_strided_slice %336 {offsets = [3, 0], sizes = [1, 24], strides = [1, 1]} : vector<6x128xf32> to vector<1x24xf32>
    %341 = vector.extract_strided_slice %336 {offsets = [4, 0], sizes = [1, 64], strides = [1, 1]} : vector<6x128xf32> to vector<1x64xf32>
    %342 = vector.extract_strided_slice %336 {offsets = [5, 0], sizes = [1, 128], strides = [1, 1]} : vector<6x128xf32> to vector<1x128xf32>
    %c5_139 = arith.constant 5 : index
    %c0_140 = arith.constant 0 : index
    %c0_141 = arith.constant 0 : index
    %343 = vector.load %arg5[%c5_139, %c0_140, %c0_141] : memref<6x128x24xf32, #tpu.memory_space<vmem>>, vector<1x128x24xf32>
    %344 = vector.shape_cast %343 : vector<1x128x24xf32> to vector<128x24xf32>
    %c5_142 = arith.constant 5 : index
    %c0_143 = arith.constant 0 : index
    %c0_144 = arith.constant 0 : index
    %345 = vector.load %arg6[%c5_142, %c0_143, %c0_144] : memref<6x32x64xf32, #tpu.memory_space<vmem>>, vector<1x32x64xf32>
    %346 = vector.shape_cast %345 : vector<1x32x64xf32> to vector<32x64xf32>
    %c5_145 = arith.constant 5 : index
    %c0_146 = arith.constant 0 : index
    %c0_147 = arith.constant 0 : index
    %347 = vector.load %arg7[%c5_145, %c0_146, %c0_147] : memref<6x64x128xf32, #tpu.memory_space<vmem>>, vector<1x64x128xf32>
    %348 = vector.shape_cast %347 : vector<1x64x128xf32> to vector<64x128xf32>
    %349 = arith.mulf %334, %334 : vector<16x128xf32>
    %cst_148 = arith.constant dense<0.000000e+00> : vector<16x128xf32>
    %350 = tpu.matmul %349, %0, %cst_148 {dimension_numbers = #tpu.dot_dimension_numbers<[1], [0], [0], [1], [0, 0, 1, 1], [], []>} : vector<16x128xf32>, vector<128x128xf32>, vector<16x128xf32> -> vector<16x128xf32>
    %cst_149 = arith.constant 1.1920929E-7 : f32
    %351 = vector.broadcast %cst_149 : f32 to vector<16x128xf32>
    %352 = arith.addf %350, %351 : vector<16x128xf32>
    %353 = math.rsqrt %352 : vector<16x128xf32>
    %354 = arith.mulf %334, %353 : vector<16x128xf32>
    %355 = vector.broadcast %337 : vector<1x128xf32> to vector<16x128xf32>
    %356 = arith.mulf %354, %355 : vector<16x128xf32>
    %cst_150 = arith.constant dense<0.000000e+00> : vector<16x24xf32>
    %357 = tpu.matmul %356, %344, %cst_150 {dimension_numbers = #tpu.dot_dimension_numbers<[1], [0], [0], [1], [0, 0, 1, 1], [], []>} : vector<16x128xf32>, vector<128x24xf32>, vector<16x24xf32> -> vector<16x24xf32>
    %358 = math.tanh %357 : vector<16x24xf32>
    %359 = vector.broadcast %339 : vector<1x24xf32> to vector<16x24xf32>
    %360 = arith.mulf %358, %359 : vector<16x24xf32>
    %361 = vector.broadcast %340 : vector<1x24xf32> to vector<16x24xf32>
    %362 = arith.addf %360, %361 : vector<16x24xf32>
    %cst_151 = arith.constant dense<0.000000e+00> : vector<16x768xf32>
    %363 = tpu.matmul %362, %3, %cst_151 {dimension_numbers = #tpu.dot_dimension_numbers<[1], [0], [0], [1], [0, 0, 1, 1], [], []>} : vector<16x24xf32>, vector<24x768xf32>, vector<16x768xf32> -> vector<16x768xf32>
    %364 = vector.extract_strided_slice %363 {offsets = [0, 0], sizes = [16, 128], strides = [1, 1]} : vector<16x768xf32> to vector<16x128xf32>
    %365 = arith.mulf %334, %364 : vector<16x128xf32>
    %cst_152 = arith.constant dense<0.000000e+00> : vector<16x32xf32>
    %366 = tpu.matmul %365, %1, %cst_152 {dimension_numbers = #tpu.dot_dimension_numbers<[1], [0], [0], [1], [0, 0, 1, 1], [], []>} : vector<16x128xf32>, vector<128x32xf32>, vector<16x32xf32> -> vector<16x32xf32>
    %367 = vector.extract_strided_slice %363 {offsets = [0, 128], sizes = [16, 128], strides = [1, 1]} : vector<16x768xf32> to vector<16x128xf32>
    %368 = arith.mulf %334, %367 : vector<16x128xf32>
    %cst_153 = arith.constant dense<0.000000e+00> : vector<16x32xf32>
    %369 = tpu.matmul %368, %1, %cst_153 {dimension_numbers = #tpu.dot_dimension_numbers<[1], [0], [0], [1], [0, 0, 1, 1], [], []>} : vector<16x128xf32>, vector<128x32xf32>, vector<16x32xf32> -> vector<16x32xf32>
    %370 = vector.extract_strided_slice %363 {offsets = [0, 256], sizes = [16, 128], strides = [1, 1]} : vector<16x768xf32> to vector<16x128xf32>
    %371 = arith.mulf %334, %370 : vector<16x128xf32>
    %cst_154 = arith.constant dense<0.000000e+00> : vector<16x32xf32>
    %372 = tpu.matmul %371, %1, %cst_154 {dimension_numbers = #tpu.dot_dimension_numbers<[1], [0], [0], [1], [0, 0, 1, 1], [], []>} : vector<16x128xf32>, vector<128x32xf32>, vector<16x32xf32> -> vector<16x32xf32>
    %373 = vector.extract_strided_slice %363 {offsets = [0, 384], sizes = [16, 128], strides = [1, 1]} : vector<16x768xf32> to vector<16x128xf32>
    %374 = arith.mulf %334, %373 : vector<16x128xf32>
    %cst_155 = arith.constant dense<0.000000e+00> : vector<16x32xf32>
    %375 = tpu.matmul %374, %1, %cst_155 {dimension_numbers = #tpu.dot_dimension_numbers<[1], [0], [0], [1], [0, 0, 1, 1], [], []>} : vector<16x128xf32>, vector<128x32xf32>, vector<16x32xf32> -> vector<16x32xf32>
    %376 = vector.extract_strided_slice %363 {offsets = [0, 512], sizes = [16, 128], strides = [1, 1]} : vector<16x768xf32> to vector<16x128xf32>
    %377 = arith.mulf %334, %376 : vector<16x128xf32>
    %cst_156 = arith.constant dense<0.000000e+00> : vector<16x32xf32>
    %378 = tpu.matmul %377, %1, %cst_156 {dimension_numbers = #tpu.dot_dimension_numbers<[1], [0], [0], [1], [0, 0, 1, 1], [], []>} : vector<16x128xf32>, vector<128x32xf32>, vector<16x32xf32> -> vector<16x32xf32>
    %379 = tpu.concatenate %366, %369, %372, %375 in 1 : vector<16x32xf32>, vector<16x32xf32>, vector<16x32xf32>, vector<16x32xf32> -> vector<16x128xf32>
    %380 = vector.extract_strided_slice %363 {offsets = [0, 640], sizes = [16, 128], strides = [1, 1]} : vector<16x768xf32> to vector<16x128xf32>
    %381 = arith.mulf %378, %378 : vector<16x32xf32>
    %cst_157 = arith.constant dense<0.000000e+00> : vector<16x32xf32>
    %382 = tpu.matmul %381, %2, %cst_157 {dimension_numbers = #tpu.dot_dimension_numbers<[1], [0], [0], [1], [0, 0, 1, 1], [], []>} : vector<16x32xf32>, vector<32x32xf32>, vector<16x32xf32> -> vector<16x32xf32>
    %cst_158 = arith.constant 1.1920929E-7 : f32
    %383 = vector.broadcast %cst_158 : f32 to vector<16x32xf32>
    %384 = arith.addf %382, %383 : vector<16x32xf32>
    %385 = math.rsqrt %384 : vector<16x32xf32>
    %386 = arith.mulf %378, %385 : vector<16x32xf32>
    %387 = vector.broadcast %338 : vector<1x32xf32> to vector<16x32xf32>
    %388 = arith.mulf %386, %387 : vector<16x32xf32>
    %cst_159 = arith.constant dense<0.000000e+00> : vector<16x64xf32>
    %389 = tpu.matmul %388, %346, %cst_159 {dimension_numbers = #tpu.dot_dimension_numbers<[1], [0], [0], [1], [0, 0, 1, 1], [], []>} : vector<16x32xf32>, vector<32x64xf32>, vector<16x64xf32> -> vector<16x64xf32>
    %390 = vector.broadcast %341 : vector<1x64xf32> to vector<16x64xf32>
    %391 = arith.addf %389, %390 : vector<16x64xf32>
    %cst_160 = arith.constant 0.000000e+00 : f32
    %392 = vector.broadcast %cst_160 : f32 to vector<16x64xf32>
    %393 = arith.maximumf %391, %392 : vector<16x64xf32>
    %394 = arith.mulf %393, %393 : vector<16x64xf32>
    %cst_161 = arith.constant dense<0.000000e+00> : vector<16x128xf32>
    %395 = tpu.matmul %394, %348, %cst_161 {dimension_numbers = #tpu.dot_dimension_numbers<[1], [0], [0], [1], [0, 0, 1, 1], [], []>} : vector<16x64xf32>, vector<64x128xf32>, vector<16x128xf32> -> vector<16x128xf32>
    %396 = vector.broadcast %342 : vector<1x128xf32> to vector<16x128xf32>
    %397 = arith.addf %395, %396 : vector<16x128xf32>
    %398 = arith.mulf %397, %380 : vector<16x128xf32>
    %399 = arith.addf %379, %398 : vector<16x128xf32>
    %cst_162 = arith.constant dense<0.000000e+00> : vector<16x32xf32>
    %400 = tpu.matmul %399, %1, %cst_162 {dimension_numbers = #tpu.dot_dimension_numbers<[1], [0], [0], [1], [0, 0, 1, 1], [], []>} : vector<16x128xf32>, vector<128x32xf32>, vector<16x32xf32> -> vector<16x32xf32>
    %401 = arith.mulf %400, %400 : vector<16x32xf32>
    %cst_163 = arith.constant dense<0.000000e+00> : vector<16x32xf32>
    %402 = tpu.matmul %401, %2, %cst_163 {dimension_numbers = #tpu.dot_dimension_numbers<[1], [0], [0], [1], [0, 0, 1, 1], [], []>} : vector<16x32xf32>, vector<32x32xf32>, vector<16x32xf32> -> vector<16x32xf32>
    %cst_164 = arith.constant 1.1920929E-7 : f32
    %403 = vector.broadcast %cst_164 : f32 to vector<16x32xf32>
    %404 = arith.addf %402, %403 : vector<16x32xf32>
    %405 = math.rsqrt %404 : vector<16x32xf32>
    %406 = arith.mulf %400, %405 : vector<16x32xf32>
    %c1_165 = arith.constant 1 : index
    %c0_166 = arith.constant 0 : index
    %407 = vector.load %arg2[%c1_165, %c0_166] : memref<2x128xf32, #tpu.memory_space<vmem>>, vector<1x32xf32>
    %408 = vector.broadcast %407 : vector<1x32xf32> to vector<16x32xf32>
    %409 = arith.mulf %406, %408 : vector<16x32xf32>
    %c1_167 = arith.constant 1 : index
    %c32 = arith.constant 32 : index
    %410 = vector.load %arg2[%c1_167, %c32] : memref<2x128xf32, #tpu.memory_space<vmem>>, vector<1x32xf32>
    %411 = vector.broadcast %410 : vector<1x32xf32> to vector<16x32xf32>
    %412 = arith.mulf %409, %411 : vector<16x32xf32>
    %cst_168 = arith.constant dense<0.000000e+00> : vector<16xf32>
    %413 = vector.multi_reduction <add>, %412, %cst_168 [1] : vector<16x32xf32> to vector<16xf32>
    %414 = vector.shape_cast %413 : vector<16xf32> to vector<16x1xf32>
    %c1_169 = arith.constant 1 : index
    %c64 = arith.constant 64 : index
    %415 = vector.load %arg2[%c1_169, %c64] : memref<2x128xf32, #tpu.memory_space<vmem>>, vector<1x1xf32>
    %416 = vector.broadcast %415 : vector<1x1xf32> to vector<16x1xf32>
    %417 = arith.addf %414, %416 : vector<16x1xf32>
    %c0_170 = arith.constant 0 : index
    %c0_171 = arith.constant 0 : index
    %418 = vector.load %arg9[%c0_170, %c0_171] : memref<16x1xf32, #tpu.memory_space<vmem>>, vector<16x1xf32>
    tpu.vector_store %arg9[%c0_170, %c0_171], %417 {strides = array<i32>} : memref<16x1xf32, #tpu.memory_space<vmem>>, vector<16x1xf32>,
    return
  }
}

</mosaic_0001>

<llo_original>
// kernel: critic_forward.1
$region0: #{critic_forward.1}
  #allocation0 [shape = 'u32[]', space=smem, size = 0x4, offset = 0x4, fixed_abs, tag = 'smem constant byte address 0x4 - core index']
  #allocation1 [shape = 'u32[144,128]{1,0:T(1,128)}', space=vmem, size = 0x12000, scoped, tag = 'internal scratch']
  %s0 = inlined_call_operand.vmem [shape: f32[16,16], index: 0, kind: input, shape index: {}]
  %s1 = inlined_call_operand.vmem [shape: f32[16,128], index: 1, kind: input, shape index: {}]
  %s2 = inlined_call_operand.vmem [shape: f32[2,128], index: 2, kind: input, shape index: {}]
  %s3 = inlined_call_operand.vmem [shape: f32[128,192], index: 3, kind: input, shape index: {}]
  %s4 = inlined_call_operand.vmem [shape: f32[24,768], index: 4, kind: input, shape index: {}]
  %s5 = inlined_call_operand.vmem [shape: f32[6,128,24], index: 5, kind: input, shape index: {}]
  %s6 = inlined_call_operand.vmem [shape: f32[6,32,64], index: 6, kind: input, shape index: {}]
  %s7 = inlined_call_operand.vmem [shape: f32[6,64,128], index: 7, kind: input, shape index: {}]
  %s8 = inlined_call_operand.vmem [shape: f32[6,6,128], index: 8, kind: input, shape index: {}]
  %s9 = inlined_call_operand.vmem [shape: f32[16,1], index: 9, kind: output, shape index: {}]
  %s10 = sld [smem:[#allocation0]]
  $region46: #{critic_forward.1} parent=0
    _
  %s12 = ssub.s32 1, %s10
  %s13 = scalar_select 0, %s12, %s10
  // Predicated region
  $region2: #{critic_forward.1} parent=0 // pred_check
    _
  $region3: #{critic_forward.1} parent=0 // pred_check_branch
    %15 = sbr.rel (0) target = $region5
  $region4: #{critic_forward.1} parent=0 // pred_region
    _
  $region5: #{critic_forward.1} parent=0 // pred_fallthru
    _
  // Predicated region
  $region6: #{critic_forward.1} parent=0 // pred_check
    _
  $region7: #{critic_forward.1} parent=0 // pred_check_branch
    %17 = sbr.rel (0) target = $region9
  $region8: #{critic_forward.1} parent=0 // pred_region
    _
  $region9: #{critic_forward.1} parent=0 // pred_fallthru
    _
  // Predicated region
  $region10: #{critic_forward.1} parent=0 // pred_check
    _
  $region11: #{critic_forward.1} parent=0 // pred_check_branch
    %19 = sbr.rel (0) target = $region13
  $region12: #{critic_forward.1} parent=0 // pred_region
    _
  $region13: #{critic_forward.1} parent=0 // pred_fallthru
    _
  // Predicated region
  $region14: #{critic_forward.1} parent=0 // pred_check
    _
  $region15: #{critic_forward.1} parent=0 // pred_check_branch
    %21 = sbr.rel (0) target = $region17
  $region16: #{critic_forward.1} parent=0 // pred_region
    _
  $region17: #{critic_forward.1} parent=0 // pred_fallthru
    _
  // Predicated region
  $region18: #{critic_forward.1} parent=0 // pred_check
    _
  $region19: #{critic_forward.1} parent=0 // pred_check_branch
    %23 = sbr.rel (0) target = $region21
  $region20: #{critic_forward.1} parent=0 // pred_region
    _
  $region21: #{critic_forward.1} parent=0 // pred_fallthru
    _
  // Predicated region
  $region22: #{critic_forward.1} parent=0 // pred_check
    _
  $region23: #{critic_forward.1} parent=0 // pred_check_branch
    %25 = sbr.rel (0) target = $region25
  $region24: #{critic_forward.1} parent=0 // pred_region
    _
  $region25: #{critic_forward.1} parent=0 // pred_fallthru
    _
  // Predicated region
  $region26: #{critic_forward.1} parent=0 // pred_check
    _
  $region27: #{critic_forward.1} parent=0 // pred_check_branch
    %27 = sbr.rel (0) target = $region29
  $region28: #{critic_forward.1} parent=0 // pred_region
    _
  $region29: #{critic_forward.1} parent=0 // pred_fallthru
    _
  // Predicated region
  $region30: #{critic_forward.1} parent=0 // pred_check
    _
  $region31: #{critic_forward.1} parent=0 // pred_check_branch
    %29 = sbr.rel (0) target = $region33
  $region32: #{critic_forward.1} parent=0 // pred_region
    _
  $region33: #{critic_forward.1} parent=0 // pred_fallthru
    _
  // Predicated region
  $region34: #{critic_forward.1} parent=0 // pred_check
    _
  $region35: #{critic_forward.1} parent=0 // pred_check_branch
    %31 = sbr.rel (0) target = $region37
  $region36: #{critic_forward.1} parent=0 // pred_region
    _
  $region37: #{critic_forward.1} parent=0 // pred_fallthru
    _
  %v32 = vld [vmem:[%s3] sm:$0xff]
  %v33 = vld [vmem:[%s3 + $0x10] sm:$0xff]
  %v34 = vld [vmem:[%s3 + $0x20] sm:$0xff]
  %v35 = vld [vmem:[%s3 + $0x30] sm:$0xff]
  %v36 = vld [vmem:[%s3 + $0x40] sm:$0xff]
  %v37 = vld [vmem:[%s3 + $0x50] sm:$0xff]
  %v38 = vld [vmem:[%s3 + $0x60] sm:$0xff]
  %v39 = vld [vmem:[%s3 + $0x70] sm:$0xff]
  %v40 = vld [vmem:[%s3 + $0x80] sm:$0xff]
  %v41 = vld [vmem:[%s3 + $0x90] sm:$0xff]
  %v42 = vld [vmem:[%s3 + $0xa0] sm:$0xff]
  %v43 = vld [vmem:[%s3 + $0xb0] sm:$0xff]
  %v44 = vld [vmem:[%s3 + $0xc0] sm:$0xff]
  %v45 = vld [vmem:[%s3 + $0xd0] sm:$0xff]
  %v46 = vld [vmem:[%s3 + $0xe0] sm:$0xff]
  %v47 = vld [vmem:[%s3 + $0xf0] sm:$0xff]
  %v48 = vld [vmem:[%s3 + $0x8] sm:$0xff]
  %v49 = vld [vmem:[%s3 + $0x18] sm:$0xff]
  %v50 = vld [vmem:[%s3 + $0x28] sm:$0xff]
  %v51 = vld [vmem:[%s3 + $0x38] sm:$0xff]
  %v52 = vld [vmem:[%s3 + $0x48] sm:$0xff]
  %v53 = vld [vmem:[%s3 + $0x58] sm:$0xff]
  %v54 = vld [vmem:[%s3 + $0x68] sm:$0xff]
  %v55 = vld [vmem:[%s3 + $0x78] sm:$0xff]
  %v56 = vld [vmem:[%s3 + $0x88] sm:$0xff]
  %v57 = vld [vmem:[%s3 + $0x98] sm:$0xff]
  %v58 = vld [vmem:[%s3 + $0xa8] sm:$0xff]
  %v59 = vld [vmem:[%s3 + $0xb8] sm:$0xff]
  %v60 = vld [vmem:[%s3 + $0xc8] sm:$0xff]
  %v61 = vld [vmem:[%s3 + $0xd8] sm:$0xff]
  %v62 = vld [vmem:[%s3 + $0xe8] sm:$0xff]
  %v63 = vld [vmem:[%s3 + $0xf8] sm:$0xff]
  %v64 = vld [vmem:[%s4] sm:$0xff]
  %v65 = vld [vmem:[%s4 + $0x8] sm:$0xff]
  %v66 = vld [vmem:[%s4 + $0x10] sm:$0xff]
  %v67 = vld [vmem:[%s4 + $0x18] sm:$0xff]
  %v68 = vld [vmem:[%s4 + $0x20] sm:$0xff]
  %v69 = vld [vmem:[%s4 + $0x28] sm:$0xff]
  %v70 = vld [vmem:[%s4 + $0x30] sm:$0xff]
  %v71 = vld [vmem:[%s4 + $0x38] sm:$0xff]
  %v72 = vld [vmem:[%s4 + $0x40] sm:$0xff]
  %v73 = vld [vmem:[%s4 + $0x48] sm:$0xff]
  %v74 = vld [vmem:[%s4 + $0x50] sm:$0xff]
  %v75 = vld [vmem:[%s4 + $0x58] sm:$0xff]
  %v76 = vld [vmem:[%s4 + $0x60] sm:$0xff]
  %v77 = vld [vmem:[%s4 + $0x68] sm:$0xff]
  %v78 = vld [vmem:[%s4 + $0x70] sm:$0xff]
  %v79 = vld [vmem:[%s4 + $0x78] sm:$0xff]
  %v80 = vld [vmem:[%s4 + $0x80] sm:$0xff]
  %v81 = vld [vmem:[%s4 + $0x88] sm:$0xff]
  %v82 = vld [vmem:[%s0] sm:$0xff]
  %v83 = vld [vmem:[%s0 + $0x8] sm:$0xff]
  %v84 = vld [vmem:[%s1] sm:$0xff]
  %v85 = vld [vmem:[%s1 + $0x8] sm:$0xff]
  %v86 = vld [vmem:[%s2] sm:$0x1]
  %v87 = vlaneseq
  %v88 = vshrl.u32 %v87, 7
  %v89 = vsub.s32 0, %v88
  %v90 = vrot.slane %v86, %v89
  %vm91 = vcmask 130048
  %v93 = vsel %vm91, %v82, 0
  %v96 = vsel %vm91, %v83, 0
  %98 = vmatprep.subr.mxu0 0.0
  %99 = vmatpush1.msra.mxu0 %v84
  %100 = vmatprep.subr.mxu0 0.0
  %101 = vmatpush1.msra.mxu0 %v85
  %102 = vmatprep.subr.mxu0 0.0
  %103 = vmatpush1.msra.mxu0 0.0
  %104 = vmatprep.subr.mxu0 0.0
  %105 = vmatpush1.msra.mxu0 0.0
  %106 = vmatprep.subr.mxu0 0.0
  %107 = vmatpush1.msra.mxu0 0.0
  %108 = vmatprep.subr.mxu0 0.0
  %109 = vmatpush1.msra.mxu0 0.0
  %110 = vmatprep.subr.mxu0 0.0
  %111 = vmatpush1.msra.mxu0 0.0
  %112 = vmatprep.subr.mxu0 0.0
  %113 = vmatpush1.msra.mxu0 0.0
  %114 = vmatprep.subr.mxu0 0.0
  %115 = vmatpush1.msra.mxu0 0.0
  %116 = vmatprep.subr.mxu0 0.0
  %117 = vmatpush1.msra.mxu0 0.0
  %118 = vmatprep.subr.mxu0 0.0
  %119 = vmatpush1.msra.mxu0 0.0
  %120 = vmatprep.subr.mxu0 0.0
  %121 = vmatpush1.msra.mxu0 0.0
  %122 = vmatprep.subr.mxu0 0.0
  %123 = vmatpush1.msra.mxu0 0.0
  %124 = vmatprep.subr.mxu0 0.0
  %125 = vmatpush1.msra.mxu0 0.0
  %126 = vmatprep.subr.mxu0 0.0
  %127 = vmatpush1.msra.mxu0 0.0
  %128 = vmatprep.subr.mxu0 0.0
  %129 = vmatpush1.msra.mxu0 0.0
  %130 = vmatprep.subr.mxu0 0.0
  %131 = vmatpush1.msra.mxu0 0.0
  %132 = vmatprep.subr.mxu0 0.0
  %133 = vmatpush1.msra.mxu0 0.0
  %134 = vmatprep.subr.mxu0 0.0
  %135 = vmatpush1.msra.mxu0 0.0
  %136 = vmatprep.subr.mxu0 0.0
  %137 = vmatpush1.msra.mxu0 0.0
  %138 = vmatprep.subr.mxu0 0.0
  %139 = vmatpush1.msra.mxu0 0.0
  %140 = vmatprep.subr.mxu0 0.0
  %141 = vmatpush1.msra.mxu0 0.0
  %142 = vmatprep.subr.mxu0 0.0
  %143 = vmatpush1.msra.mxu0 0.0
  %144 = vmatprep.subr.mxu0 0.0
  %145 = vmatpush1.msra.mxu0 0.0
  %146 = vmatprep.subr.mxu0 0.0
  %147 = vmatpush1.msra.mxu0 0.0
  %148 = vmatprep.subr.mxu0 0.0
  %149 = vmatpush1.msra.mxu0 0.0
  %150 = vmatprep.subr.mxu0 0.0
  %151 = vmatpush1.msra.mxu0 0.0
  %152 = vmatprep.subr.mxu0 0.0
  %153 = vmatpush1.msra.mxu0 0.0
  %154 = vmatprep.subr.mxu0 0.0
  %155 = vmatpush1.msra.mxu0 0.0
  %156 = vmatprep.subr.mxu0 0.0
  %157 = vmatpush1.msra.mxu0 0.0
  %158 = vmatprep.subr.mxu0 0.0
  %159 = vmatpush1.msra.mxu0 0.0
  %160 = vmatprep.subr.mxu0 0.0
  %161 = vmatpush1.msra.mxu0 0.0
  %162 = vmatprep.mubr.f32.mxu0 0.0
  %163 = vmatmul.mubr.f32.gmra.mrb[0].mxu0 %v93
  %v164 = vpop.f32.mrb[0].mxu0
  %v165 = vadd.f32 %v90, %v164
  %v166 = vpop.f32.mrb[0].mxu0
  %167 = vmatprep.mubr.f32.mxu0 0.0
  %168 = vmatmul.mubr.f32.gmra.mrb[0].mxu0 %v96
  %v169 = vpop.f32.mrb[0].mxu0
  %v170 = vadd.f32 %v90, %v169
  %v171 = vpop.f32.mrb[0].mxu0
  %172 = vdwg.mxu0
  %v173 = vld [vmem:[%s8] sm:$0x3f]
  %v174 = vld [vmem:[%s5] sm:$0xff]
  %v175 = vld [vmem:[%s5 + $0x8] sm:$0xff]
  %v176 = vld [vmem:[%s5 + $0x10] sm:$0xff]
  %v177 = vld [vmem:[%s5 + $0x18] sm:$0xff]
  %v178 = vld [vmem:[%s5 + $0x20] sm:$0xff]
  %v179 = vld [vmem:[%s5 + $0x28] sm:$0xff]
  %v180 = vld [vmem:[%s5 + $0x30] sm:$0xff]
  %v181 = vld [vmem:[%s5 + $0x38] sm:$0xff]
  %v182 = vld [vmem:[%s5 + $0x40] sm:$0xff]
  %v183 = vld [vmem:[%s5 + $0x48] sm:$0xff]
  %v184 = vld [vmem:[%s5 + $0x50] sm:$0xff]
  %v185 = vld [vmem:[%s5 + $0x58] sm:$0xff]
  %v186 = vld [vmem:[%s5 + $0x60] sm:$0xff]
  %v187 = vld [vmem:[%s5 + $0x68] sm:$0xff]
  %v188 = vld [vmem:[%s5 + $0x70] sm:$0xff]
  %v189 = vld [vmem:[%s5 + $0x78] sm:$0xff]
  %v190 = vld [vmem:[%s6] sm:$0xff]
  %v191 = vld [vmem:[%s6 + $0x8] sm:$0xff]
  %v192 = vld [vmem:[%s6 + $0x10] sm:$0xff]
  %v193 = vld [vmem:[%s6 + $0x18] sm:$0xff]
  %v194 = vld [vmem:[%s7] sm:$0xff]
  %v195 = vld [vmem:[%s7 + $0x8] sm:$0xff]
  %v196 = vld [vmem:[%s7 + $0x10] sm:$0xff]
  %v197 = vld [vmem:[%s7 + $0x18] sm:$0xff]
  %v198 = vld [vmem:[%s7 + $0x20] sm:$0xff]
  %v199 = vld [vmem:[%s7 + $0x28] sm:$0xff]
  %v200 = vld [vmem:[%s7 + $0x30] sm:$0xff]
  %v201 = vld [vmem:[%s7 + $0x38] sm:$0xff]
  %v202 = vmul.f32 %v165, %v165
  %v203 = vmul.f32 %v170, %v170
  %204 = vmatprep.subr.mxu0 0.0
  %205 = vmatpush1.msra.mxu0 %v32
  %206 = vmatprep.subr.mxu0 0.0
  %207 = vmatpush1.msra.mxu0 %v33
  %208 = vmatprep.subr.mxu0 0.0
  %209 = vmatpush1.msra.mxu0 %v34
  %210 = vmatprep.subr.mxu0 0.0
  %211 = vmatpush1.msra.mxu0 %v35
  %212 = vmatprep.subr.mxu0 0.0
  %213 = vmatpush1.msra.mxu0 %v36
  %214 = vmatprep.subr.mxu0 0.0
  %215 = vmatpush1.msra.mxu0 %v37
  %216 = vmatprep.subr.mxu0 0.0
  %217 = vmatpush1.msra.mxu0 %v38
  %218 = vmatprep.subr.mxu0 0.0
  %219 = vmatpush1.msra.mxu0 %v39
  %220 = vmatprep.subr.mxu0 0.0
  %221 = vmatpush1.msra.mxu0 %v40
  %222 = vmatprep.subr.mxu0 0.0
  %223 = vmatpush1.msra.mxu0 %v41
  %224 = vmatprep.subr.mxu0 0.0
  %225 = vmatpush1.msra.mxu0 %v42
  %226 = vmatprep.subr.mxu0 0.0
  %227 = vmatpush1.msra.mxu0 %v43
  %228 = vmatprep.subr.mxu0 0.0
  %229 = vmatpush1.msra.mxu0 %v44
  %230 = vmatprep.subr.mxu0 0.0
  %231 = vmatpush1.msra.mxu0 %v45
  %232 = vmatprep.subr.mxu0 0.0
  %233 = vmatpush1.msra.mxu0 %v46
  %234 = vmatprep.subr.mxu0 0.0
  %235 = vmatpush1.msra.mxu0 %v47
  %236 = vmatprep.subr.mxu0 0.0
  %237 = vmatpush1.msra.mxu0 0.0
  %238 = vmatprep.subr.mxu0 0.0
  %239 = vmatpush1.msra.mxu0 0.0
  %240 = vmatprep.subr.mxu0 0.0
  %241 = vmatpush1.msra.mxu0 0.0
  %242 = vmatprep.subr.mxu0 0.0
  %243 = vmatpush1.msra.mxu0 0.0
  %244 = vmatprep.subr.mxu0 0.0
  %245 = vmatpush1.msra.mxu0 0.0
  %246 = vmatprep.subr.mxu0 0.0
  %247 = vmatpush1.msra.mxu0 0.0
  %248 = vmatprep.subr.mxu0 0.0
  %249 = vmatpush1.msra.mxu0 0.0
  %250 = vmatprep.subr.mxu0 0.0
  %251 = vmatpush1.msra.mxu0 0.0
  %252 = vmatprep.subr.mxu0 0.0
  %253 = vmatpush1.msra.mxu0 0.0
  %254 = vmatprep.subr.mxu0 0.0
  %255 = vmatpush1.msra.mxu0 0.0
  %256 = vmatprep.subr.mxu0 0.0
  %257 = vmatpush1.msra.mxu0 0.0
  %258 = vmatprep.subr.mxu0 0.0
  %259 = vmatpush1.msra.mxu0 0.0
  %260 = vmatprep.subr.mxu0 0.0
  %261 = vmatpush1.msra.mxu0 0.0
  %262 = vmatprep.subr.mxu0 0.0
  %263 = vmatpush1.msra.mxu0 0.0
  %264 = vmatprep.subr.mxu0 0.0
  %265 = vmatpush1.msra.mxu0 0.0
  %266 = vmatprep.subr.mxu0 0.0
  %267 = vmatpush1.msra.mxu0 0.0
  %268 = vmatprep.mubr.f32.mxu0 0.0
  %269 = vmatmul.mubr.f32.gmra.mrb[0].mxu0 %v202
  %v270 = vpop.f32.mrb[0].mxu0
  %v271 = vadd.f32 1.1920929e-07, %v270
  %v272 = vpop.f32.mrb[0].mxu0
  %273 = vmatprep.mubr.f32.mxu0 0.0
  %274 = vmatmul.mubr.f32.gmra.mrb[0].mxu0 %v203
  %v275 = vpop.f32.mrb[0].mxu0
  %v276 = vadd.f32 1.1920929e-07, %v275
  %v277 = vpop.f32.mrb[0].mxu0
  %278 = vdwg.mxu0
  %v279 = vrsqrt.pop %v271
  %v280 = vrsqrt.pop %v276
  %v281 = vmul.f32 %v165, %v279
  %v282 = vmul.f32 %v170, %v280
  %v283 = vlaneseq
  %v284 = vshrl.u32 %v283, 7
  %v285 = vsub.s32 0, %v284
  %v286 = vrot.slane %v173, %v285
  %v287 = vmul.f32 %v281, %v286
  %v288 = vmul.f32 %v282, %v286
  %289 = vmatprep.subr.mxu0 0.0
  %290 = vmatpush1.msra.mxu0 %v174
  %291 = vmatprep.subr.mxu0 0.0
  %292 = vmatpush1.msra.mxu0 %v175
  %293 = vmatprep.subr.mxu0 0.0
  %294 = vmatpush1.msra.mxu0 %v176
  %295 = vmatprep.subr.mxu0 0.0
  %296 = vmatpush1.msra.mxu0 %v177
  %297 = vmatprep.subr.mxu0 0.0
  %298 = vmatpush1.msra.mxu0 %v178
  %299 = vmatprep.subr.mxu0 0.0
  %300 = vmatpush1.msra.mxu0 %v179
  %301 = vmatprep.subr.mxu0 0.0
  %302 = vmatpush1.msra.mxu0 %v180
  %303 = vmatprep.subr.mxu0 0.0
  %304 = vmatpush1.msra.mxu0 %v181
  %305 = vmatprep.subr.mxu0 0.0
  %306 = vmatpush1.msra.mxu0 %v182
  %307 = vmatprep.subr.mxu0 0.0
  %308 = vmatpush1.msra.mxu0 %v183
  %309 = vmatprep.subr.mxu0 0.0
  %310 = vmatpush1.msra.mxu0 %v184
  %311 = vmatprep.subr.mxu0 0.0
  %312 = vmatpush1.msra.mxu0 %v185
  %313 = vmatprep.subr.mxu0 0.0
  %314 = vmatpush1.msra.mxu0 %v186
  %315 = vmatprep.subr.mxu0 0.0
  %316 = vmatpush1.msra.mxu0 %v187
  %317 = vmatprep.subr.mxu0 0.0
  %318 = vmatpush1.msra.mxu0 %v188
  %319 = vmatprep.subr.mxu0 0.0
  %320 = vmatpush1.msra.mxu0 %v189
  %321 = vmatprep.subr.mxu0 0.0
  %322 = vmatpush1.msra.mxu0 0.0
  %323 = vmatprep.subr.mxu0 0.0
  %324 = vmatpush1.msra.mxu0 0.0
  %325 = vmatprep.subr.mxu0 0.0
  %326 = vmatpush1.msra.mxu0 0.0
  %327 = vmatprep.subr.mxu0 0.0
  %328 = vmatpush1.msra.mxu0 0.0
  %329 = vmatprep.subr.mxu0 0.0
  %330 = vmatpush1.msra.mxu0 0.0
  %331 = vmatprep.subr.mxu0 0.0
  %332 = vmatpush1.msra.mxu0 0.0
  %333 = vmatprep.subr.mxu0 0.0
  %334 = vmatpush1.msra.mxu0 0.0
  %335 = vmatprep.subr.mxu0 0.0
  %336 = vmatpush1.msra.mxu0 0.0
  %337 = vmatprep.subr.mxu0 0.0
  %338 = vmatpush1.msra.mxu0 0.0
  %339 = vmatprep.subr.mxu0 0.0
  %340 = vmatpush1.msra.mxu0 0.0
  %341 = vmatprep.subr.mxu0 0.0
  %342 = vmatpush1.msra.mxu0 0.0
  %343 = vmatprep.subr.mxu0 0.0
  %344 = vmatpush1.msra.mxu0 0.0
  %345 = vmatprep.subr.mxu0 0.0
  %346 = vmatpush1.msra.mxu0 0.0
  %347 = vmatprep.subr.mxu0 0.0
  %348 = vmatpush1.msra.mxu0 0.0
  %349 = vmatprep.subr.mxu0 0.0
  %350 = vmatpush1.msra.mxu0 0.0
  %351 = vmatprep.subr.mxu0 0.0
  %352 = vmatpush1.msra.mxu0 0.0
  %353 = vmatprep.mubr.f32.mxu0 0.0
  %354 = vmatmul.mubr.f32.gmra.mrb[0].mxu0 %v287
  %v355 = vpop.f32.mrb[0].mxu0
  %v356 = vadd.f32 0.0, %v355
  %v357 = vpop.f32.mrb[0].mxu0
  %358 = vmatprep.mubr.f32.mxu0 0.0
  %359 = vmatmul.mubr.f32.gmra.mrb[0].mxu0 %v288
  %v360 = vpop.f32.mrb[0].mxu0
  %v361 = vadd.f32 0.0, %v360
  %v362 = vpop.f32.mrb[0].mxu0
  %363 = vdwg.mxu0
  %v364 = vtanh.pop %v356
  %v365 = vtanh.pop %v361
  %v366 = vlaneseq
  %v367 = vshrl.u32 %v366, 7
  %v368 = vsub.s32 2, %v367
  %v369 = vrot.slane %v173, %v368
  %v370 = vmul.f32 %v364, %v369
  %v371 = vmul.f32 %v365, %v369
  %v372 = vlaneseq
  %v373 = vshrl.u32 %v372, 7
  %v374 = vsub.s32 3, %v373
  %v375 = vrot.slane %v173, %v374
  %v376 = vadd.f32 %v370, %v375
  %v377 = vadd.f32 %v371, %v375
  %vm378 = vcmask 195584
  %v380 = vsel %vm378, %v376, 0
  %v383 = vsel %vm378, %v377, 0
  %385 = vmatprep.subr.mxu0 %v65
  %386 = vmatpush1.msra.mxu0 %v64
  %387 = vmatprep.subr.mxu0 %v71
  %388 = vmatpush1.msra.mxu0 %v70
  %389 = vmatprep.subr.mxu0 %v77
  %390 = vmatpush1.msra.mxu0 %v76
  %391 = vmatprep.subr.mxu0 0.0
  %392 = vmatpush1.msra.mxu0 0.0
  %393 = vmatprep.subr.mxu0 0.0
  %394 = vmatpush1.msra.mxu0 0.0
  %395 = vmatprep.subr.mxu0 0.0
  %396 = vmatpush1.msra.mxu0 0.0
  %397 = vmatprep.subr.mxu0 0.0
  %398 = vmatpush1.msra.mxu0 0.0
  %399 = vmatprep.subr.mxu0 0.0
  %400 = vmatpush1.msra.mxu0 0.0
  %401 = vmatprep.subr.mxu0 0.0
  %402 = vmatpush1.msra.mxu0 0.0
  %403 = vmatprep.subr.mxu0 0.0
  %404 = vmatpush1.msra.mxu0 0.0
  %405 = vmatprep.subr.mxu0 0.0
  %406 = vmatpush1.msra.mxu0 0.0
  %407 = vmatprep.subr.mxu0 0.0
  %408 = vmatpush1.msra.mxu0 0.0
  %409 = vmatprep.subr.mxu0 0.0
  %410 = vmatpush1.msra.mxu0 0.0
  %411 = vmatprep.subr.mxu0 0.0
  %412 = vmatpush1.msra.mxu0 0.0
  %413 = vmatprep.subr.mxu0 0.0
  %414 = vmatpush1.msra.mxu0 0.0
  %415 = vmatprep.subr.mxu0 0.0
  %416 = vmatpush1.msra.mxu0 0.0
  %417 = vmatprep.subr.mxu0 0.0
  %418 = vmatpush1.msra.mxu0 0.0
  %419 = vmatprep.subr.mxu0 0.0
  %420 = vmatpush1.msra.mxu0 0.0
  %421 = vmatprep.subr.mxu0 0.0
  %422 = vmatpush1.msra.mxu0 0.0
  %423 = vmatprep.subr.mxu0 0.0
  %424 = vmatpush1.msra.mxu0 0.0
  %425 = vmatprep.subr.mxu0 0.0
  %426 = vmatpush1.msra.mxu0 0.0
  %427 = vmatprep.subr.mxu0 0.0
  %428 = vmatpush1.msra.mxu0 0.0
  %429 = vmatprep.subr.mxu0 0.0
  %430 = vmatpush1.msra.mxu0 0.0
  %431 = vmatprep.subr.mxu0 0.0
  %432 = vmatpush1.msra.mxu0 0.0
  %433 = vmatprep.subr.mxu0 0.0
  %434 = vmatpush1.msra.mxu0 0.0
  %435 = vmatprep.subr.mxu0 0.0
  %436 = vmatpush1.msra.mxu0 0.0
  %437 = vmatprep.subr.mxu0 0.0
  %438 = vmatpush1.msra.mxu0 0.0
  %439 = vmatprep.subr.mxu0 0.0
  %440 = vmatpush1.msra.mxu0 0.0
  %441 = vmatprep.subr.mxu0 0.0
  %442 = vmatpush1.msra.mxu0 0.0
  %443 = vmatprep.subr.mxu0 0.0
  %444 = vmatpush1.msra.mxu0 0.0
  %445 = vmatprep.subr.mxu0 0.0
  %446 = vmatpush1.msra.mxu0 0.0
  %447 = vmatprep.subr.mxu0 0.0
  %448 = vmatpush1.msra.mxu0 0.0
  %449 = vmatprep.mubr.f32.mxu0 0.0
  %450 = vmatmul.mubr.f32.gmra.mrb[0].mxu0 %v380
  %v451 = vpop.f32.mrb[0].mxu0
  %v452 = vadd.f32 0.0, %v451
  %v453 = vpop.f32.mrb[0].mxu0
  %v454 = vadd.f32 0.0, %v453
  %455 = vmatprep.mubr.f32.mxu0 0.0
  %456 = vmatmul.mubr.f32.gmra.mrb[0].mxu0 %v383
  %v457 = vpop.f32.mrb[0].mxu0
  %v458 = vadd.f32 0.0, %v457
  %v459 = vpop.f32.mrb[0].mxu0
  %v460 = vadd.f32 0.0, %v459
  %461 = vdwg.mxu0
  %462 = vmatprep.subr.mxu0 %v67
  %463 = vmatpush1.msra.mxu0 %v66
  %464 = vmatprep.subr.mxu0 %v73
  %465 = vmatpush1.msra.mxu0 %v72
  %466 = vmatprep.subr.mxu0 %v79
  %467 = vmatpush1.msra.mxu0 %v78
  %468 = vmatprep.subr.mxu0 0.0
  %469 = vmatpush1.msra.mxu0 0.0
  %470 = vmatprep.subr.mxu0 0.0
  %471 = vmatpush1.msra.mxu0 0.0
  %472 = vmatprep.subr.mxu0 0.0
  %473 = vmatpush1.msra.mxu0 0.0
  %474 = vmatprep.subr.mxu0 0.0
  %475 = vmatpush1.msra.mxu0 0.0
  %476 = vmatprep.subr.mxu0 0.0
  %477 = vmatpush1.msra.mxu0 0.0
  %478 = vmatprep.subr.mxu0 0.0
  %479 = vmatpush1.msra.mxu0 0.0
  %480 = vmatprep.subr.mxu0 0.0
  %481 = vmatpush1.msra.mxu0 0.0
  %482 = vmatprep.subr.mxu0 0.0
  %483 = vmatpush1.msra.mxu0 0.0
  %484 = vmatprep.subr.mxu0 0.0
  %485 = vmatpush1.msra.mxu0 0.0
  %486 = vmatprep.subr.mxu0 0.0
  %487 = vmatpush1.msra.mxu0 0.0
  %488 = vmatprep.subr.mxu0 0.0
  %489 = vmatpush1.msra.mxu0 0.0
  %490 = vmatprep.subr.mxu0 0.0
  %491 = vmatpush1.msra.mxu0 0.0
  %492 = vmatprep.subr.mxu0 0.0
  %493 = vmatpush1.msra.mxu0 0.0
  %494 = vmatprep.subr.mxu0 0.0
  %495 = vmatpush1.msra.mxu0 0.0
  %496 = vmatprep.subr.mxu0 0.0
  %497 = vmatpush1.msra.mxu0 0.0
  %498 = vmatprep.subr.mxu0 0.0
  %499 = vmatpush1.msra.mxu0 0.0
  %500 = vmatprep.subr.mxu0 0.0
  %501 = vmatpush1.msra.mxu0 0.0
  %502 = vmatprep.subr.mxu0 0.0
  %503 = vmatpush1.msra.mxu0 0.0
  %504 = vmatprep.subr.mxu0 0.0
  %505 = vmatpush1.msra.mxu0 0.0
  %506 = vmatprep.subr.mxu0 0.0
  %507 = vmatpush1.msra.mxu0 0.0
  %508 = vmatprep.subr.mxu0 0.0
  %509 = vmatpush1.msra.mxu0 0.0
  %510 = vmatprep.subr.mxu0 0.0
  %511 = vmatpush1.msra.mxu0 0.0
  %512 = vmatprep.subr.mxu0 0.0
  %513 = vmatpush1.msra.mxu0 0.0
  %514 = vmatprep.subr.mxu0 0.0
  %515 = vmatpush1.msra.mxu0 0.0
  %516 = vmatprep.subr.mxu0 0.0
  %517 = vmatpush1.msra.mxu0 0.0
  %518 = vmatprep.subr.mxu0 0.0
  %519 = vmatpush1.msra.mxu0 0.0
  %520 = vmatprep.subr.mxu0 0.0
  %521 = vmatpush1.msra.mxu0 0.0
  %522 = vmatprep.subr.mxu0 0.0
  %523 = vmatpush1.msra.mxu0 0.0
  %524 = vmatprep.subr.mxu0 0.0
  %525 = vmatpush1.msra.mxu0 0.0
  %526 = vmatprep.mubr.f32.mxu0 0.0
  %527 = vmatmul.mubr.f32.gmra.mrb[0].mxu0 %v380
  %v528 = vpop.f32.mrb[0].mxu0
  %v529 = vadd.f32 0.0, %v528
  %v530 = vpop.f32.mrb[0].mxu0
  %v531 = vadd.f32 0.0, %v530
  %532 = vmatprep.mubr.f32.mxu0 0.0
  %533 = vmatmul.mubr.f32.gmra.mrb[0].mxu0 %v383
  %v534 = vpop.f32.mrb[0].mxu0
  %v535 = vadd.f32 0.0, %v534
  %v536 = vpop.f32.mrb[0].mxu0
  %v537 = vadd.f32 0.0, %v536
  %538 = vdwg.mxu0
  %539 = vmatprep.subr.mxu0 %v69
  %540 = vmatpush1.msra.mxu0 %v68
  %541 = vmatprep.subr.mxu0 %v75
  %542 = vmatpush1.msra.mxu0 %v74
  %543 = vmatprep.subr.mxu0 %v81
  %544 = vmatpush1.msra.mxu0 %v80
  %545 = vmatprep.subr.mxu0 0.0
  %546 = vmatpush1.msra.mxu0 0.0
  %547 = vmatprep.subr.mxu0 0.0
  %548 = vmatpush1.msra.mxu0 0.0
  %549 = vmatprep.subr.mxu0 0.0
  %550 = vmatpush1.msra.mxu0 0.0
  %551 = vmatprep.subr.mxu0 0.0
  %552 = vmatpush1.msra.mxu0 0.0
  %553 = vmatprep.subr.mxu0 0.0
  %554 = vmatpush1.msra.mxu0 0.0
  %555 = vmatprep.subr.mxu0 0.0
  %556 = vmatpush1.msra.mxu0 0.0
  %557 = vmatprep.subr.mxu0 0.0
  %558 = vmatpush1.msra.mxu0 0.0
  %559 = vmatprep.subr.mxu0 0.0
  %560 = vmatpush1.msra.mxu0 0.0
  %561 = vmatprep.subr.mxu0 0.0
  %562 = vmatpush1.msra.mxu0 0.0
  %563 = vmatprep.subr.mxu0 0.0
  %564 = vmatpush1.msra.mxu0 0.0
  %565 = vmatprep.subr.mxu0 0.0
  %566 = vmatpush1.msra.mxu0 0.0
  %567 = vmatprep.subr.mxu0 0.0
  %568 = vmatpush1.msra.mxu0 0.0
  %569 = vmatprep.subr.mxu0 0.0
  %570 = vmatpush1.msra.mxu0 0.0
  %571 = vmatprep.subr.mxu0 0.0
  %572 = vmatpush1.msra.mxu0 0.0
  %573 = vmatprep.subr.mxu0 0.0
  %574 = vmatpush1.msra.mxu0 0.0
  %575 = vmatprep.subr.mxu0 0.0
  %576 = vmatpush1.msra.mxu0 0.0
  %577 = vmatprep.subr.mxu0 0.0
  %578 = vmatpush1.msra.mxu0 0.0
  %579 = vmatprep.subr.mxu0 0.0
  %580 = vmatpush1.msra.mxu0 0.0
  %581 = vmatprep.subr.mxu0 0.0
  %582 = vmatpush1.msra.mxu0 0.0
  %583 = vmatprep.subr.mxu0 0.0
  %584 = vmatpush1.msra.mxu0 0.0
  %585 = vmatprep.subr.mxu0 0.0
  %586 = vmatpush1.msra.mxu0 0.0
  %587 = vmatprep.subr.mxu0 0.0
  %588 = vmatpush1.msra.mxu0 0.0
  %589 = vmatprep.subr.mxu0 0.0
  %590 = vmatpush1.msra.mxu0 0.0
  %591 = vmatprep.subr.mxu0 0.0
  %592 = vmatpush1.msra.mxu0 0.0
  %593 = vmatprep.subr.mxu0 0.0
  %594 = vmatpush1.msra.mxu0 0.0
  %595 = vmatprep.subr.mxu0 0.0
  %596 = vmatpush1.msra.mxu0 0.0
  %597 = vmatprep.subr.mxu0 0.0
  %598 = vmatpush1.msra.mxu0 0.0
  %599 = vmatprep.subr.mxu0 0.0
  %600 = vmatpush1.msra.mxu0 0.0
  %601 = vmatprep.subr.mxu0 0.0
  %602 = vmatpush1.msra.mxu0 0.0
  %603 = vmatprep.mubr.f32.mxu0 0.0
  %604 = vmatmul.mubr.f32.gmra.mrb[0].mxu0 %v380
  %v605 = vpop.f32.mrb[0].mxu0
  %v606 = vadd.f32 0.0, %v605
  %v607 = vpop.f32.mrb[0].mxu0
  %v608 = vadd.f32 0.0, %v607
  %609 = vmatprep.mubr.f32.mxu0 0.0
  %610 = vmatmul.mubr.f32.gmra.mrb[0].mxu0 %v383
  %v611 = vpop.f32.mrb[0].mxu0
  %v612 = vadd.f32 0.0, %v611
  %v613 = vpop.f32.mrb[0].mxu0
  %v614 = vadd.f32 0.0, %v613
  %615 = vdwg.mxu0
  %v616 = vmul.f32 %v165, %v452
  %v617 = vmul.f32 %v170, %v458
  %618 = vmatprep.subr.mxu0 0.0
  %619 = vmatpush1.msra.mxu0 %v48
  %620 = vmatprep.subr.mxu0 0.0
  %621 = vmatpush1.msra.mxu0 %v49
  %622 = vmatprep.subr.mxu0 0.0
  %623 = vmatpush1.msra.mxu0 %v50
  %624 = vmatprep.subr.mxu0 0.0
  %625 = vmatpush1.msra.mxu0 %v51
  %626 = vmatprep.subr.mxu0 0.0
  %627 = vmatpush1.msra.mxu0 %v52
  %628 = vmatprep.subr.mxu0 0.0
  %629 = vmatpush1.msra.mxu0 %v53
  %630 = vmatprep.subr.mxu0 0.0
  %631 = vmatpush1.msra.mxu0 %v54
  %632 = vmatprep.subr.mxu0 0.0
  %633 = vmatpush1.msra.mxu0 %v55
  %634 = vmatprep.subr.mxu0 0.0
  %635 = vmatpush1.msra.mxu0 %v56
  %636 = vmatprep.subr.mxu0 0.0
  %637 = vmatpush1.msra.mxu0 %v57
  %638 = vmatprep.subr.mxu0 0.0
  %639 = vmatpush1.msra.mxu0 %v58
  %640 = vmatprep.subr.mxu0 0.0
  %641 = vmatpush1.msra.mxu0 %v59
  %642 = vmatprep.subr.mxu0 0.0
  %643 = vmatpush1.msra.mxu0 %v60
  %644 = vmatprep.subr.mxu0 0.0
  %645 = vmatpush1.msra.mxu0 %v61
  %646 = vmatprep.subr.mxu0 0.0
  %647 = vmatpush1.msra.mxu0 %v62
  %648 = vmatprep.subr.mxu0 0.0
  %649 = vmatpush1.msra.mxu0 %v63
  %650 = vmatprep.subr.mxu0 0.0
  %651 = vmatpush1.msra.mxu0 0.0
  %652 = vmatprep.subr.mxu0 0.0
  %653 = vmatpush1.msra.mxu0 0.0
  %654 = vmatprep.subr.mxu0 0.0
  %655 = vmatpush1.msra.mxu0 0.0
  %656 = vmatprep.subr.mxu0 0.0
  %657 = vmatpush1.msra.mxu0 0.0
  %658 = vmatprep.subr.mxu0 0.0
  %659 = vmatpush1.msra.mxu0 0.0
  %660 = vmatprep.subr.mxu0 0.0
  %661 = vmatpush1.msra.mxu0 0.0
  %662 = vmatprep.subr.mxu0 0.0
  %663 = vmatpush1.msra.mxu0 0.0
  %664 = vmatprep.subr.mxu0 0.0
  %665 = vmatpush1.msra.mxu0 0.0
  %666 = vmatprep.subr.mxu0 0.0
  %667 = vmatpush1.msra.mxu0 0.0
  %668 = vmatprep.subr.mxu0 0.0
  %669 = vmatpush1.msra.mxu0 0.0
  %670 = vmatprep.subr.mxu0 0.0
  %671 = vmatpush1.msra.mxu0 0.0
  %672 = vmatprep.subr.mxu0 0.0
  %673 = vmatpush1.msra.mxu0 0.0
  %674 = vmatprep.subr.mxu0 0.0
  %675 = vmatpush1.msra.mxu0 0.0
  %676 = vmatprep.subr.mxu0 0.0
  %677 = vmatpush1.msra.mxu0 0.0
  %678 = vmatprep.subr.mxu0 0.0
  %679 = vmatpush1.msra.mxu0 0.0
  %680 = vmatprep.subr.mxu0 0.0
  %681 = vmatpush1.msra.mxu0 0.0
  %682 = vmatprep.mubr.f32.mxu0 0.0
  %683 = vmatmul.mubr.f32.gmra.mrb[0].mxu0 %v616
  %v684 = vpop.f32.mrb[0].mxu0
  %v685 = vadd.f32 0.0, %v684
  %v686 = vpop.f32.mrb[0].mxu0
  %687 = vmatprep.mubr.f32.mxu0 0.0
  %688 = vmatmul.mubr.f32.gmra.mrb[0].mxu0 %v617
  %v689 = vpop.f32.mrb[0].mxu0
  %v690 = vadd.f32 0.0, %v689
  %v691 = vpop.f32.mrb[0].mxu0
  %692 = vdwg.mxu0
  %v693 = vmul.f32 %v165, %v454
  %v694 = vmul.f32 %v170, %v460
  %695 = vmatprep.subr.mxu0 0.0
  %696 = vmatpush1.msra.mxu0 %v48
  %697 = vmatprep.subr.mxu0 0.0
  %698 = vmatpush1.msra.mxu0 %v49
  %699 = vmatprep.subr.mxu0 0.0
  %700 = vmatpush1.msra.mxu0 %v50
  %701 = vmatprep.subr.mxu0 0.0
  %702 = vmatpush1.msra.mxu0 %v51
  %703 = vmatprep.subr.mxu0 0.0
  %704 = vmatpush1.msra.mxu0 %v52
  %705 = vmatprep.subr.mxu0 0.0
  %706 = vmatpush1.msra.mxu0 %v53
  %707 = vmatprep.subr.mxu0 0.0
  %708 = vmatpush1.msra.mxu0 %v54
  %709 = vmatprep.subr.mxu0 0.0
  %710 = vmatpush1.msra.mxu0 %v55
  %711 = vmatprep.subr.mxu0 0.0
  %712 = vmatpush1.msra.mxu0 %v56
  %713 = vmatprep.subr.mxu0 0.0
  %714 = vmatpush1.msra.mxu0 %v57
  %715 = vmatprep.subr.mxu0 0.0
  %716 = vmatpush1.msra.mxu0 %v58
  %717 = vmatprep.subr.mxu0 0.0
  %718 = vmatpush1.msra.mxu0 %v59
  %719 = vmatprep.subr.mxu0 0.0
  %720 = vmatpush1.msra.mxu0 %v60
  %721 = vmatprep.subr.mxu0 0.0
  %722 = vmatpush1.msra.mxu0 %v61
  %723 = vmatprep.subr.mxu0 0.0
  %724 = vmatpush1.msra.mxu0 %v62
  %725 = vmatprep.subr.mxu0 0.0
  %726 = vmatpush1.msra.mxu0 %v63
  %727 = vmatprep.subr.mxu0 0.0
  %728 = vmatpush1.msra.mxu0 0.0
  %729 = vmatprep.subr.mxu0 0.0
  %730 = vmatpush1.msra.mxu0 0.0
  %731 = vmatprep.subr.mxu0 0.0
  %732 = vmatpush1.msra.mxu0 0.0
  %733 = vmatprep.subr.mxu0 0.0
  %734 = vmatpush1.msra.mxu0 0.0
  %735 = vmatprep.subr.mxu0 0.0
  %736 = vmatpush1.msra.mxu0 0.0
  %737 = vmatprep.subr.mxu0 0.0
  %738 = vmatpush1.msra.mxu0 0.0
  %739 = vmatprep.subr.mxu0 0.0
  %740 = vmatpush1.msra.mxu0 0.0
  %741 = vmatprep.subr.mxu0 0.0
  %742 = vmatpush1.msra.mxu0 0.0
  %743 = vmatprep.subr.mxu0 0.0
  %744 = vmatpush1.msra.mxu0 0.0
  %745 = vmatprep.subr.mxu0 0.0
  %746 = vmatpush1.msra.mxu0 0.0
  %747 = vmatprep.subr.mxu0 0.0
  %748 = vmatpush1.msra.mxu0 0.0
  %749 = vmatprep.subr.mxu0 0.0
  %750 = vmatpush1.msra.mxu0 0.0
  %751 = vmatprep.subr.mxu0 0.0
  %752 = vmatpush1.msra.mxu0 0.0
  %753 = vmatprep.subr.mxu0 0.0
  %754 = vmatpush1.msra.mxu0 0.0
  %755 = vmatprep.subr.mxu0 0.0
  %756 = vmatpush1.msra.mxu0 0.0
  %757 = vmatprep.subr.mxu0 0.0
  %758 = vmatpush1.msra.mxu0 0.0
  %759 = vmatprep.mubr.f32.mxu0 0.0
  %760 = vmatmul.mubr.f32.gmra.mrb[0].mxu0 %v693
  %v761 = vpop.f32.mrb[0].mxu0
  %v762 = vadd.f32 0.0, %v761
  %v763 = vpop.f32.mrb[0].mxu0
  %764 = vmatprep.mubr.f32.mxu0 0.0
  %765 = vmatmul.mubr.f32.gmra.mrb[0].mxu0 %v694
  %v766 = vpop.f32.mrb[0].mxu0
  %v767 = vadd.f32 0.0, %v766
  %v768 = vpop.f32.mrb[0].mxu0
  %769 = vdwg.mxu0
  %v770 = vmul.f32 %v165, %v529
  %v771 = vmul.f32 %v170, %v535
  %772 = vmatprep.subr.mxu0 0.0
  %773 = vmatpush1.msra.mxu0 %v48
  %774 = vmatprep.subr.mxu0 0.0
  %775 = vmatpush1.msra.mxu0 %v49
  %776 = vmatprep.subr.mxu0 0.0
  %777 = vmatpush1.msra.mxu0 %v50
  %778 = vmatprep.subr.mxu0 0.0
  %779 = vmatpush1.msra.mxu0 %v51
  %780 = vmatprep.subr.mxu0 0.0
  %781 = vmatpush1.msra.mxu0 %v52
  %782 = vmatprep.subr.mxu0 0.0
  %783 = vmatpush1.msra.mxu0 %v53
  %784 = vmatprep.subr.mxu0 0.0
  %785 = vmatpush1.msra.mxu0 %v54
  %786 = vmatprep.subr.mxu0 0.0
  %787 = vmatpush1.msra.mxu0 %v55
  %788 = vmatprep.subr.mxu0 0.0
  %789 = vmatpush1.msra.mxu0 %v56
  %790 = vmatprep.subr.mxu0 0.0
  %791 = vmatpush1.msra.mxu0 %v57
  %792 = vmatprep.subr.mxu0 0.0
  %793 = vmatpush1.msra.mxu0 %v58
  %794 = vmatprep.subr.mxu0 0.0
  %795 = vmatpush1.msra.mxu0 %v59
  %796 = vmatprep.subr.mxu0 0.0
  %797 = vmatpush1.msra.mxu0 %v60
  %798 = vmatprep.subr.mxu0 0.0
  %799 = vmatpush1.msra.mxu0 %v61
  %800 = vmatprep.subr.mxu0 0.0
  %801 = vmatpush1.msra.mxu0 %v62
  %802 = vmatprep.subr.mxu0 0.0
  %803 = vmatpush1.msra.mxu0 %v63
  %804 = vmatprep.subr.mxu0 0.0
  %805 = vmatpush1.msra.mxu0 0.0
  %806 = vmatprep.subr.mxu0 0.0
  %807 = vmatpush1.msra.mxu0 0.0
  %808 = vmatprep.subr.mxu0 0.0
  %809 = vmatpush1.msra.mxu0 0.0
  %810 = vmatprep.subr.mxu0 0.0
  %811 = vmatpush1.msra.mxu0 0.0
  %812 = vmatprep.subr.mxu0 0.0
  %813 = vmatpush1.msra.mxu0 0.0
  %814 = vmatprep.subr.mxu0 0.0
  %815 = vmatpush1.msra.mxu0 0.0
  %816 = vmatprep.subr.mxu0 0.0
  %817 = vmatpush1.msra.mxu0 0.0
  %818 = vmatprep.subr.mxu0 0.0
  %819 = vmatpush1.msra.mxu0 0.0
  %820 = vmatprep.subr.mxu0 0.0
  %821 = vmatpush1.msra.mxu0 0.0
  %822 = vmatprep.subr.mxu0 0.0
  %823 = vmatpush1.msra.mxu0 0.0
  %824 = vmatprep.subr.mxu0 0.0
  %825 = vmatpush1.msra.mxu0 0.0
  %826 = vmatprep.subr.mxu0 0.0
  %827 = vmatpush1.msra.mxu0 0.0
  %828 = vmatprep.subr.mxu0 0.0
  %829 = vmatpush1.msra.mxu0 0.0
  %830 = vmatprep.subr.mxu0 0.0
  %831 = vmatpush1.msra.mxu0 0.0
  %832 = vmatprep.subr.mxu0 0.0
  %833 = vmatpush1.msra.mxu0 0.0
  %834 = vmatprep.subr.mxu0 0.0
  %835 = vmatpush1.msra.mxu0 0.0
  %836 = vmatprep.mubr.f32.mxu0 0.0
  %837 = vmatmul.mubr.f32.gmra.mrb[0].mxu0 %v770
  %v838 = vpop.f32.mrb[0].mxu0
  %v839 = vadd.f32 0.0, %v838
  %v840 = vpop.f32.mrb[0].mxu0
  %841 = vmatprep.mubr.f32.mxu0 0.0
  %842 = vmatmul.mubr.f32.gmra.mrb[0].mxu0 %v771
  %v843 = vpop.f32.mrb[0].mxu0
  %v844 = vadd.f32 0.0, %v843
  %v845 = vpop.f32.mrb[0].mxu0
  %846 = vdwg.mxu0
  %v847 = vmul.f32 %v165, %v531
  %v848 = vmul.f32 %v170, %v537
  %849 = vmatprep.subr.mxu0 0.0
  %850 = vmatpush1.msra.mxu0 %v48
  %851 = vmatprep.subr.mxu0 0.0
  %852 = vmatpush1.msra.mxu0 %v49
  %853 = vmatprep.subr.mxu0 0.0
  %854 = vmatpush1.msra.mxu0 %v50
  %855 = vmatprep.subr.mxu0 0.0
  %856 = vmatpush1.msra.mxu0 %v51
  %857 = vmatprep.subr.mxu0 0.0
  %858 = vmatpush1.msra.mxu0 %v52
  %859 = vmatprep.subr.mxu0 0.0
  %860 = vmatpush1.msra.mxu0 %v53
  %861 = vmatprep.subr.mxu0 0.0
  %862 = vmatpush1.msra.mxu0 %v54
  %863 = vmatprep.subr.mxu0 0.0
  %864 = vmatpush1.msra.mxu0 %v55
  %865 = vmatprep.subr.mxu0 0.0
  %866 = vmatpush1.msra.mxu0 %v56
  %867 = vmatprep.subr.mxu0 0.0
  %868 = vmatpush1.msra.mxu0 %v57
  %869 = vmatprep.subr.mxu0 0.0
  %870 = vmatpush1.msra.mxu0 %v58
  %871 = vmatprep.subr.mxu0 0.0
  %872 = vmatpush1.msra.mxu0 %v59
  %873 = vmatprep.subr.mxu0 0.0
  %874 = vmatpush1.msra.mxu0 %v60
  %875 = vmatprep.subr.mxu0 0.0
  %876 = vmatpush1.msra.mxu0 %v61
  %877 = vmatprep.subr.mxu0 0.0
  %878 = vmatpush1.msra.mxu0 %v62
  %879 = vmatprep.subr.mxu0 0.0
  %880 = vmatpush1.msra.mxu0 %v63
  %881 = vmatprep.subr.mxu0 0.0
  %882 = vmatpush1.msra.mxu0 0.0
  %883 = vmatprep.subr.mxu0 0.0
  %884 = vmatpush1.msra.mxu0 0.0
  %885 = vmatprep.subr.mxu0 0.0
  %886 = vmatpush1.msra.mxu0 0.0
  %887 = vmatprep.subr.mxu0 0.0
  %888 = vmatpush1.msra.mxu0 0.0
  %889 = vmatprep.subr.mxu0 0.0
  %890 = vmatpush1.msra.mxu0 0.0
  %891 = vmatprep.subr.mxu0 0.0
  %892 = vmatpush1.msra.mxu0 0.0
  %893 = vmatprep.subr.mxu0 0.0
  %894 = vmatpush1.msra.mxu0 0.0
  %895 = vmatprep.subr.mxu0 0.0
  %896 = vmatpush1.msra.mxu0 0.0
  %897 = vmatprep.subr.mxu0 0.0
  %898 = vmatpush1.msra.mxu0 0.0
  %899 = vmatprep.subr.mxu0 0.0
  %900 = vmatpush1.msra.mxu0 0.0
  %901 = vmatprep.subr.mxu0 0.0
  %902 = vmatpush1.msra.mxu0 0.0
  %903 = vmatprep.subr.mxu0 0.0
  %904 = vmatpush1.msra.mxu0 0.0
  %905 = vmatprep.subr.mxu0 0.0
  %906 = vmatpush1.msra.mxu0 0.0
  %907 = vmatprep.subr.mxu0 0.0
  %908 = vmatpush1.msra.mxu0 0.0
  %909 = vmatprep.subr.mxu0 0.0
  %910 = vmatpush1.msra.mxu0 0.0
  %911 = vmatprep.subr.mxu0 0.0
  %912 = vmatpush1.msra.mxu0 0.0
  %913 = vmatprep.mubr.f32.mxu0 0.0
  %914 = vmatmul.mubr.f32.gmra.mrb[0].mxu0 %v847
  %v915 = vpop.f32.mrb[0].mxu0
  %v916 = vadd.f32 0.0, %v915
  %v917 = vpop.f32.mrb[0].mxu0
  %918 = vmatprep.mubr.f32.mxu0 0.0
  %919 = vmatmul.mubr.f32.gmra.mrb[0].mxu0 %v848
  %v920 = vpop.f32.mrb[0].mxu0
  %v921 = vadd.f32 0.0, %v920
  %v922 = vpop.f32.mrb[0].mxu0
  %923 = vdwg.mxu0
  %v924 = vmul.f32 %v165, %v606
  %v925 = vmul.f32 %v170, %v612
  %926 = vmatprep.subr.mxu0 0.0
  %927 = vmatpush1.msra.mxu0 %v48
  %928 = vmatprep.subr.mxu0 0.0
  %929 = vmatpush1.msra.mxu0 %v49
  %930 = vmatprep.subr.mxu0 0.0
  %931 = vmatpush1.msra.mxu0 %v50
  %932 = vmatprep.subr.mxu0 0.0
  %933 = vmatpush1.msra.mxu0 %v51
  %934 = vmatprep.subr.mxu0 0.0
  %935 = vmatpush1.msra.mxu0 %v52
  %936 = vmatprep.subr.mxu0 0.0
  %937 = vmatpush1.msra.mxu0 %v53
  %938 = vmatprep.subr.mxu0 0.0
  %939 = vmatpush1.msra.mxu0 %v54
  %940 = vmatprep.subr.mxu0 0.0
  %941 = vmatpush1.msra.mxu0 %v55
  %942 = vmatprep.subr.mxu0 0.0
  %943 = vmatpush1.msra.mxu0 %v56
  %944 = vmatprep.subr.mxu0 0.0
  %945 = vmatpush1.msra.mxu0 %v57
  %946 = vmatprep.subr.mxu0 0.0
  %947 = vmatpush1.msra.mxu0 %v58
  %948 = vmatprep.subr.mxu0 0.0
  %949 = vmatpush1.msra.mxu0 %v59
  %950 = vmatprep.subr.mxu0 0.0
  %951 = vmatpush1.msra.mxu0 %v60
  %952 = vmatprep.subr.mxu0 0.0
  %953 = vmatpush1.msra.mxu0 %v61
  %954 = vmatprep.subr.mxu0 0.0
  %955 = vmatpush1.msra.mxu0 %v62
  %956 = vmatprep.subr.mxu0 0.0
  %957 = vmatpush1.msra.mxu0 %v63
  %958 = vmatprep.subr.mxu0 0.0
  %959 = vmatpush1.msra.mxu0 0.0
  %960 = vmatprep.subr.mxu0 0.0
  %961 = vmatpush1.msra.mxu0 0.0
  %962 = vmatprep.subr.mxu0 0.0
  %963 = vmatpush1.msra.mxu0 0.0
  %964 = vmatprep.subr.mxu0 0.0
  %965 = vmatpush1.msra.mxu0 0.0
  %966 = vmatprep.subr.mxu0 0.0
  %967 = vmatpush1.msra.mxu0 0.0
  %968 = vmatprep.subr.mxu0 0.0
  %969 = vmatpush1.msra.mxu0 0.0
  %970 = vmatprep.subr.mxu0 0.0
  %971 = vmatpush1.msra.mxu0 0.0
  %972 = vmatprep.subr.mxu0 0.0
  %973 = vmatpush1.msra.mxu0 0.0
  %974 = vmatprep.subr.mxu0 0.0
  %975 = vmatpush1.msra.mxu0 0.0
  %976 = vmatprep.subr.mxu0 0.0
  %977 = vmatpush1.msra.mxu0 0.0
  %978 = vmatprep.subr.mxu0 0.0
  %979 = vmatpush1.msra.mxu0 0.0
  %980 = vmatprep.subr.mxu0 0.0
  %981 = vmatpush1.msra.mxu0 0.0
  %982 = vmatprep.subr.mxu0 0.0
  %983 = vmatpush1.msra.mxu0 0.0
  %984 = vmatprep.subr.mxu0 0.0
  %985 = vmatpush1.msra.mxu0 0.0
  %986 = vmatprep.subr.mxu0 0.0
  %987 = vmatpush1.msra.mxu0 0.0
  %988 = vmatprep.subr.mxu0 0.0
  %989 = vmatpush1.msra.mxu0 0.0
  %990 = vmatprep.mubr.f32.mxu0 0.0
  %991 = vmatmul.mubr.f32.gmra.mrb[0].mxu0 %v924
  %v992 = vpop.f32.mrb[0].mxu0
  %v993 = vadd.f32 0.0, %v992
  %v994 = vpop.f32.mrb[0].mxu0
  %995 = vmatprep.mubr.f32.mxu0 0.0
  %996 = vmatmul.mubr.f32.gmra.mrb[0].mxu0 %v925
  %v997 = vpop.f32.mrb[0].mxu0
  %v998 = vadd.f32 0.0, %v997
  %v999 = vpop.f32.mrb[0].mxu0
  %1000 = vdwg.mxu0
  %1003 = vrot.lane.b32.xlu0 %v762, 32
  %v1004 = vpop.permute.xlu0 %1003
  %1005 = vrot.lane.b32.xlu0 %v767, 32
  %v1006 = vpop.permute.xlu0 %1005
  %1011 = vrot.lane.b32.xlu0 %v839, 64
  %v1012 = vpop.permute.xlu0 %1011
  %1013 = vrot.lane.b32.xlu0 %v844, 64
  %v1014 = vpop.permute.xlu0 %1013
  %1019 = vrot.lane.b32.xlu0 %v916, 96
  %v1020 = vpop.permute.xlu0 %1019
  %1021 = vrot.lane.b32.xlu0 %v921, 96
  %v1022 = vpop.permute.xlu0 %1021
  %vm1025 = vcmask 261120
  %v1026 = vsel %vm1025, %v685, %v1004
  %v1027 = vsel %vm1025, %v690, %v1006
  %vm1028 = vcmask 523264
  %v1029 = vsel %vm1028, %v1026, %v1012
  %v1030 = vsel %vm1028, %v1027, %v1014
  %vm1031 = vcmask 785408
  %v1032 = vsel %vm1031, %v1029, %v1020
  %v1033 = vsel %vm1031, %v1030, %v1022
  %v1034 = vmul.f32 %v993, %v993
  %v1035 = vmul.f32 %v998, %v998
  %1040 = vrot.lane.b32.xlu0 %v48, 96
  %v1041 = vpop.permute.xlu0 %1040
  %1042 = vrot.lane.b32.xlu0 %v49, 96
  %v1043 = vpop.permute.xlu0 %1042
  %1044 = vrot.lane.b32.xlu0 %v50, 96
  %v1045 = vpop.permute.xlu0 %1044
  %1046 = vrot.lane.b32.xlu0 %v51, 96
  %v1047 = vpop.permute.xlu0 %1046
  %v1053 = vsel %vm1025, %v1034, 0
  %v1056 = vsel %vm1025, %v1035, 0
  %1058 = vmatprep.subr.mxu0 0.0
  %1059 = vmatpush1.msra.mxu0 %v1041
  %1060 = vmatprep.subr.mxu0 0.0
  %1061 = vmatpush1.msra.mxu0 %v1043
  %1062 = vmatprep.subr.mxu0 0.0
  %1063 = vmatpush1.msra.mxu0 %v1045
  %1064 = vmatprep.subr.mxu0 0.0
  %1065 = vmatpush1.msra.mxu0 %v1047
  %1066 = vmatprep.subr.mxu0 0.0
  %1067 = vmatpush1.msra.mxu0 0.0
  %1068 = vmatprep.subr.mxu0 0.0
  %1069 = vmatpush1.msra.mxu0 0.0
  %1070 = vmatprep.subr.mxu0 0.0
  %1071 = vmatpush1.msra.mxu0 0.0
  %1072 = vmatprep.subr.mxu0 0.0
  %1073 = vmatpush1.msra.mxu0 0.0
  %1074 = vmatprep.subr.mxu0 0.0
  %1075 = vmatpush1.msra.mxu0 0.0
  %1076 = vmatprep.subr.mxu0 0.0
  %1077 = vmatpush1.msra.mxu0 0.0
  %1078 = vmatprep.subr.mxu0 0.0
  %1079 = vmatpush1.msra.mxu0 0.0
  %1080 = vmatprep.subr.mxu0 0.0
  %1081 = vmatpush1.msra.mxu0 0.0
  %1082 = vmatprep.subr.mxu0 0.0
  %1083 = vmatpush1.msra.mxu0 0.0
  %1084 = vmatprep.subr.mxu0 0.0
  %1085 = vmatpush1.msra.mxu0 0.0
  %1086 = vmatprep.subr.mxu0 0.0
  %1087 = vmatpush1.msra.mxu0 0.0
  %1088 = vmatprep.subr.mxu0 0.0
  %1089 = vmatpush1.msra.mxu0 0.0
  %1090 = vmatprep.subr.mxu0 0.0
  %1091 = vmatpush1.msra.mxu0 0.0
  %1092 = vmatprep.subr.mxu0 0.0
  %1093 = vmatpush1.msra.mxu0 0.0
  %1094 = vmatprep.subr.mxu0 0.0
  %1095 = vmatpush1.msra.mxu0 0.0
  %1096 = vmatprep.subr.mxu0 0.0
  %1097 = vmatpush1.msra.mxu0 0.0
  %1098 = vmatprep.subr.mxu0 0.0
  %1099 = vmatpush1.msra.mxu0 0.0
  %1100 = vmatprep.subr.mxu0 0.0
  %1101 = vmatpush1.msra.mxu0 0.0
  %1102 = vmatprep.subr.mxu0 0.0
  %1103 = vmatpush1.msra.mxu0 0.0
  %1104 = vmatprep.subr.mxu0 0.0
  %1105 = vmatpush1.msra.mxu0 0.0
  %1106 = vmatprep.subr.mxu0 0.0
  %1107 = vmatpush1.msra.mxu0 0.0
  %1108 = vmatprep.subr.mxu0 0.0
  %1109 = vmatpush1.msra.mxu0 0.0
  %1110 = vmatprep.subr.mxu0 0.0
  %1111 = vmatpush1.msra.mxu0 0.0
  %1112 = vmatprep.subr.mxu0 0.0
  %1113 = vmatpush1.msra.mxu0 0.0
  %1114 = vmatprep.subr.mxu0 0.0
  %1115 = vmatpush1.msra.mxu0 0.0
  %1116 = vmatprep.subr.mxu0 0.0
  %1117 = vmatpush1.msra.mxu0 0.0
  %1118 = vmatprep.subr.mxu0 0.0
  %1119 = vmatpush1.msra.mxu0 0.0
  %1120 = vmatprep.subr.mxu0 0.0
  %1121 = vmatpush1.msra.mxu0 0.0
  %1122 = vmatprep.mubr.f32.mxu0 0.0
  %1123 = vmatmul.mubr.f32.gmra.mrb[0].mxu0 %v1053
  %v1124 = vpop.f32.mrb[0].mxu0
  %v1125 = vadd.f32 1.1920929e-07, %v1124
  %v1126 = vpop.f32.mrb[0].mxu0
  %1127 = vmatprep.mubr.f32.mxu0 0.0
  %1128 = vmatmul.mubr.f32.gmra.mrb[0].mxu0 %v1056
  %v1129 = vpop.f32.mrb[0].mxu0
  %v1130 = vadd.f32 1.1920929e-07, %v1129
  %v1131 = vpop.f32.mrb[0].mxu0
  %1132 = vdwg.mxu0
  %v1133 = vrsqrt.pop %v1125
  %v1134 = vrsqrt.pop %v1130
  %v1135 = vmul.f32 %v993, %v1133
  %v1136 = vmul.f32 %v998, %v1134
  %v1137 = vlaneseq
  %v1138 = vshrl.u32 %v1137, 7
  %v1139 = vsub.s32 1, %v1138
  %v1140 = vrot.slane %v173, %v1139
  %v1141 = vmul.f32 %v1135, %v1140
  %v1142 = vmul.f32 %v1136, %v1140
  %v1143 = vlaneseq
  %v1144 = vshrl.u32 %v1143, 7
  %v1145 = vsub.s32 4, %v1144
  %v1146 = vrot.slane %v173, %v1145
  %v1148 = vsel %vm1025, %v1141, 0
  %v1151 = vsel %vm1025, %v1142, 0
  %1153 = vmatprep.subr.mxu0 0.0
  %1154 = vmatpush1.msra.mxu0 %v190
  %1155 = vmatprep.subr.mxu0 0.0
  %1156 = vmatpush1.msra.mxu0 %v191
  %1157 = vmatprep.subr.mxu0 0.0
  %1158 = vmatpush1.msra.mxu0 %v192
  %1159 = vmatprep.subr.mxu0 0.0
  %1160 = vmatpush1.msra.mxu0 %v193
  %1161 = vmatprep.subr.mxu0 0.0
  %1162 = vmatpush1.msra.mxu0 0.0
  %1163 = vmatprep.subr.mxu0 0.0
  %1164 = vmatpush1.msra.mxu0 0.0
  %1165 = vmatprep.subr.mxu0 0.0
  %1166 = vmatpush1.msra.mxu0 0.0
  %1167 = vmatprep.subr.mxu0 0.0
  %1168 = vmatpush1.msra.mxu0 0.0
  %1169 = vmatprep.subr.mxu0 0.0
  %1170 = vmatpush1.msra.mxu0 0.0
  %1171 = vmatprep.subr.mxu0 0.0
  %1172 = vmatpush1.msra.mxu0 0.0
  %1173 = vmatprep.subr.mxu0 0.0
  %1174 = vmatpush1.msra.mxu0 0.0
  %1175 = vmatprep.subr.mxu0 0.0
  %1176 = vmatpush1.msra.mxu0 0.0
  %1177 = vmatprep.subr.mxu0 0.0
  %1178 = vmatpush1.msra.mxu0 0.0
  %1179 = vmatprep.subr.mxu0 0.0
  %1180 = vmatpush1.msra.mxu0 0.0
  %1181 = vmatprep.subr.mxu0 0.0
  %1182 = vmatpush1.msra.mxu0 0.0
  %1183 = vmatprep.subr.mxu0 0.0
  %1184 = vmatpush1.msra.mxu0 0.0
  %1185 = vmatprep.subr.mxu0 0.0
  %1186 = vmatpush1.msra.mxu0 0.0
  %1187 = vmatprep.subr.mxu0 0.0
  %1188 = vmatpush1.msra.mxu0 0.0
  %1189 = vmatprep.subr.mxu0 0.0
  %1190 = vmatpush1.msra.mxu0 0.0
  %1191 = vmatprep.subr.mxu0 0.0
  %1192 = vmatpush1.msra.mxu0 0.0
  %1193 = vmatprep.subr.mxu0 0.0
  %1194 = vmatpush1.msra.mxu0 0.0
  %1195 = vmatprep.subr.mxu0 0.0
  %1196 = vmatpush1.msra.mxu0 0.0
  %1197 = vmatprep.subr.mxu0 0.0
  %1198 = vmatpush1.msra.mxu0 0.0
  %1199 = vmatprep.subr.mxu0 0.0
  %1200 = vmatpush1.msra.mxu0 0.0
  %1201 = vmatprep.subr.mxu0 0.0
  %1202 = vmatpush1.msra.mxu0 0.0
  %1203 = vmatprep.subr.mxu0 0.0
  %1204 = vmatpush1.msra.mxu0 0.0
  %1205 = vmatprep.subr.mxu0 0.0
  %1206 = vmatpush1.msra.mxu0 0.0
  %1207 = vmatprep.subr.mxu0 0.0
  %1208 = vmatpush1.msra.mxu0 0.0
  %1209 = vmatprep.subr.mxu0 0.0
  %1210 = vmatpush1.msra.mxu0 0.0
  %1211 = vmatprep.subr.mxu0 0.0
  %1212 = vmatpush1.msra.mxu0 0.0
  %1213 = vmatprep.subr.mxu0 0.0
  %1214 = vmatpush1.msra.mxu0 0.0
  %1215 = vmatprep.subr.mxu0 0.0
  %1216 = vmatpush1.msra.mxu0 0.0
  %1217 = vmatprep.mubr.f32.mxu0 0.0
  %1218 = vmatmul.mubr.f32.gmra.mrb[0].mxu0 %v1148
  %v1219 = vpop.f32.mrb[0].mxu0
  %v1220 = vadd.f32 %v1146, %v1219
  %v1221 = vpop.f32.mrb[0].mxu0
  %1222 = vmatprep.mubr.f32.mxu0 0.0
  %1223 = vmatmul.mubr.f32.gmra.mrb[0].mxu0 %v1151
  %v1224 = vpop.f32.mrb[0].mxu0
  %v1225 = vadd.f32 %v1146, %v1224
  %v1226 = vpop.f32.mrb[0].mxu0
  %1227 = vdwg.mxu0
  %v1228 = vmax.f32 %v1220, 0.0
  %v1229 = vmax.f32 %v1225, 0.0
  %v1230 = vmul.f32 %v1228, %v1228
  %v1231 = vmul.f32 %v1229, %v1229
  %v1232 = vlaneseq
  %v1233 = vshrl.u32 %v1232, 7
  %v1234 = vsub.s32 5, %v1233
  %v1235 = vrot.slane %v173, %v1234
  %v1237 = vsel %vm1028, %v1230, 0
  %v1240 = vsel %vm1028, %v1231, 0
  %1242 = vmatprep.subr.mxu0 0.0
  %1243 = vmatpush1.msra.mxu0 %v194
  %1244 = vmatprep.subr.mxu0 0.0
  %1245 = vmatpush1.msra.mxu0 %v195
  %1246 = vmatprep.subr.mxu0 0.0
  %1247 = vmatpush1.msra.mxu0 %v196
  %1248 = vmatprep.subr.mxu0 0.0
  %1249 = vmatpush1.msra.mxu0 %v197
  %1250 = vmatprep.subr.mxu0 0.0
  %1251 = vmatpush1.msra.mxu0 %v198
  %1252 = vmatprep.subr.mxu0 0.0
  %1253 = vmatpush1.msra.mxu0 %v199
  %1254 = vmatprep.subr.mxu0 0.0
  %1255 = vmatpush1.msra.mxu0 %v200
  %1256 = vmatprep.subr.mxu0 0.0
  %1257 = vmatpush1.msra.mxu0 %v201
  %1258 = vmatprep.subr.mxu0 0.0
  %1259 = vmatpush1.msra.mxu0 0.0
  %1260 = vmatprep.subr.mxu0 0.0
  %1261 = vmatpush1.msra.mxu0 0.0
  %1262 = vmatprep.subr.mxu0 0.0
  %1263 = vmatpush1.msra.mxu0 0.0
  %1264 = vmatprep.subr.mxu0 0.0
  %1265 = vmatpush1.msra.mxu0 0.0
  %1266 = vmatprep.subr.mxu0 0.0
  %1267 = vmatpush1.msra.mxu0 0.0
  %1268 = vmatprep.subr.mxu0 0.0
  %1269 = vmatpush1.msra.mxu0 0.0
  %1270 = vmatprep.subr.mxu0 0.0
  %1271 = vmatpush1.msra.mxu0 0.0
  %1272 = vmatprep.subr.mxu0 0.0
  %1273 = vmatpush1.msra.mxu0 0.0
  %1274 = vmatprep.subr.mxu0 0.0
  %1275 = vmatpush1.msra.mxu0 0.0
  %1276 = vmatprep.subr.mxu0 0.0
  %1277 = vmatpush1.msra.mxu0 0.0
  %1278 = vmatprep.subr.mxu0 0.0
  %1279 = vmatpush1.msra.mxu0 0.0
  %1280 = vmatprep.subr.mxu0 0.0
  %1281 = vmatpush1.msra.mxu0 0.0
  %1282 = vmatprep.subr.mxu0 0.0
  %1283 = vmatpush1.msra.mxu0 0.0
  %1284 = vmatprep.subr.mxu0 0.0
  %1285 = vmatpush1.msra.mxu0 0.0
  %1286 = vmatprep.subr.mxu0 0.0
  %1287 = vmatpush1.msra.mxu0 0.0
  %1288 = vmatprep.subr.mxu0 0.0
  %1289 = vmatpush1.msra.mxu0 0.0
  %1290 = vmatprep.subr.mxu0 0.0
  %1291 = vmatpush1.msra.mxu0 0.0
  %1292 = vmatprep.subr.mxu0 0.0
  %1293 = vmatpush1.msra.mxu0 0.0
  %1294 = vmatprep.subr.mxu0 0.0
  %1295 = vmatpush1.msra.mxu0 0.0
  %1296 = vmatprep.subr.mxu0 0.0
  %1297 = vmatpush1.msra.mxu0 0.0
  %1298 = vmatprep.subr.mxu0 0.0
  %1299 = vmatpush1.msra.mxu0 0.0
  %1300 = vmatprep.subr.mxu0 0.0
  %1301 = vmatpush1.msra.mxu0 0.0
  %1302 = vmatprep.subr.mxu0 0.0
  %1303 = vmatpush1.msra.mxu0 0.0
  %1304 = vmatprep.subr.mxu0 0.0
  %1305 = vmatpush1.msra.mxu0 0.0
  %1306 = vmatprep.mubr.f32.mxu0 0.0
  %1307 = vmatmul.mubr.f32.gmra.mrb[0].mxu0 %v1237
  %v1308 = vpop.f32.mrb[0].mxu0
  %v1309 = vadd.f32 %v1235, %v1308
  %v1310 = vpop.f32.mrb[0].mxu0
  %1311 = vmatprep.mubr.f32.mxu0 0.0
  %1312 = vmatmul.mubr.f32.gmra.mrb[0].mxu0 %v1240
  %v1313 = vpop.f32.mrb[0].mxu0
  %v1314 = vadd.f32 %v1235, %v1313
  %v1315 = vpop.f32.mrb[0].mxu0
  %1316 = vdwg.mxu0
  %v1317 = vmul.f32 %v1309, %v608
  %v1318 = vmul.f32 %v1314, %v614
  %v1319 = vadd.f32 %v1032, %v1317
  %v1320 = vadd.f32 %v1033, %v1318
  %s1321 = scalar_lea.vmem %s8, 8
  %v1322 = vld [vmem:[%s1321] sm:$0x3f]
  %s1323 = scalar_lea.vmem %s5, 128
  %v1324 = vld [vmem:[%s1323] sm:$0xff]
  %v1325 = vld [vmem:[%s1323 + $0x8] sm:$0xff]
  %v1326 = vld [vmem:[%s1323 + $0x10] sm:$0xff]
  %v1327 = vld [vmem:[%s1323 + $0x18] sm:$0xff]
  %v1328 = vld [vmem:[%s1323 + $0x20] sm:$0xff]
  %v1329 = vld [vmem:[%s1323 + $0x28] sm:$0xff]
  %v1330 = vld [vmem:[%s1323 + $0x30] sm:$0xff]
  %v1331 = vld [vmem:[%s1323 + $0x38] sm:$0xff]
  %v1332 = vld [vmem:[%s1323 + $0x40] sm:$0xff]
  %v1333 = vld [vmem:[%s1323 + $0x48] sm:$0xff]
  %v1334 = vld [vmem:[%s1323 + $0x50] sm:$0xff]
  %v1335 = vld [vmem:[%s1323 + $0x58] sm:$0xff]
  %v1336 = vld [vmem:[%s1323 + $0x60] sm:$0xff]
  %v1337 = vld [vmem:[%s1323 + $0x68] sm:$0xff]
  %v1338 = vld [vmem:[%s1323 + $0x70] sm:$0xff]
  %v1339 = vld [vmem:[%s1323 + $0x78] sm:$0xff]
  %s1340 = scalar_lea.vmem %s6, 32
  %v1341 = vld [vmem:[%s1340] sm:$0xff]
  %v1342 = vld [vmem:[%s1340 + $0x8] sm:$0xff]
  %v1343 = vld [vmem:[%s1340 + $0x10] sm:$0xff]
  %v1344 = vld [vmem:[%s1340 + $0x18] sm:$0xff]
  %s1345 = scalar_lea.vmem %s7, 64
  %v1346 = vld [vmem:[%s1345] sm:$0xff]
  %v1347 = vld [vmem:[%s1345 + $0x8] sm:$0xff]
  %v1348 = vld [vmem:[%s1345 + $0x10] sm:$0xff]
  %v1349 = vld [vmem:[%s1345 + $0x18] sm:$0xff]
  %v1350 = vld [vmem:[%s1345 + $0x20] sm:$0xff]
  %v1351 = vld [vmem:[%s1345 + $0x28] sm:$0xff]
  %v1352 = vld [vmem:[%s1345 + $0x30] sm:$0xff]
  %v1353 = vld [vmem:[%s1345 + $0x38] sm:$0xff]
  %v1354 = vmul.f32 %v1319, %v1319
  %v1355 = vmul.f32 %v1320, %v1320
  %1356 = vmatprep.subr.mxu0 0.0
  %1357 = vmatpush1.msra.mxu0 %v32
  %1358 = vmatprep.subr.mxu0 0.0
  %1359 = vmatpush1.msra.mxu0 %v33
  %1360 = vmatprep.subr.mxu0 0.0
  %1361 = vmatpush1.msra.mxu0 %v34
  %1362 = vmatprep.subr.mxu0 0.0
  %1363 = vmatpush1.msra.mxu0 %v35
  %1364 = vmatprep.subr.mxu0 0.0
  %1365 = vmatpush1.msra.mxu0 %v36
  %1366 = vmatprep.subr.mxu0 0.0
  %1367 = vmatpush1.msra.mxu0 %v37
  %1368 = vmatprep.subr.mxu0 0.0
  %1369 = vmatpush1.msra.mxu0 %v38
  %1370 = vmatprep.subr.mxu0 0.0
  %1371 = vmatpush1.msra.mxu0 %v39
  %1372 = vmatprep.subr.mxu0 0.0
  %1373 = vmatpush1.msra.mxu0 %v40
  %1374 = vmatprep.subr.mxu0 0.0
  %1375 = vmatpush1.msra.mxu0 %v41
  %1376 = vmatprep.subr.mxu0 0.0
  %1377 = vmatpush1.msra.mxu0 %v42
  %1378 = vmatprep.subr.mxu0 0.0
  %1379 = vmatpush1.msra.mxu0 %v43
  %1380 = vmatprep.subr.mxu0 0.0
  %1381 = vmatpush1.msra.mxu0 %v44
  %1382 = vmatprep.subr.mxu0 0.0
  %1383 = vmatpush1.msra.mxu0 %v45
  %1384 = vmatprep.subr.mxu0 0.0
  %1385 = vmatpush1.msra.mxu0 %v46
  %1386 = vmatprep.subr.mxu0 0.0
  %1387 = vmatpush1.msra.mxu0 %v47
  %1388 = vmatprep.subr.mxu0 0.0
  %1389 = vmatpush1.msra.mxu0 0.0
  %1390 = vmatprep.subr.mxu0 0.0
  %1391 = vmatpush1.msra.mxu0 0.0
  %1392 = vmatprep.subr.mxu0 0.0
  %1393 = vmatpush1.msra.mxu0 0.0
  %1394 = vmatprep.subr.mxu0 0.0
  %1395 = vmatpush1.msra.mxu0 0.0
  %1396 = vmatprep.subr.mxu0 0.0
  %1397 = vmatpush1.msra.mxu0 0.0
  %1398 = vmatprep.subr.mxu0 0.0
  %1399 = vmatpush1.msra.mxu0 0.0
  %1400 = vmatprep.subr.mxu0 0.0
  %1401 = vmatpush1.msra.mxu0 0.0
  %1402 = vmatprep.subr.mxu0 0.0
  %1403 = vmatpush1.msra.mxu0 0.0
  %1404 = vmatprep.subr.mxu0 0.0
  %1405 = vmatpush1.msra.mxu0 0.0
  %1406 = vmatprep.subr.mxu0 0.0
  %1407 = vmatpush1.msra.mxu0 0.0
  %1408 = vmatprep.subr.mxu0 0.0
  %1409 = vmatpush1.msra.mxu0 0.0
  %1410 = vmatprep.subr.mxu0 0.0
  %1411 = vmatpush1.msra.mxu0 0.0
  %1412 = vmatprep.subr.mxu0 0.0
  %1413 = vmatpush1.msra.mxu0 0.0
  %1414 = vmatprep.subr.mxu0 0.0
  %1415 = vmatpush1.msra.mxu0 0.0
  %1416 = vmatprep.subr.mxu0 0.0
  %1417 = vmatpush1.msra.mxu0 0.0
  %1418 = vmatprep.subr.mxu0 0.0
  %1419 = vmatpush1.msra.mxu0 0.0
  %1420 = vmatprep.mubr.f32.mxu0 0.0
  %1421 = vmatmul.mubr.f32.gmra.mrb[0].mxu0 %v1354
  %v1422 = vpop.f32.mrb[0].mxu0
  %v1423 = vadd.f32 1.1920929e-07, %v1422
  %v1424 = vpop.f32.mrb[0].mxu0
  %1425 = vmatprep.mubr.f32.mxu0 0.0
  %1426 = vmatmul.mubr.f32.gmra.mrb[0].mxu0 %v1355
  %v1427 = vpop.f32.mrb[0].mxu0
  %v1428 = vadd.f32 1.1920929e-07, %v1427
  %v1429 = vpop.f32.mrb[0].mxu0
  %1430 = vdwg.mxu0
  %v1431 = vrsqrt.pop %v1423
  %v1432 = vrsqrt.pop %v1428
  %v1433 = vmul.f32 %v1319, %v1431
  %v1434 = vmul.f32 %v1320, %v1432
  %v1435 = vlaneseq
  %v1436 = vshrl.u32 %v1435, 7
  %v1437 = vsub.s32 0, %v1436
  %v1438 = vrot.slane %v1322, %v1437
  %v1439 = vmul.f32 %v1433, %v1438
  %v1440 = vmul.f32 %v1434, %v1438
  %1441 = vmatprep.subr.mxu0 0.0
  %1442 = vmatpush1.msra.mxu0 %v1324
  %1443 = vmatprep.subr.mxu0 0.0
  %1444 = vmatpush1.msra.mxu0 %v1325
  %1445 = vmatprep.subr.mxu0 0.0
  %1446 = vmatpush1.msra.mxu0 %v1326
  %1447 = vmatprep.subr.mxu0 0.0
  %1448 = vmatpush1.msra.mxu0 %v1327
  %1449 = vmatprep.subr.mxu0 0.0
  %1450 = vmatpush1.msra.mxu0 %v1328
  %1451 = vmatprep.subr.mxu0 0.0
  %1452 = vmatpush1.msra.mxu0 %v1329
  %1453 = vmatprep.subr.mxu0 0.0
  %1454 = vmatpush1.msra.mxu0 %v1330
  %1455 = vmatprep.subr.mxu0 0.0
  %1456 = vmatpush1.msra.mxu0 %v1331
  %1457 = vmatprep.subr.mxu0 0.0
  %1458 = vmatpush1.msra.mxu0 %v1332
  %1459 = vmatprep.subr.mxu0 0.0
  %1460 = vmatpush1.msra.mxu0 %v1333
  %1461 = vmatprep.subr.mxu0 0.0
  %1462 = vmatpush1.msra.mxu0 %v1334
  %1463 = vmatprep.subr.mxu0 0.0
  %1464 = vmatpush1.msra.mxu0 %v1335
  %1465 = vmatprep.subr.mxu0 0.0
  %1466 = vmatpush1.msra.mxu0 %v1336
  %1467 = vmatprep.subr.mxu0 0.0
  %1468 = vmatpush1.msra.mxu0 %v1337
  %1469 = vmatprep.subr.mxu0 0.0
  %1470 = vmatpush1.msra.mxu0 %v1338
  %1471 = vmatprep.subr.mxu0 0.0
  %1472 = vmatpush1.msra.mxu0 %v1339
  %1473 = vmatprep.subr.mxu0 0.0
  %1474 = vmatpush1.msra.mxu0 0.0
  %1475 = vmatprep.subr.mxu0 0.0
  %1476 = vmatpush1.msra.mxu0 0.0
  %1477 = vmatprep.subr.mxu0 0.0
  %1478 = vmatpush1.msra.mxu0 0.0
  %1479 = vmatprep.subr.mxu0 0.0
  %1480 = vmatpush1.msra.mxu0 0.0
  %1481 = vmatprep.subr.mxu0 0.0
  %1482 = vmatpush1.msra.mxu0 0.0
  %1483 = vmatprep.subr.mxu0 0.0
  %1484 = vmatpush1.msra.mxu0 0.0
  %1485 = vmatprep.subr.mxu0 0.0
  %1486 = vmatpush1.msra.mxu0 0.0
  %1487 = vmatprep.subr.mxu0 0.0
  %1488 = vmatpush1.msra.mxu0 0.0
  %1489 = vmatprep.subr.mxu0 0.0
  %1490 = vmatpush1.msra.mxu0 0.0
  %1491 = vmatprep.subr.mxu0 0.0
  %1492 = vmatpush1.msra.mxu0 0.0
  %1493 = vmatprep.subr.mxu0 0.0
  %1494 = vmatpush1.msra.mxu0 0.0
  %1495 = vmatprep.subr.mxu0 0.0
  %1496 = vmatpush1.msra.mxu0 0.0
  %1497 = vmatprep.subr.mxu0 0.0
  %1498 = vmatpush1.msra.mxu0 0.0
  %1499 = vmatprep.subr.mxu0 0.0
  %1500 = vmatpush1.msra.mxu0 0.0
  %1501 = vmatprep.subr.mxu0 0.0
  %1502 = vmatpush1.msra.mxu0 0.0
  %1503 = vmatprep.subr.mxu0 0.0
  %1504 = vmatpush1.msra.mxu0 0.0
  %1505 = vmatprep.mubr.f32.mxu0 0.0
  %1506 = vmatmul.mubr.f32.gmra.mrb[0].mxu0 %v1439
  %v1507 = vpop.f32.mrb[0].mxu0
  %v1508 = vadd.f32 0.0, %v1507
  %v1509 = vpop.f32.mrb[0].mxu0
  %1510 = vmatprep.mubr.f32.mxu0 0.0
  %1511 = vmatmul.mubr.f32.gmra.mrb[0].mxu0 %v1440
  %v1512 = vpop.f32.mrb[0].mxu0
  %v1513 = vadd.f32 0.0, %v1512
  %v1514 = vpop.f32.mrb[0].mxu0
  %1515 = vdwg.mxu0
  %v1516 = vtanh.pop %v1508
  %v1517 = vtanh.pop %v1513
  %v1518 = vlaneseq
  %v1519 = vshrl.u32 %v1518, 7
  %v1520 = vsub.s32 2, %v1519
  %v1521 = vrot.slane %v1322, %v1520
  %v1522 = vmul.f32 %v1516, %v1521
  %v1523 = vmul.f32 %v1517, %v1521
  %v1524 = vlaneseq
  %v1525 = vshrl.u32 %v1524, 7
  %v1526 = vsub.s32 3, %v1525
  %v1527 = vrot.slane %v1322, %v1526
  %v1528 = vadd.f32 %v1522, %v1527
  %v1529 = vadd.f32 %v1523, %v1527
  %v1531 = vsel %vm378, %v1528, 0
  %v1534 = vsel %vm378, %v1529, 0
  %1536 = vmatprep.subr.mxu0 %v65
  %1537 = vmatpush1.msra.mxu0 %v64
  %1538 = vmatprep.subr.mxu0 %v71
  %1539 = vmatpush1.msra.mxu0 %v70
  %1540 = vmatprep.subr.mxu0 %v77
  %1541 = vmatpush1.msra.mxu0 %v76
  %1542 = vmatprep.subr.mxu0 0.0
  %1543 = vmatpush1.msra.mxu0 0.0
  %1544 = vmatprep.subr.mxu0 0.0
  %1545 = vmatpush1.msra.mxu0 0.0
  %1546 = vmatprep.subr.mxu0 0.0
  %1547 = vmatpush1.msra.mxu0 0.0
  %1548 = vmatprep.subr.mxu0 0.0
  %1549 = vmatpush1.msra.mxu0 0.0
  %1550 = vmatprep.subr.mxu0 0.0
  %1551 = vmatpush1.msra.mxu0 0.0
  %1552 = vmatprep.subr.mxu0 0.0
  %1553 = vmatpush1.msra.mxu0 0.0
  %1554 = vmatprep.subr.mxu0 0.0
  %1555 = vmatpush1.msra.mxu0 0.0
  %1556 = vmatprep.subr.mxu0 0.0
  %1557 = vmatpush1.msra.mxu0 0.0
  %1558 = vmatprep.subr.mxu0 0.0
  %1559 = vmatpush1.msra.mxu0 0.0
  %1560 = vmatprep.subr.mxu0 0.0
  %1561 = vmatpush1.msra.mxu0 0.0
  %1562 = vmatprep.subr.mxu0 0.0
  %1563 = vmatpush1.msra.mxu0 0.0
  %1564 = vmatprep.subr.mxu0 0.0
  %1565 = vmatpush1.msra.mxu0 0.0
  %1566 = vmatprep.subr.mxu0 0.0
  %1567 = vmatpush1.msra.mxu0 0.0
  %1568 = vmatprep.subr.mxu0 0.0
  %1569 = vmatpush1.msra.mxu0 0.0
  %1570 = vmatprep.subr.mxu0 0.0
  %1571 = vmatpush1.msra.mxu0 0.0
  %1572 = vmatprep.subr.mxu0 0.0
  %1573 = vmatpush1.msra.mxu0 0.0
  %1574 = vmatprep.subr.mxu0 0.0
  %1575 = vmatpush1.msra.mxu0 0.0
  %1576 = vmatprep.subr.mxu0 0.0
  %1577 = vmatpush1.msra.mxu0 0.0
  %1578 = vmatprep.subr.mxu0 0.0
  %1579 = vmatpush1.msra.mxu0 0.0
  %1580 = vmatprep.subr.mxu0 0.0
  %1581 = vmatpush1.msra.mxu0 0.0
  %1582 = vmatprep.subr.mxu0 0.0
  %1583 = vmatpush1.msra.mxu0 0.0
  %1584 = vmatprep.subr.mxu0 0.0
  %1585 = vmatpush1.msra.mxu0 0.0
  %1586 = vmatprep.subr.mxu0 0.0
  %1587 = vmatpush1.msra.mxu0 0.0
  %1588 = vmatprep.subr.mxu0 0.0
  %1589 = vmatpush1.msra.mxu0 0.0
  %1590 = vmatprep.subr.mxu0 0.0
  %1591 = vmatpush1.msra.mxu0 0.0
  %1592 = vmatprep.subr.mxu0 0.0
  %1593 = vmatpush1.msra.mxu0 0.0
  %1594 = vmatprep.subr.mxu0 0.0
  %1595 = vmatpush1.msra.mxu0 0.0
  %1596 = vmatprep.subr.mxu0 0.0
  %1597 = vmatpush1.msra.mxu0 0.0
  %1598 = vmatprep.subr.mxu0 0.0
  %1599 = vmatpush1.msra.mxu0 0.0
  %1600 = vmatprep.mubr.f32.mxu0 0.0
  %1601 = vmatmul.mubr.f32.gmra.mrb[0].mxu0 %v1531
  %v1602 = vpop.f32.mrb[0].mxu0
  %v1603 = vadd.f32 0.0, %v1602
  %v1604 = vpop.f32.mrb[0].mxu0
  %v1605 = vadd.f32 0.0, %v1604
  %1606 = vmatprep.mubr.f32.mxu0 0.0
  %1607 = vmatmul.mubr.f32.gmra.mrb[0].mxu0 %v1534
  %v1608 = vpop.f32.mrb[0].mxu0
  %v1609 = vadd.f32 0.0, %v1608
  %v1610 = vpop.f32.mrb[0].mxu0
  %v1611 = vadd.f32 0.0, %v1610
  %1612 = vdwg.mxu0
  %1613 = vmatprep.subr.mxu0 %v67
  %1614 = vmatpush1.msra.mxu0 %v66
  %1615 = vmatprep.subr.mxu0 %v73
  %1616 = vmatpush1.msra.mxu0 %v72
  %1617 = vmatprep.subr.mxu0 %v79
  %1618 = vmatpush1.msra.mxu0 %v78
  %1619 = vmatprep.subr.mxu0 0.0
  %1620 = vmatpush1.msra.mxu0 0.0
  %1621 = vmatprep.subr.mxu0 0.0
  %1622 = vmatpush1.msra.mxu0 0.0
  %1623 = vmatprep.subr.mxu0 0.0
  %1624 = vmatpush1.msra.mxu0 0.0
  %1625 = vmatprep.subr.mxu0 0.0
  %1626 = vmatpush1.msra.mxu0 0.0
  %1627 = vmatprep.subr.mxu0 0.0
  %1628 = vmatpush1.msra.mxu0 0.0
  %1629 = vmatprep.subr.mxu0 0.0
  %1630 = vmatpush1.msra.mxu0 0.0
  %1631 = vmatprep.subr.mxu0 0.0
  %1632 = vmatpush1.msra.mxu0 0.0
  %1633 = vmatprep.subr.mxu0 0.0
  %1634 = vmatpush1.msra.mxu0 0.0
  %1635 = vmatprep.subr.mxu0 0.0
  %1636 = vmatpush1.msra.mxu0 0.0
  %1637 = vmatprep.subr.mxu0 0.0
  %1638 = vmatpush1.msra.mxu0 0.0
  %1639 = vmatprep.subr.mxu0 0.0
  %1640 = vmatpush1.msra.mxu0 0.0
  %1641 = vmatprep.subr.mxu0 0.0
  %1642 = vmatpush1.msra.mxu0 0.0
  %1643 = vmatprep.subr.mxu0 0.0
  %1644 = vmatpush1.msra.mxu0 0.0
  %1645 = vmatprep.subr.mxu0 0.0
  %1646 = vmatpush1.msra.mxu0 0.0
  %1647 = vmatprep.subr.mxu0 0.0
  %1648 = vmatpush1.msra.mxu0 0.0
  %1649 = vmatprep.subr.mxu0 0.0
  %1650 = vmatpush1.msra.mxu0 0.0
  %1651 = vmatprep.subr.mxu0 0.0
  %1652 = vmatpush1.msra.mxu0 0.0
  %1653 = vmatprep.subr.mxu0 0.0
  %1654 = vmatpush1.msra.mxu0 0.0
  %1655 = vmatprep.subr.mxu0 0.0
  %1656 = vmatpush1.msra.mxu0 0.0
  %1657 = vmatprep.subr.mxu0 0.0
  %1658 = vmatpush1.msra.mxu0 0.0
  %1659 = vmatprep.subr.mxu0 0.0
  %1660 = vmatpush1.msra.mxu0 0.0
  %1661 = vmatprep.subr.mxu0 0.0
  %1662 = vmatpush1.msra.mxu0 0.0
  %1663 = vmatprep.subr.mxu0 0.0
  %1664 = vmatpush1.msra.mxu0 0.0
  %1665 = vmatprep.subr.mxu0 0.0
  %1666 = vmatpush1.msra.mxu0 0.0
  %1667 = vmatprep.subr.mxu0 0.0
  %1668 = vmatpush1.msra.mxu0 0.0
  %1669 = vmatprep.subr.mxu0 0.0
  %1670 = vmatpush1.msra.mxu0 0.0
  %1671 = vmatprep.subr.mxu0 0.0
  %1672 = vmatpush1.msra.mxu0 0.0
  %1673 = vmatprep.subr.mxu0 0.0
  %1674 = vmatpush1.msra.mxu0 0.0
  %1675 = vmatprep.subr.mxu0 0.0
  %1676 = vmatpush1.msra.mxu0 0.0
  %1677 = vmatprep.mubr.f32.mxu0 0.0
  %1678 = vmatmul.mubr.f32.gmra.mrb[0].mxu0 %v1531
  %v1679 = vpop.f32.mrb[0].mxu0
  %v1680 = vadd.f32 0.0, %v1679
  %v1681 = vpop.f32.mrb[0].mxu0
  %v1682 = vadd.f32 0.0, %v1681
  %1683 = vmatprep.mubr.f32.mxu0 0.0
  %1684 = vmatmul.mubr.f32.gmra.mrb[0].mxu0 %v1534
  %v1685 = vpop.f32.mrb[0].mxu0
  %v1686 = vadd.f32 0.0, %v1685
  %v1687 = vpop.f32.mrb[0].mxu0
  %v1688 = vadd.f32 0.0, %v1687
  %1689 = vdwg.mxu0
  %1690 = vmatprep.subr.mxu0 %v69
  %1691 = vmatpush1.msra.mxu0 %v68
  %1692 = vmatprep.subr.mxu0 %v75
  %1693 = vmatpush1.msra.mxu0 %v74
  %1694 = vmatprep.subr.mxu0 %v81
  %1695 = vmatpush1.msra.mxu0 %v80
  %1696 = vmatprep.subr.mxu0 0.0
  %1697 = vmatpush1.msra.mxu0 0.0
  %1698 = vmatprep.subr.mxu0 0.0
  %1699 = vmatpush1.msra.mxu0 0.0
  %1700 = vmatprep.subr.mxu0 0.0
  %1701 = vmatpush1.msra.mxu0 0.0
  %1702 = vmatprep.subr.mxu0 0.0
  %1703 = vmatpush1.msra.mxu0 0.0
  %1704 = vmatprep.subr.mxu0 0.0
  %1705 = vmatpush1.msra.mxu0 0.0
  %1706 = vmatprep.subr.mxu0 0.0
  %1707 = vmatpush1.msra.mxu0 0.0
  %1708 = vmatprep.subr.mxu0 0.0
  %1709 = vmatpush1.msra.mxu0 0.0
  %1710 = vmatprep.subr.mxu0 0.0
  %1711 = vmatpush1.msra.mxu0 0.0
  %1712 = vmatprep.subr.mxu0 0.0
  %1713 = vmatpush1.msra.mxu0 0.0
  %1714 = vmatprep.subr.mxu0 0.0
  %1715 = vmatpush1.msra.mxu0 0.0
  %1716 = vmatprep.subr.mxu0 0.0
  %1717 = vmatpush1.msra.mxu0 0.0
  %1718 = vmatprep.subr.mxu0 0.0
  %1719 = vmatpush1.msra.mxu0 0.0
  %1720 = vmatprep.subr.mxu0 0.0
  %1721 = vmatpush1.msra.mxu0 0.0
  %1722 = vmatprep.subr.mxu0 0.0
  %1723 = vmatpush1.msra.mxu0 0.0
  %1724 = vmatprep.subr.mxu0 0.0
  %1725 = vmatpush1.msra.mxu0 0.0
  %1726 = vmatprep.subr.mxu0 0.0
  %1727 = vmatpush1.msra.mxu0 0.0
  %1728 = vmatprep.subr.mxu0 0.0
  %1729 = vmatpush1.msra.mxu0 0.0
  %1730 = vmatprep.subr.mxu0 0.0
  %1731 = vmatpush1.msra.mxu0 0.0
  %1732 = vmatprep.subr.mxu0 0.0
  %1733 = vmatpush1.msra.mxu0 0.0
  %1734 = vmatprep.subr.mxu0 0.0
  %1735 = vmatpush1.msra.mxu0 0.0
  %1736 = vmatprep.subr.mxu0 0.0
  %1737 = vmatpush1.msra.mxu0 0.0
  %1738 = vmatprep.subr.mxu0 0.0
  %1739 = vmatpush1.msra.mxu0 0.0
  %1740 = vmatprep.subr.mxu0 0.0
  %1741 = vmatpush1.msra.mxu0 0.0
  %1742 = vmatprep.subr.mxu0 0.0
  %1743 = vmatpush1.msra.mxu0 0.0
  %1744 = vmatprep.subr.mxu0 0.0
  %1745 = vmatpush1.msra.mxu0 0.0
  %1746 = vmatprep.subr.mxu0 0.0
  %1747 = vmatpush1.msra.mxu0 0.0
  %1748 = vmatprep.subr.mxu0 0.0
  %1749 = vmatpush1.msra.mxu0 0.0
  %1750 = vmatprep.subr.mxu0 0.0
  %1751 = vmatpush1.msra.mxu0 0.0
  %1752 = vmatprep.subr.mxu0 0.0
  %1753 = vmatpush1.msra.mxu0 0.0
  %1754 = vmatprep.mubr.f32.mxu0 0.0
  %1755 = vmatmul.mubr.f32.gmra.mrb[0].mxu0 %v1531
  %v1756 = vpop.f32.mrb[0].mxu0
  %v1757 = vadd.f32 0.0, %v1756
  %v1758 = vpop.f32.mrb[0].mxu0
  %v1759 = vadd.f32 0.0, %v1758
  %1760 = vmatprep.mubr.f32.mxu0 0.0
  %1761 = vmatmul.mubr.f32.gmra.mrb[0].mxu0 %v1534
  %v1762 = vpop.f32.mrb[0].mxu0
  %v1763 = vadd.f32 0.0, %v1762
  %v1764 = vpop.f32.mrb[0].mxu0
  %v1765 = vadd.f32 0.0, %v1764
  %1766 = vdwg.mxu0
  %v1767 = vmul.f32 %v1319, %v1603
  %v1768 = vmul.f32 %v1320, %v1609
  %1769 = vmatprep.subr.mxu0 0.0
  %1770 = vmatpush1.msra.mxu0 %v48
  %1771 = vmatprep.subr.mxu0 0.0
  %1772 = vmatpush1.msra.mxu0 %v49
  %1773 = vmatprep.subr.mxu0 0.0
  %1774 = vmatpush1.msra.mxu0 %v50
  %1775 = vmatprep.subr.mxu0 0.0
  %1776 = vmatpush1.msra.mxu0 %v51
  %1777 = vmatprep.subr.mxu0 0.0
  %1778 = vmatpush1.msra.mxu0 %v52
  %1779 = vmatprep.subr.mxu0 0.0
  %1780 = vmatpush1.msra.mxu0 %v53
  %1781 = vmatprep.subr.mxu0 0.0
  %1782 = vmatpush1.msra.mxu0 %v54
  %1783 = vmatprep.subr.mxu0 0.0
  %1784 = vmatpush1.msra.mxu0 %v55
  %1785 = vmatprep.subr.mxu0 0.0
  %1786 = vmatpush1.msra.mxu0 %v56
  %1787 = vmatprep.subr.mxu0 0.0
  %1788 = vmatpush1.msra.mxu0 %v57
  %1789 = vmatprep.subr.mxu0 0.0
  %1790 = vmatpush1.msra.mxu0 %v58
  %1791 = vmatprep.subr.mxu0 0.0
  %1792 = vmatpush1.msra.mxu0 %v59
  %1793 = vmatprep.subr.mxu0 0.0
  %1794 = vmatpush1.msra.mxu0 %v60
  %1795 = vmatprep.subr.mxu0 0.0
  %1796 = vmatpush1.msra.mxu0 %v61
  %1797 = vmatprep.subr.mxu0 0.0
  %1798 = vmatpush1.msra.mxu0 %v62
  %1799 = vmatprep.subr.mxu0 0.0
  %1800 = vmatpush1.msra.mxu0 %v63
  %1801 = vmatprep.subr.mxu0 0.0
  %1802 = vmatpush1.msra.mxu0 0.0
  %1803 = vmatprep.subr.mxu0 0.0
  %1804 = vmatpush1.msra.mxu0 0.0
  %1805 = vmatprep.subr.mxu0 0.0
  %1806 = vmatpush1.msra.mxu0 0.0
  %1807 = vmatprep.subr.mxu0 0.0
  %1808 = vmatpush1.msra.mxu0 0.0
  %1809 = vmatprep.subr.mxu0 0.0
  %1810 = vmatpush1.msra.mxu0 0.0
  %1811 = vmatprep.subr.mxu0 0.0
  %1812 = vmatpush1.msra.mxu0 0.0
  %1813 = vmatprep.subr.mxu0 0.0
  %1814 = vmatpush1.msra.mxu0 0.0
  %1815 = vmatprep.subr.mxu0 0.0
  %1816 = vmatpush1.msra.mxu0 0.0
  %1817 = vmatprep.subr.mxu0 0.0
  %1818 = vmatpush1.msra.mxu0 0.0
  %1819 = vmatprep.subr.mxu0 0.0
  %1820 = vmatpush1.msra.mxu0 0.0
  %1821 = vmatprep.subr.mxu0 0.0
  %1822 = vmatpush1.msra.mxu0 0.0
  %1823 = vmatprep.subr.mxu0 0.0
  %1824 = vmatpush1.msra.mxu0 0.0
  %1825 = vmatprep.subr.mxu0 0.0
  %1826 = vmatpush1.msra.mxu0 0.0
  %1827 = vmatprep.subr.mxu0 0.0
  %1828 = vmatpush1.msra.mxu0 0.0
  %1829 = vmatprep.subr.mxu0 0.0
  %1830 = vmatpush1.msra.mxu0 0.0
  %1831 = vmatprep.subr.mxu0 0.0
  %1832 = vmatpush1.msra.mxu0 0.0
  %1833 = vmatprep.mubr.f32.mxu0 0.0
  %1834 = vmatmul.mubr.f32.gmra.mrb[0].mxu0 %v1767
  %v1835 = vpop.f32.mrb[0].mxu0
  %v1836 = vadd.f32 0.0, %v1835
  %v1837 = vpop.f32.mrb[0].mxu0
  %1838 = vmatprep.mubr.f32.mxu0 0.0
  %1839 = vmatmul.mubr.f32.gmra.mrb[0].mxu0 %v1768
  %v1840 = vpop.f32.mrb[0].mxu0
  %v1841 = vadd.f32 0.0, %v1840
  %v1842 = vpop.f32.mrb[0].mxu0
  %1843 = vdwg.mxu0
  %v1844 = vmul.f32 %v1319, %v1605
  %v1845 = vmul.f32 %v1320, %v1611
  %1846 = vmatprep.subr.mxu0 0.0
  %1847 = vmatpush1.msra.mxu0 %v48
  %1848 = vmatprep.subr.mxu0 0.0
  %1849 = vmatpush1.msra.mxu0 %v49
  %1850 = vmatprep.subr.mxu0 0.0
  %1851 = vmatpush1.msra.mxu0 %v50
  %1852 = vmatprep.subr.mxu0 0.0
  %1853 = vmatpush1.msra.mxu0 %v51
  %1854 = vmatprep.subr.mxu0 0.0
  %1855 = vmatpush1.msra.mxu0 %v52
  %1856 = vmatprep.subr.mxu0 0.0
  %1857 = vmatpush1.msra.mxu0 %v53
  %1858 = vmatprep.subr.mxu0 0.0
  %1859 = vmatpush1.msra.mxu0 %v54
  %1860 = vmatprep.subr.mxu0 0.0
  %1861 = vmatpush1.msra.mxu0 %v55
  %1862 = vmatprep.subr.mxu0 0.0
  %1863 = vmatpush1.msra.mxu0 %v56
  %1864 = vmatprep.subr.mxu0 0.0
  %1865 = vmatpush1.msra.mxu0 %v57
  %1866 = vmatprep.subr.mxu0 0.0
  %1867 = vmatpush1.msra.mxu0 %v58
  %1868 = vmatprep.subr.mxu0 0.0
  %1869 = vmatpush1.msra.mxu0 %v59
  %1870 = vmatprep.subr.mxu0 0.0
  %1871 = vmatpush1.msra.mxu0 %v60
  %1872 = vmatprep.subr.mxu0 0.0
  %1873 = vmatpush1.msra.mxu0 %v61
  %1874 = vmatprep.subr.mxu0 0.0
  %1875 = vmatpush1.msra.mxu0 %v62
  %1876 = vmatprep.subr.mxu0 0.0
  %1877 = vmatpush1.msra.mxu0 %v63
  %1878 = vmatprep.subr.mxu0 0.0
  %1879 = vmatpush1.msra.mxu0 0.0
  %1880 = vmatprep.subr.mxu0 0.0
  %1881 = vmatpush1.msra.mxu0 0.0
  %1882 = vmatprep.subr.mxu0 0.0
  %1883 = vmatpush1.msra.mxu0 0.0
  %1884 = vmatprep.subr.mxu0 0.0
  %1885 = vmatpush1.msra.mxu0 0.0
  %1886 = vmatprep.subr.mxu0 0.0
  %1887 = vmatpush1.msra.mxu0 0.0
  %1888 = vmatprep.subr.mxu0 0.0
  %1889 = vmatpush1.msra.mxu0 0.0
  %1890 = vmatprep.subr.mxu0 0.0
  %1891 = vmatpush1.msra.mxu0 0.0
  %1892 = vmatprep.subr.mxu0 0.0
  %1893 = vmatpush1.msra.mxu0 0.0
  %1894 = vmatprep.subr.mxu0 0.0
  %1895 = vmatpush1.msra.mxu0 0.0
  %1896 = vmatprep.subr.mxu0 0.0
  %1897 = vmatpush1.msra.mxu0 0.0
  %1898 = vmatprep.subr.mxu0 0.0
  %1899 = vmatpush1.msra.mxu0 0.0
  %1900 = vmatprep.subr.mxu0 0.0
  %1901 = vmatpush1.msra.mxu0 0.0
  %1902 = vmatprep.subr.mxu0 0.0
  %1903 = vmatpush1.msra.mxu0 0.0
  %1904 = vmatprep.subr.mxu0 0.0
  %1905 = vmatpush1.msra.mxu0 0.0
  %1906 = vmatprep.subr.mxu0 0.0
  %1907 = vmatpush1.msra.mxu0 0.0
  %1908 = vmatprep.subr.mxu0 0.0
  %1909 = vmatpush1.msra.mxu0 0.0
  %1910 = vmatprep.mubr.f32.mxu0 0.0
  %1911 = vmatmul.mubr.f32.gmra.mrb[0].mxu0 %v1844
  %v1912 = vpop.f32.mrb[0].mxu0
  %v1913 = vadd.f32 0.0, %v1912
  %v1914 = vpop.f32.mrb[0].mxu0
  %1915 = vmatprep.mubr.f32.mxu0 0.0
  %1916 = vmatmul.mubr.f32.gmra.mrb[0].mxu0 %v1845
  %v1917 = vpop.f32.mrb[0].mxu0
  %v1918 = vadd.f32 0.0, %v1917
  %v1919 = vpop.f32.mrb[0].mxu0
  %1920 = vdwg.mxu0
  %v1921 = vmul.f32 %v1319, %v1680
  %v1922 = vmul.f32 %v1320, %v1686
  %1923 = vmatprep.subr.mxu0 0.0
  %1924 = vmatpush1.msra.mxu0 %v48
  %1925 = vmatprep.subr.mxu0 0.0
  %1926 = vmatpush1.msra.mxu0 %v49
  %1927 = vmatprep.subr.mxu0 0.0
  %1928 = vmatpush1.msra.mxu0 %v50
  %1929 = vmatprep.subr.mxu0 0.0
  %1930 = vmatpush1.msra.mxu0 %v51
  %1931 = vmatprep.subr.mxu0 0.0
  %1932 = vmatpush1.msra.mxu0 %v52
  %1933 = vmatprep.subr.mxu0 0.0
  %1934 = vmatpush1.msra.mxu0 %v53
  %1935 = vmatprep.subr.mxu0 0.0
  %1936 = vmatpush1.msra.mxu0 %v54
  %1937 = vmatprep.subr.mxu0 0.0
  %1938 = vmatpush1.msra.mxu0 %v55
  %1939 = vmatprep.subr.mxu0 0.0
  %1940 = vmatpush1.msra.mxu0 %v56
  %1941 = vmatprep.subr.mxu0 0.0
  %1942 = vmatpush1.msra.mxu0 %v57
  %1943 = vmatprep.subr.mxu0 0.0
  %1944 = vmatpush1.msra.mxu0 %v58
  %1945 = vmatprep.subr.mxu0 0.0
  %1946 = vmatpush1.msra.mxu0 %v59
  %1947 = vmatprep.subr.mxu0 0.0
  %1948 = vmatpush1.msra.mxu0 %v60
  %1949 = vmatprep.subr.mxu0 0.0
  %1950 = vmatpush1.msra.mxu0 %v61
  %1951 = vmatprep.subr.mxu0 0.0
  %1952 = vmatpush1.msra.mxu0 %v62
  %1953 = vmatprep.subr.mxu0 0.0
  %1954 = vmatpush1.msra.mxu0 %v63
  %1955 = vmatprep.subr.mxu0 0.0
  %1956 = vmatpush1.msra.mxu0 0.0
  %1957 = vmatprep.subr.mxu0 0.0
  %1958 = vmatpush1.msra.mxu0 0.0
  %1959 = vmatprep.subr.mxu0 0.0
  %1960 = vmatpush1.msra.mxu0 0.0
  %1961 = vmatprep.subr.mxu0 0.0
  %1962 = vmatpush1.msra.mxu0 0.0
  %1963 = vmatprep.subr.mxu0 0.0
  %1964 = vmatpush1.msra.mxu0 0.0
  %1965 = vmatprep.subr.mxu0 0.0
  %1966 = vmatpush1.msra.mxu0 0.0
  %1967 = vmatprep.subr.mxu0 0.0
  %1968 = vmatpush1.msra.mxu0 0.0
  %1969 = vmatprep.subr.mxu0 0.0
  %1970 = vmatpush1.msra.mxu0 0.0
  %1971 = vmatprep.subr.mxu0 0.0
  %1972 = vmatpush1.msra.mxu0 0.0
  %1973 = vmatprep.subr.mxu0 0.0
  %1974 = vmatpush1.msra.mxu0 0.0
  %1975 = vmatprep.subr.mxu0 0.0
  %1976 = vmatpush1.msra.mxu0 0.0
  %1977 = vmatprep.subr.mxu0 0.0
  %1978 = vmatpush1.msra.mxu0 0.0
  %1979 = vmatprep.subr.mxu0 0.0
  %1980 = vmatpush1.msra.mxu0 0.0
  %1981 = vmatprep.subr.mxu0 0.0
  %1982 = vmatpush1.msra.mxu0 0.0
  %1983 = vmatprep.subr.mxu0 0.0
  %1984 = vmatpush1.msra.mxu0 0.0
  %1985 = vmatprep.subr.mxu0 0.0
  %1986 = vmatpush1.msra.mxu0 0.0
  %1987 = vmatprep.mubr.f32.mxu0 0.0
  %1988 = vmatmul.mubr.f32.gmra.mrb[0].mxu0 %v1921
  %v1989 = vpop.f32.mrb[0].mxu0
  %v1990 = vadd.f32 0.0, %v1989
  %v1991 = vpop.f32.mrb[0].mxu0
  %1992 = vmatprep.mubr.f32.mxu0 0.0
  %1993 = vmatmul.mubr.f32.gmra.mrb[0].mxu0 %v1922
  %v1994 = vpop.f32.mrb[0].mxu0
  %v1995 = vadd.f32 0.0, %v1994
  %v1996 = vpop.f32.mrb[0].mxu0
  %1997 = vdwg.mxu0
  %v1998 = vmul.f32 %v1319, %v1682
  %v1999 = vmul.f32 %v1320, %v1688
  %2000 = vmatprep.subr.mxu0 0.0
  %2001 = vmatpush1.msra.mxu0 %v48
  %2002 = vmatprep.subr.mxu0 0.0
  %2003 = vmatpush1.msra.mxu0 %v49
  %2004 = vmatprep.subr.mxu0 0.0
  %2005 = vmatpush1.msra.mxu0 %v50
  %2006 = vmatprep.subr.mxu0 0.0
  %2007 = vmatpush1.msra.mxu0 %v51
  %2008 = vmatprep.subr.mxu0 0.0
  %2009 = vmatpush1.msra.mxu0 %v52
  %2010 = vmatprep.subr.mxu0 0.0
  %2011 = vmatpush1.msra.mxu0 %v53
  %2012 = vmatprep.subr.mxu0 0.0
  %2013 = vmatpush1.msra.mxu0 %v54
  %2014 = vmatprep.subr.mxu0 0.0
  %2015 = vmatpush1.msra.mxu0 %v55
  %2016 = vmatprep.subr.mxu0 0.0
  %2017 = vmatpush1.msra.mxu0 %v56
  %2018 = vmatprep.subr.mxu0 0.0
  %2019 = vmatpush1.msra.mxu0 %v57
  %2020 = vmatprep.subr.mxu0 0.0
  %2021 = vmatpush1.msra.mxu0 %v58
  %2022 = vmatprep.subr.mxu0 0.0
  %2023 = vmatpush1.msra.mxu0 %v59
  %2024 = vmatprep.subr.mxu0 0.0
  %2025 = vmatpush1.msra.mxu0 %v60
  %2026 = vmatprep.subr.mxu0 0.0
  %2027 = vmatpush1.msra.mxu0 %v61
  %2028 = vmatprep.subr.mxu0 0.0
  %2029 = vmatpush1.msra.mxu0 %v62
  %2030 = vmatprep.subr.mxu0 0.0
  %2031 = vmatpush1.msra.mxu0 %v63
  %2032 = vmatprep.subr.mxu0 0.0
  %2033 = vmatpush1.msra.mxu0 0.0
  %2034 = vmatprep.subr.mxu0 0.0
  %2035 = vmatpush1.msra.mxu0 0.0
  %2036 = vmatprep.subr.mxu0 0.0
  %2037 = vmatpush1.msra.mxu0 0.0
  %2038 = vmatprep.subr.mxu0 0.0
  %2039 = vmatpush1.msra.mxu0 0.0
  %2040 = vmatprep.subr.mxu0 0.0
  %2041 = vmatpush1.msra.mxu0 0.0
  %2042 = vmatprep.subr.mxu0 0.0
  %2043 = vmatpush1.msra.mxu0 0.0
  %2044 = vmatprep.subr.mxu0 0.0
  %2045 = vmatpush1.msra.mxu0 0.0
  %2046 = vmatprep.subr.mxu0 0.0
  %2047 = vmatpush1.msra.mxu0 0.0
  %2048 = vmatprep.subr.mxu0 0.0
  %2049 = vmatpush1.msra.mxu0 0.0
  %2050 = vmatprep.subr.mxu0 0.0
  %2051 = vmatpush1.msra.mxu0 0.0
  %2052 = vmatprep.subr.mxu0 0.0
  %2053 = vmatpush1.msra.mxu0 0.0
  %2054 = vmatprep.subr.mxu0 0.0
  %2055 = vmatpush1.msra.mxu0 0.0
  %2056 = vmatprep.subr.mxu0 0.0
  %2057 = vmatpush1.msra.mxu0 0.0
  %2058 = vmatprep.subr.mxu0 0.0
  %2059 = vmatpush1.msra.mxu0 0.0
  %2060 = vmatprep.subr.mxu0 0.0
  %2061 = vmatpush1.msra.mxu0 0.0
  %2062 = vmatprep.subr.mxu0 0.0
  %2063 = vmatpush1.msra.mxu0 0.0
  %2064 = vmatprep.mubr.f32.mxu0 0.0
  %2065 = vmatmul.mubr.f32.gmra.mrb[0].mxu0 %v1998
  %v2066 = vpop.f32.mrb[0].mxu0
  %v2067 = vadd.f32 0.0, %v2066
  %v2068 = vpop.f32.mrb[0].mxu0
  %2069 = vmatprep.mubr.f32.mxu0 0.0
  %2070 = vmatmul.mubr.f32.gmra.mrb[0].mxu0 %v1999
  %v2071 = vpop.f32.mrb[0].mxu0
  %v2072 = vadd.f32 0.0, %v2071
  %v2073 = vpop.f32.mrb[0].mxu0
  %2074 = vdwg.mxu0
  %v2075 = vmul.f32 %v1319, %v1757
  %v2076 = vmul.f32 %v1320, %v1763
  %2077 = vmatprep.subr.mxu0 0.0
  %2078 = vmatpush1.msra.mxu0 %v48
  %2079 = vmatprep.subr.mxu0 0.0
  %2080 = vmatpush1.msra.mxu0 %v49
  %2081 = vmatprep.subr.mxu0 0.0
  %2082 = vmatpush1.msra.mxu0 %v50
  %2083 = vmatprep.subr.mxu0 0.0
  %2084 = vmatpush1.msra.mxu0 %v51
  %2085 = vmatprep.subr.mxu0 0.0
  %2086 = vmatpush1.msra.mxu0 %v52
  %2087 = vmatprep.subr.mxu0 0.0
  %2088 = vmatpush1.msra.mxu0 %v53
  %2089 = vmatprep.subr.mxu0 0.0
  %2090 = vmatpush1.msra.mxu0 %v54
  %2091 = vmatprep.subr.mxu0 0.0
  %2092 = vmatpush1.msra.mxu0 %v55
  %2093 = vmatprep.subr.mxu0 0.0
  %2094 = vmatpush1.msra.mxu0 %v56
  %2095 = vmatprep.subr.mxu0 0.0
  %2096 = vmatpush1.msra.mxu0 %v57
  %2097 = vmatprep.subr.mxu0 0.0
  %2098 = vmatpush1.msra.mxu0 %v58
  %2099 = vmatprep.subr.mxu0 0.0
  %2100 = vmatpush1.msra.mxu0 %v59
  %2101 = vmatprep.subr.mxu0 0.0
  %2102 = vmatpush1.msra.mxu0 %v60
  %2103 = vmatprep.subr.mxu0 0.0
  %2104 = vmatpush1.msra.mxu0 %v61
  %2105 = vmatprep.subr.mxu0 0.0
  %2106 = vmatpush1.msra.mxu0 %v62
  %2107 = vmatprep.subr.mxu0 0.0
  %2108 = vmatpush1.msra.mxu0 %v63
  %2109 = vmatprep.subr.mxu0 0.0
  %2110 = vmatpush1.msra.mxu0 0.0
  %2111 = vmatprep.subr.mxu0 0.0
  %2112 = vmatpush1.msra.mxu0 0.0
  %2113 = vmatprep.subr.mxu0 0.0
  %2114 = vmatpush1.msra.mxu0 0.0
  %2115 = vmatprep.subr.mxu0 0.0
  %2116 = vmatpush1.msra.mxu0 0.0
  %2117 = vmatprep.subr.mxu0 0.0
  %2118 = vmatpush1.msra.mxu0 0.0
  %2119 = vmatprep.subr.mxu0 0.0
  %2120 = vmatpush1.msra.mxu0 0.0
  %2121 = vmatprep.subr.mxu0 0.0
  %2122 = vmatpush1.msra.mxu0 0.0
  %2123 = vmatprep.subr.mxu0 0.0
  %2124 = vmatpush1.msra.mxu0 0.0
  %2125 = vmatprep.subr.mxu0 0.0
  %2126 = vmatpush1.msra.mxu0 0.0
  %2127 = vmatprep.subr.mxu0 0.0
  %2128 = vmatpush1.msra.mxu0 0.0
  %2129 = vmatprep.subr.mxu0 0.0
  %2130 = vmatpush1.msra.mxu0 0.0
  %2131 = vmatprep.subr.mxu0 0.0
  %2132 = vmatpush1.msra.mxu0 0.0
  %2133 = vmatprep.subr.mxu0 0.0
  %2134 = vmatpush1.msra.mxu0 0.0
  %2135 = vmatprep.subr.mxu0 0.0
  %2136 = vmatpush1.msra.mxu0 0.0
  %2137 = vmatprep.subr.mxu0 0.0
  %2138 = vmatpush1.msra.mxu0 0.0
  %2139 = vmatprep.subr.mxu0 0.0
  %2140 = vmatpush1.msra.mxu0 0.0
  %2141 = vmatprep.mubr.f32.mxu0 0.0
  %2142 = vmatmul.mubr.f32.gmra.mrb[0].mxu0 %v2075
  %v2143 = vpop.f32.mrb[0].mxu0
  %v2144 = vadd.f32 0.0, %v2143
  %v2145 = vpop.f32.mrb[0].mxu0
  %2146 = vmatprep.mubr.f32.mxu0 0.0
  %2147 = vmatmul.mubr.f32.gmra.mrb[0].mxu0 %v2076
  %v2148 = vpop.f32.mrb[0].mxu0
  %v2149 = vadd.f32 0.0, %v2148
  %v2150 = vpop.f32.mrb[0].mxu0
  %2151 = vdwg.mxu0
  %2154 = vrot.lane.b32.xlu0 %v1913, 32
  %v2155 = vpop.permute.xlu0 %2154
  %2156 = vrot.lane.b32.xlu0 %v1918, 32
  %v2157 = vpop.permute.xlu0 %2156
  %2162 = vrot.lane.b32.xlu0 %v1990, 64
  %v2163 = vpop.permute.xlu0 %2162
  %2164 = vrot.lane.b32.xlu0 %v1995, 64
  %v2165 = vpop.permute.xlu0 %2164
  %2170 = vrot.lane.b32.xlu0 %v2067, 96
  %v2171 = vpop.permute.xlu0 %2170
  %2172 = vrot.lane.b32.xlu0 %v2072, 96
  %v2173 = vpop.permute.xlu0 %2172
  %v2176 = vsel %vm1025, %v1836, %v2155
  %v2177 = vsel %vm1025, %v1841, %v2157
  %v2178 = vsel %vm1028, %v2176, %v2163
  %v2179 = vsel %vm1028, %v2177, %v2165
  %v2180 = vsel %vm1031, %v2178, %v2171
  %v2181 = vsel %vm1031, %v2179, %v2173
  %v2182 = vmul.f32 %v2144, %v2144
  %v2183 = vmul.f32 %v2149, %v2149
  %v2185 = vsel %vm1025, %v2182, 0
  %v2188 = vsel %vm1025, %v2183, 0
  %2190 = vmatprep.subr.mxu0 0.0
  %2191 = vmatpush1.msra.mxu0 %v1041
  %2192 = vmatprep.subr.mxu0 0.0
  %2193 = vmatpush1.msra.mxu0 %v1043
  %2194 = vmatprep.subr.mxu0 0.0
  %2195 = vmatpush1.msra.mxu0 %v1045
  %2196 = vmatprep.subr.mxu0 0.0
  %2197 = vmatpush1.msra.mxu0 %v1047
  %2198 = vmatprep.subr.mxu0 0.0
  %2199 = vmatpush1.msra.mxu0 0.0
  %2200 = vmatprep.subr.mxu0 0.0
  %2201 = vmatpush1.msra.mxu0 0.0
  %2202 = vmatprep.subr.mxu0 0.0
  %2203 = vmatpush1.msra.mxu0 0.0
  %2204 = vmatprep.subr.mxu0 0.0
  %2205 = vmatpush1.msra.mxu0 0.0
  %2206 = vmatprep.subr.mxu0 0.0
  %2207 = vmatpush1.msra.mxu0 0.0
  %2208 = vmatprep.subr.mxu0 0.0
  %2209 = vmatpush1.msra.mxu0 0.0
  %2210 = vmatprep.subr.mxu0 0.0
  %2211 = vmatpush1.msra.mxu0 0.0
  %2212 = vmatprep.subr.mxu0 0.0
  %2213 = vmatpush1.msra.mxu0 0.0
  %2214 = vmatprep.subr.mxu0 0.0
  %2215 = vmatpush1.msra.mxu0 0.0
  %2216 = vmatprep.subr.mxu0 0.0
  %2217 = vmatpush1.msra.mxu0 0.0
  %2218 = vmatprep.subr.mxu0 0.0
  %2219 = vmatpush1.msra.mxu0 0.0
  %2220 = vmatprep.subr.mxu0 0.0
  %2221 = vmatpush1.msra.mxu0 0.0
  %2222 = vmatprep.subr.mxu0 0.0
  %2223 = vmatpush1.msra.mxu0 0.0
  %2224 = vmatprep.subr.mxu0 0.0
  %2225 = vmatpush1.msra.mxu0 0.0
  %2226 = vmatprep.subr.mxu0 0.0
  %2227 = vmatpush1.msra.mxu0 0.0
  %2228 = vmatprep.subr.mxu0 0.0
  %2229 = vmatpush1.msra.mxu0 0.0
  %2230 = vmatprep.subr.mxu0 0.0
  %2231 = vmatpush1.msra.mxu0 0.0
  %2232 = vmatprep.subr.mxu0 0.0
  %2233 = vmatpush1.msra.mxu0 0.0
  %2234 = vmatprep.subr.mxu0 0.0
  %2235 = vmatpush1.msra.mxu0 0.0
  %2236 = vmatprep.subr.mxu0 0.0
  %2237 = vmatpush1.msra.mxu0 0.0
  %2238 = vmatprep.subr.mxu0 0.0
  %2239 = vmatpush1.msra.mxu0 0.0
  %2240 = vmatprep.subr.mxu0 0.0
  %2241 = vmatpush1.msra.mxu0 0.0
  %2242 = vmatprep.subr.mxu0 0.0
  %2243 = vmatpush1.msra.mxu0 0.0
  %2244 = vmatprep.subr.mxu0 0.0
  %2245 = vmatpush1.msra.mxu0 0.0
  %2246 = vmatprep.subr.mxu0 0.0
  %2247 = vmatpush1.msra.mxu0 0.0
  %2248 = vmatprep.subr.mxu0 0.0
  %2249 = vmatpush1.msra.mxu0 0.0
  %2250 = vmatprep.subr.mxu0 0.0
  %2251 = vmatpush1.msra.mxu0 0.0
  %2252 = vmatprep.subr.mxu0 0.0
  %2253 = vmatpush1.msra.mxu0 0.0
  %2254 = vmatprep.mubr.f32.mxu0 0.0
  %2255 = vmatmul.mubr.f32.gmra.mrb[0].mxu0 %v2185
  %v2256 = vpop.f32.mrb[0].mxu0
  %v2257 = vadd.f32 1.1920929e-07, %v2256
  %v2258 = vpop.f32.mrb[0].mxu0
  %2259 = vmatprep.mubr.f32.mxu0 0.0
  %2260 = vmatmul.mubr.f32.gmra.mrb[0].mxu0 %v2188
  %v2261 = vpop.f32.mrb[0].mxu0
  %v2262 = vadd.f32 1.1920929e-07, %v2261
  %v2263 = vpop.f32.mrb[0].mxu0
  %2264 = vdwg.mxu0
  %v2265 = vrsqrt.pop %v2257
  %v2266 = vrsqrt.pop %v2262
  %v2267 = vmul.f32 %v2144, %v2265
  %v2268 = vmul.f32 %v2149, %v2266
  %v2269 = vlaneseq
  %v2270 = vshrl.u32 %v2269, 7
  %v2271 = vsub.s32 1, %v2270
  %v2272 = vrot.slane %v1322, %v2271
  %v2273 = vmul.f32 %v2267, %v2272
  %v2274 = vmul.f32 %v2268, %v2272
  %v2275 = vlaneseq
  %v2276 = vshrl.u32 %v2275, 7
  %v2277 = vsub.s32 4, %v2276
  %v2278 = vrot.slane %v1322, %v2277
  %v2280 = vsel %vm1025, %v2273, 0
  %v2283 = vsel %vm1025, %v2274, 0
  %2285 = vmatprep.subr.mxu0 0.0
  %2286 = vmatpush1.msra.mxu0 %v1341
  %2287 = vmatprep.subr.mxu0 0.0
  %2288 = vmatpush1.msra.mxu0 %v1342
  %2289 = vmatprep.subr.mxu0 0.0
  %2290 = vmatpush1.msra.mxu0 %v1343
  %2291 = vmatprep.subr.mxu0 0.0
  %2292 = vmatpush1.msra.mxu0 %v1344
  %2293 = vmatprep.subr.mxu0 0.0
  %2294 = vmatpush1.msra.mxu0 0.0
  %2295 = vmatprep.subr.mxu0 0.0
  %2296 = vmatpush1.msra.mxu0 0.0
  %2297 = vmatprep.subr.mxu0 0.0
  %2298 = vmatpush1.msra.mxu0 0.0
  %2299 = vmatprep.subr.mxu0 0.0
  %2300 = vmatpush1.msra.mxu0 0.0
  %2301 = vmatprep.subr.mxu0 0.0
  %2302 = vmatpush1.msra.mxu0 0.0
  %2303 = vmatprep.subr.mxu0 0.0
  %2304 = vmatpush1.msra.mxu0 0.0
  %2305 = vmatprep.subr.mxu0 0.0
  %2306 = vmatpush1.msra.mxu0 0.0
  %2307 = vmatprep.subr.mxu0 0.0
  %2308 = vmatpush1.msra.mxu0 0.0
  %2309 = vmatprep.subr.mxu0 0.0
  %2310 = vmatpush1.msra.mxu0 0.0
  %2311 = vmatprep.subr.mxu0 0.0
  %2312 = vmatpush1.msra.mxu0 0.0
  %2313 = vmatprep.subr.mxu0 0.0
  %2314 = vmatpush1.msra.mxu0 0.0
  %2315 = vmatprep.subr.mxu0 0.0
  %2316 = vmatpush1.msra.mxu0 0.0
  %2317 = vmatprep.subr.mxu0 0.0
  %2318 = vmatpush1.msra.mxu0 0.0
  %2319 = vmatprep.subr.mxu0 0.0
  %2320 = vmatpush1.msra.mxu0 0.0
  %2321 = vmatprep.subr.mxu0 0.0
  %2322 = vmatpush1.msra.mxu0 0.0
  %2323 = vmatprep.subr.mxu0 0.0
  %2324 = vmatpush1.msra.mxu0 0.0
  %2325 = vmatprep.subr.mxu0 0.0
  %2326 = vmatpush1.msra.mxu0 0.0
  %2327 = vmatprep.subr.mxu0 0.0
  %2328 = vmatpush1.msra.mxu0 0.0
  %2329 = vmatprep.subr.mxu0 0.0
  %2330 = vmatpush1.msra.mxu0 0.0
  %2331 = vmatprep.subr.mxu0 0.0
  %2332 = vmatpush1.msra.mxu0 0.0
  %2333 = vmatprep.subr.mxu0 0.0
  %2334 = vmatpush1.msra.mxu0 0.0
  %2335 = vmatprep.subr.mxu0 0.0
  %2336 = vmatpush1.msra.mxu0 0.0
  %2337 = vmatprep.subr.mxu0 0.0
  %2338 = vmatpush1.msra.mxu0 0.0
  %2339 = vmatprep.subr.mxu0 0.0
  %2340 = vmatpush1.msra.mxu0 0.0
  %2341 = vmatprep.subr.mxu0 0.0
  %2342 = vmatpush1.msra.mxu0 0.0
  %2343 = vmatprep.subr.mxu0 0.0
  %2344 = vmatpush1.msra.mxu0 0.0
  %2345 = vmatprep.subr.mxu0 0.0
  %2346 = vmatpush1.msra.mxu0 0.0
  %2347 = vmatprep.subr.mxu0 0.0
  %2348 = vmatpush1.msra.mxu0 0.0
  %2349 = vmatprep.mubr.f32.mxu0 0.0
  %2350 = vmatmul.mubr.f32.gmra.mrb[0].mxu0 %v2280
  %v2351 = vpop.f32.mrb[0].mxu0
  %v2352 = vadd.f32 %v2278, %v2351
  %v2353 = vpop.f32.mrb[0].mxu0
  %2354 = vmatprep.mubr.f32.mxu0 0.0
  %2355 = vmatmul.mubr.f32.gmra.mrb[0].mxu0 %v2283
  %v2356 = vpop.f32.mrb[0].mxu0
  %v2357 = vadd.f32 %v2278, %v2356
  %v2358 = vpop.f32.mrb[0].mxu0
  %2359 = vdwg.mxu0
  %v2360 = vmax.f32 %v2352, 0.0
  %v2361 = vmax.f32 %v2357, 0.0
  %v2362 = vmul.f32 %v2360, %v2360
  %v2363 = vmul.f32 %v2361, %v2361
  %v2364 = vlaneseq
  %v2365 = vshrl.u32 %v2364, 7
  %v2366 = vsub.s32 5, %v2365
  %v2367 = vrot.slane %v1322, %v2366
  %v2369 = vsel %vm1028, %v2362, 0
  %v2372 = vsel %vm1028, %v2363, 0
  %2374 = vmatprep.subr.mxu0 0.0
  %2375 = vmatpush1.msra.mxu0 %v1346
  %2376 = vmatprep.subr.mxu0 0.0
  %2377 = vmatpush1.msra.mxu0 %v1347
  %2378 = vmatprep.subr.mxu0 0.0
  %2379 = vmatpush1.msra.mxu0 %v1348
  %2380 = vmatprep.subr.mxu0 0.0
  %2381 = vmatpush1.msra.mxu0 %v1349
  %2382 = vmatprep.subr.mxu0 0.0
  %2383 = vmatpush1.msra.mxu0 %v1350
  %2384 = vmatprep.subr.mxu0 0.0
  %2385 = vmatpush1.msra.mxu0 %v1351
  %2386 = vmatprep.subr.mxu0 0.0
  %2387 = vmatpush1.msra.mxu0 %v1352
  %2388 = vmatprep.subr.mxu0 0.0
  %2389 = vmatpush1.msra.mxu0 %v1353
  %2390 = vmatprep.subr.mxu0 0.0
  %2391 = vmatpush1.msra.mxu0 0.0
  %2392 = vmatprep.subr.mxu0 0.0
  %2393 = vmatpush1.msra.mxu0 0.0
  %2394 = vmatprep.subr.mxu0 0.0
  %2395 = vmatpush1.msra.mxu0 0.0
  %2396 = vmatprep.subr.mxu0 0.0
  %2397 = vmatpush1.msra.mxu0 0.0
  %2398 = vmatprep.subr.mxu0 0.0
  %2399 = vmatpush1.msra.mxu0 0.0
  %2400 = vmatprep.subr.mxu0 0.0
  %2401 = vmatpush1.msra.mxu0 0.0
  %2402 = vmatprep.subr.mxu0 0.0
  %2403 = vmatpush1.msra.mxu0 0.0
  %2404 = vmatprep.subr.mxu0 0.0
  %2405 = vmatpush1.msra.mxu0 0.0
  %2406 = vmatprep.subr.mxu0 0.0
  %2407 = vmatpush1.msra.mxu0 0.0
  %2408 = vmatprep.subr.mxu0 0.0
  %2409 = vmatpush1.msra.mxu0 0.0
  %2410 = vmatprep.subr.mxu0 0.0
  %2411 = vmatpush1.msra.mxu0 0.0
  %2412 = vmatprep.subr.mxu0 0.0
  %2413 = vmatpush1.msra.mxu0 0.0
  %2414 = vmatprep.subr.mxu0 0.0
  %2415 = vmatpush1.msra.mxu0 0.0
  %2416 = vmatprep.subr.mxu0 0.0
  %2417 = vmatpush1.msra.mxu0 0.0
  %2418 = vmatprep.subr.mxu0 0.0
  %2419 = vmatpush1.msra.mxu0 0.0
  %2420 = vmatprep.subr.mxu0 0.0
  %2421 = vmatpush1.msra.mxu0 0.0
  %2422 = vmatprep.subr.mxu0 0.0
  %2423 = vmatpush1.msra.mxu0 0.0
  %2424 = vmatprep.subr.mxu0 0.0
  %2425 = vmatpush1.msra.mxu0 0.0
  %2426 = vmatprep.subr.mxu0 0.0
  %2427 = vmatpush1.msra.mxu0 0.0
  %2428 = vmatprep.subr.mxu0 0.0
  %2429 = vmatpush1.msra.mxu0 0.0
  %2430 = vmatprep.subr.mxu0 0.0
  %2431 = vmatpush1.msra.mxu0 0.0
  %2432 = vmatprep.subr.mxu0 0.0
  %2433 = vmatpush1.msra.mxu0 0.0
  %2434 = vmatprep.subr.mxu0 0.0
  %2435 = vmatpush1.msra.mxu0 0.0
  %2436 = vmatprep.subr.mxu0 0.0
  %2437 = vmatpush1.msra.mxu0 0.0
  %2438 = vmatprep.mubr.f32.mxu0 0.0
  %2439 = vmatmul.mubr.f32.gmra.mrb[0].mxu0 %v2369
  %v2440 = vpop.f32.mrb[0].mxu0
  %v2441 = vadd.f32 %v2367, %v2440
  %v2442 = vpop.f32.mrb[0].mxu0
  %2443 = vmatprep.mubr.f32.mxu0 0.0
  %2444 = vmatmul.mubr.f32.gmra.mrb[0].mxu0 %v2372
  %v2445 = vpop.f32.mrb[0].mxu0
  %v2446 = vadd.f32 %v2367, %v2445
  %v2447 = vpop.f32.mrb[0].mxu0
  %2448 = vdwg.mxu0
  %v2449 = vmul.f32 %v2441, %v1759
  %v2450 = vmul.f32 %v2446, %v1765
  %v2451 = vadd.f32 %v2180, %v2449
  %v2452 = vadd.f32 %v2181, %v2450
  %s2453 = scalar_lea.vmem %s8, 16
  %v2454 = vld [vmem:[%s2453] sm:$0x3f]
  %s2455 = scalar_lea.vmem %s5, 256
  %v2456 = vld [vmem:[%s2455] sm:$0xff]
  %v2457 = vld [vmem:[%s2455 + $0x8] sm:$0xff]
  %v2458 = vld [vmem:[%s2455 + $0x10] sm:$0xff]
  %v2459 = vld [vmem:[%s2455 + $0x18] sm:$0xff]
  %v2460 = vld [vmem:[%s2455 + $0x20] sm:$0xff]
  %v2461 = vld [vmem:[%s2455 + $0x28] sm:$0xff]
  %v2462 = vld [vmem:[%s2455 + $0x30] sm:$0xff]
  %v2463 = vld [vmem:[%s2455 + $0x38] sm:$0xff]
  %v2464 = vld [vmem:[%s2455 + $0x40] sm:$0xff]
  %v2465 = vld [vmem:[%s2455 + $0x48] sm:$0xff]
  %v2466 = vld [vmem:[%s2455 + $0x50] sm:$0xff]
  %v2467 = vld [vmem:[%s2455 + $0x58] sm:$0xff]
  %v2468 = vld [vmem:[%s2455 + $0x60] sm:$0xff]
  %v2469 = vld [vmem:[%s2455 + $0x68] sm:$0xff]
  %v2470 = vld [vmem:[%s2455 + $0x70] sm:$0xff]
  %v2471 = vld [vmem:[%s2455 + $0x78] sm:$0xff]
  %s2472 = scalar_lea.vmem %s6, 64
  %v2473 = vld [vmem:[%s2472] sm:$0xff]
  %v2474 = vld [vmem:[%s2472 + $0x8] sm:$0xff]
  %v2475 = vld [vmem:[%s2472 + $0x10] sm:$0xff]
  %v2476 = vld [vmem:[%s2472 + $0x18] sm:$0xff]
  %s2477 = scalar_lea.vmem %s7, 128
  %v2478 = vld [vmem:[%s2477] sm:$0xff]
  %v2479 = vld [vmem:[%s2477 + $0x8] sm:$0xff]
  %v2480 = vld [vmem:[%s2477 + $0x10] sm:$0xff]
  %v2481 = vld [vmem:[%s2477 + $0x18] sm:$0xff]
  %v2482 = vld [vmem:[%s2477 + $0x20] sm:$0xff]
  %v2483 = vld [vmem:[%s2477 + $0x28] sm:$0xff]
  %v2484 = vld [vmem:[%s2477 + $0x30] sm:$0xff]
  %v2485 = vld [vmem:[%s2477 + $0x38] sm:$0xff]
  %v2486 = vmul.f32 %v2451, %v2451
  %v2487 = vmul.f32 %v2452, %v2452
  %2488 = vmatprep.subr.mxu0 0.0
  %2489 = vmatpush1.msra.mxu0 %v32
  %2490 = vmatprep.subr.mxu0 0.0
  %2491 = vmatpush1.msra.mxu0 %v33
  %2492 = vmatprep.subr.mxu0 0.0
  %2493 = vmatpush1.msra.mxu0 %v34
  %2494 = vmatprep.subr.mxu0 0.0
  %2495 = vmatpush1.msra.mxu0 %v35
  %2496 = vmatprep.subr.mxu0 0.0
  %2497 = vmatpush1.msra.mxu0 %v36
  %2498 = vmatprep.subr.mxu0 0.0
  %2499 = vmatpush1.msra.mxu0 %v37
  %2500 = vmatprep.subr.mxu0 0.0
  %2501 = vmatpush1.msra.mxu0 %v38
  %2502 = vmatprep.subr.mxu0 0.0
  %2503 = vmatpush1.msra.mxu0 %v39
  %2504 = vmatprep.subr.mxu0 0.0
  %2505 = vmatpush1.msra.mxu0 %v40
  %2506 = vmatprep.subr.mxu0 0.0
  %2507 = vmatpush1.msra.mxu0 %v41
  %2508 = vmatprep.subr.mxu0 0.0
  %2509 = vmatpush1.msra.mxu0 %v42
  %2510 = vmatprep.subr.mxu0 0.0
  %2511 = vmatpush1.msra.mxu0 %v43
  %2512 = vmatprep.subr.mxu0 0.0
  %2513 = vmatpush1.msra.mxu0 %v44
  %2514 = vmatprep.subr.mxu0 0.0
  %2515 = vmatpush1.msra.mxu0 %v45
  %2516 = vmatprep.subr.mxu0 0.0
  %2517 = vmatpush1.msra.mxu0 %v46
  %2518 = vmatprep.subr.mxu0 0.0
  %2519 = vmatpush1.msra.mxu0 %v47
  %2520 = vmatprep.subr.mxu0 0.0
  %2521 = vmatpush1.msra.mxu0 0.0
  %2522 = vmatprep.subr.mxu0 0.0
  %2523 = vmatpush1.msra.mxu0 0.0
  %2524 = vmatprep.subr.mxu0 0.0
  %2525 = vmatpush1.msra.mxu0 0.0
  %2526 = vmatprep.subr.mxu0 0.0
  %2527 = vmatpush1.msra.mxu0 0.0
  %2528 = vmatprep.subr.mxu0 0.0
  %2529 = vmatpush1.msra.mxu0 0.0
  %2530 = vmatprep.subr.mxu0 0.0
  %2531 = vmatpush1.msra.mxu0 0.0
  %2532 = vmatprep.subr.mxu0 0.0
  %2533 = vmatpush1.msra.mxu0 0.0
  %2534 = vmatprep.subr.mxu0 0.0
  %2535 = vmatpush1.msra.mxu0 0.0
  %2536 = vmatprep.subr.mxu0 0.0
  %2537 = vmatpush1.msra.mxu0 0.0
  %2538 = vmatprep.subr.mxu0 0.0
  %2539 = vmatpush1.msra.mxu0 0.0
  %2540 = vmatprep.subr.mxu0 0.0
  %2541 = vmatpush1.msra.mxu0 0.0
  %2542 = vmatprep.subr.mxu0 0.0
  %2543 = vmatpush1.msra.mxu0 0.0
  %2544 = vmatprep.subr.mxu0 0.0
  %2545 = vmatpush1.msra.mxu0 0.0
  %2546 = vmatprep.subr.mxu0 0.0
  %2547 = vmatpush1.msra.mxu0 0.0
  %2548 = vmatprep.subr.mxu0 0.0
  %2549 = vmatpush1.msra.mxu0 0.0
  %2550 = vmatprep.subr.mxu0 0.0
  %2551 = vmatpush1.msra.mxu0 0.0
  %2552 = vmatprep.mubr.f32.mxu0 0.0
  %2553 = vmatmul.mubr.f32.gmra.mrb[0].mxu0 %v2486
  %v2554 = vpop.f32.mrb[0].mxu0
  %v2555 = vadd.f32 1.1920929e-07, %v2554
  %v2556 = vpop.f32.mrb[0].mxu0
  %2557 = vmatprep.mubr.f32.mxu0 0.0
  %2558 = vmatmul.mubr.f32.gmra.mrb[0].mxu0 %v2487
  %v2559 = vpop.f32.mrb[0].mxu0
  %v2560 = vadd.f32 1.1920929e-07, %v2559
  %v2561 = vpop.f32.mrb[0].mxu0
  %2562 = vdwg.mxu0
  %v2563 = vrsqrt.pop %v2555
  %v2564 = vrsqrt.pop %v2560
  %v2565 = vmul.f32 %v2451, %v2563
  %v2566 = vmul.f32 %v2452, %v2564
  %v2567 = vlaneseq
  %v2568 = vshrl.u32 %v2567, 7
  %v2569 = vsub.s32 0, %v2568
  %v2570 = vrot.slane %v2454, %v2569
  %v2571 = vmul.f32 %v2565, %v2570
  %v2572 = vmul.f32 %v2566, %v2570
  %2573 = vmatprep.subr.mxu0 0.0
  %2574 = vmatpush1.msra.mxu0 %v2456
  %2575 = vmatprep.subr.mxu0 0.0
  %2576 = vmatpush1.msra.mxu0 %v2457
  %2577 = vmatprep.subr.mxu0 0.0
  %2578 = vmatpush1.msra.mxu0 %v2458
  %2579 = vmatprep.subr.mxu0 0.0
  %2580 = vmatpush1.msra.mxu0 %v2459
  %2581 = vmatprep.subr.mxu0 0.0
  %2582 = vmatpush1.msra.mxu0 %v2460
  %2583 = vmatprep.subr.mxu0 0.0
  %2584 = vmatpush1.msra.mxu0 %v2461
  %2585 = vmatprep.subr.mxu0 0.0
  %2586 = vmatpush1.msra.mxu0 %v2462
  %2587 = vmatprep.subr.mxu0 0.0
  %2588 = vmatpush1.msra.mxu0 %v2463
  %2589 = vmatprep.subr.mxu0 0.0
  %2590 = vmatpush1.msra.mxu0 %v2464
  %2591 = vmatprep.subr.mxu0 0.0
  %2592 = vmatpush1.msra.mxu0 %v2465
  %2593 = vmatprep.subr.mxu0 0.0
  %2594 = vmatpush1.msra.mxu0 %v2466
  %2595 = vmatprep.subr.mxu0 0.0
  %2596 = vmatpush1.msra.mxu0 %v2467
  %2597 = vmatprep.subr.mxu0 0.0
  %2598 = vmatpush1.msra.mxu0 %v2468
  %2599 = vmatprep.subr.mxu0 0.0
  %2600 = vmatpush1.msra.mxu0 %v2469
  %2601 = vmatprep.subr.mxu0 0.0
  %2602 = vmatpush1.msra.mxu0 %v2470
  %2603 = vmatprep.subr.mxu0 0.0
  %2604 = vmatpush1.msra.mxu0 %v2471
  %2605 = vmatprep.subr.mxu0 0.0
  %2606 = vmatpush1.msra.mxu0 0.0
  %2607 = vmatprep.subr.mxu0 0.0
  %2608 = vmatpush1.msra.mxu0 0.0
  %2609 = vmatprep.subr.mxu0 0.0
  %2610 = vmatpush1.msra.mxu0 0.0
  %2611 = vmatprep.subr.mxu0 0.0
  %2612 = vmatpush1.msra.mxu0 0.0
  %2613 = vmatprep.subr.mxu0 0.0
  %2614 = vmatpush1.msra.mxu0 0.0
  %2615 = vmatprep.subr.mxu0 0.0
  %2616 = vmatpush1.msra.mxu0 0.0
  %2617 = vmatprep.subr.mxu0 0.0
  %2618 = vmatpush1.msra.mxu0 0.0
  %2619 = vmatprep.subr.mxu0 0.0
  %2620 = vmatpush1.msra.mxu0 0.0
  %2621 = vmatprep.subr.mxu0 0.0
  %2622 = vmatpush1.msra.mxu0 0.0
  %2623 = vmatprep.subr.mxu0 0.0
  %2624 = vmatpush1.msra.mxu0 0.0
  %2625 = vmatprep.subr.mxu0 0.0
  %2626 = vmatpush1.msra.mxu0 0.0
  %2627 = vmatprep.subr.mxu0 0.0
  %2628 = vmatpush1.msra.mxu0 0.0
  %2629 = vmatprep.subr.mxu0 0.0
  %2630 = vmatpush1.msra.mxu0 0.0
  %2631 = vmatprep.subr.mxu0 0.0
  %2632 = vmatpush1.msra.mxu0 0.0
  %2633 = vmatprep.subr.mxu0 0.0
  %2634 = vmatpush1.msra.mxu0 0.0
  %2635 = vmatprep.subr.mxu0 0.0
  %2636 = vmatpush1.msra.mxu0 0.0
  %2637 = vmatprep.mubr.f32.mxu0 0.0
  %2638 = vmatmul.mubr.f32.gmra.mrb[0].mxu0 %v2571
  %v2639 = vpop.f32.mrb[0].mxu0
  %v2640 = vadd.f32 0.0, %v2639
  %v2641 = vpop.f32.mrb[0].mxu0
  %2642 = vmatprep.mubr.f32.mxu0 0.0
  %2643 = vmatmul.mubr.f32.gmra.mrb[0].mxu0 %v2572
  %v2644 = vpop.f32.mrb[0].mxu0
  %v2645 = vadd.f32 0.0, %v2644
  %v2646 = vpop.f32.mrb[0].mxu0
  %2647 = vdwg.mxu0
  %v2648 = vtanh.pop %v2640
  %v2649 = vtanh.pop %v2645
  %v2650 = vlaneseq
  %v2651 = vshrl.u32 %v2650, 7
  %v2652 = vsub.s32 2, %v2651
  %v2653 = vrot.slane %v2454, %v2652
  %v2654 = vmul.f32 %v2648, %v2653
  %v2655 = vmul.f32 %v2649, %v2653
  %v2656 = vlaneseq
  %v2657 = vshrl.u32 %v2656, 7
  %v2658 = vsub.s32 3, %v2657
  %v2659 = vrot.slane %v2454, %v2658
  %v2660 = vadd.f32 %v2654, %v2659
  %v2661 = vadd.f32 %v2655, %v2659
  %v2663 = vsel %vm378, %v2660, 0
  %v2666 = vsel %vm378, %v2661, 0
  %2668 = vmatprep.subr.mxu0 %v65
  %2669 = vmatpush1.msra.mxu0 %v64
  %2670 = vmatprep.subr.mxu0 %v71
  %2671 = vmatpush1.msra.mxu0 %v70
  %2672 = vmatprep.subr.mxu0 %v77
  %2673 = vmatpush1.msra.mxu0 %v76
  %2674 = vmatprep.subr.mxu0 0.0
  %2675 = vmatpush1.msra.mxu0 0.0
  %2676 = vmatprep.subr.mxu0 0.0
  %2677 = vmatpush1.msra.mxu0 0.0
  %2678 = vmatprep.subr.mxu0 0.0
  %2679 = vmatpush1.msra.mxu0 0.0
  %2680 = vmatprep.subr.mxu0 0.0
  %2681 = vmatpush1.msra.mxu0 0.0
  %2682 = vmatprep.subr.mxu0 0.0
  %2683 = vmatpush1.msra.mxu0 0.0
  %2684 = vmatprep.subr.mxu0 0.0
  %2685 = vmatpush1.msra.mxu0 0.0
  %2686 = vmatprep.subr.mxu0 0.0
  %2687 = vmatpush1.msra.mxu0 0.0
  %2688 = vmatprep.subr.mxu0 0.0
  %2689 = vmatpush1.msra.mxu0 0.0
  %2690 = vmatprep.subr.mxu0 0.0
  %2691 = vmatpush1.msra.mxu0 0.0
  %2692 = vmatprep.subr.mxu0 0.0
  %2693 = vmatpush1.msra.mxu0 0.0
  %2694 = vmatprep.subr.mxu0 0.0
  %2695 = vmatpush1.msra.mxu0 0.0
  %2696 = vmatprep.subr.mxu0 0.0
  %2697 = vmatpush1.msra.mxu0 0.0
  %2698 = vmatprep.subr.mxu0 0.0
  %2699 = vmatpush1.msra.mxu0 0.0
  %2700 = vmatprep.subr.mxu0 0.0
  %2701 = vmatpush1.msra.mxu0 0.0
  %2702 = vmatprep.subr.mxu0 0.0
  %2703 = vmatpush1.msra.mxu0 0.0
  %2704 = vmatprep.subr.mxu0 0.0
  %2705 = vmatpush1.msra.mxu0 0.0
  %2706 = vmatprep.subr.mxu0 0.0
  %2707 = vmatpush1.msra.mxu0 0.0
  %2708 = vmatprep.subr.mxu0 0.0
  %2709 = vmatpush1.msra.mxu0 0.0
  %2710 = vmatprep.subr.mxu0 0.0
  %2711 = vmatpush1.msra.mxu0 0.0
  %2712 = vmatprep.subr.mxu0 0.0
  %2713 = vmatpush1.msra.mxu0 0.0
  %2714 = vmatprep.subr.mxu0 0.0
  %2715 = vmatpush1.msra.mxu0 0.0
  %2716 = vmatprep.subr.mxu0 0.0
  %2717 = vmatpush1.msra.mxu0 0.0
  %2718 = vmatprep.subr.mxu0 0.0
  %2719 = vmatpush1.msra.mxu0 0.0
  %2720 = vmatprep.subr.mxu0 0.0
  %2721 = vmatpush1.msra.mxu0 0.0
  %2722 = vmatprep.subr.mxu0 0.0
  %2723 = vmatpush1.msra.mxu0 0.0
  %2724 = vmatprep.subr.mxu0 0.0
  %2725 = vmatpush1.msra.mxu0 0.0
  %2726 = vmatprep.subr.mxu0 0.0
  %2727 = vmatpush1.msra.mxu0 0.0
  %2728 = vmatprep.subr.mxu0 0.0
  %2729 = vmatpush1.msra.mxu0 0.0
  %2730 = vmatprep.subr.mxu0 0.0
  %2731 = vmatpush1.msra.mxu0 0.0
  %2732 = vmatprep.mubr.f32.mxu0 0.0
  %2733 = vmatmul.mubr.f32.gmra.mrb[0].mxu0 %v2663
  %v2734 = vpop.f32.mrb[0].mxu0
  %v2735 = vadd.f32 0.0, %v2734
  %v2736 = vpop.f32.mrb[0].mxu0
  %v2737 = vadd.f32 0.0, %v2736
  %2738 = vmatprep.mubr.f32.mxu0 0.0
  %2739 = vmatmul.mubr.f32.gmra.mrb[0].mxu0 %v2666
  %v2740 = vpop.f32.mrb[0].mxu0
  %v2741 = vadd.f32 0.0, %v2740
  %v2742 = vpop.f32.mrb[0].mxu0
  %v2743 = vadd.f32 0.0, %v2742
  %2744 = vdwg.mxu0
  %2745 = vmatprep.subr.mxu0 %v67
  %2746 = vmatpush1.msra.mxu0 %v66
  %2747 = vmatprep.subr.mxu0 %v73
  %2748 = vmatpush1.msra.mxu0 %v72
  %2749 = vmatprep.subr.mxu0 %v79
  %2750 = vmatpush1.msra.mxu0 %v78
  %2751 = vmatprep.subr.mxu0 0.0
  %2752 = vmatpush1.msra.mxu0 0.0
  %2753 = vmatprep.subr.mxu0 0.0
  %2754 = vmatpush1.msra.mxu0 0.0
  %2755 = vmatprep.subr.mxu0 0.0
  %2756 = vmatpush1.msra.mxu0 0.0
  %2757 = vmatprep.subr.mxu0 0.0
  %2758 = vmatpush1.msra.mxu0 0.0
  %2759 = vmatprep.subr.mxu0 0.0
  %2760 = vmatpush1.msra.mxu0 0.0
  %2761 = vmatprep.subr.mxu0 0.0
  %2762 = vmatpush1.msra.mxu0 0.0
  %2763 = vmatprep.subr.mxu0 0.0
  %2764 = vmatpush1.msra.mxu0 0.0
  %2765 = vmatprep.subr.mxu0 0.0
  %2766 = vmatpush1.msra.mxu0 0.0
  %2767 = vmatprep.subr.mxu0 0.0
  %2768 = vmatpush1.msra.mxu0 0.0
  %2769 = vmatprep.subr.mxu0 0.0
  %2770 = vmatpush1.msra.mxu0 0.0
  %2771 = vmatprep.subr.mxu0 0.0
  %2772 = vmatpush1.msra.mxu0 0.0
  %2773 = vmatprep.subr.mxu0 0.0
  %2774 = vmatpush1.msra.mxu0 0.0
  %2775 = vmatprep.subr.mxu0 0.0
  %2776 = vmatpush1.msra.mxu0 0.0
  %2777 = vmatprep.subr.mxu0 0.0
  %2778 = vmatpush1.msra.mxu0 0.0
  %2779 = vmatprep.subr.mxu0 0.0
  %2780 = vmatpush1.msra.mxu0 0.0
  %2781 = vmatprep.subr.mxu0 0.0
  %2782 = vmatpush1.msra.mxu0 0.0
  %2783 = vmatprep.subr.mxu0 0.0
  %2784 = vmatpush1.msra.mxu0 0.0
  %2785 = vmatprep.subr.mxu0 0.0
  %2786 = vmatpush1.msra.mxu0 0.0
  %2787 = vmatprep.subr.mxu0 0.0
  %2788 = vmatpush1.msra.mxu0 0.0
  %2789 = vmatprep.subr.mxu0 0.0
  %2790 = vmatpush1.msra.mxu0 0.0
  %2791 = vmatprep.subr.mxu0 0.0
  %2792 = vmatpush1.msra.mxu0 0.0
  %2793 = vmatprep.subr.mxu0 0.0
  %2794 = vmatpush1.msra.mxu0 0.0
  %2795 = vmatprep.subr.mxu0 0.0
  %2796 = vmatpush1.msra.mxu0 0.0
  %2797 = vmatprep.subr.mxu0 0.0
  %2798 = vmatpush1.msra.mxu0 0.0
  %2799 = vmatprep.subr.mxu0 0.0
  %2800 = vmatpush1.msra.mxu0 0.0
  %2801 = vmatprep.subr.mxu0 0.0
  %2802 = vmatpush1.msra.mxu0 0.0
  %2803 = vmatprep.subr.mxu0 0.0
  %2804 = vmatpush1.msra.mxu0 0.0
  %2805 = vmatprep.subr.mxu0 0.0
  %2806 = vmatpush1.msra.mxu0 0.0
  %2807 = vmatprep.subr.mxu0 0.0
  %2808 = vmatpush1.msra.mxu0 0.0
  %2809 = vmatprep.mubr.f32.mxu0 0.0
  %2810 = vmatmul.mubr.f32.gmra.mrb[0].mxu0 %v2663
  %v2811 = vpop.f32.mrb[0].mxu0
  %v2812 = vadd.f32 0.0, %v2811
  %v2813 = vpop.f32.mrb[0].mxu0
  %v2814 = vadd.f32 0.0, %v2813
  %2815 = vmatprep.mubr.f32.mxu0 0.0
  %2816 = vmatmul.mubr.f32.gmra.mrb[0].mxu0 %v2666
  %v2817 = vpop.f32.mrb[0].mxu0
  %v2818 = vadd.f32 0.0, %v2817
  %v2819 = vpop.f32.mrb[0].mxu0
  %v2820 = vadd.f32 0.0, %v2819
  %2821 = vdwg.mxu0
  %2822 = vmatprep.subr.mxu0 %v69
  %2823 = vmatpush1.msra.mxu0 %v68
  %2824 = vmatprep.subr.mxu0 %v75
  %2825 = vmatpush1.msra.mxu0 %v74
  %2826 = vmatprep.subr.mxu0 %v81
  %2827 = vmatpush1.msra.mxu0 %v80
  %2828 = vmatprep.subr.mxu0 0.0
  %2829 = vmatpush1.msra.mxu0 0.0
  %2830 = vmatprep.subr.mxu0 0.0
  %2831 = vmatpush1.msra.mxu0 0.0
  %2832 = vmatprep.subr.mxu0 0.0
  %2833 = vmatpush1.msra.mxu0 0.0
  %2834 = vmatprep.subr.mxu0 0.0
  %2835 = vmatpush1.msra.mxu0 0.0
  %2836 = vmatprep.subr.mxu0 0.0
  %2837 = vmatpush1.msra.mxu0 0.0
  %2838 = vmatprep.subr.mxu0 0.0
  %2839 = vmatpush1.msra.mxu0 0.0
  %2840 = vmatprep.subr.mxu0 0.0
  %2841 = vmatpush1.msra.mxu0 0.0
  %2842 = vmatprep.subr.mxu0 0.0
  %2843 = vmatpush1.msra.mxu0 0.0
  %2844 = vmatprep.subr.mxu0 0.0
  %2845 = vmatpush1.msra.mxu0 0.0
  %2846 = vmatprep.subr.mxu0 0.0
  %2847 = vmatpush1.msra.mxu0 0.0
  %2848 = vmatprep.subr.mxu0 0.0
  %2849 = vmatpush1.msra.mxu0 0.0
  %2850 = vmatprep.subr.mxu0 0.0
  %2851 = vmatpush1.msra.mxu0 0.0
  %2852 = vmatprep.subr.mxu0 0.0
  %2853 = vmatpush1.msra.mxu0 0.0
  %2854 = vmatprep.subr.mxu0 0.0
  %2855 = vmatpush1.msra.mxu0 0.0
  %2856 = vmatprep.subr.mxu0 0.0
  %2857 = vmatpush1.msra.mxu0 0.0
  %2858 = vmatprep.subr.mxu0 0.0
  %2859 = vmatpush1.msra.mxu0 0.0
  %2860 = vmatprep.subr.mxu0 0.0
  %2861 = vmatpush1.msra.mxu0 0.0
  %2862 = vmatprep.subr.mxu0 0.0
  %2863 = vmatpush1.msra.mxu0 0.0
  %2864 = vmatprep.subr.mxu0 0.0
  %2865 = vmatpush1.msra.mxu0 0.0
  %2866 = vmatprep.subr.mxu0 0.0
  %2867 = vmatpush1.msra.mxu0 0.0
  %2868 = vmatprep.subr.mxu0 0.0
  %2869 = vmatpush1.msra.mxu0 0.0
  %2870 = vmatprep.subr.mxu0 0.0
  %2871 = vmatpush1.msra.mxu0 0.0
  %2872 = vmatprep.subr.mxu0 0.0
  %2873 = vmatpush1.msra.mxu0 0.0
  %2874 = vmatprep.subr.mxu0 0.0
  %2875 = vmatpush1.msra.mxu0 0.0
  %2876 = vmatprep.subr.mxu0 0.0
  %2877 = vmatpush1.msra.mxu0 0.0
  %2878 = vmatprep.subr.mxu0 0.0
  %2879 = vmatpush1.msra.mxu0 0.0
  %2880 = vmatprep.subr.mxu0 0.0
  %2881 = vmatpush1.msra.mxu0 0.0
  %2882 = vmatprep.subr.mxu0 0.0
  %2883 = vmatpush1.msra.mxu0 0.0
  %2884 = vmatprep.subr.mxu0 0.0
  %2885 = vmatpush1.msra.mxu0 0.0
  %2886 = vmatprep.mubr.f32.mxu0 0.0
  %2887 = vmatmul.mubr.f32.gmra.mrb[0].mxu0 %v2663
  %v2888 = vpop.f32.mrb[0].mxu0
  %v2889 = vadd.f32 0.0, %v2888
  %v2890 = vpop.f32.mrb[0].mxu0
  %v2891 = vadd.f32 0.0, %v2890
  %2892 = vmatprep.mubr.f32.mxu0 0.0
  %2893 = vmatmul.mubr.f32.gmra.mrb[0].mxu0 %v2666
  %v2894 = vpop.f32.mrb[0].mxu0
  %v2895 = vadd.f32 0.0, %v2894
  %v2896 = vpop.f32.mrb[0].mxu0
  %v2897 = vadd.f32 0.0, %v2896
  %2898 = vdwg.mxu0
  %v2899 = vmul.f32 %v2451, %v2735
  %v2900 = vmul.f32 %v2452, %v2741
  %2901 = vmatprep.subr.mxu0 0.0
  %2902 = vmatpush1.msra.mxu0 %v48
  %2903 = vmatprep.subr.mxu0 0.0
  %2904 = vmatpush1.msra.mxu0 %v49
  %2905 = vmatprep.subr.mxu0 0.0
  %2906 = vmatpush1.msra.mxu0 %v50
  %2907 = vmatprep.subr.mxu0 0.0
  %2908 = vmatpush1.msra.mxu0 %v51
  %2909 = vmatprep.subr.mxu0 0.0
  %2910 = vmatpush1.msra.mxu0 %v52
  %2911 = vmatprep.subr.mxu0 0.0
  %2912 = vmatpush1.msra.mxu0 %v53
  %2913 = vmatprep.subr.mxu0 0.0
  %2914 = vmatpush1.msra.mxu0 %v54
  %2915 = vmatprep.subr.mxu0 0.0
  %2916 = vmatpush1.msra.mxu0 %v55
  %2917 = vmatprep.subr.mxu0 0.0
  %2918 = vmatpush1.msra.mxu0 %v56
  %2919 = vmatprep.subr.mxu0 0.0
  %2920 = vmatpush1.msra.mxu0 %v57
  %2921 = vmatprep.subr.mxu0 0.0
  %2922 = vmatpush1.msra.mxu0 %v58
  %2923 = vmatprep.subr.mxu0 0.0
  %2924 = vmatpush1.msra.mxu0 %v59
  %2925 = vmatprep.subr.mxu0 0.0
  %2926 = vmatpush1.msra.mxu0 %v60
  %2927 = vmatprep.subr.mxu0 0.0
  %2928 = vmatpush1.msra.mxu0 %v61
  %2929 = vmatprep.subr.mxu0 0.0
  %2930 = vmatpush1.msra.mxu0 %v62
  %2931 = vmatprep.subr.mxu0 0.0
  %2932 = vmatpush1.msra.mxu0 %v63
  %2933 = vmatprep.subr.mxu0 0.0
  %2934 = vmatpush1.msra.mxu0 0.0
  %2935 = vmatprep.subr.mxu0 0.0
  %2936 = vmatpush1.msra.mxu0 0.0
  %2937 = vmatprep.subr.mxu0 0.0
  %2938 = vmatpush1.msra.mxu0 0.0
  %2939 = vmatprep.subr.mxu0 0.0
  %2940 = vmatpush1.msra.mxu0 0.0
  %2941 = vmatprep.subr.mxu0 0.0
  %2942 = vmatpush1.msra.mxu0 0.0
  %2943 = vmatprep.subr.mxu0 0.0
  %2944 = vmatpush1.msra.mxu0 0.0
  %2945 = vmatprep.subr.mxu0 0.0
  %2946 = vmatpush1.msra.mxu0 0.0
  %2947 = vmatprep.subr.mxu0 0.0
  %2948 = vmatpush1.msra.mxu0 0.0
  %2949 = vmatprep.subr.mxu0 0.0
  %2950 = vmatpush1.msra.mxu0 0.0
  %2951 = vmatprep.subr.mxu0 0.0
  %2952 = vmatpush1.msra.mxu0 0.0
  %2953 = vmatprep.subr.mxu0 0.0
  %2954 = vmatpush1.msra.mxu0 0.0
  %2955 = vmatprep.subr.mxu0 0.0
  %2956 = vmatpush1.msra.mxu0 0.0
  %2957 = vmatprep.subr.mxu0 0.0
  %2958 = vmatpush1.msra.mxu0 0.0
  %2959 = vmatprep.subr.mxu0 0.0
  %2960 = vmatpush1.msra.mxu0 0.0
  %2961 = vmatprep.subr.mxu0 0.0
  %2962 = vmatpush1.msra.mxu0 0.0
  %2963 = vmatprep.subr.mxu0 0.0
  %2964 = vmatpush1.msra.mxu0 0.0
  %2965 = vmatprep.mubr.f32.mxu0 0.0
  %2966 = vmatmul.mubr.f32.gmra.mrb[0].mxu0 %v2899
  %v2967 = vpop.f32.mrb[0].mxu0
  %v2968 = vadd.f32 0.0, %v2967
  %v2969 = vpop.f32.mrb[0].mxu0
  %2970 = vmatprep.mubr.f32.mxu0 0.0
  %2971 = vmatmul.mubr.f32.gmra.mrb[0].mxu0 %v2900
  %v2972 = vpop.f32.mrb[0].mxu0
  %v2973 = vadd.f32 0.0, %v2972
  %v2974 = vpop.f32.mrb[0].mxu0
  %2975 = vdwg.mxu0
  %v2976 = vmul.f32 %v2451, %v2737
  %v2977 = vmul.f32 %v2452, %v2743
  %2978 = vmatprep.subr.mxu0 0.0
  %2979 = vmatpush1.msra.mxu0 %v48
  %2980 = vmatprep.subr.mxu0 0.0
  %2981 = vmatpush1.msra.mxu0 %v49
  %2982 = vmatprep.subr.mxu0 0.0
  %2983 = vmatpush1.msra.mxu0 %v50
  %2984 = vmatprep.subr.mxu0 0.0
  %2985 = vmatpush1.msra.mxu0 %v51
  %2986 = vmatprep.subr.mxu0 0.0
  %2987 = vmatpush1.msra.mxu0 %v52
  %2988 = vmatprep.subr.mxu0 0.0
  %2989 = vmatpush1.msra.mxu0 %v53
  %2990 = vmatprep.subr.mxu0 0.0
  %2991 = vmatpush1.msra.mxu0 %v54
  %2992 = vmatprep.subr.mxu0 0.0
  %2993 = vmatpush1.msra.mxu0 %v55
  %2994 = vmatprep.subr.mxu0 0.0
  %2995 = vmatpush1.msra.mxu0 %v56
  %2996 = vmatprep.subr.mxu0 0.0
  %2997 = vmatpush1.msra.mxu0 %v57
  %2998 = vmatprep.subr.mxu0 0.0
  %2999 = vmatpush1.msra.mxu0 %v58
  %3000 = vmatprep.subr.mxu0 0.0
  %3001 = vmatpush1.msra.mxu0 %v59
  %3002 = vmatprep.subr.mxu0 0.0
  %3003 = vmatpush1.msra.mxu0 %v60
  %3004 = vmatprep.subr.mxu0 0.0
  %3005 = vmatpush1.msra.mxu0 %v61
  %3006 = vmatprep.subr.mxu0 0.0
  %3007 = vmatpush1.msra.mxu0 %v62
  %3008 = vmatprep.subr.mxu0 0.0
  %3009 = vmatpush1.msra.mxu0 %v63
  %3010 = vmatprep.subr.mxu0 0.0
  %3011 = vmatpush1.msra.mxu0 0.0
  %3012 = vmatprep.subr.mxu0 0.0
  %3013 = vmatpush1.msra.mxu0 0.0
  %3014 = vmatprep.subr.mxu0 0.0
  %3015 = vmatpush1.msra.mxu0 0.0
  %3016 = vmatprep.subr.mxu0 0.0
  %3017 = vmatpush1.msra.mxu0 0.0
  %3018 = vmatprep.subr.mxu0 0.0
  %3019 = vmatpush1.msra.mxu0 0.0
  %3020 = vmatprep.subr.mxu0 0.0
  %3021 = vmatpush1.msra.mxu0 0.0
  %3022 = vmatprep.subr.mxu0 0.0
  %3023 = vmatpush1.msra.mxu0 0.0
  %3024 = vmatprep.subr.mxu0 0.0
  %3025 = vmatpush1.msra.mxu0 0.0
  %3026 = vmatprep.subr.mxu0 0.0
  %3027 = vmatpush1.msra.mxu0 0.0
  %3028 = vmatprep.subr.mxu0 0.0
  %3029 = vmatpush1.msra.mxu0 0.0
  %3030 = vmatprep.subr.mxu0 0.0
  %3031 = vmatpush1.msra.mxu0 0.0
  %3032 = vmatprep.subr.mxu0 0.0
  %3033 = vmatpush1.msra.mxu0 0.0
  %3034 = vmatprep.subr.mxu0 0.0
  %3035 = vmatpush1.msra.mxu0 0.0
  %3036 = vmatprep.subr.mxu0 0.0
  %3037 = vmatpush1.msra.mxu0 0.0
  %3038 = vmatprep.subr.mxu0 0.0
  %3039 = vmatpush1.msra.mxu0 0.0
  %3040 = vmatprep.subr.mxu0 0.0
  %3041 = vmatpush1.msra.mxu0 0.0
  %3042 = vmatprep.mubr.f32.mxu0 0.0
  %3043 = vmatmul.mubr.f32.gmra.mrb[0].mxu0 %v2976
  %v3044 = vpop.f32.mrb[0].mxu0
  %v3045 = vadd.f32 0.0, %v3044
  %v3046 = vpop.f32.mrb[0].mxu0
  %3047 = vmatprep.mubr.f32.mxu0 0.0
  %3048 = vmatmul.mubr.f32.gmra.mrb[0].mxu0 %v2977
  %v3049 = vpop.f32.mrb[0].mxu0
  %v3050 = vadd.f32 0.0, %v3049
  %v3051 = vpop.f32.mrb[0].mxu0
  %3052 = vdwg.mxu0
  %v3053 = vmul.f32 %v2451, %v2812
  %v3054 = vmul.f32 %v2452, %v2818
  %3055 = vmatprep.subr.mxu0 0.0
  %3056 = vmatpush1.msra.mxu0 %v48
  %3057 = vmatprep.subr.mxu0 0.0
  %3058 = vmatpush1.msra.mxu0 %v49
  %3059 = vmatprep.subr.mxu0 0.0
  %3060 = vmatpush1.msra.mxu0 %v50
  %3061 = vmatprep.subr.mxu0 0.0
  %3062 = vmatpush1.msra.mxu0 %v51
  %3063 = vmatprep.subr.mxu0 0.0
  %3064 = vmatpush1.msra.mxu0 %v52
  %3065 = vmatprep.subr.mxu0 0.0
  %3066 = vmatpush1.msra.mxu0 %v53
  %3067 = vmatprep.subr.mxu0 0.0
  %3068 = vmatpush1.msra.mxu0 %v54
  %3069 = vmatprep.subr.mxu0 0.0
  %3070 = vmatpush1.msra.mxu0 %v55
  %3071 = vmatprep.subr.mxu0 0.0
  %3072 = vmatpush1.msra.mxu0 %v56
  %3073 = vmatprep.subr.mxu0 0.0
  %3074 = vmatpush1.msra.mxu0 %v57
  %3075 = vmatprep.subr.mxu0 0.0
  %3076 = vmatpush1.msra.mxu0 %v58
  %3077 = vmatprep.subr.mxu0 0.0
  %3078 = vmatpush1.msra.mxu0 %v59
  %3079 = vmatprep.subr.mxu0 0.0
  %3080 = vmatpush1.msra.mxu0 %v60
  %3081 = vmatprep.subr.mxu0 0.0
  %3082 = vmatpush1.msra.mxu0 %v61
  %3083 = vmatprep.subr.mxu0 0.0
  %3084 = vmatpush1.msra.mxu0 %v62
  %3085 = vmatprep.subr.mxu0 0.0
  %3086 = vmatpush1.msra.mxu0 %v63
  %3087 = vmatprep.subr.mxu0 0.0
  %3088 = vmatpush1.msra.mxu0 0.0
  %3089 = vmatprep.subr.mxu0 0.0
  %3090 = vmatpush1.msra.mxu0 0.0
  %3091 = vmatprep.subr.mxu0 0.0
  %3092 = vmatpush1.msra.mxu0 0.0
  %3093 = vmatprep.subr.mxu0 0.0
  %3094 = vmatpush1.msra.mxu0 0.0
  %3095 = vmatprep.subr.mxu0 0.0
  %3096 = vmatpush1.msra.mxu0 0.0
  %3097 = vmatprep.subr.mxu0 0.0
  %3098 = vmatpush1.msra.mxu0 0.0
  %3099 = vmatprep.subr.mxu0 0.0
  %3100 = vmatpush1.msra.mxu0 0.0
  %3101 = vmatprep.subr.mxu0 0.0
  %3102 = vmatpush1.msra.mxu0 0.0
  %3103 = vmatprep.subr.mxu0 0.0
  %3104 = vmatpush1.msra.mxu0 0.0
  %3105 = vmatprep.subr.mxu0 0.0
  %3106 = vmatpush1.msra.mxu0 0.0
  %3107 = vmatprep.subr.mxu0 0.0
  %3108 = vmatpush1.msra.mxu0 0.0
  %3109 = vmatprep.subr.mxu0 0.0
  %3110 = vmatpush1.msra.mxu0 0.0
  %3111 = vmatprep.subr.mxu0 0.0
  %3112 = vmatpush1.msra.mxu0 0.0
  %3113 = vmatprep.subr.mxu0 0.0
  %3114 = vmatpush1.msra.mxu0 0.0
  %3115 = vmatprep.subr.mxu0 0.0
  %3116 = vmatpush1.msra.mxu0 0.0
  %3117 = vmatprep.subr.mxu0 0.0
  %3118 = vmatpush1.msra.mxu0 0.0
  %3119 = vmatprep.mubr.f32.mxu0 0.0
  %3120 = vmatmul.mubr.f32.gmra.mrb[0].mxu0 %v3053
  %v3121 = vpop.f32.mrb[0].mxu0
  %v3122 = vadd.f32 0.0, %v3121
  %v3123 = vpop.f32.mrb[0].mxu0
  %3124 = vmatprep.mubr.f32.mxu0 0.0
  %3125 = vmatmul.mubr.f32.gmra.mrb[0].mxu0 %v3054
  %v3126 = vpop.f32.mrb[0].mxu0
  %v3127 = vadd.f32 0.0, %v3126
  %v3128 = vpop.f32.mrb[0].mxu0
  %3129 = vdwg.mxu0
  %v3130 = vmul.f32 %v2451, %v2814
  %v3131 = vmul.f32 %v2452, %v2820
  %3132 = vmatprep.subr.mxu0 0.0
  %3133 = vmatpush1.msra.mxu0 %v48
  %3134 = vmatprep.subr.mxu0 0.0
  %3135 = vmatpush1.msra.mxu0 %v49
  %3136 = vmatprep.subr.mxu0 0.0
  %3137 = vmatpush1.msra.mxu0 %v50
  %3138 = vmatprep.subr.mxu0 0.0
  %3139 = vmatpush1.msra.mxu0 %v51
  %3140 = vmatprep.subr.mxu0 0.0
  %3141 = vmatpush1.msra.mxu0 %v52
  %3142 = vmatprep.subr.mxu0 0.0
  %3143 = vmatpush1.msra.mxu0 %v53
  %3144 = vmatprep.subr.mxu0 0.0
  %3145 = vmatpush1.msra.mxu0 %v54
  %3146 = vmatprep.subr.mxu0 0.0
  %3147 = vmatpush1.msra.mxu0 %v55
  %3148 = vmatprep.subr.mxu0 0.0
  %3149 = vmatpush1.msra.mxu0 %v56
  %3150 = vmatprep.subr.mxu0 0.0
  %3151 = vmatpush1.msra.mxu0 %v57
  %3152 = vmatprep.subr.mxu0 0.0
  %3153 = vmatpush1.msra.mxu0 %v58
  %3154 = vmatprep.subr.mxu0 0.0
  %3155 = vmatpush1.msra.mxu0 %v59
  %3156 = vmatprep.subr.mxu0 0.0
  %3157 = vmatpush1.msra.mxu0 %v60
  %3158 = vmatprep.subr.mxu0 0.0
  %3159 = vmatpush1.msra.mxu0 %v61
  %3160 = vmatprep.subr.mxu0 0.0
  %3161 = vmatpush1.msra.mxu0 %v62
  %3162 = vmatprep.subr.mxu0 0.0
  %3163 = vmatpush1.msra.mxu0 %v63
  %3164 = vmatprep.subr.mxu0 0.0
  %3165 = vmatpush1.msra.mxu0 0.0
  %3166 = vmatprep.subr.mxu0 0.0
  %3167 = vmatpush1.msra.mxu0 0.0
  %3168 = vmatprep.subr.mxu0 0.0
  %3169 = vmatpush1.msra.mxu0 0.0
  %3170 = vmatprep.subr.mxu0 0.0
  %3171 = vmatpush1.msra.mxu0 0.0
  %3172 = vmatprep.subr.mxu0 0.0
  %3173 = vmatpush1.msra.mxu0 0.0
  %3174 = vmatprep.subr.mxu0 0.0
  %3175 = vmatpush1.msra.mxu0 0.0
  %3176 = vmatprep.subr.mxu0 0.0
  %3177 = vmatpush1.msra.mxu0 0.0
  %3178 = vmatprep.subr.mxu0 0.0
  %3179 = vmatpush1.msra.mxu0 0.0
  %3180 = vmatprep.subr.mxu0 0.0
  %3181 = vmatpush1.msra.mxu0 0.0
  %3182 = vmatprep.subr.mxu0 0.0
  %3183 = vmatpush1.msra.mxu0 0.0
  %3184 = vmatprep.subr.mxu0 0.0
  %3185 = vmatpush1.msra.mxu0 0.0
  %3186 = vmatprep.subr.mxu0 0.0
  %3187 = vmatpush1.msra.mxu0 0.0
  %3188 = vmatprep.subr.mxu0 0.0
  %3189 = vmatpush1.msra.mxu0 0.0
  %3190 = vmatprep.subr.mxu0 0.0
  %3191 = vmatpush1.msra.mxu0 0.0
  %3192 = vmatprep.subr.mxu0 0.0
  %3193 = vmatpush1.msra.mxu0 0.0
  %3194 = vmatprep.subr.mxu0 0.0
  %3195 = vmatpush1.msra.mxu0 0.0
  %3196 = vmatprep.mubr.f32.mxu0 0.0
  %3197 = vmatmul.mubr.f32.gmra.mrb[0].mxu0 %v3130
  %v3198 = vpop.f32.mrb[0].mxu0
  %v3199 = vadd.f32 0.0, %v3198
  %v3200 = vpop.f32.mrb[0].mxu0
  %3201 = vmatprep.mubr.f32.mxu0 0.0
  %3202 = vmatmul.mubr.f32.gmra.mrb[0].mxu0 %v3131
  %v3203 = vpop.f32.mrb[0].mxu0
  %v3204 = vadd.f32 0.0, %v3203
  %v3205 = vpop.f32.mrb[0].mxu0
  %3206 = vdwg.mxu0
  %v3207 = vmul.f32 %v2451, %v2889
  %v3208 = vmul.f32 %v2452, %v2895
  %3209 = vmatprep.subr.mxu0 0.0
  %3210 = vmatpush1.msra.mxu0 %v48
  %3211 = vmatprep.subr.mxu0 0.0
  %3212 = vmatpush1.msra.mxu0 %v49
  %3213 = vmatprep.subr.mxu0 0.0
  %3214 = vmatpush1.msra.mxu0 %v50
  %3215 = vmatprep.subr.mxu0 0.0
  %3216 = vmatpush1.msra.mxu0 %v51
  %3217 = vmatprep.subr.mxu0 0.0
  %3218 = vmatpush1.msra.mxu0 %v52
  %3219 = vmatprep.subr.mxu0 0.0
  %3220 = vmatpush1.msra.mxu0 %v53
  %3221 = vmatprep.subr.mxu0 0.0
  %3222 = vmatpush1.msra.mxu0 %v54
  %3223 = vmatprep.subr.mxu0 0.0
  %3224 = vmatpush1.msra.mxu0 %v55
  %3225 = vmatprep.subr.mxu0 0.0
  %3226 = vmatpush1.msra.mxu0 %v56
  %3227 = vmatprep.subr.mxu0 0.0
  %3228 = vmatpush1.msra.mxu0 %v57
  %3229 = vmatprep.subr.mxu0 0.0
  %3230 = vmatpush1.msra.mxu0 %v58
  %3231 = vmatprep.subr.mxu0 0.0
  %3232 = vmatpush1.msra.mxu0 %v59
  %3233 = vmatprep.subr.mxu0 0.0
  %3234 = vmatpush1.msra.mxu0 %v60
  %3235 = vmatprep.subr.mxu0 0.0
  %3236 = vmatpush1.msra.mxu0 %v61
  %3237 = vmatprep.subr.mxu0 0.0
  %3238 = vmatpush1.msra.mxu0 %v62
  %3239 = vmatprep.subr.mxu0 0.0
  %3240 = vmatpush1.msra.mxu0 %v63
  %3241 = vmatprep.subr.mxu0 0.0
  %3242 = vmatpush1.msra.mxu0 0.0
  %3243 = vmatprep.subr.mxu0 0.0
  %3244 = vmatpush1.msra.mxu0 0.0
  %3245 = vmatprep.subr.mxu0 0.0
  %3246 = vmatpush1.msra.mxu0 0.0
  %3247 = vmatprep.subr.mxu0 0.0
  %3248 = vmatpush1.msra.mxu0 0.0
  %3249 = vmatprep.subr.mxu0 0.0
  %3250 = vmatpush1.msra.mxu0 0.0
  %3251 = vmatprep.subr.mxu0 0.0
  %3252 = vmatpush1.msra.mxu0 0.0
  %3253 = vmatprep.subr.mxu0 0.0
  %3254 = vmatpush1.msra.mxu0 0.0
  %3255 = vmatprep.subr.mxu0 0.0
  %3256 = vmatpush1.msra.mxu0 0.0
  %3257 = vmatprep.subr.mxu0 0.0
  %3258 = vmatpush1.msra.mxu0 0.0
  %3259 = vmatprep.subr.mxu0 0.0
  %3260 = vmatpush1.msra.mxu0 0.0
  %3261 = vmatprep.subr.mxu0 0.0
  %3262 = vmatpush1.msra.mxu0 0.0
  %3263 = vmatprep.subr.mxu0 0.0
  %3264 = vmatpush1.msra.mxu0 0.0
  %3265 = vmatprep.subr.mxu0 0.0
  %3266 = vmatpush1.msra.mxu0 0.0
  %3267 = vmatprep.subr.mxu0 0.0
  %3268 = vmatpush1.msra.mxu0 0.0
  %3269 = vmatprep.subr.mxu0 0.0
  %3270 = vmatpush1.msra.mxu0 0.0
  %3271 = vmatprep.subr.mxu0 0.0
  %3272 = vmatpush1.msra.mxu0 0.0
  %3273 = vmatprep.mubr.f32.mxu0 0.0
  %3274 = vmatmul.mubr.f32.gmra.mrb[0].mxu0 %v3207
  %v3275 = vpop.f32.mrb[0].mxu0
  %v3276 = vadd.f32 0.0, %v3275
  %v3277 = vpop.f32.mrb[0].mxu0
  %3278 = vmatprep.mubr.f32.mxu0 0.0
  %3279 = vmatmul.mubr.f32.gmra.mrb[0].mxu0 %v3208
  %v3280 = vpop.f32.mrb[0].mxu0
  %v3281 = vadd.f32 0.0, %v3280
  %v3282 = vpop.f32.mrb[0].mxu0
  %3283 = vdwg.mxu0
  %3286 = vrot.lane.b32.xlu0 %v3045, 32
  %v3287 = vpop.permute.xlu0 %3286
  %3288 = vrot.lane.b32.xlu0 %v3050, 32
  %v3289 = vpop.permute.xlu0 %3288
  %3294 = vrot.lane.b32.xlu0 %v3122, 64
  %v3295 = vpop.permute.xlu0 %3294
  %3296 = vrot.lane.b32.xlu0 %v3127, 64
  %v3297 = vpop.permute.xlu0 %3296
  %3302 = vrot.lane.b32.xlu0 %v3199, 96
  %v3303 = vpop.permute.xlu0 %3302
  %3304 = vrot.lane.b32.xlu0 %v3204, 96
  %v3305 = vpop.permute.xlu0 %3304
  %v3308 = vsel %vm1025, %v2968, %v3287
  %v3309 = vsel %vm1025, %v2973, %v3289
  %v3310 = vsel %vm1028, %v3308, %v3295
  %v3311 = vsel %vm1028, %v3309, %v3297
  %v3312 = vsel %vm1031, %v3310, %v3303
  %v3313 = vsel %vm1031, %v3311, %v3305
  %v3314 = vmul.f32 %v3276, %v3276
  %v3315 = vmul.f32 %v3281, %v3281
  %v3317 = vsel %vm1025, %v3314, 0
  %v3320 = vsel %vm1025, %v3315, 0
  %3322 = vmatprep.subr.mxu0 0.0
  %3323 = vmatpush1.msra.mxu0 %v1041
  %3324 = vmatprep.subr.mxu0 0.0
  %3325 = vmatpush1.msra.mxu0 %v1043
  %3326 = vmatprep.subr.mxu0 0.0
  %3327 = vmatpush1.msra.mxu0 %v1045
  %3328 = vmatprep.subr.mxu0 0.0
  %3329 = vmatpush1.msra.mxu0 %v1047
  %3330 = vmatprep.subr.mxu0 0.0
  %3331 = vmatpush1.msra.mxu0 0.0
  %3332 = vmatprep.subr.mxu0 0.0
  %3333 = vmatpush1.msra.mxu0 0.0
  %3334 = vmatprep.subr.mxu0 0.0
  %3335 = vmatpush1.msra.mxu0 0.0
  %3336 = vmatprep.subr.mxu0 0.0
  %3337 = vmatpush1.msra.mxu0 0.0
  %3338 = vmatprep.subr.mxu0 0.0
  %3339 = vmatpush1.msra.mxu0 0.0
  %3340 = vmatprep.subr.mxu0 0.0
  %3341 = vmatpush1.msra.mxu0 0.0
  %3342 = vmatprep.subr.mxu0 0.0
  %3343 = vmatpush1.msra.mxu0 0.0
  %3344 = vmatprep.subr.mxu0 0.0
  %3345 = vmatpush1.msra.mxu0 0.0
  %3346 = vmatprep.subr.mxu0 0.0
  %3347 = vmatpush1.msra.mxu0 0.0
  %3348 = vmatprep.subr.mxu0 0.0
  %3349 = vmatpush1.msra.mxu0 0.0
  %3350 = vmatprep.subr.mxu0 0.0
  %3351 = vmatpush1.msra.mxu0 0.0
  %3352 = vmatprep.subr.mxu0 0.0
  %3353 = vmatpush1.msra.mxu0 0.0
  %3354 = vmatprep.subr.mxu0 0.0
  %3355 = vmatpush1.msra.mxu0 0.0
  %3356 = vmatprep.subr.mxu0 0.0
  %3357 = vmatpush1.msra.mxu0 0.0
  %3358 = vmatprep.subr.mxu0 0.0
  %3359 = vmatpush1.msra.mxu0 0.0
  %3360 = vmatprep.subr.mxu0 0.0
  %3361 = vmatpush1.msra.mxu0 0.0
  %3362 = vmatprep.subr.mxu0 0.0
  %3363 = vmatpush1.msra.mxu0 0.0
  %3364 = vmatprep.subr.mxu0 0.0
  %3365 = vmatpush1.msra.mxu0 0.0
  %3366 = vmatprep.subr.mxu0 0.0
  %3367 = vmatpush1.msra.mxu0 0.0
  %3368 = vmatprep.subr.mxu0 0.0
  %3369 = vmatpush1.msra.mxu0 0.0
  %3370 = vmatprep.subr.mxu0 0.0
  %3371 = vmatpush1.msra.mxu0 0.0
  %3372 = vmatprep.subr.mxu0 0.0
  %3373 = vmatpush1.msra.mxu0 0.0
  %3374 = vmatprep.subr.mxu0 0.0
  %3375 = vmatpush1.msra.mxu0 0.0
  %3376 = vmatprep.subr.mxu0 0.0
  %3377 = vmatpush1.msra.mxu0 0.0
  %3378 = vmatprep.subr.mxu0 0.0
  %3379 = vmatpush1.msra.mxu0 0.0
  %3380 = vmatprep.subr.mxu0 0.0
  %3381 = vmatpush1.msra.mxu0 0.0
  %3382 = vmatprep.subr.mxu0 0.0
  %3383 = vmatpush1.msra.mxu0 0.0
  %3384 = vmatprep.subr.mxu0 0.0
  %3385 = vmatpush1.msra.mxu0 0.0
  %3386 = vmatprep.mubr.f32.mxu0 0.0
  %3387 = vmatmul.mubr.f32.gmra.mrb[0].mxu0 %v3317
  %v3388 = vpop.f32.mrb[0].mxu0
  %v3389 = vadd.f32 1.1920929e-07, %v3388
  %v3390 = vpop.f32.mrb[0].mxu0
  %3391 = vmatprep.mubr.f32.mxu0 0.0
  %3392 = vmatmul.mubr.f32.gmra.mrb[0].mxu0 %v3320
  %v3393 = vpop.f32.mrb[0].mxu0
  %v3394 = vadd.f32 1.1920929e-07, %v3393
  %v3395 = vpop.f32.mrb[0].mxu0
  %3396 = vdwg.mxu0
  %v3397 = vrsqrt.pop %v3389
  %v3398 = vrsqrt.pop %v3394
  %v3399 = vmul.f32 %v3276, %v3397
  %v3400 = vmul.f32 %v3281, %v3398
  %v3401 = vlaneseq
  %v3402 = vshrl.u32 %v3401, 7
  %v3403 = vsub.s32 1, %v3402
  %v3404 = vrot.slane %v2454, %v3403
  %v3405 = vmul.f32 %v3399, %v3404
  %v3406 = vmul.f32 %v3400, %v3404
  %v3407 = vlaneseq
  %v3408 = vshrl.u32 %v3407, 7
  %v3409 = vsub.s32 4, %v3408
  %v3410 = vrot.slane %v2454, %v3409
  %v3412 = vsel %vm1025, %v3405, 0
  %v3415 = vsel %vm1025, %v3406, 0
  %3417 = vmatprep.subr.mxu0 0.0
  %3418 = vmatpush1.msra.mxu0 %v2473
  %3419 = vmatprep.subr.mxu0 0.0
  %3420 = vmatpush1.msra.mxu0 %v2474
  %3421 = vmatprep.subr.mxu0 0.0
  %3422 = vmatpush1.msra.mxu0 %v2475
  %3423 = vmatprep.subr.mxu0 0.0
  %3424 = vmatpush1.msra.mxu0 %v2476
  %3425 = vmatprep.subr.mxu0 0.0
  %3426 = vmatpush1.msra.mxu0 0.0
  %3427 = vmatprep.subr.mxu0 0.0
  %3428 = vmatpush1.msra.mxu0 0.0
  %3429 = vmatprep.subr.mxu0 0.0
  %3430 = vmatpush1.msra.mxu0 0.0
  %3431 = vmatprep.subr.mxu0 0.0
  %3432 = vmatpush1.msra.mxu0 0.0
  %3433 = vmatprep.subr.mxu0 0.0
  %3434 = vmatpush1.msra.mxu0 0.0
  %3435 = vmatprep.subr.mxu0 0.0
  %3436 = vmatpush1.msra.mxu0 0.0
  %3437 = vmatprep.subr.mxu0 0.0
  %3438 = vmatpush1.msra.mxu0 0.0
  %3439 = vmatprep.subr.mxu0 0.0
  %3440 = vmatpush1.msra.mxu0 0.0
  %3441 = vmatprep.subr.mxu0 0.0
  %3442 = vmatpush1.msra.mxu0 0.0
  %3443 = vmatprep.subr.mxu0 0.0
  %3444 = vmatpush1.msra.mxu0 0.0
  %3445 = vmatprep.subr.mxu0 0.0
  %3446 = vmatpush1.msra.mxu0 0.0
  %3447 = vmatprep.subr.mxu0 0.0
  %3448 = vmatpush1.msra.mxu0 0.0
  %3449 = vmatprep.subr.mxu0 0.0
  %3450 = vmatpush1.msra.mxu0 0.0
  %3451 = vmatprep.subr.mxu0 0.0
  %3452 = vmatpush1.msra.mxu0 0.0
  %3453 = vmatprep.subr.mxu0 0.0
  %3454 = vmatpush1.msra.mxu0 0.0
  %3455 = vmatprep.subr.mxu0 0.0
  %3456 = vmatpush1.msra.mxu0 0.0
  %3457 = vmatprep.subr.mxu0 0.0
  %3458 = vmatpush1.msra.mxu0 0.0
  %3459 = vmatprep.subr.mxu0 0.0
  %3460 = vmatpush1.msra.mxu0 0.0
  %3461 = vmatprep.subr.mxu0 0.0
  %3462 = vmatpush1.msra.mxu0 0.0
  %3463 = vmatprep.subr.mxu0 0.0
  %3464 = vmatpush1.msra.mxu0 0.0
  %3465 = vmatprep.subr.mxu0 0.0
  %3466 = vmatpush1.msra.mxu0 0.0
  %3467 = vmatprep.subr.mxu0 0.0
  %3468 = vmatpush1.msra.mxu0 0.0
  %3469 = vmatprep.subr.mxu0 0.0
  %3470 = vmatpush1.msra.mxu0 0.0
  %3471 = vmatprep.subr.mxu0 0.0
  %3472 = vmatpush1.msra.mxu0 0.0
  %3473 = vmatprep.subr.mxu0 0.0
  %3474 = vmatpush1.msra.mxu0 0.0
  %3475 = vmatprep.subr.mxu0 0.0
  %3476 = vmatpush1.msra.mxu0 0.0
  %3477 = vmatprep.subr.mxu0 0.0
  %3478 = vmatpush1.msra.mxu0 0.0
  %3479 = vmatprep.subr.mxu0 0.0
  %3480 = vmatpush1.msra.mxu0 0.0
  %3481 = vmatprep.mubr.f32.mxu0 0.0
  %3482 = vmatmul.mubr.f32.gmra.mrb[0].mxu0 %v3412
  %v3483 = vpop.f32.mrb[0].mxu0
  %v3484 = vadd.f32 %v3410, %v3483
  %v3485 = vpop.f32.mrb[0].mxu0
  %3486 = vmatprep.mubr.f32.mxu0 0.0
  %3487 = vmatmul.mubr.f32.gmra.mrb[0].mxu0 %v3415
  %v3488 = vpop.f32.mrb[0].mxu0
  %v3489 = vadd.f32 %v3410, %v3488
  %v3490 = vpop.f32.mrb[0].mxu0
  %3491 = vdwg.mxu0
  %v3492 = vmax.f32 %v3484, 0.0
  %v3493 = vmax.f32 %v3489, 0.0
  %v3494 = vmul.f32 %v3492, %v3492
  %v3495 = vmul.f32 %v3493, %v3493
  %v3496 = vlaneseq
  %v3497 = vshrl.u32 %v3496, 7
  %v3498 = vsub.s32 5, %v3497
  %v3499 = vrot.slane %v2454, %v3498
  %v3501 = vsel %vm1028, %v3494, 0
  %v3504 = vsel %vm1028, %v3495, 0
  %3506 = vmatprep.subr.mxu0 0.0
  %3507 = vmatpush1.msra.mxu0 %v2478
  %3508 = vmatprep.subr.mxu0 0.0
  %3509 = vmatpush1.msra.mxu0 %v2479
  %3510 = vmatprep.subr.mxu0 0.0
  %3511 = vmatpush1.msra.mxu0 %v2480
  %3512 = vmatprep.subr.mxu0 0.0
  %3513 = vmatpush1.msra.mxu0 %v2481
  %3514 = vmatprep.subr.mxu0 0.0
  %3515 = vmatpush1.msra.mxu0 %v2482
  %3516 = vmatprep.subr.mxu0 0.0
  %3517 = vmatpush1.msra.mxu0 %v2483
  %3518 = vmatprep.subr.mxu0 0.0
  %3519 = vmatpush1.msra.mxu0 %v2484
  %3520 = vmatprep.subr.mxu0 0.0
  %3521 = vmatpush1.msra.mxu0 %v2485
  %3522 = vmatprep.subr.mxu0 0.0
  %3523 = vmatpush1.msra.mxu0 0.0
  %3524 = vmatprep.subr.mxu0 0.0
  %3525 = vmatpush1.msra.mxu0 0.0
  %3526 = vmatprep.subr.mxu0 0.0
  %3527 = vmatpush1.msra.mxu0 0.0
  %3528 = vmatprep.subr.mxu0 0.0
  %3529 = vmatpush1.msra.mxu0 0.0
  %3530 = vmatprep.subr.mxu0 0.0
  %3531 = vmatpush1.msra.mxu0 0.0
  %3532 = vmatprep.subr.mxu0 0.0
  %3533 = vmatpush1.msra.mxu0 0.0
  %3534 = vmatprep.subr.mxu0 0.0
  %3535 = vmatpush1.msra.mxu0 0.0
  %3536 = vmatprep.subr.mxu0 0.0
  %3537 = vmatpush1.msra.mxu0 0.0
  %3538 = vmatprep.subr.mxu0 0.0
  %3539 = vmatpush1.msra.mxu0 0.0
  %3540 = vmatprep.subr.mxu0 0.0
  %3541 = vmatpush1.msra.mxu0 0.0
  %3542 = vmatprep.subr.mxu0 0.0
  %3543 = vmatpush1.msra.mxu0 0.0
  %3544 = vmatprep.subr.mxu0 0.0
  %3545 = vmatpush1.msra.mxu0 0.0
  %3546 = vmatprep.subr.mxu0 0.0
  %3547 = vmatpush1.msra.mxu0 0.0
  %3548 = vmatprep.subr.mxu0 0.0
  %3549 = vmatpush1.msra.mxu0 0.0
  %3550 = vmatprep.subr.mxu0 0.0
  %3551 = vmatpush1.msra.mxu0 0.0
  %3552 = vmatprep.subr.mxu0 0.0
  %3553 = vmatpush1.msra.mxu0 0.0
  %3554 = vmatprep.subr.mxu0 0.0
  %3555 = vmatpush1.msra.mxu0 0.0
  %3556 = vmatprep.subr.mxu0 0.0
  %3557 = vmatpush1.msra.mxu0 0.0
  %3558 = vmatprep.subr.mxu0 0.0
  %3559 = vmatpush1.msra.mxu0 0.0
  %3560 = vmatprep.subr.mxu0 0.0
  %3561 = vmatpush1.msra.mxu0 0.0
  %3562 = vmatprep.subr.mxu0 0.0
  %3563 = vmatpush1.msra.mxu0 0.0
  %3564 = vmatprep.subr.mxu0 0.0
  %3565 = vmatpush1.msra.mxu0 0.0
  %3566 = vmatprep.subr.mxu0 0.0
  %3567 = vmatpush1.msra.mxu0 0.0
  %3568 = vmatprep.subr.mxu0 0.0
  %3569 = vmatpush1.msra.mxu0 0.0
  %3570 = vmatprep.mubr.f32.mxu0 0.0
  %3571 = vmatmul.mubr.f32.gmra.mrb[0].mxu0 %v3501
  %v3572 = vpop.f32.mrb[0].mxu0
  %v3573 = vadd.f32 %v3499, %v3572
  %v3574 = vpop.f32.mrb[0].mxu0
  %3575 = vmatprep.mubr.f32.mxu0 0.0
  %3576 = vmatmul.mubr.f32.gmra.mrb[0].mxu0 %v3504
  %v3577 = vpop.f32.mrb[0].mxu0
  %v3578 = vadd.f32 %v3499, %v3577
  %v3579 = vpop.f32.mrb[0].mxu0
  %3580 = vdwg.mxu0
  %v3581 = vmul.f32 %v3573, %v2891
  %v3582 = vmul.f32 %v3578, %v2897
  %v3583 = vadd.f32 %v3312, %v3581
  %v3584 = vadd.f32 %v3313, %v3582
  %s3585 = scalar_lea.vmem %s8, 24
  %v3586 = vld [vmem:[%s3585] sm:$0x3f]
  %s3587 = scalar_lea.vmem %s5, 384
  %v3588 = vld [vmem:[%s3587] sm:$0xff]
  %v3589 = vld [vmem:[%s3587 + $0x8] sm:$0xff]
  %v3590 = vld [vmem:[%s3587 + $0x10] sm:$0xff]
  %v3591 = vld [vmem:[%s3587 + $0x18] sm:$0xff]
  %v3592 = vld [vmem:[%s3587 + $0x20] sm:$0xff]
  %v3593 = vld [vmem:[%s3587 + $0x28] sm:$0xff]
  %v3594 = vld [vmem:[%s3587 + $0x30] sm:$0xff]
  %v3595 = vld [vmem:[%s3587 + $0x38] sm:$0xff]
  %v3596 = vld [vmem:[%s3587 + $0x40] sm:$0xff]
  %v3597 = vld [vmem:[%s3587 + $0x48] sm:$0xff]
  %v3598 = vld [vmem:[%s3587 + $0x50] sm:$0xff]
  %v3599 = vld [vmem:[%s3587 + $0x58] sm:$0xff]
  %v3600 = vld [vmem:[%s3587 + $0x60] sm:$0xff]
  %v3601 = vld [vmem:[%s3587 + $0x68] sm:$0xff]
  %v3602 = vld [vmem:[%s3587 + $0x70] sm:$0xff]
  %v3603 = vld [vmem:[%s3587 + $0x78] sm:$0xff]
  %s3604 = scalar_lea.vmem %s6, 96
  %v3605 = vld [vmem:[%s3604] sm:$0xff]
  %v3606 = vld [vmem:[%s3604 + $0x8] sm:$0xff]
  %v3607 = vld [vmem:[%s3604 + $0x10] sm:$0xff]
  %v3608 = vld [vmem:[%s3604 + $0x18] sm:$0xff]
  %s3609 = scalar_lea.vmem %s7, 192
  %v3610 = vld [vmem:[%s3609] sm:$0xff]
  %v3611 = vld [vmem:[%s3609 + $0x8] sm:$0xff]
  %v3612 = vld [vmem:[%s3609 + $0x10] sm:$0xff]
  %v3613 = vld [vmem:[%s3609 + $0x18] sm:$0xff]
  %v3614 = vld [vmem:[%s3609 + $0x20] sm:$0xff]
  %v3615 = vld [vmem:[%s3609 + $0x28] sm:$0xff]
  %v3616 = vld [vmem:[%s3609 + $0x30] sm:$0xff]
  %v3617 = vld [vmem:[%s3609 + $0x38] sm:$0xff]
  %v3618 = vmul.f32 %v3583, %v3583
  %v3619 = vmul.f32 %v3584, %v3584
  %3620 = vmatprep.subr.mxu0 0.0
  %3621 = vmatpush1.msra.mxu0 %v32
  %3622 = vmatprep.subr.mxu0 0.0
  %3623 = vmatpush1.msra.mxu0 %v33
  %3624 = vmatprep.subr.mxu0 0.0
  %3625 = vmatpush1.msra.mxu0 %v34
  %3626 = vmatprep.subr.mxu0 0.0
  %3627 = vmatpush1.msra.mxu0 %v35
  %3628 = vmatprep.subr.mxu0 0.0
  %3629 = vmatpush1.msra.mxu0 %v36
  %3630 = vmatprep.subr.mxu0 0.0
  %3631 = vmatpush1.msra.mxu0 %v37
  %3632 = vmatprep.subr.mxu0 0.0
  %3633 = vmatpush1.msra.mxu0 %v38
  %3634 = vmatprep.subr.mxu0 0.0
  %3635 = vmatpush1.msra.mxu0 %v39
  %3636 = vmatprep.subr.mxu0 0.0
  %3637 = vmatpush1.msra.mxu0 %v40
  %3638 = vmatprep.subr.mxu0 0.0
  %3639 = vmatpush1.msra.mxu0 %v41
  %3640 = vmatprep.subr.mxu0 0.0
  %3641 = vmatpush1.msra.mxu0 %v42
  %3642 = vmatprep.subr.mxu0 0.0
  %3643 = vmatpush1.msra.mxu0 %v43
  %3644 = vmatprep.subr.mxu0 0.0
  %3645 = vmatpush1.msra.mxu0 %v44
  %3646 = vmatprep.subr.mxu0 0.0
  %3647 = vmatpush1.msra.mxu0 %v45
  %3648 = vmatprep.subr.mxu0 0.0
  %3649 = vmatpush1.msra.mxu0 %v46
  %3650 = vmatprep.subr.mxu0 0.0
  %3651 = vmatpush1.msra.mxu0 %v47
  %3652 = vmatprep.subr.mxu0 0.0
  %3653 = vmatpush1.msra.mxu0 0.0
  %3654 = vmatprep.subr.mxu0 0.0
  %3655 = vmatpush1.msra.mxu0 0.0
  %3656 = vmatprep.subr.mxu0 0.0
  %3657 = vmatpush1.msra.mxu0 0.0
  %3658 = vmatprep.subr.mxu0 0.0
  %3659 = vmatpush1.msra.mxu0 0.0
  %3660 = vmatprep.subr.mxu0 0.0
  %3661 = vmatpush1.msra.mxu0 0.0
  %3662 = vmatprep.subr.mxu0 0.0
  %3663 = vmatpush1.msra.mxu0 0.0
  %3664 = vmatprep.subr.mxu0 0.0
  %3665 = vmatpush1.msra.mxu0 0.0
  %3666 = vmatprep.subr.mxu0 0.0
  %3667 = vmatpush1.msra.mxu0 0.0
  %3668 = vmatprep.subr.mxu0 0.0
  %3669 = vmatpush1.msra.mxu0 0.0
  %3670 = vmatprep.subr.mxu0 0.0
  %3671 = vmatpush1.msra.mxu0 0.0
  %3672 = vmatprep.subr.mxu0 0.0
  %3673 = vmatpush1.msra.mxu0 0.0
  %3674 = vmatprep.subr.mxu0 0.0
  %3675 = vmatpush1.msra.mxu0 0.0
  %3676 = vmatprep.subr.mxu0 0.0
  %3677 = vmatpush1.msra.mxu0 0.0
  %3678 = vmatprep.subr.mxu0 0.0
  %3679 = vmatpush1.msra.mxu0 0.0
  %3680 = vmatprep.subr.mxu0 0.0
  %3681 = vmatpush1.msra.mxu0 0.0
  %3682 = vmatprep.subr.mxu0 0.0
  %3683 = vmatpush1.msra.mxu0 0.0
  %3684 = vmatprep.mubr.f32.mxu0 0.0
  %3685 = vmatmul.mubr.f32.gmra.mrb[0].mxu0 %v3618
  %v3686 = vpop.f32.mrb[0].mxu0
  %v3687 = vadd.f32 1.1920929e-07, %v3686
  %v3688 = vpop.f32.mrb[0].mxu0
  %3689 = vmatprep.mubr.f32.mxu0 0.0
  %3690 = vmatmul.mubr.f32.gmra.mrb[0].mxu0 %v3619
  %v3691 = vpop.f32.mrb[0].mxu0
  %v3692 = vadd.f32 1.1920929e-07, %v3691
  %v3693 = vpop.f32.mrb[0].mxu0
  %3694 = vdwg.mxu0
  %v3695 = vrsqrt.pop %v3687
  %v3696 = vrsqrt.pop %v3692
  %v3697 = vmul.f32 %v3583, %v3695
  %v3698 = vmul.f32 %v3584, %v3696
  %v3699 = vlaneseq
  %v3700 = vshrl.u32 %v3699, 7
  %v3701 = vsub.s32 0, %v3700
  %v3702 = vrot.slane %v3586, %v3701
  %v3703 = vmul.f32 %v3697, %v3702
  %v3704 = vmul.f32 %v3698, %v3702
  %3705 = vmatprep.subr.mxu0 0.0
  %3706 = vmatpush1.msra.mxu0 %v3588
  %3707 = vmatprep.subr.mxu0 0.0
  %3708 = vmatpush1.msra.mxu0 %v3589
  %3709 = vmatprep.subr.mxu0 0.0
  %3710 = vmatpush1.msra.mxu0 %v3590
  %3711 = vmatprep.subr.mxu0 0.0
  %3712 = vmatpush1.msra.mxu0 %v3591
  %3713 = vmatprep.subr.mxu0 0.0
  %3714 = vmatpush1.msra.mxu0 %v3592
  %3715 = vmatprep.subr.mxu0 0.0
  %3716 = vmatpush1.msra.mxu0 %v3593
  %3717 = vmatprep.subr.mxu0 0.0
  %3718 = vmatpush1.msra.mxu0 %v3594
  %3719 = vmatprep.subr.mxu0 0.0
  %3720 = vmatpush1.msra.mxu0 %v3595
  %3721 = vmatprep.subr.mxu0 0.0
  %3722 = vmatpush1.msra.mxu0 %v3596
  %3723 = vmatprep.subr.mxu0 0.0
  %3724 = vmatpush1.msra.mxu0 %v3597
  %3725 = vmatprep.subr.mxu0 0.0
  %3726 = vmatpush1.msra.mxu0 %v3598
  %3727 = vmatprep.subr.mxu0 0.0
  %3728 = vmatpush1.msra.mxu0 %v3599
  %3729 = vmatprep.subr.mxu0 0.0
  %3730 = vmatpush1.msra.mxu0 %v3600
  %3731 = vmatprep.subr.mxu0 0.0
  %3732 = vmatpush1.msra.mxu0 %v3601
  %3733 = vmatprep.subr.mxu0 0.0
  %3734 = vmatpush1.msra.mxu0 %v3602
  %3735 = vmatprep.subr.mxu0 0.0
  %3736 = vmatpush1.msra.mxu0 %v3603
  %3737 = vmatprep.subr.mxu0 0.0
  %3738 = vmatpush1.msra.mxu0 0.0
  %3739 = vmatprep.subr.mxu0 0.0
  %3740 = vmatpush1.msra.mxu0 0.0
  %3741 = vmatprep.subr.mxu0 0.0
  %3742 = vmatpush1.msra.mxu0 0.0
  %3743 = vmatprep.subr.mxu0 0.0
  %3744 = vmatpush1.msra.mxu0 0.0
  %3745 = vmatprep.subr.mxu0 0.0
  %3746 = vmatpush1.msra.mxu0 0.0
  %3747 = vmatprep.subr.mxu0 0.0
  %3748 = vmatpush1.msra.mxu0 0.0
  %3749 = vmatprep.subr.mxu0 0.0
  %3750 = vmatpush1.msra.mxu0 0.0
  %3751 = vmatprep.subr.mxu0 0.0
  %3752 = vmatpush1.msra.mxu0 0.0
  %3753 = vmatprep.subr.mxu0 0.0
  %3754 = vmatpush1.msra.mxu0 0.0
  %3755 = vmatprep.subr.mxu0 0.0
  %3756 = vmatpush1.msra.mxu0 0.0
  %3757 = vmatprep.subr.mxu0 0.0
  %3758 = vmatpush1.msra.mxu0 0.0
  %3759 = vmatprep.subr.mxu0 0.0
  %3760 = vmatpush1.msra.mxu0 0.0
  %3761 = vmatprep.subr.mxu0 0.0
  %3762 = vmatpush1.msra.mxu0 0.0
  %3763 = vmatprep.subr.mxu0 0.0
  %3764 = vmatpush1.msra.mxu0 0.0
  %3765 = vmatprep.subr.mxu0 0.0
  %3766 = vmatpush1.msra.mxu0 0.0
  %3767 = vmatprep.subr.mxu0 0.0
  %3768 = vmatpush1.msra.mxu0 0.0
  %3769 = vmatprep.mubr.f32.mxu0 0.0
  %3770 = vmatmul.mubr.f32.gmra.mrb[0].mxu0 %v3703
  %v3771 = vpop.f32.mrb[0].mxu0
  %v3772 = vadd.f32 0.0, %v3771
  %v3773 = vpop.f32.mrb[0].mxu0
  %3774 = vmatprep.mubr.f32.mxu0 0.0
  %3775 = vmatmul.mubr.f32.gmra.mrb[0].mxu0 %v3704
  %v3776 = vpop.f32.mrb[0].mxu0
  %v3777 = vadd.f32 0.0, %v3776
  %v3778 = vpop.f32.mrb[0].mxu0
  %3779 = vdwg.mxu0
  %v3780 = vtanh.pop %v3772
  %v3781 = vtanh.pop %v3777
  %v3782 = vlaneseq
  %v3783 = vshrl.u32 %v3782, 7
  %v3784 = vsub.s32 2, %v3783
  %v3785 = vrot.slane %v3586, %v3784
  %v3786 = vmul.f32 %v3780, %v3785
  %v3787 = vmul.f32 %v3781, %v3785
  %v3788 = vlaneseq
  %v3789 = vshrl.u32 %v3788, 7
  %v3790 = vsub.s32 3, %v3789
  %v3791 = vrot.slane %v3586, %v3790
  %v3792 = vadd.f32 %v3786, %v3791
  %v3793 = vadd.f32 %v3787, %v3791
  %v3795 = vsel %vm378, %v3792, 0
  %v3798 = vsel %vm378, %v3793, 0
  %3800 = vmatprep.subr.mxu0 %v65
  %3801 = vmatpush1.msra.mxu0 %v64
  %3802 = vmatprep.subr.mxu0 %v71
  %3803 = vmatpush1.msra.mxu0 %v70
  %3804 = vmatprep.subr.mxu0 %v77
  %3805 = vmatpush1.msra.mxu0 %v76
  %3806 = vmatprep.subr.mxu0 0.0
  %3807 = vmatpush1.msra.mxu0 0.0
  %3808 = vmatprep.subr.mxu0 0.0
  %3809 = vmatpush1.msra.mxu0 0.0
  %3810 = vmatprep.subr.mxu0 0.0
  %3811 = vmatpush1.msra.mxu0 0.0
  %3812 = vmatprep.subr.mxu0 0.0
  %3813 = vmatpush1.msra.mxu0 0.0
  %3814 = vmatprep.subr.mxu0 0.0
  %3815 = vmatpush1.msra.mxu0 0.0
  %3816 = vmatprep.subr.mxu0 0.0
  %3817 = vmatpush1.msra.mxu0 0.0
  %3818 = vmatprep.subr.mxu0 0.0
  %3819 = vmatpush1.msra.mxu0 0.0
  %3820 = vmatprep.subr.mxu0 0.0
  %3821 = vmatpush1.msra.mxu0 0.0
  %3822 = vmatprep.subr.mxu0 0.0
  %3823 = vmatpush1.msra.mxu0 0.0
  %3824 = vmatprep.subr.mxu0 0.0
  %3825 = vmatpush1.msra.mxu0 0.0
  %3826 = vmatprep.subr.mxu0 0.0
  %3827 = vmatpush1.msra.mxu0 0.0
  %3828 = vmatprep.subr.mxu0 0.0
  %3829 = vmatpush1.msra.mxu0 0.0
  %3830 = vmatprep.subr.mxu0 0.0
  %3831 = vmatpush1.msra.mxu0 0.0
  %3832 = vmatprep.subr.mxu0 0.0
  %3833 = vmatpush1.msra.mxu0 0.0
  %3834 = vmatprep.subr.mxu0 0.0
  %3835 = vmatpush1.msra.mxu0 0.0
  %3836 = vmatprep.subr.mxu0 0.0
  %3837 = vmatpush1.msra.mxu0 0.0
  %3838 = vmatprep.subr.mxu0 0.0
  %3839 = vmatpush1.msra.mxu0 0.0
  %3840 = vmatprep.subr.mxu0 0.0
  %3841 = vmatpush1.msra.mxu0 0.0
  %3842 = vmatprep.subr.mxu0 0.0
  %3843 = vmatpush1.msra.mxu0 0.0
  %3844 = vmatprep.subr.mxu0 0.0
  %3845 = vmatpush1.msra.mxu0 0.0
  %3846 = vmatprep.subr.mxu0 0.0
  %3847 = vmatpush1.msra.mxu0 0.0
  %3848 = vmatprep.subr.mxu0 0.0
  %3849 = vmatpush1.msra.mxu0 0.0
  %3850 = vmatprep.subr.mxu0 0.0
  %3851 = vmatpush1.msra.mxu0 0.0
  %3852 = vmatprep.subr.mxu0 0.0
  %3853 = vmatpush1.msra.mxu0 0.0
  %3854 = vmatprep.subr.mxu0 0.0
  %3855 = vmatpush1.msra.mxu0 0.0
  %3856 = vmatprep.subr.mxu0 0.0
  %3857 = vmatpush1.msra.mxu0 0.0
  %3858 = vmatprep.subr.mxu0 0.0
  %3859 = vmatpush1.msra.mxu0 0.0
  %3860 = vmatprep.subr.mxu0 0.0
  %3861 = vmatpush1.msra.mxu0 0.0
  %3862 = vmatprep.subr.mxu0 0.0
  %3863 = vmatpush1.msra.mxu0 0.0
  %3864 = vmatprep.mubr.f32.mxu0 0.0
  %3865 = vmatmul.mubr.f32.gmra.mrb[0].mxu0 %v3795
  %v3866 = vpop.f32.mrb[0].mxu0
  %v3867 = vadd.f32 0.0, %v3866
  %v3868 = vpop.f32.mrb[0].mxu0
  %v3869 = vadd.f32 0.0, %v3868
  %3870 = vmatprep.mubr.f32.mxu0 0.0
  %3871 = vmatmul.mubr.f32.gmra.mrb[0].mxu0 %v3798
  %v3872 = vpop.f32.mrb[0].mxu0
  %v3873 = vadd.f32 0.0, %v3872
  %v3874 = vpop.f32.mrb[0].mxu0
  %v3875 = vadd.f32 0.0, %v3874
  %3876 = vdwg.mxu0
  %3877 = vmatprep.subr.mxu0 %v67
  %3878 = vmatpush1.msra.mxu0 %v66
  %3879 = vmatprep.subr.mxu0 %v73
  %3880 = vmatpush1.msra.mxu0 %v72
  %3881 = vmatprep.subr.mxu0 %v79
  %3882 = vmatpush1.msra.mxu0 %v78
  %3883 = vmatprep.subr.mxu0 0.0
  %3884 = vmatpush1.msra.mxu0 0.0
  %3885 = vmatprep.subr.mxu0 0.0
  %3886 = vmatpush1.msra.mxu0 0.0
  %3887 = vmatprep.subr.mxu0 0.0
  %3888 = vmatpush1.msra.mxu0 0.0
  %3889 = vmatprep.subr.mxu0 0.0
  %3890 = vmatpush1.msra.mxu0 0.0
  %3891 = vmatprep.subr.mxu0 0.0
  %3892 = vmatpush1.msra.mxu0 0.0
  %3893 = vmatprep.subr.mxu0 0.0
  %3894 = vmatpush1.msra.mxu0 0.0
  %3895 = vmatprep.subr.mxu0 0.0
  %3896 = vmatpush1.msra.mxu0 0.0
  %3897 = vmatprep.subr.mxu0 0.0
  %3898 = vmatpush1.msra.mxu0 0.0
  %3899 = vmatprep.subr.mxu0 0.0
  %3900 = vmatpush1.msra.mxu0 0.0
  %3901 = vmatprep.subr.mxu0 0.0
  %3902 = vmatpush1.msra.mxu0 0.0
  %3903 = vmatprep.subr.mxu0 0.0
  %3904 = vmatpush1.msra.mxu0 0.0
  %3905 = vmatprep.subr.mxu0 0.0
  %3906 = vmatpush1.msra.mxu0 0.0
  %3907 = vmatprep.subr.mxu0 0.0
  %3908 = vmatpush1.msra.mxu0 0.0
  %3909 = vmatprep.subr.mxu0 0.0
  %3910 = vmatpush1.msra.mxu0 0.0
  %3911 = vmatprep.subr.mxu0 0.0
  %3912 = vmatpush1.msra.mxu0 0.0
  %3913 = vmatprep.subr.mxu0 0.0
  %3914 = vmatpush1.msra.mxu0 0.0
  %3915 = vmatprep.subr.mxu0 0.0
  %3916 = vmatpush1.msra.mxu0 0.0
  %3917 = vmatprep.subr.mxu0 0.0
  %3918 = vmatpush1.msra.mxu0 0.0
  %3919 = vmatprep.subr.mxu0 0.0
  %3920 = vmatpush1.msra.mxu0 0.0
  %3921 = vmatprep.subr.mxu0 0.0
  %3922 = vmatpush1.msra.mxu0 0.0
  %3923 = vmatprep.subr.mxu0 0.0
  %3924 = vmatpush1.msra.mxu0 0.0
  %3925 = vmatprep.subr.mxu0 0.0
  %3926 = vmatpush1.msra.mxu0 0.0
  %3927 = vmatprep.subr.mxu0 0.0
  %3928 = vmatpush1.msra.mxu0 0.0
  %3929 = vmatprep.subr.mxu0 0.0
  %3930 = vmatpush1.msra.mxu0 0.0
  %3931 = vmatprep.subr.mxu0 0.0
  %3932 = vmatpush1.msra.mxu0 0.0
  %3933 = vmatprep.subr.mxu0 0.0
  %3934 = vmatpush1.msra.mxu0 0.0
  %3935 = vmatprep.subr.mxu0 0.0
  %3936 = vmatpush1.msra.mxu0 0.0
  %3937 = vmatprep.subr.mxu0 0.0
  %3938 = vmatpush1.msra.mxu0 0.0
  %3939 = vmatprep.subr.mxu0 0.0
  %3940 = vmatpush1.msra.mxu0 0.0
  %3941 = vmatprep.mubr.f32.mxu0 0.0
  %3942 = vmatmul.mubr.f32.gmra.mrb[0].mxu0 %v3795
  %v3943 = vpop.f32.mrb[0].mxu0
  %v3944 = vadd.f32 0.0, %v3943
  %v3945 = vpop.f32.mrb[0].mxu0
  %v3946 = vadd.f32 0.0, %v3945
  %3947 = vmatprep.mubr.f32.mxu0 0.0
  %3948 = vmatmul.mubr.f32.gmra.mrb[0].mxu0 %v3798
  %v3949 = vpop.f32.mrb[0].mxu0
  %v3950 = vadd.f32 0.0, %v3949
  %v3951 = vpop.f32.mrb[0].mxu0
  %v3952 = vadd.f32 0.0, %v3951
  %3953 = vdwg.mxu0
  %3954 = vmatprep.subr.mxu0 %v69
  %3955 = vmatpush1.msra.mxu0 %v68
  %3956 = vmatprep.subr.mxu0 %v75
  %3957 = vmatpush1.msra.mxu0 %v74
  %3958 = vmatprep.subr.mxu0 %v81
  %3959 = vmatpush1.msra.mxu0 %v80
  %3960 = vmatprep.subr.mxu0 0.0
  %3961 = vmatpush1.msra.mxu0 0.0
  %3962 = vmatprep.subr.mxu0 0.0
  %3963 = vmatpush1.msra.mxu0 0.0
  %3964 = vmatprep.subr.mxu0 0.0
  %3965 = vmatpush1.msra.mxu0 0.0
  %3966 = vmatprep.subr.mxu0 0.0
  %3967 = vmatpush1.msra.mxu0 0.0
  %3968 = vmatprep.subr.mxu0 0.0
  %3969 = vmatpush1.msra.mxu0 0.0
  %3970 = vmatprep.subr.mxu0 0.0
  %3971 = vmatpush1.msra.mxu0 0.0
  %3972 = vmatprep.subr.mxu0 0.0
  %3973 = vmatpush1.msra.mxu0 0.0
  %3974 = vmatprep.subr.mxu0 0.0
  %3975 = vmatpush1.msra.mxu0 0.0
  %3976 = vmatprep.subr.mxu0 0.0
  %3977 = vmatpush1.msra.mxu0 0.0
  %3978 = vmatprep.subr.mxu0 0.0
  %3979 = vmatpush1.msra.mxu0 0.0
  %3980 = vmatprep.subr.mxu0 0.0
  %3981 = vmatpush1.msra.mxu0 0.0
  %3982 = vmatprep.subr.mxu0 0.0
  %3983 = vmatpush1.msra.mxu0 0.0
  %3984 = vmatprep.subr.mxu0 0.0
  %3985 = vmatpush1.msra.mxu0 0.0
  %3986 = vmatprep.subr.mxu0 0.0
  %3987 = vmatpush1.msra.mxu0 0.0
  %3988 = vmatprep.subr.mxu0 0.0
  %3989 = vmatpush1.msra.mxu0 0.0
  %3990 = vmatprep.subr.mxu0 0.0
  %3991 = vmatpush1.msra.mxu0 0.0
  %3992 = vmatprep.subr.mxu0 0.0
  %3993 = vmatpush1.msra.mxu0 0.0
  %3994 = vmatprep.subr.mxu0 0.0
  %3995 = vmatpush1.msra.mxu0 0.0
  %3996 = vmatprep.subr.mxu0 0.0
  %3997 = vmatpush1.msra.mxu0 0.0
  %3998 = vmatprep.subr.mxu0 0.0
  %3999 = vmatpush1.msra.mxu0 0.0
  %4000 = vmatprep.subr.mxu0 0.0
  %4001 = vmatpush1.msra.mxu0 0.0
  %4002 = vmatprep.subr.mxu0 0.0
  %4003 = vmatpush1.msra.mxu0 0.0
  %4004 = vmatprep.subr.mxu0 0.0
  %4005 = vmatpush1.msra.mxu0 0.0
  %4006 = vmatprep.subr.mxu0 0.0
  %4007 = vmatpush1.msra.mxu0 0.0
  %4008 = vmatprep.subr.mxu0 0.0
  %4009 = vmatpush1.msra.mxu0 0.0
  %4010 = vmatprep.subr.mxu0 0.0
  %4011 = vmatpush1.msra.mxu0 0.0
  %4012 = vmatprep.subr.mxu0 0.0
  %4013 = vmatpush1.msra.mxu0 0.0
  %4014 = vmatprep.subr.mxu0 0.0
  %4015 = vmatpush1.msra.mxu0 0.0
  %4016 = vmatprep.subr.mxu0 0.0
  %4017 = vmatpush1.msra.mxu0 0.0
  %4018 = vmatprep.mubr.f32.mxu0 0.0
  %4019 = vmatmul.mubr.f32.gmra.mrb[0].mxu0 %v3795
  %v4020 = vpop.f32.mrb[0].mxu0
  %v4021 = vadd.f32 0.0, %v4020
  %v4022 = vpop.f32.mrb[0].mxu0
  %v4023 = vadd.f32 0.0, %v4022
  %4024 = vmatprep.mubr.f32.mxu0 0.0
  %4025 = vmatmul.mubr.f32.gmra.mrb[0].mxu0 %v3798
  %v4026 = vpop.f32.mrb[0].mxu0
  %v4027 = vadd.f32 0.0, %v4026
  %v4028 = vpop.f32.mrb[0].mxu0
  %v4029 = vadd.f32 0.0, %v4028
  %4030 = vdwg.mxu0
  %v4031 = vmul.f32 %v3583, %v3867
  %v4032 = vmul.f32 %v3584, %v3873
  %4033 = vmatprep.subr.mxu0 0.0
  %4034 = vmatpush1.msra.mxu0 %v48
  %4035 = vmatprep.subr.mxu0 0.0
  %4036 = vmatpush1.msra.mxu0 %v49
  %4037 = vmatprep.subr.mxu0 0.0
  %4038 = vmatpush1.msra.mxu0 %v50
  %4039 = vmatprep.subr.mxu0 0.0
  %4040 = vmatpush1.msra.mxu0 %v51
  %4041 = vmatprep.subr.mxu0 0.0
  %4042 = vmatpush1.msra.mxu0 %v52
  %4043 = vmatprep.subr.mxu0 0.0
  %4044 = vmatpush1.msra.mxu0 %v53
  %4045 = vmatprep.subr.mxu0 0.0
  %4046 = vmatpush1.msra.mxu0 %v54
  %4047 = vmatprep.subr.mxu0 0.0
  %4048 = vmatpush1.msra.mxu0 %v55
  %4049 = vmatprep.subr.mxu0 0.0
  %4050 = vmatpush1.msra.mxu0 %v56
  %4051 = vmatprep.subr.mxu0 0.0
  %4052 = vmatpush1.msra.mxu0 %v57
  %4053 = vmatprep.subr.mxu0 0.0
  %4054 = vmatpush1.msra.mxu0 %v58
  %4055 = vmatprep.subr.mxu0 0.0
  %4056 = vmatpush1.msra.mxu0 %v59
  %4057 = vmatprep.subr.mxu0 0.0
  %4058 = vmatpush1.msra.mxu0 %v60
  %4059 = vmatprep.subr.mxu0 0.0
  %4060 = vmatpush1.msra.mxu0 %v61
  %4061 = vmatprep.subr.mxu0 0.0
  %4062 = vmatpush1.msra.mxu0 %v62
  %4063 = vmatprep.subr.mxu0 0.0
  %4064 = vmatpush1.msra.mxu0 %v63
  %4065 = vmatprep.subr.mxu0 0.0
  %4066 = vmatpush1.msra.mxu0 0.0
  %4067 = vmatprep.subr.mxu0 0.0
  %4068 = vmatpush1.msra.mxu0 0.0
  %4069 = vmatprep.subr.mxu0 0.0
  %4070 = vmatpush1.msra.mxu0 0.0
  %4071 = vmatprep.subr.mxu0 0.0
  %4072 = vmatpush1.msra.mxu0 0.0
  %4073 = vmatprep.subr.mxu0 0.0
  %4074 = vmatpush1.msra.mxu0 0.0
  %4075 = vmatprep.subr.mxu0 0.0
  %4076 = vmatpush1.msra.mxu0 0.0
  %4077 = vmatprep.subr.mxu0 0.0
  %4078 = vmatpush1.msra.mxu0 0.0
  %4079 = vmatprep.subr.mxu0 0.0
  %4080 = vmatpush1.msra.mxu0 0.0
  %4081 = vmatprep.subr.mxu0 0.0
  %4082 = vmatpush1.msra.mxu0 0.0
  %4083 = vmatprep.subr.mxu0 0.0
  %4084 = vmatpush1.msra.mxu0 0.0
  %4085 = vmatprep.subr.mxu0 0.0
  %4086 = vmatpush1.msra.mxu0 0.0
  %4087 = vmatprep.subr.mxu0 0.0
  %4088 = vmatpush1.msra.mxu0 0.0
  %4089 = vmatprep.subr.mxu0 0.0
  %4090 = vmatpush1.msra.mxu0 0.0
  %4091 = vmatprep.subr.mxu0 0.0
  %4092 = vmatpush1.msra.mxu0 0.0
  %4093 = vmatprep.subr.mxu0 0.0
  %4094 = vmatpush1.msra.mxu0 0.0
  %4095 = vmatprep.subr.mxu0 0.0
  %4096 = vmatpush1.msra.mxu0 0.0
  %4097 = vmatprep.mubr.f32.mxu0 0.0
  %4098 = vmatmul.mubr.f32.gmra.mrb[0].mxu0 %v4031
  %v4099 = vpop.f32.mrb[0].mxu0
  %v4100 = vadd.f32 0.0, %v4099
  %v4101 = vpop.f32.mrb[0].mxu0
  %4102 = vmatprep.mubr.f32.mxu0 0.0
  %4103 = vmatmul.mubr.f32.gmra.mrb[0].mxu0 %v4032
  %v4104 = vpop.f32.mrb[0].mxu0
  %v4105 = vadd.f32 0.0, %v4104
  %v4106 = vpop.f32.mrb[0].mxu0
  %4107 = vdwg.mxu0
  %v4108 = vmul.f32 %v3583, %v3869
  %v4109 = vmul.f32 %v3584, %v3875
  %4110 = vmatprep.subr.mxu0 0.0
  %4111 = vmatpush1.msra.mxu0 %v48
  %4112 = vmatprep.subr.mxu0 0.0
  %4113 = vmatpush1.msra.mxu0 %v49
  %4114 = vmatprep.subr.mxu0 0.0
  %4115 = vmatpush1.msra.mxu0 %v50
  %4116 = vmatprep.subr.mxu0 0.0
  %4117 = vmatpush1.msra.mxu0 %v51
  %4118 = vmatprep.subr.mxu0 0.0
  %4119 = vmatpush1.msra.mxu0 %v52
  %4120 = vmatprep.subr.mxu0 0.0
  %4121 = vmatpush1.msra.mxu0 %v53
  %4122 = vmatprep.subr.mxu0 0.0
  %4123 = vmatpush1.msra.mxu0 %v54
  %4124 = vmatprep.subr.mxu0 0.0
  %4125 = vmatpush1.msra.mxu0 %v55
  %4126 = vmatprep.subr.mxu0 0.0
  %4127 = vmatpush1.msra.mxu0 %v56
  %4128 = vmatprep.subr.mxu0 0.0
  %4129 = vmatpush1.msra.mxu0 %v57
  %4130 = vmatprep.subr.mxu0 0.0
  %4131 = vmatpush1.msra.mxu0 %v58
  %4132 = vmatprep.subr.mxu0 0.0
  %4133 = vmatpush1.msra.mxu0 %v59
  %4134 = vmatprep.subr.mxu0 0.0
  %4135 = vmatpush1.msra.mxu0 %v60
  %4136 = vmatprep.subr.mxu0 0.0
  %4137 = vmatpush1.msra.mxu0 %v61
  %4138 = vmatprep.subr.mxu0 0.0
  %4139 = vmatpush1.msra.mxu0 %v62
  %4140 = vmatprep.subr.mxu0 0.0
  %4141 = vmatpush1.msra.mxu0 %v63
  %4142 = vmatprep.subr.mxu0 0.0
  %4143 = vmatpush1.msra.mxu0 0.0
  %4144 = vmatprep.subr.mxu0 0.0
  %4145 = vmatpush1.msra.mxu0 0.0
  %4146 = vmatprep.subr.mxu0 0.0
  %4147 = vmatpush1.msra.mxu0 0.0
  %4148 = vmatprep.subr.mxu0 0.0
  %4149 = vmatpush1.msra.mxu0 0.0
  %4150 = vmatprep.subr.mxu0 0.0
  %4151 = vmatpush1.msra.mxu0 0.0
  %4152 = vmatprep.subr.mxu0 0.0
  %4153 = vmatpush1.msra.mxu0 0.0
  %4154 = vmatprep.subr.mxu0 0.0
  %4155 = vmatpush1.msra.mxu0 0.0
  %4156 = vmatprep.subr.mxu0 0.0
  %4157 = vmatpush1.msra.mxu0 0.0
  %4158 = vmatprep.subr.mxu0 0.0
  %4159 = vmatpush1.msra.mxu0 0.0
  %4160 = vmatprep.subr.mxu0 0.0
  %4161 = vmatpush1.msra.mxu0 0.0
  %4162 = vmatprep.subr.mxu0 0.0
  %4163 = vmatpush1.msra.mxu0 0.0
  %4164 = vmatprep.subr.mxu0 0.0
  %4165 = vmatpush1.msra.mxu0 0.0
  %4166 = vmatprep.subr.mxu0 0.0
  %4167 = vmatpush1.msra.mxu0 0.0
  %4168 = vmatprep.subr.mxu0 0.0
  %4169 = vmatpush1.msra.mxu0 0.0
  %4170 = vmatprep.subr.mxu0 0.0
  %4171 = vmatpush1.msra.mxu0 0.0
  %4172 = vmatprep.subr.mxu0 0.0
  %4173 = vmatpush1.msra.mxu0 0.0
  %4174 = vmatprep.mubr.f32.mxu0 0.0
  %4175 = vmatmul.mubr.f32.gmra.mrb[0].mxu0 %v4108
  %v4176 = vpop.f32.mrb[0].mxu0
  %v4177 = vadd.f32 0.0, %v4176
  %v4178 = vpop.f32.mrb[0].mxu0
  %4179 = vmatprep.mubr.f32.mxu0 0.0
  %4180 = vmatmul.mubr.f32.gmra.mrb[0].mxu0 %v4109
  %v4181 = vpop.f32.mrb[0].mxu0
  %v4182 = vadd.f32 0.0, %v4181
  %v4183 = vpop.f32.mrb[0].mxu0
  %4184 = vdwg.mxu0
  %v4185 = vmul.f32 %v3583, %v3944
  %v4186 = vmul.f32 %v3584, %v3950
  %4187 = vmatprep.subr.mxu0 0.0
  %4188 = vmatpush1.msra.mxu0 %v48
  %4189 = vmatprep.subr.mxu0 0.0
  %4190 = vmatpush1.msra.mxu0 %v49
  %4191 = vmatprep.subr.mxu0 0.0
  %4192 = vmatpush1.msra.mxu0 %v50
  %4193 = vmatprep.subr.mxu0 0.0
  %4194 = vmatpush1.msra.mxu0 %v51
  %4195 = vmatprep.subr.mxu0 0.0
  %4196 = vmatpush1.msra.mxu0 %v52
  %4197 = vmatprep.subr.mxu0 0.0
  %4198 = vmatpush1.msra.mxu0 %v53
  %4199 = vmatprep.subr.mxu0 0.0
  %4200 = vmatpush1.msra.mxu0 %v54
  %4201 = vmatprep.subr.mxu0 0.0
  %4202 = vmatpush1.msra.mxu0 %v55
  %4203 = vmatprep.subr.mxu0 0.0
  %4204 = vmatpush1.msra.mxu0 %v56
  %4205 = vmatprep.subr.mxu0 0.0
  %4206 = vmatpush1.msra.mxu0 %v57
  %4207 = vmatprep.subr.mxu0 0.0
  %4208 = vmatpush1.msra.mxu0 %v58
  %4209 = vmatprep.subr.mxu0 0.0
  %4210 = vmatpush1.msra.mxu0 %v59
  %4211 = vmatprep.subr.mxu0 0.0
  %4212 = vmatpush1.msra.mxu0 %v60
  %4213 = vmatprep.subr.mxu0 0.0
  %4214 = vmatpush1.msra.mxu0 %v61
  %4215 = vmatprep.subr.mxu0 0.0
  %4216 = vmatpush1.msra.mxu0 %v62
  %4217 = vmatprep.subr.mxu0 0.0
  %4218 = vmatpush1.msra.mxu0 %v63
  %4219 = vmatprep.subr.mxu0 0.0
  %4220 = vmatpush1.msra.mxu0 0.0
  %4221 = vmatprep.subr.mxu0 0.0
  %4222 = vmatpush1.msra.mxu0 0.0
  %4223 = vmatprep.subr.mxu0 0.0
  %4224 = vmatpush1.msra.mxu0 0.0
  %4225 = vmatprep.subr.mxu0 0.0
  %4226 = vmatpush1.msra.mxu0 0.0
  %4227 = vmatprep.subr.mxu0 0.0
  %4228 = vmatpush1.msra.mxu0 0.0
  %4229 = vmatprep.subr.mxu0 0.0
  %4230 = vmatpush1.msra.mxu0 0.0
  %4231 = vmatprep.subr.mxu0 0.0
  %4232 = vmatpush1.msra.mxu0 0.0
  %4233 = vmatprep.subr.mxu0 0.0
  %4234 = vmatpush1.msra.mxu0 0.0
  %4235 = vmatprep.subr.mxu0 0.0
  %4236 = vmatpush1.msra.mxu0 0.0
  %4237 = vmatprep.subr.mxu0 0.0
  %4238 = vmatpush1.msra.mxu0 0.0
  %4239 = vmatprep.subr.mxu0 0.0
  %4240 = vmatpush1.msra.mxu0 0.0
  %4241 = vmatprep.subr.mxu0 0.0
  %4242 = vmatpush1.msra.mxu0 0.0
  %4243 = vmatprep.subr.mxu0 0.0
  %4244 = vmatpush1.msra.mxu0 0.0
  %4245 = vmatprep.subr.mxu0 0.0
  %4246 = vmatpush1.msra.mxu0 0.0
  %4247 = vmatprep.subr.mxu0 0.0
  %4248 = vmatpush1.msra.mxu0 0.0
  %4249 = vmatprep.subr.mxu0 0.0
  %4250 = vmatpush1.msra.mxu0 0.0
  %4251 = vmatprep.mubr.f32.mxu0 0.0
  %4252 = vmatmul.mubr.f32.gmra.mrb[0].mxu0 %v4185
  %v4253 = vpop.f32.mrb[0].mxu0
  %v4254 = vadd.f32 0.0, %v4253
  %v4255 = vpop.f32.mrb[0].mxu0
  %4256 = vmatprep.mubr.f32.mxu0 0.0
  %4257 = vmatmul.mubr.f32.gmra.mrb[0].mxu0 %v4186
  %v4258 = vpop.f32.mrb[0].mxu0
  %v4259 = vadd.f32 0.0, %v4258
  %v4260 = vpop.f32.mrb[0].mxu0
  %4261 = vdwg.mxu0
  %v4262 = vmul.f32 %v3583, %v3946
  %v4263 = vmul.f32 %v3584, %v3952
  %4264 = vmatprep.subr.mxu0 0.0
  %4265 = vmatpush1.msra.mxu0 %v48
  %4266 = vmatprep.subr.mxu0 0.0
  %4267 = vmatpush1.msra.mxu0 %v49
  %4268 = vmatprep.subr.mxu0 0.0
  %4269 = vmatpush1.msra.mxu0 %v50
  %4270 = vmatprep.subr.mxu0 0.0
  %4271 = vmatpush1.msra.mxu0 %v51
  %4272 = vmatprep.subr.mxu0 0.0
  %4273 = vmatpush1.msra.mxu0 %v52
  %4274 = vmatprep.subr.mxu0 0.0
  %4275 = vmatpush1.msra.mxu0 %v53
  %4276 = vmatprep.subr.mxu0 0.0
  %4277 = vmatpush1.msra.mxu0 %v54
  %4278 = vmatprep.subr.mxu0 0.0
  %4279 = vmatpush1.msra.mxu0 %v55
  %4280 = vmatprep.subr.mxu0 0.0
  %4281 = vmatpush1.msra.mxu0 %v56
  %4282 = vmatprep.subr.mxu0 0.0
  %4283 = vmatpush1.msra.mxu0 %v57
  %4284 = vmatprep.subr.mxu0 0.0
  %4285 = vmatpush1.msra.mxu0 %v58
  %4286 = vmatprep.subr.mxu0 0.0
  %4287 = vmatpush1.msra.mxu0 %v59
  %4288 = vmatprep.subr.mxu0 0.0
  %4289 = vmatpush1.msra.mxu0 %v60
  %4290 = vmatprep.subr.mxu0 0.0
  %4291 = vmatpush1.msra.mxu0 %v61
  %4292 = vmatprep.subr.mxu0 0.0
  %4293 = vmatpush1.msra.mxu0 %v62
  %4294 = vmatprep.subr.mxu0 0.0
  %4295 = vmatpush1.msra.mxu0 %v63
  %4296 = vmatprep.subr.mxu0 0.0
  %4297 = vmatpush1.msra.mxu0 0.0
  %4298 = vmatprep.subr.mxu0 0.0
  %4299 = vmatpush1.msra.mxu0 0.0
  %4300 = vmatprep.subr.mxu0 0.0
  %4301 = vmatpush1.msra.mxu0 0.0
  %4302 = vmatprep.subr.mxu0 0.0
  %4303 = vmatpush1.msra.mxu0 0.0
  %4304 = vmatprep.subr.mxu0 0.0
  %4305 = vmatpush1.msra.mxu0 0.0
  %4306 = vmatprep.subr.mxu0 0.0
  %4307 = vmatpush1.msra.mxu0 0.0
  %4308 = vmatprep.subr.mxu0 0.0
  %4309 = vmatpush1.msra.mxu0 0.0
  %4310 = vmatprep.subr.mxu0 0.0
  %4311 = vmatpush1.msra.mxu0 0.0
  %4312 = vmatprep.subr.mxu0 0.0
  %4313 = vmatpush1.msra.mxu0 0.0
  %4314 = vmatprep.subr.mxu0 0.0
  %4315 = vmatpush1.msra.mxu0 0.0
  %4316 = vmatprep.subr.mxu0 0.0
  %4317 = vmatpush1.msra.mxu0 0.0
  %4318 = vmatprep.subr.mxu0 0.0
  %4319 = vmatpush1.msra.mxu0 0.0
  %4320 = vmatprep.subr.mxu0 0.0
  %4321 = vmatpush1.msra.mxu0 0.0
  %4322 = vmatprep.subr.mxu0 0.0
  %4323 = vmatpush1.msra.mxu0 0.0
  %4324 = vmatprep.subr.mxu0 0.0
  %4325 = vmatpush1.msra.mxu0 0.0
  %4326 = vmatprep.subr.mxu0 0.0
  %4327 = vmatpush1.msra.mxu0 0.0
  %4328 = vmatprep.mubr.f32.mxu0 0.0
  %4329 = vmatmul.mubr.f32.gmra.mrb[0].mxu0 %v4262
  %v4330 = vpop.f32.mrb[0].mxu0
  %v4331 = vadd.f32 0.0, %v4330
  %v4332 = vpop.f32.mrb[0].mxu0
  %4333 = vmatprep.mubr.f32.mxu0 0.0
  %4334 = vmatmul.mubr.f32.gmra.mrb[0].mxu0 %v4263
  %v4335 = vpop.f32.mrb[0].mxu0
  %v4336 = vadd.f32 0.0, %v4335
  %v4337 = vpop.f32.mrb[0].mxu0
  %4338 = vdwg.mxu0
  %v4339 = vmul.f32 %v3583, %v4021
  %v4340 = vmul.f32 %v3584, %v4027
  %4341 = vmatprep.subr.mxu0 0.0
  %4342 = vmatpush1.msra.mxu0 %v48
  %4343 = vmatprep.subr.mxu0 0.0
  %4344 = vmatpush1.msra.mxu0 %v49
  %4345 = vmatprep.subr.mxu0 0.0
  %4346 = vmatpush1.msra.mxu0 %v50
  %4347 = vmatprep.subr.mxu0 0.0
  %4348 = vmatpush1.msra.mxu0 %v51
  %4349 = vmatprep.subr.mxu0 0.0
  %4350 = vmatpush1.msra.mxu0 %v52
  %4351 = vmatprep.subr.mxu0 0.0
  %4352 = vmatpush1.msra.mxu0 %v53
  %4353 = vmatprep.subr.mxu0 0.0
  %4354 = vmatpush1.msra.mxu0 %v54
  %4355 = vmatprep.subr.mxu0 0.0
  %4356 = vmatpush1.msra.mxu0 %v55
  %4357 = vmatprep.subr.mxu0 0.0
  %4358 = vmatpush1.msra.mxu0 %v56
  %4359 = vmatprep.subr.mxu0 0.0
  %4360 = vmatpush1.msra.mxu0 %v57
  %4361 = vmatprep.subr.mxu0 0.0
  %4362 = vmatpush1.msra.mxu0 %v58
  %4363 = vmatprep.subr.mxu0 0.0
  %4364 = vmatpush1.msra.mxu0 %v59
  %4365 = vmatprep.subr.mxu0 0.0
  %4366 = vmatpush1.msra.mxu0 %v60
  %4367 = vmatprep.subr.mxu0 0.0
  %4368 = vmatpush1.msra.mxu0 %v61
  %4369 = vmatprep.subr.mxu0 0.0
  %4370 = vmatpush1.msra.mxu0 %v62
  %4371 = vmatprep.subr.mxu0 0.0
  %4372 = vmatpush1.msra.mxu0 %v63
  %4373 = vmatprep.subr.mxu0 0.0
  %4374 = vmatpush1.msra.mxu0 0.0
  %4375 = vmatprep.subr.mxu0 0.0
  %4376 = vmatpush1.msra.mxu0 0.0
  %4377 = vmatprep.subr.mxu0 0.0
  %4378 = vmatpush1.msra.mxu0 0.0
  %4379 = vmatprep.subr.mxu0 0.0
  %4380 = vmatpush1.msra.mxu0 0.0
  %4381 = vmatprep.subr.mxu0 0.0
  %4382 = vmatpush1.msra.mxu0 0.0
  %4383 = vmatprep.subr.mxu0 0.0
  %4384 = vmatpush1.msra.mxu0 0.0
  %4385 = vmatprep.subr.mxu0 0.0
  %4386 = vmatpush1.msra.mxu0 0.0
  %4387 = vmatprep.subr.mxu0 0.0
  %4388 = vmatpush1.msra.mxu0 0.0
  %4389 = vmatprep.subr.mxu0 0.0
  %4390 = vmatpush1.msra.mxu0 0.0
  %4391 = vmatprep.subr.mxu0 0.0
  %4392 = vmatpush1.msra.mxu0 0.0
  %4393 = vmatprep.subr.mxu0 0.0
  %4394 = vmatpush1.msra.mxu0 0.0
  %4395 = vmatprep.subr.mxu0 0.0
  %4396 = vmatpush1.msra.mxu0 0.0
  %4397 = vmatprep.subr.mxu0 0.0
  %4398 = vmatpush1.msra.mxu0 0.0
  %4399 = vmatprep.subr.mxu0 0.0
  %4400 = vmatpush1.msra.mxu0 0.0
  %4401 = vmatprep.subr.mxu0 0.0
  %4402 = vmatpush1.msra.mxu0 0.0
  %4403 = vmatprep.subr.mxu0 0.0
  %4404 = vmatpush1.msra.mxu0 0.0
  %4405 = vmatprep.mubr.f32.mxu0 0.0
  %4406 = vmatmul.mubr.f32.gmra.mrb[0].mxu0 %v4339
  %v4407 = vpop.f32.mrb[0].mxu0
  %v4408 = vadd.f32 0.0, %v4407
  %v4409 = vpop.f32.mrb[0].mxu0
  %4410 = vmatprep.mubr.f32.mxu0 0.0
  %4411 = vmatmul.mubr.f32.gmra.mrb[0].mxu0 %v4340
  %v4412 = vpop.f32.mrb[0].mxu0
  %v4413 = vadd.f32 0.0, %v4412
  %v4414 = vpop.f32.mrb[0].mxu0
  %4415 = vdwg.mxu0
  %4418 = vrot.lane.b32.xlu0 %v4177, 32
  %v4419 = vpop.permute.xlu0 %4418
  %4420 = vrot.lane.b32.xlu0 %v4182, 32
  %v4421 = vpop.permute.xlu0 %4420
  %4426 = vrot.lane.b32.xlu0 %v4254, 64
  %v4427 = vpop.permute.xlu0 %4426
  %4428 = vrot.lane.b32.xlu0 %v4259, 64
  %v4429 = vpop.permute.xlu0 %4428
  %4434 = vrot.lane.b32.xlu0 %v4331, 96
  %v4435 = vpop.permute.xlu0 %4434
  %4436 = vrot.lane.b32.xlu0 %v4336, 96
  %v4437 = vpop.permute.xlu0 %4436
  %v4440 = vsel %vm1025, %v4100, %v4419
  %v4441 = vsel %vm1025, %v4105, %v4421
  %v4442 = vsel %vm1028, %v4440, %v4427
  %v4443 = vsel %vm1028, %v4441, %v4429
  %v4444 = vsel %vm1031, %v4442, %v4435
  %v4445 = vsel %vm1031, %v4443, %v4437
  %v4446 = vmul.f32 %v4408, %v4408
  %v4447 = vmul.f32 %v4413, %v4413
  %v4449 = vsel %vm1025, %v4446, 0
  %v4452 = vsel %vm1025, %v4447, 0
  %4454 = vmatprep.subr.mxu0 0.0
  %4455 = vmatpush1.msra.mxu0 %v1041
  %4456 = vmatprep.subr.mxu0 0.0
  %4457 = vmatpush1.msra.mxu0 %v1043
  %4458 = vmatprep.subr.mxu0 0.0
  %4459 = vmatpush1.msra.mxu0 %v1045
  %4460 = vmatprep.subr.mxu0 0.0
  %4461 = vmatpush1.msra.mxu0 %v1047
  %4462 = vmatprep.subr.mxu0 0.0
  %4463 = vmatpush1.msra.mxu0 0.0
  %4464 = vmatprep.subr.mxu0 0.0
  %4465 = vmatpush1.msra.mxu0 0.0
  %4466 = vmatprep.subr.mxu0 0.0
  %4467 = vmatpush1.msra.mxu0 0.0
  %4468 = vmatprep.subr.mxu0 0.0
  %4469 = vmatpush1.msra.mxu0 0.0
  %4470 = vmatprep.subr.mxu0 0.0
  %4471 = vmatpush1.msra.mxu0 0.0
  %4472 = vmatprep.subr.mxu0 0.0
  %4473 = vmatpush1.msra.mxu0 0.0
  %4474 = vmatprep.subr.mxu0 0.0
  %4475 = vmatpush1.msra.mxu0 0.0
  %4476 = vmatprep.subr.mxu0 0.0
  %4477 = vmatpush1.msra.mxu0 0.0
  %4478 = vmatprep.subr.mxu0 0.0
  %4479 = vmatpush1.msra.mxu0 0.0
  %4480 = vmatprep.subr.mxu0 0.0
  %4481 = vmatpush1.msra.mxu0 0.0
  %4482 = vmatprep.subr.mxu0 0.0
  %4483 = vmatpush1.msra.mxu0 0.0
  %4484 = vmatprep.subr.mxu0 0.0
  %4485 = vmatpush1.msra.mxu0 0.0
  %4486 = vmatprep.subr.mxu0 0.0
  %4487 = vmatpush1.msra.mxu0 0.0
  %4488 = vmatprep.subr.mxu0 0.0
  %4489 = vmatpush1.msra.mxu0 0.0
  %4490 = vmatprep.subr.mxu0 0.0
  %4491 = vmatpush1.msra.mxu0 0.0
  %4492 = vmatprep.subr.mxu0 0.0
  %4493 = vmatpush1.msra.mxu0 0.0
  %4494 = vmatprep.subr.mxu0 0.0
  %4495 = vmatpush1.msra.mxu0 0.0
  %4496 = vmatprep.subr.mxu0 0.0
  %4497 = vmatpush1.msra.mxu0 0.0
  %4498 = vmatprep.subr.mxu0 0.0
  %4499 = vmatpush1.msra.mxu0 0.0
  %4500 = vmatprep.subr.mxu0 0.0
  %4501 = vmatpush1.msra.mxu0 0.0
  %4502 = vmatprep.subr.mxu0 0.0
  %4503 = vmatpush1.msra.mxu0 0.0
  %4504 = vmatprep.subr.mxu0 0.0
  %4505 = vmatpush1.msra.mxu0 0.0
  %4506 = vmatprep.subr.mxu0 0.0
  %4507 = vmatpush1.msra.mxu0 0.0
  %4508 = vmatprep.subr.mxu0 0.0
  %4509 = vmatpush1.msra.mxu0 0.0
  %4510 = vmatprep.subr.mxu0 0.0
  %4511 = vmatpush1.msra.mxu0 0.0
  %4512 = vmatprep.subr.mxu0 0.0
  %4513 = vmatpush1.msra.mxu0 0.0
  %4514 = vmatprep.subr.mxu0 0.0
  %4515 = vmatpush1.msra.mxu0 0.0
  %4516 = vmatprep.subr.mxu0 0.0
  %4517 = vmatpush1.msra.mxu0 0.0
  %4518 = vmatprep.mubr.f32.mxu0 0.0
  %4519 = vmatmul.mubr.f32.gmra.mrb[0].mxu0 %v4449
  %v4520 = vpop.f32.mrb[0].mxu0
  %v4521 = vadd.f32 1.1920929e-07, %v4520
  %v4522 = vpop.f32.mrb[0].mxu0
  %4523 = vmatprep.mubr.f32.mxu0 0.0
  %4524 = vmatmul.mubr.f32.gmra.mrb[0].mxu0 %v4452
  %v4525 = vpop.f32.mrb[0].mxu0
  %v4526 = vadd.f32 1.1920929e-07, %v4525
  %v4527 = vpop.f32.mrb[0].mxu0
  %4528 = vdwg.mxu0
  %v4529 = vrsqrt.pop %v4521
  %v4530 = vrsqrt.pop %v4526
  %v4531 = vmul.f32 %v4408, %v4529
  %v4532 = vmul.f32 %v4413, %v4530
  %v4533 = vlaneseq
  %v4534 = vshrl.u32 %v4533, 7
  %v4535 = vsub.s32 1, %v4534
  %v4536 = vrot.slane %v3586, %v4535
  %v4537 = vmul.f32 %v4531, %v4536
  %v4538 = vmul.f32 %v4532, %v4536
  %v4539 = vlaneseq
  %v4540 = vshrl.u32 %v4539, 7
  %v4541 = vsub.s32 4, %v4540
  %v4542 = vrot.slane %v3586, %v4541
  %v4544 = vsel %vm1025, %v4537, 0
  %v4547 = vsel %vm1025, %v4538, 0
  %4549 = vmatprep.subr.mxu0 0.0
  %4550 = vmatpush1.msra.mxu0 %v3605
  %4551 = vmatprep.subr.mxu0 0.0
  %4552 = vmatpush1.msra.mxu0 %v3606
  %4553 = vmatprep.subr.mxu0 0.0
  %4554 = vmatpush1.msra.mxu0 %v3607
  %4555 = vmatprep.subr.mxu0 0.0
  %4556 = vmatpush1.msra.mxu0 %v3608
  %4557 = vmatprep.subr.mxu0 0.0
  %4558 = vmatpush1.msra.mxu0 0.0
  %4559 = vmatprep.subr.mxu0 0.0
  %4560 = vmatpush1.msra.mxu0 0.0
  %4561 = vmatprep.subr.mxu0 0.0
  %4562 = vmatpush1.msra.mxu0 0.0
  %4563 = vmatprep.subr.mxu0 0.0
  %4564 = vmatpush1.msra.mxu0 0.0
  %4565 = vmatprep.subr.mxu0 0.0
  %4566 = vmatpush1.msra.mxu0 0.0
  %4567 = vmatprep.subr.mxu0 0.0
  %4568 = vmatpush1.msra.mxu0 0.0
  %4569 = vmatprep.subr.mxu0 0.0
  %4570 = vmatpush1.msra.mxu0 0.0
  %4571 = vmatprep.subr.mxu0 0.0
  %4572 = vmatpush1.msra.mxu0 0.0
  %4573 = vmatprep.subr.mxu0 0.0
  %4574 = vmatpush1.msra.mxu0 0.0
  %4575 = vmatprep.subr.mxu0 0.0
  %4576 = vmatpush1.msra.mxu0 0.0
  %4577 = vmatprep.subr.mxu0 0.0
  %4578 = vmatpush1.msra.mxu0 0.0
  %4579 = vmatprep.subr.mxu0 0.0
  %4580 = vmatpush1.msra.mxu0 0.0
  %4581 = vmatprep.subr.mxu0 0.0
  %4582 = vmatpush1.msra.mxu0 0.0
  %4583 = vmatprep.subr.mxu0 0.0
  %4584 = vmatpush1.msra.mxu0 0.0
  %4585 = vmatprep.subr.mxu0 0.0
  %4586 = vmatpush1.msra.mxu0 0.0
  %4587 = vmatprep.subr.mxu0 0.0
  %4588 = vmatpush1.msra.mxu0 0.0
  %4589 = vmatprep.subr.mxu0 0.0
  %4590 = vmatpush1.msra.mxu0 0.0
  %4591 = vmatprep.subr.mxu0 0.0
  %4592 = vmatpush1.msra.mxu0 0.0
  %4593 = vmatprep.subr.mxu0 0.0
  %4594 = vmatpush1.msra.mxu0 0.0
  %4595 = vmatprep.subr.mxu0 0.0
  %4596 = vmatpush1.msra.mxu0 0.0
  %4597 = vmatprep.subr.mxu0 0.0
  %4598 = vmatpush1.msra.mxu0 0.0
  %4599 = vmatprep.subr.mxu0 0.0
  %4600 = vmatpush1.msra.mxu0 0.0
  %4601 = vmatprep.subr.mxu0 0.0
  %4602 = vmatpush1.msra.mxu0 0.0
  %4603 = vmatprep.subr.mxu0 0.0
  %4604 = vmatpush1.msra.mxu0 0.0
  %4605 = vmatprep.subr.mxu0 0.0
  %4606 = vmatpush1.msra.mxu0 0.0
  %4607 = vmatprep.subr.mxu0 0.0
  %4608 = vmatpush1.msra.mxu0 0.0
  %4609 = vmatprep.subr.mxu0 0.0
  %4610 = vmatpush1.msra.mxu0 0.0
  %4611 = vmatprep.subr.mxu0 0.0
  %4612 = vmatpush1.msra.mxu0 0.0
  %4613 = vmatprep.mubr.f32.mxu0 0.0
  %4614 = vmatmul.mubr.f32.gmra.mrb[0].mxu0 %v4544
  %v4615 = vpop.f32.mrb[0].mxu0
  %v4616 = vadd.f32 %v4542, %v4615
  %v4617 = vpop.f32.mrb[0].mxu0
  %4618 = vmatprep.mubr.f32.mxu0 0.0
  %4619 = vmatmul.mubr.f32.gmra.mrb[0].mxu0 %v4547
  %v4620 = vpop.f32.mrb[0].mxu0
  %v4621 = vadd.f32 %v4542, %v4620
  %v4622 = vpop.f32.mrb[0].mxu0
  %4623 = vdwg.mxu0
  %v4624 = vmax.f32 %v4616, 0.0
  %v4625 = vmax.f32 %v4621, 0.0
  %v4626 = vmul.f32 %v4624, %v4624
  %v4627 = vmul.f32 %v4625, %v4625
  %v4628 = vlaneseq
  %v4629 = vshrl.u32 %v4628, 7
  %v4630 = vsub.s32 5, %v4629
  %v4631 = vrot.slane %v3586, %v4630
  %v4633 = vsel %vm1028, %v4626, 0
  %v4636 = vsel %vm1028, %v4627, 0
  %4638 = vmatprep.subr.mxu0 0.0
  %4639 = vmatpush1.msra.mxu0 %v3610
  %4640 = vmatprep.subr.mxu0 0.0
  %4641 = vmatpush1.msra.mxu0 %v3611
  %4642 = vmatprep.subr.mxu0 0.0
  %4643 = vmatpush1.msra.mxu0 %v3612
  %4644 = vmatprep.subr.mxu0 0.0
  %4645 = vmatpush1.msra.mxu0 %v3613
  %4646 = vmatprep.subr.mxu0 0.0
  %4647 = vmatpush1.msra.mxu0 %v3614
  %4648 = vmatprep.subr.mxu0 0.0
  %4649 = vmatpush1.msra.mxu0 %v3615
  %4650 = vmatprep.subr.mxu0 0.0
  %4651 = vmatpush1.msra.mxu0 %v3616
  %4652 = vmatprep.subr.mxu0 0.0
  %4653 = vmatpush1.msra.mxu0 %v3617
  %4654 = vmatprep.subr.mxu0 0.0
  %4655 = vmatpush1.msra.mxu0 0.0
  %4656 = vmatprep.subr.mxu0 0.0
  %4657 = vmatpush1.msra.mxu0 0.0
  %4658 = vmatprep.subr.mxu0 0.0
  %4659 = vmatpush1.msra.mxu0 0.0
  %4660 = vmatprep.subr.mxu0 0.0
  %4661 = vmatpush1.msra.mxu0 0.0
  %4662 = vmatprep.subr.mxu0 0.0
  %4663 = vmatpush1.msra.mxu0 0.0
  %4664 = vmatprep.subr.mxu0 0.0
  %4665 = vmatpush1.msra.mxu0 0.0
  %4666 = vmatprep.subr.mxu0 0.0
  %4667 = vmatpush1.msra.mxu0 0.0
  %4668 = vmatprep.subr.mxu0 0.0
  %4669 = vmatpush1.msra.mxu0 0.0
  %4670 = vmatprep.subr.mxu0 0.0
  %4671 = vmatpush1.msra.mxu0 0.0
  %4672 = vmatprep.subr.mxu0 0.0
  %4673 = vmatpush1.msra.mxu0 0.0
  %4674 = vmatprep.subr.mxu0 0.0
  %4675 = vmatpush1.msra.mxu0 0.0
  %4676 = vmatprep.subr.mxu0 0.0
  %4677 = vmatpush1.msra.mxu0 0.0
  %4678 = vmatprep.subr.mxu0 0.0
  %4679 = vmatpush1.msra.mxu0 0.0
  %4680 = vmatprep.subr.mxu0 0.0
  %4681 = vmatpush1.msra.mxu0 0.0
  %4682 = vmatprep.subr.mxu0 0.0
  %4683 = vmatpush1.msra.mxu0 0.0
  %4684 = vmatprep.subr.mxu0 0.0
  %4685 = vmatpush1.msra.mxu0 0.0
  %4686 = vmatprep.subr.mxu0 0.0
  %4687 = vmatpush1.msra.mxu0 0.0
  %4688 = vmatprep.subr.mxu0 0.0
  %4689 = vmatpush1.msra.mxu0 0.0
  %4690 = vmatprep.subr.mxu0 0.0
  %4691 = vmatpush1.msra.mxu0 0.0
  %4692 = vmatprep.subr.mxu0 0.0
  %4693 = vmatpush1.msra.mxu0 0.0
  %4694 = vmatprep.subr.mxu0 0.0
  %4695 = vmatpush1.msra.mxu0 0.0
  %4696 = vmatprep.subr.mxu0 0.0
  %4697 = vmatpush1.msra.mxu0 0.0
  %4698 = vmatprep.subr.mxu0 0.0
  %4699 = vmatpush1.msra.mxu0 0.0
  %4700 = vmatprep.subr.mxu0 0.0
  %4701 = vmatpush1.msra.mxu0 0.0
  %4702 = vmatprep.mubr.f32.mxu0 0.0
  %4703 = vmatmul.mubr.f32.gmra.mrb[0].mxu0 %v4633
  %v4704 = vpop.f32.mrb[0].mxu0
  %v4705 = vadd.f32 %v4631, %v4704
  %v4706 = vpop.f32.mrb[0].mxu0
  %4707 = vmatprep.mubr.f32.mxu0 0.0
  %4708 = vmatmul.mubr.f32.gmra.mrb[0].mxu0 %v4636
  %v4709 = vpop.f32.mrb[0].mxu0
  %v4710 = vadd.f32 %v4631, %v4709
  %v4711 = vpop.f32.mrb[0].mxu0
  %4712 = vdwg.mxu0
  %v4713 = vmul.f32 %v4705, %v4023
  %v4714 = vmul.f32 %v4710, %v4029
  %v4715 = vadd.f32 %v4444, %v4713
  %v4716 = vadd.f32 %v4445, %v4714
  %s4717 = scalar_lea.vmem %s8, 32
  %v4718 = vld [vmem:[%s4717] sm:$0x3f]
  %s4719 = scalar_lea.vmem %s5, 512
  %v4720 = vld [vmem:[%s4719] sm:$0xff]
  %v4721 = vld [vmem:[%s4719 + $0x8] sm:$0xff]
  %v4722 = vld [vmem:[%s4719 + $0x10] sm:$0xff]
  %v4723 = vld [vmem:[%s4719 + $0x18] sm:$0xff]
  %v4724 = vld [vmem:[%s4719 + $0x20] sm:$0xff]
  %v4725 = vld [vmem:[%s4719 + $0x28] sm:$0xff]
  %v4726 = vld [vmem:[%s4719 + $0x30] sm:$0xff]
  %v4727 = vld [vmem:[%s4719 + $0x38] sm:$0xff]
  %v4728 = vld [vmem:[%s4719 + $0x40] sm:$0xff]
  %v4729 = vld [vmem:[%s4719 + $0x48] sm:$0xff]
  %v4730 = vld [vmem:[%s4719 + $0x50] sm:$0xff]
  %v4731 = vld [vmem:[%s4719 + $0x58] sm:$0xff]
  %v4732 = vld [vmem:[%s4719 + $0x60] sm:$0xff]
  %v4733 = vld [vmem:[%s4719 + $0x68] sm:$0xff]
  %v4734 = vld [vmem:[%s4719 + $0x70] sm:$0xff]
  %v4735 = vld [vmem:[%s4719 + $0x78] sm:$0xff]
  %s4736 = scalar_lea.vmem %s6, 128
  %v4737 = vld [vmem:[%s4736] sm:$0xff]
  %v4738 = vld [vmem:[%s4736 + $0x8] sm:$0xff]
  %v4739 = vld [vmem:[%s4736 + $0x10] sm:$0xff]
  %v4740 = vld [vmem:[%s4736 + $0x18] sm:$0xff]
  %s4741 = scalar_lea.vmem %s7, 256
  %v4742 = vld [vmem:[%s4741] sm:$0xff]
  %v4743 = vld [vmem:[%s4741 + $0x8] sm:$0xff]
  %v4744 = vld [vmem:[%s4741 + $0x10] sm:$0xff]
  %v4745 = vld [vmem:[%s4741 + $0x18] sm:$0xff]
  %v4746 = vld [vmem:[%s4741 + $0x20] sm:$0xff]
  %v4747 = vld [vmem:[%s4741 + $0x28] sm:$0xff]
  %v4748 = vld [vmem:[%s4741 + $0x30] sm:$0xff]
  %v4749 = vld [vmem:[%s4741 + $0x38] sm:$0xff]
  %v4750 = vmul.f32 %v4715, %v4715
  %v4751 = vmul.f32 %v4716, %v4716
  %4752 = vmatprep.subr.mxu0 0.0
  %4753 = vmatpush1.msra.mxu0 %v32
  %4754 = vmatprep.subr.mxu0 0.0
  %4755 = vmatpush1.msra.mxu0 %v33
  %4756 = vmatprep.subr.mxu0 0.0
  %4757 = vmatpush1.msra.mxu0 %v34
  %4758 = vmatprep.subr.mxu0 0.0
  %4759 = vmatpush1.msra.mxu0 %v35
  %4760 = vmatprep.subr.mxu0 0.0
  %4761 = vmatpush1.msra.mxu0 %v36
  %4762 = vmatprep.subr.mxu0 0.0
  %4763 = vmatpush1.msra.mxu0 %v37
  %4764 = vmatprep.subr.mxu0 0.0
  %4765 = vmatpush1.msra.mxu0 %v38
  %4766 = vmatprep.subr.mxu0 0.0
  %4767 = vmatpush1.msra.mxu0 %v39
  %4768 = vmatprep.subr.mxu0 0.0
  %4769 = vmatpush1.msra.mxu0 %v40
  %4770 = vmatprep.subr.mxu0 0.0
  %4771 = vmatpush1.msra.mxu0 %v41
  %4772 = vmatprep.subr.mxu0 0.0
  %4773 = vmatpush1.msra.mxu0 %v42
  %4774 = vmatprep.subr.mxu0 0.0
  %4775 = vmatpush1.msra.mxu0 %v43
  %4776 = vmatprep.subr.mxu0 0.0
  %4777 = vmatpush1.msra.mxu0 %v44
  %4778 = vmatprep.subr.mxu0 0.0
  %4779 = vmatpush1.msra.mxu0 %v45
  %4780 = vmatprep.subr.mxu0 0.0
  %4781 = vmatpush1.msra.mxu0 %v46
  %4782 = vmatprep.subr.mxu0 0.0
  %4783 = vmatpush1.msra.mxu0 %v47
  %4784 = vmatprep.subr.mxu0 0.0
  %4785 = vmatpush1.msra.mxu0 0.0
  %4786 = vmatprep.subr.mxu0 0.0
  %4787 = vmatpush1.msra.mxu0 0.0
  %4788 = vmatprep.subr.mxu0 0.0
  %4789 = vmatpush1.msra.mxu0 0.0
  %4790 = vmatprep.subr.mxu0 0.0
  %4791 = vmatpush1.msra.mxu0 0.0
  %4792 = vmatprep.subr.mxu0 0.0
  %4793 = vmatpush1.msra.mxu0 0.0
  %4794 = vmatprep.subr.mxu0 0.0
  %4795 = vmatpush1.msra.mxu0 0.0
  %4796 = vmatprep.subr.mxu0 0.0
  %4797 = vmatpush1.msra.mxu0 0.0
  %4798 = vmatprep.subr.mxu0 0.0
  %4799 = vmatpush1.msra.mxu0 0.0
  %4800 = vmatprep.subr.mxu0 0.0
  %4801 = vmatpush1.msra.mxu0 0.0
  %4802 = vmatprep.subr.mxu0 0.0
  %4803 = vmatpush1.msra.mxu0 0.0
  %4804 = vmatprep.subr.mxu0 0.0
  %4805 = vmatpush1.msra.mxu0 0.0
  %4806 = vmatprep.subr.mxu0 0.0
  %4807 = vmatpush1.msra.mxu0 0.0
  %4808 = vmatprep.subr.mxu0 0.0
  %4809 = vmatpush1.msra.mxu0 0.0
  %4810 = vmatprep.subr.mxu0 0.0
  %4811 = vmatpush1.msra.mxu0 0.0
  %4812 = vmatprep.subr.mxu0 0.0
  %4813 = vmatpush1.msra.mxu0 0.0
  %4814 = vmatprep.subr.mxu0 0.0
  %4815 = vmatpush1.msra.mxu0 0.0
  %4816 = vmatprep.mubr.f32.mxu0 0.0
  %4817 = vmatmul.mubr.f32.gmra.mrb[0].mxu0 %v4750
  %v4818 = vpop.f32.mrb[0].mxu0
  %v4819 = vadd.f32 1.1920929e-07, %v4818
  %v4820 = vpop.f32.mrb[0].mxu0
  %4821 = vmatprep.mubr.f32.mxu0 0.0
  %4822 = vmatmul.mubr.f32.gmra.mrb[0].mxu0 %v4751
  %v4823 = vpop.f32.mrb[0].mxu0
  %v4824 = vadd.f32 1.1920929e-07, %v4823
  %v4825 = vpop.f32.mrb[0].mxu0
  %4826 = vdwg.mxu0
  %v4827 = vrsqrt.pop %v4819
  %v4828 = vrsqrt.pop %v4824
  %v4829 = vmul.f32 %v4715, %v4827
  %v4830 = vmul.f32 %v4716, %v4828
  %v4831 = vlaneseq
  %v4832 = vshrl.u32 %v4831, 7
  %v4833 = vsub.s32 0, %v4832
  %v4834 = vrot.slane %v4718, %v4833
  %v4835 = vmul.f32 %v4829, %v4834
  %v4836 = vmul.f32 %v4830, %v4834
  %4837 = vmatprep.subr.mxu0 0.0
  %4838 = vmatpush1.msra.mxu0 %v4720
  %4839 = vmatprep.subr.mxu0 0.0
  %4840 = vmatpush1.msra.mxu0 %v4721
  %4841 = vmatprep.subr.mxu0 0.0
  %4842 = vmatpush1.msra.mxu0 %v4722
  %4843 = vmatprep.subr.mxu0 0.0
  %4844 = vmatpush1.msra.mxu0 %v4723
  %4845 = vmatprep.subr.mxu0 0.0
  %4846 = vmatpush1.msra.mxu0 %v4724
  %4847 = vmatprep.subr.mxu0 0.0
  %4848 = vmatpush1.msra.mxu0 %v4725
  %4849 = vmatprep.subr.mxu0 0.0
  %4850 = vmatpush1.msra.mxu0 %v4726
  %4851 = vmatprep.subr.mxu0 0.0
  %4852 = vmatpush1.msra.mxu0 %v4727
  %4853 = vmatprep.subr.mxu0 0.0
  %4854 = vmatpush1.msra.mxu0 %v4728
  %4855 = vmatprep.subr.mxu0 0.0
  %4856 = vmatpush1.msra.mxu0 %v4729
  %4857 = vmatprep.subr.mxu0 0.0
  %4858 = vmatpush1.msra.mxu0 %v4730
  %4859 = vmatprep.subr.mxu0 0.0
  %4860 = vmatpush1.msra.mxu0 %v4731
  %4861 = vmatprep.subr.mxu0 0.0
  %4862 = vmatpush1.msra.mxu0 %v4732
  %4863 = vmatprep.subr.mxu0 0.0
  %4864 = vmatpush1.msra.mxu0 %v4733
  %4865 = vmatprep.subr.mxu0 0.0
  %4866 = vmatpush1.msra.mxu0 %v4734
  %4867 = vmatprep.subr.mxu0 0.0
  %4868 = vmatpush1.msra.mxu0 %v4735
  %4869 = vmatprep.subr.mxu0 0.0
  %4870 = vmatpush1.msra.mxu0 0.0
  %4871 = vmatprep.subr.mxu0 0.0
  %4872 = vmatpush1.msra.mxu0 0.0
  %4873 = vmatprep.subr.mxu0 0.0
  %4874 = vmatpush1.msra.mxu0 0.0
  %4875 = vmatprep.subr.mxu0 0.0
  %4876 = vmatpush1.msra.mxu0 0.0
  %4877 = vmatprep.subr.mxu0 0.0
  %4878 = vmatpush1.msra.mxu0 0.0
  %4879 = vmatprep.subr.mxu0 0.0
  %4880 = vmatpush1.msra.mxu0 0.0
  %4881 = vmatprep.subr.mxu0 0.0
  %4882 = vmatpush1.msra.mxu0 0.0
  %4883 = vmatprep.subr.mxu0 0.0
  %4884 = vmatpush1.msra.mxu0 0.0
  %4885 = vmatprep.subr.mxu0 0.0
  %4886 = vmatpush1.msra.mxu0 0.0
  %4887 = vmatprep.subr.mxu0 0.0
  %4888 = vmatpush1.msra.mxu0 0.0
  %4889 = vmatprep.subr.mxu0 0.0
  %4890 = vmatpush1.msra.mxu0 0.0
  %4891 = vmatprep.subr.mxu0 0.0
  %4892 = vmatpush1.msra.mxu0 0.0
  %4893 = vmatprep.subr.mxu0 0.0
  %4894 = vmatpush1.msra.mxu0 0.0
  %4895 = vmatprep.subr.mxu0 0.0
  %4896 = vmatpush1.msra.mxu0 0.0
  %4897 = vmatprep.subr.mxu0 0.0
  %4898 = vmatpush1.msra.mxu0 0.0
  %4899 = vmatprep.subr.mxu0 0.0
  %4900 = vmatpush1.msra.mxu0 0.0
  %4901 = vmatprep.mubr.f32.mxu0 0.0
  %4902 = vmatmul.mubr.f32.gmra.mrb[0].mxu0 %v4835
  %v4903 = vpop.f32.mrb[0].mxu0
  %v4904 = vadd.f32 0.0, %v4903
  %v4905 = vpop.f32.mrb[0].mxu0
  %4906 = vmatprep.mubr.f32.mxu0 0.0
  %4907 = vmatmul.mubr.f32.gmra.mrb[0].mxu0 %v4836
  %v4908 = vpop.f32.mrb[0].mxu0
  %v4909 = vadd.f32 0.0, %v4908
  %v4910 = vpop.f32.mrb[0].mxu0
  %4911 = vdwg.mxu0
  %v4912 = vtanh.pop %v4904
  %v4913 = vtanh.pop %v4909
  %v4914 = vlaneseq
  %v4915 = vshrl.u32 %v4914, 7
  %v4916 = vsub.s32 2, %v4915
  %v4917 = vrot.slane %v4718, %v4916
  %v4918 = vmul.f32 %v4912, %v4917
  %v4919 = vmul.f32 %v4913, %v4917
  %v4920 = vlaneseq
  %v4921 = vshrl.u32 %v4920, 7
  %v4922 = vsub.s32 3, %v4921
  %v4923 = vrot.slane %v4718, %v4922
  %v4924 = vadd.f32 %v4918, %v4923
  %v4925 = vadd.f32 %v4919, %v4923
  %v4927 = vsel %vm378, %v4924, 0
  %v4930 = vsel %vm378, %v4925, 0
  %4932 = vmatprep.subr.mxu0 %v65
  %4933 = vmatpush1.msra.mxu0 %v64
  %4934 = vmatprep.subr.mxu0 %v71
  %4935 = vmatpush1.msra.mxu0 %v70
  %4936 = vmatprep.subr.mxu0 %v77
  %4937 = vmatpush1.msra.mxu0 %v76
  %4938 = vmatprep.subr.mxu0 0.0
  %4939 = vmatpush1.msra.mxu0 0.0
  %4940 = vmatprep.subr.mxu0 0.0
  %4941 = vmatpush1.msra.mxu0 0.0
  %4942 = vmatprep.subr.mxu0 0.0
  %4943 = vmatpush1.msra.mxu0 0.0
  %4944 = vmatprep.subr.mxu0 0.0
  %4945 = vmatpush1.msra.mxu0 0.0
  %4946 = vmatprep.subr.mxu0 0.0
  %4947 = vmatpush1.msra.mxu0 0.0
  %4948 = vmatprep.subr.mxu0 0.0
  %4949 = vmatpush1.msra.mxu0 0.0
  %4950 = vmatprep.subr.mxu0 0.0
  %4951 = vmatpush1.msra.mxu0 0.0
  %4952 = vmatprep.subr.mxu0 0.0
  %4953 = vmatpush1.msra.mxu0 0.0
  %4954 = vmatprep.subr.mxu0 0.0
  %4955 = vmatpush1.msra.mxu0 0.0
  %4956 = vmatprep.subr.mxu0 0.0
  %4957 = vmatpush1.msra.mxu0 0.0
  %4958 = vmatprep.subr.mxu0 0.0
  %4959 = vmatpush1.msra.mxu0 0.0
  %4960 = vmatprep.subr.mxu0 0.0
  %4961 = vmatpush1.msra.mxu0 0.0
  %4962 = vmatprep.subr.mxu0 0.0
  %4963 = vmatpush1.msra.mxu0 0.0
  %4964 = vmatprep.subr.mxu0 0.0
  %4965 = vmatpush1.msra.mxu0 0.0
  %4966 = vmatprep.subr.mxu0 0.0
  %4967 = vmatpush1.msra.mxu0 0.0
  %4968 = vmatprep.subr.mxu0 0.0
  %4969 = vmatpush1.msra.mxu0 0.0
  %4970 = vmatprep.subr.mxu0 0.0
  %4971 = vmatpush1.msra.mxu0 0.0
  %4972 = vmatprep.subr.mxu0 0.0
  %4973 = vmatpush1.msra.mxu0 0.0
  %4974 = vmatprep.subr.mxu0 0.0
  %4975 = vmatpush1.msra.mxu0 0.0
  %4976 = vmatprep.subr.mxu0 0.0
  %4977 = vmatpush1.msra.mxu0 0.0
  %4978 = vmatprep.subr.mxu0 0.0
  %4979 = vmatpush1.msra.mxu0 0.0
  %4980 = vmatprep.subr.mxu0 0.0
  %4981 = vmatpush1.msra.mxu0 0.0
  %4982 = vmatprep.subr.mxu0 0.0
  %4983 = vmatpush1.msra.mxu0 0.0
  %4984 = vmatprep.subr.mxu0 0.0
  %4985 = vmatpush1.msra.mxu0 0.0
  %4986 = vmatprep.subr.mxu0 0.0
  %4987 = vmatpush1.msra.mxu0 0.0
  %4988 = vmatprep.subr.mxu0 0.0
  %4989 = vmatpush1.msra.mxu0 0.0
  %4990 = vmatprep.subr.mxu0 0.0
  %4991 = vmatpush1.msra.mxu0 0.0
  %4992 = vmatprep.subr.mxu0 0.0
  %4993 = vmatpush1.msra.mxu0 0.0
  %4994 = vmatprep.subr.mxu0 0.0
  %4995 = vmatpush1.msra.mxu0 0.0
  %4996 = vmatprep.mubr.f32.mxu0 0.0
  %4997 = vmatmul.mubr.f32.gmra.mrb[0].mxu0 %v4927
  %v4998 = vpop.f32.mrb[0].mxu0
  %v4999 = vadd.f32 0.0, %v4998
  %v5000 = vpop.f32.mrb[0].mxu0
  %v5001 = vadd.f32 0.0, %v5000
  %5002 = vmatprep.mubr.f32.mxu0 0.0
  %5003 = vmatmul.mubr.f32.gmra.mrb[0].mxu0 %v4930
  %v5004 = vpop.f32.mrb[0].mxu0
  %v5005 = vadd.f32 0.0, %v5004
  %v5006 = vpop.f32.mrb[0].mxu0
  %v5007 = vadd.f32 0.0, %v5006
  %5008 = vdwg.mxu0
  %5009 = vmatprep.subr.mxu0 %v67
  %5010 = vmatpush1.msra.mxu0 %v66
  %5011 = vmatprep.subr.mxu0 %v73
  %5012 = vmatpush1.msra.mxu0 %v72
  %5013 = vmatprep.subr.mxu0 %v79
  %5014 = vmatpush1.msra.mxu0 %v78
  %5015 = vmatprep.subr.mxu0 0.0
  %5016 = vmatpush1.msra.mxu0 0.0
  %5017 = vmatprep.subr.mxu0 0.0
  %5018 = vmatpush1.msra.mxu0 0.0
  %5019 = vmatprep.subr.mxu0 0.0
  %5020 = vmatpush1.msra.mxu0 0.0
  %5021 = vmatprep.subr.mxu0 0.0
  %5022 = vmatpush1.msra.mxu0 0.0
  %5023 = vmatprep.subr.mxu0 0.0
  %5024 = vmatpush1.msra.mxu0 0.0
  %5025 = vmatprep.subr.mxu0 0.0
  %5026 = vmatpush1.msra.mxu0 0.0
  %5027 = vmatprep.subr.mxu0 0.0
  %5028 = vmatpush1.msra.mxu0 0.0
  %5029 = vmatprep.subr.mxu0 0.0
  %5030 = vmatpush1.msra.mxu0 0.0
  %5031 = vmatprep.subr.mxu0 0.0
  %5032 = vmatpush1.msra.mxu0 0.0
  %5033 = vmatprep.subr.mxu0 0.0
  %5034 = vmatpush1.msra.mxu0 0.0
  %5035 = vmatprep.subr.mxu0 0.0
  %5036 = vmatpush1.msra.mxu0 0.0
  %5037 = vmatprep.subr.mxu0 0.0
  %5038 = vmatpush1.msra.mxu0 0.0
  %5039 = vmatprep.subr.mxu0 0.0
  %5040 = vmatpush1.msra.mxu0 0.0
  %5041 = vmatprep.subr.mxu0 0.0
  %5042 = vmatpush1.msra.mxu0 0.0
  %5043 = vmatprep.subr.mxu0 0.0
  %5044 = vmatpush1.msra.mxu0 0.0
  %5045 = vmatprep.subr.mxu0 0.0
  %5046 = vmatpush1.msra.mxu0 0.0
  %5047 = vmatprep.subr.mxu0 0.0
  %5048 = vmatpush1.msra.mxu0 0.0
  %5049 = vmatprep.subr.mxu0 0.0
  %5050 = vmatpush1.msra.mxu0 0.0
  %5051 = vmatprep.subr.mxu0 0.0
  %5052 = vmatpush1.msra.mxu0 0.0
  %5053 = vmatprep.subr.mxu0 0.0
  %5054 = vmatpush1.msra.mxu0 0.0
  %5055 = vmatprep.subr.mxu0 0.0
  %5056 = vmatpush1.msra.mxu0 0.0
  %5057 = vmatprep.subr.mxu0 0.0
  %5058 = vmatpush1.msra.mxu0 0.0
  %5059 = vmatprep.subr.mxu0 0.0
  %5060 = vmatpush1.msra.mxu0 0.0
  %5061 = vmatprep.subr.mxu0 0.0
  %5062 = vmatpush1.msra.mxu0 0.0
  %5063 = vmatprep.subr.mxu0 0.0
  %5064 = vmatpush1.msra.mxu0 0.0
  %5065 = vmatprep.subr.mxu0 0.0
  %5066 = vmatpush1.msra.mxu0 0.0
  %5067 = vmatprep.subr.mxu0 0.0
  %5068 = vmatpush1.msra.mxu0 0.0
  %5069 = vmatprep.subr.mxu0 0.0
  %5070 = vmatpush1.msra.mxu0 0.0
  %5071 = vmatprep.subr.mxu0 0.0
  %5072 = vmatpush1.msra.mxu0 0.0
  %5073 = vmatprep.mubr.f32.mxu0 0.0
  %5074 = vmatmul.mubr.f32.gmra.mrb[0].mxu0 %v4927
  %v5075 = vpop.f32.mrb[0].mxu0
  %v5076 = vadd.f32 0.0, %v5075
  %v5077 = vpop.f32.mrb[0].mxu0
  %v5078 = vadd.f32 0.0, %v5077
  %5079 = vmatprep.mubr.f32.mxu0 0.0
  %5080 = vmatmul.mubr.f32.gmra.mrb[0].mxu0 %v4930
  %v5081 = vpop.f32.mrb[0].mxu0
  %v5082 = vadd.f32 0.0, %v5081
  %v5083 = vpop.f32.mrb[0].mxu0
  %v5084 = vadd.f32 0.0, %v5083
  %5085 = vdwg.mxu0
  %5086 = vmatprep.subr.mxu0 %v69
  %5087 = vmatpush1.msra.mxu0 %v68
  %5088 = vmatprep.subr.mxu0 %v75
  %5089 = vmatpush1.msra.mxu0 %v74
  %5090 = vmatprep.subr.mxu0 %v81
  %5091 = vmatpush1.msra.mxu0 %v80
  %5092 = vmatprep.subr.mxu0 0.0
  %5093 = vmatpush1.msra.mxu0 0.0
  %5094 = vmatprep.subr.mxu0 0.0
  %5095 = vmatpush1.msra.mxu0 0.0
  %5096 = vmatprep.subr.mxu0 0.0
  %5097 = vmatpush1.msra.mxu0 0.0
  %5098 = vmatprep.subr.mxu0 0.0
  %5099 = vmatpush1.msra.mxu0 0.0
  %5100 = vmatprep.subr.mxu0 0.0
  %5101 = vmatpush1.msra.mxu0 0.0
  %5102 = vmatprep.subr.mxu0 0.0
  %5103 = vmatpush1.msra.mxu0 0.0
  %5104 = vmatprep.subr.mxu0 0.0
  %5105 = vmatpush1.msra.mxu0 0.0
  %5106 = vmatprep.subr.mxu0 0.0
  %5107 = vmatpush1.msra.mxu0 0.0
  %5108 = vmatprep.subr.mxu0 0.0
  %5109 = vmatpush1.msra.mxu0 0.0
  %5110 = vmatprep.subr.mxu0 0.0
  %5111 = vmatpush1.msra.mxu0 0.0
  %5112 = vmatprep.subr.mxu0 0.0
  %5113 = vmatpush1.msra.mxu0 0.0
  %5114 = vmatprep.subr.mxu0 0.0
  %5115 = vmatpush1.msra.mxu0 0.0
  %5116 = vmatprep.subr.mxu0 0.0
  %5117 = vmatpush1.msra.mxu0 0.0
  %5118 = vmatprep.subr.mxu0 0.0
  %5119 = vmatpush1.msra.mxu0 0.0
  %5120 = vmatprep.subr.mxu0 0.0
  %5121 = vmatpush1.msra.mxu0 0.0
  %5122 = vmatprep.subr.mxu0 0.0
  %5123 = vmatpush1.msra.mxu0 0.0
  %5124 = vmatprep.subr.mxu0 0.0
  %5125 = vmatpush1.msra.mxu0 0.0
  %5126 = vmatprep.subr.mxu0 0.0
  %5127 = vmatpush1.msra.mxu0 0.0
  %5128 = vmatprep.subr.mxu0 0.0
  %5129 = vmatpush1.msra.mxu0 0.0
  %5130 = vmatprep.subr.mxu0 0.0
  %5131 = vmatpush1.msra.mxu0 0.0
  %5132 = vmatprep.subr.mxu0 0.0
  %5133 = vmatpush1.msra.mxu0 0.0
  %5134 = vmatprep.subr.mxu0 0.0
  %5135 = vmatpush1.msra.mxu0 0.0
  %5136 = vmatprep.subr.mxu0 0.0
  %5137 = vmatpush1.msra.mxu0 0.0
  %5138 = vmatprep.subr.mxu0 0.0
  %5139 = vmatpush1.msra.mxu0 0.0
  %5140 = vmatprep.subr.mxu0 0.0
  %5141 = vmatpush1.msra.mxu0 0.0
  %5142 = vmatprep.subr.mxu0 0.0
  %5143 = vmatpush1.msra.mxu0 0.0
  %5144 = vmatprep.subr.mxu0 0.0
  %5145 = vmatpush1.msra.mxu0 0.0
  %5146 = vmatprep.subr.mxu0 0.0
  %5147 = vmatpush1.msra.mxu0 0.0
  %5148 = vmatprep.subr.mxu0 0.0
  %5149 = vmatpush1.msra.mxu0 0.0
  %5150 = vmatprep.mubr.f32.mxu0 0.0
  %5151 = vmatmul.mubr.f32.gmra.mrb[0].mxu0 %v4927
  %v5152 = vpop.f32.mrb[0].mxu0
  %v5153 = vadd.f32 0.0, %v5152
  %v5154 = vpop.f32.mrb[0].mxu0
  %v5155 = vadd.f32 0.0, %v5154
  %5156 = vmatprep.mubr.f32.mxu0 0.0
  %5157 = vmatmul.mubr.f32.gmra.mrb[0].mxu0 %v4930
  %v5158 = vpop.f32.mrb[0].mxu0
  %v5159 = vadd.f32 0.0, %v5158
  %v5160 = vpop.f32.mrb[0].mxu0
  %v5161 = vadd.f32 0.0, %v5160
  %5162 = vdwg.mxu0
  %v5163 = vmul.f32 %v4715, %v4999
  %v5164 = vmul.f32 %v4716, %v5005
  %5165 = vmatprep.subr.mxu0 0.0
  %5166 = vmatpush1.msra.mxu0 %v48
  %5167 = vmatprep.subr.mxu0 0.0
  %5168 = vmatpush1.msra.mxu0 %v49
  %5169 = vmatprep.subr.mxu0 0.0
  %5170 = vmatpush1.msra.mxu0 %v50
  %5171 = vmatprep.subr.mxu0 0.0
  %5172 = vmatpush1.msra.mxu0 %v51
  %5173 = vmatprep.subr.mxu0 0.0
  %5174 = vmatpush1.msra.mxu0 %v52
  %5175 = vmatprep.subr.mxu0 0.0
  %5176 = vmatpush1.msra.mxu0 %v53
  %5177 = vmatprep.subr.mxu0 0.0
  %5178 = vmatpush1.msra.mxu0 %v54
  %5179 = vmatprep.subr.mxu0 0.0
  %5180 = vmatpush1.msra.mxu0 %v55
  %5181 = vmatprep.subr.mxu0 0.0
  %5182 = vmatpush1.msra.mxu0 %v56
  %5183 = vmatprep.subr.mxu0 0.0
  %5184 = vmatpush1.msra.mxu0 %v57
  %5185 = vmatprep.subr.mxu0 0.0
  %5186 = vmatpush1.msra.mxu0 %v58
  %5187 = vmatprep.subr.mxu0 0.0
  %5188 = vmatpush1.msra.mxu0 %v59
  %5189 = vmatprep.subr.mxu0 0.0
  %5190 = vmatpush1.msra.mxu0 %v60
  %5191 = vmatprep.subr.mxu0 0.0
  %5192 = vmatpush1.msra.mxu0 %v61
  %5193 = vmatprep.subr.mxu0 0.0
  %5194 = vmatpush1.msra.mxu0 %v62
  %5195 = vmatprep.subr.mxu0 0.0
  %5196 = vmatpush1.msra.mxu0 %v63
  %5197 = vmatprep.subr.mxu0 0.0
  %5198 = vmatpush1.msra.mxu0 0.0
  %5199 = vmatprep.subr.mxu0 0.0
  %5200 = vmatpush1.msra.mxu0 0.0
  %5201 = vmatprep.subr.mxu0 0.0
  %5202 = vmatpush1.msra.mxu0 0.0
  %5203 = vmatprep.subr.mxu0 0.0
  %5204 = vmatpush1.msra.mxu0 0.0
  %5205 = vmatprep.subr.mxu0 0.0
  %5206 = vmatpush1.msra.mxu0 0.0
  %5207 = vmatprep.subr.mxu0 0.0
  %5208 = vmatpush1.msra.mxu0 0.0
  %5209 = vmatprep.subr.mxu0 0.0
  %5210 = vmatpush1.msra.mxu0 0.0
  %5211 = vmatprep.subr.mxu0 0.0
  %5212 = vmatpush1.msra.mxu0 0.0
  %5213 = vmatprep.subr.mxu0 0.0
  %5214 = vmatpush1.msra.mxu0 0.0
  %5215 = vmatprep.subr.mxu0 0.0
  %5216 = vmatpush1.msra.mxu0 0.0
  %5217 = vmatprep.subr.mxu0 0.0
  %5218 = vmatpush1.msra.mxu0 0.0
  %5219 = vmatprep.subr.mxu0 0.0
  %5220 = vmatpush1.msra.mxu0 0.0
  %5221 = vmatprep.subr.mxu0 0.0
  %5222 = vmatpush1.msra.mxu0 0.0
  %5223 = vmatprep.subr.mxu0 0.0
  %5224 = vmatpush1.msra.mxu0 0.0
  %5225 = vmatprep.subr.mxu0 0.0
  %5226 = vmatpush1.msra.mxu0 0.0
  %5227 = vmatprep.subr.mxu0 0.0
  %5228 = vmatpush1.msra.mxu0 0.0
  %5229 = vmatprep.mubr.f32.mxu0 0.0
  %5230 = vmatmul.mubr.f32.gmra.mrb[0].mxu0 %v5163
  %v5231 = vpop.f32.mrb[0].mxu0
  %v5232 = vadd.f32 0.0, %v5231
  %v5233 = vpop.f32.mrb[0].mxu0
  %5234 = vmatprep.mubr.f32.mxu0 0.0
  %5235 = vmatmul.mubr.f32.gmra.mrb[0].mxu0 %v5164
  %v5236 = vpop.f32.mrb[0].mxu0
  %v5237 = vadd.f32 0.0, %v5236
  %v5238 = vpop.f32.mrb[0].mxu0
  %5239 = vdwg.mxu0
  %v5240 = vmul.f32 %v4715, %v5001
  %v5241 = vmul.f32 %v4716, %v5007
  %5242 = vmatprep.subr.mxu0 0.0
  %5243 = vmatpush1.msra.mxu0 %v48
  %5244 = vmatprep.subr.mxu0 0.0
  %5245 = vmatpush1.msra.mxu0 %v49
  %5246 = vmatprep.subr.mxu0 0.0
  %5247 = vmatpush1.msra.mxu0 %v50
  %5248 = vmatprep.subr.mxu0 0.0
  %5249 = vmatpush1.msra.mxu0 %v51
  %5250 = vmatprep.subr.mxu0 0.0
  %5251 = vmatpush1.msra.mxu0 %v52
  %5252 = vmatprep.subr.mxu0 0.0
  %5253 = vmatpush1.msra.mxu0 %v53
  %5254 = vmatprep.subr.mxu0 0.0
  %5255 = vmatpush1.msra.mxu0 %v54
  %5256 = vmatprep.subr.mxu0 0.0
  %5257 = vmatpush1.msra.mxu0 %v55
  %5258 = vmatprep.subr.mxu0 0.0
  %5259 = vmatpush1.msra.mxu0 %v56
  %5260 = vmatprep.subr.mxu0 0.0
  %5261 = vmatpush1.msra.mxu0 %v57
  %5262 = vmatprep.subr.mxu0 0.0
  %5263 = vmatpush1.msra.mxu0 %v58
  %5264 = vmatprep.subr.mxu0 0.0
  %5265 = vmatpush1.msra.mxu0 %v59
  %5266 = vmatprep.subr.mxu0 0.0
  %5267 = vmatpush1.msra.mxu0 %v60
  %5268 = vmatprep.subr.mxu0 0.0
  %5269 = vmatpush1.msra.mxu0 %v61
  %5270 = vmatprep.subr.mxu0 0.0
  %5271 = vmatpush1.msra.mxu0 %v62
  %5272 = vmatprep.subr.mxu0 0.0
  %5273 = vmatpush1.msra.mxu0 %v63
  %5274 = vmatprep.subr.mxu0 0.0
  %5275 = vmatpush1.msra.mxu0 0.0
  %5276 = vmatprep.subr.mxu0 0.0
  %5277 = vmatpush1.msra.mxu0 0.0
  %5278 = vmatprep.subr.mxu0 0.0
  %5279 = vmatpush1.msra.mxu0 0.0
  %5280 = vmatprep.subr.mxu0 0.0
  %5281 = vmatpush1.msra.mxu0 0.0
  %5282 = vmatprep.subr.mxu0 0.0
  %5283 = vmatpush1.msra.mxu0 0.0
  %5284 = vmatprep.subr.mxu0 0.0
  %5285 = vmatpush1.msra.mxu0 0.0
  %5286 = vmatprep.subr.mxu0 0.0
  %5287 = vmatpush1.msra.mxu0 0.0
  %5288 = vmatprep.subr.mxu0 0.0
  %5289 = vmatpush1.msra.mxu0 0.0
  %5290 = vmatprep.subr.mxu0 0.0
  %5291 = vmatpush1.msra.mxu0 0.0
  %5292 = vmatprep.subr.mxu0 0.0
  %5293 = vmatpush1.msra.mxu0 0.0
  %5294 = vmatprep.subr.mxu0 0.0
  %5295 = vmatpush1.msra.mxu0 0.0
  %5296 = vmatprep.subr.mxu0 0.0
  %5297 = vmatpush1.msra.mxu0 0.0
  %5298 = vmatprep.subr.mxu0 0.0
  %5299 = vmatpush1.msra.mxu0 0.0
  %5300 = vmatprep.subr.mxu0 0.0
  %5301 = vmatpush1.msra.mxu0 0.0
  %5302 = vmatprep.subr.mxu0 0.0
  %5303 = vmatpush1.msra.mxu0 0.0
  %5304 = vmatprep.subr.mxu0 0.0
  %5305 = vmatpush1.msra.mxu0 0.0
  %5306 = vmatprep.mubr.f32.mxu0 0.0
  %5307 = vmatmul.mubr.f32.gmra.mrb[0].mxu0 %v5240
  %v5308 = vpop.f32.mrb[0].mxu0
  %v5309 = vadd.f32 0.0, %v5308
  %v5310 = vpop.f32.mrb[0].mxu0
  %5311 = vmatprep.mubr.f32.mxu0 0.0
  %5312 = vmatmul.mubr.f32.gmra.mrb[0].mxu0 %v5241
  %v5313 = vpop.f32.mrb[0].mxu0
  %v5314 = vadd.f32 0.0, %v5313
  %v5315 = vpop.f32.mrb[0].mxu0
  %5316 = vdwg.mxu0
  %v5317 = vmul.f32 %v4715, %v5076
  %v5318 = vmul.f32 %v4716, %v5082
  %5319 = vmatprep.subr.mxu0 0.0
  %5320 = vmatpush1.msra.mxu0 %v48
  %5321 = vmatprep.subr.mxu0 0.0
  %5322 = vmatpush1.msra.mxu0 %v49
  %5323 = vmatprep.subr.mxu0 0.0
  %5324 = vmatpush1.msra.mxu0 %v50
  %5325 = vmatprep.subr.mxu0 0.0
  %5326 = vmatpush1.msra.mxu0 %v51
  %5327 = vmatprep.subr.mxu0 0.0
  %5328 = vmatpush1.msra.mxu0 %v52
  %5329 = vmatprep.subr.mxu0 0.0
  %5330 = vmatpush1.msra.mxu0 %v53
  %5331 = vmatprep.subr.mxu0 0.0
  %5332 = vmatpush1.msra.mxu0 %v54
  %5333 = vmatprep.subr.mxu0 0.0
  %5334 = vmatpush1.msra.mxu0 %v55
  %5335 = vmatprep.subr.mxu0 0.0
  %5336 = vmatpush1.msra.mxu0 %v56
  %5337 = vmatprep.subr.mxu0 0.0
  %5338 = vmatpush1.msra.mxu0 %v57
  %5339 = vmatprep.subr.mxu0 0.0
  %5340 = vmatpush1.msra.mxu0 %v58
  %5341 = vmatprep.subr.mxu0 0.0
  %5342 = vmatpush1.msra.mxu0 %v59
  %5343 = vmatprep.subr.mxu0 0.0
  %5344 = vmatpush1.msra.mxu0 %v60
  %5345 = vmatprep.subr.mxu0 0.0
  %5346 = vmatpush1.msra.mxu0 %v61
  %5347 = vmatprep.subr.mxu0 0.0
  %5348 = vmatpush1.msra.mxu0 %v62
  %5349 = vmatprep.subr.mxu0 0.0
  %5350 = vmatpush1.msra.mxu0 %v63
  %5351 = vmatprep.subr.mxu0 0.0
  %5352 = vmatpush1.msra.mxu0 0.0
  %5353 = vmatprep.subr.mxu0 0.0
  %5354 = vmatpush1.msra.mxu0 0.0
  %5355 = vmatprep.subr.mxu0 0.0
  %5356 = vmatpush1.msra.mxu0 0.0
  %5357 = vmatprep.subr.mxu0 0.0
  %5358 = vmatpush1.msra.mxu0 0.0
  %5359 = vmatprep.subr.mxu0 0.0
  %5360 = vmatpush1.msra.mxu0 0.0
  %5361 = vmatprep.subr.mxu0 0.0
  %5362 = vmatpush1.msra.mxu0 0.0
  %5363 = vmatprep.subr.mxu0 0.0
  %5364 = vmatpush1.msra.mxu0 0.0
  %5365 = vmatprep.subr.mxu0 0.0
  %5366 = vmatpush1.msra.mxu0 0.0
  %5367 = vmatprep.subr.mxu0 0.0
  %5368 = vmatpush1.msra.mxu0 0.0
  %5369 = vmatprep.subr.mxu0 0.0
  %5370 = vmatpush1.msra.mxu0 0.0
  %5371 = vmatprep.subr.mxu0 0.0
  %5372 = vmatpush1.msra.mxu0 0.0
  %5373 = vmatprep.subr.mxu0 0.0
  %5374 = vmatpush1.msra.mxu0 0.0
  %5375 = vmatprep.subr.mxu0 0.0
  %5376 = vmatpush1.msra.mxu0 0.0
  %5377 = vmatprep.subr.mxu0 0.0
  %5378 = vmatpush1.msra.mxu0 0.0
  %5379 = vmatprep.subr.mxu0 0.0
  %5380 = vmatpush1.msra.mxu0 0.0
  %5381 = vmatprep.subr.mxu0 0.0
  %5382 = vmatpush1.msra.mxu0 0.0
  %5383 = vmatprep.mubr.f32.mxu0 0.0
  %5384 = vmatmul.mubr.f32.gmra.mrb[0].mxu0 %v5317
  %v5385 = vpop.f32.mrb[0].mxu0
  %v5386 = vadd.f32 0.0, %v5385
  %v5387 = vpop.f32.mrb[0].mxu0
  %5388 = vmatprep.mubr.f32.mxu0 0.0
  %5389 = vmatmul.mubr.f32.gmra.mrb[0].mxu0 %v5318
  %v5390 = vpop.f32.mrb[0].mxu0
  %v5391 = vadd.f32 0.0, %v5390
  %v5392 = vpop.f32.mrb[0].mxu0
  %5393 = vdwg.mxu0
  %v5394 = vmul.f32 %v4715, %v5078
  %v5395 = vmul.f32 %v4716, %v5084
  %5396 = vmatprep.subr.mxu0 0.0
  %5397 = vmatpush1.msra.mxu0 %v48
  %5398 = vmatprep.subr.mxu0 0.0
  %5399 = vmatpush1.msra.mxu0 %v49
  %5400 = vmatprep.subr.mxu0 0.0
  %5401 = vmatpush1.msra.mxu0 %v50
  %5402 = vmatprep.subr.mxu0 0.0
  %5403 = vmatpush1.msra.mxu0 %v51
  %5404 = vmatprep.subr.mxu0 0.0
  %5405 = vmatpush1.msra.mxu0 %v52
  %5406 = vmatprep.subr.mxu0 0.0
  %5407 = vmatpush1.msra.mxu0 %v53
  %5408 = vmatprep.subr.mxu0 0.0
  %5409 = vmatpush1.msra.mxu0 %v54
  %5410 = vmatprep.subr.mxu0 0.0
  %5411 = vmatpush1.msra.mxu0 %v55
  %5412 = vmatprep.subr.mxu0 0.0
  %5413 = vmatpush1.msra.mxu0 %v56
  %5414 = vmatprep.subr.mxu0 0.0
  %5415 = vmatpush1.msra.mxu0 %v57
  %5416 = vmatprep.subr.mxu0 0.0
  %5417 = vmatpush1.msra.mxu0 %v58
  %5418 = vmatprep.subr.mxu0 0.0
  %5419 = vmatpush1.msra.mxu0 %v59
  %5420 = vmatprep.subr.mxu0 0.0
  %5421 = vmatpush1.msra.mxu0 %v60
  %5422 = vmatprep.subr.mxu0 0.0
  %5423 = vmatpush1.msra.mxu0 %v61
  %5424 = vmatprep.subr.mxu0 0.0
  %5425 = vmatpush1.msra.mxu0 %v62
  %5426 = vmatprep.subr.mxu0 0.0
  %5427 = vmatpush1.msra.mxu0 %v63
  %5428 = vmatprep.subr.mxu0 0.0
  %5429 = vmatpush1.msra.mxu0 0.0
  %5430 = vmatprep.subr.mxu0 0.0
  %5431 = vmatpush1.msra.mxu0 0.0
  %5432 = vmatprep.subr.mxu0 0.0
  %5433 = vmatpush1.msra.mxu0 0.0
  %5434 = vmatprep.subr.mxu0 0.0
  %5435 = vmatpush1.msra.mxu0 0.0
  %5436 = vmatprep.subr.mxu0 0.0
  %5437 = vmatpush1.msra.mxu0 0.0
  %5438 = vmatprep.subr.mxu0 0.0
  %5439 = vmatpush1.msra.mxu0 0.0
  %5440 = vmatprep.subr.mxu0 0.0
  %5441 = vmatpush1.msra.mxu0 0.0
  %5442 = vmatprep.subr.mxu0 0.0
  %5443 = vmatpush1.msra.mxu0 0.0
  %5444 = vmatprep.subr.mxu0 0.0
  %5445 = vmatpush1.msra.mxu0 0.0
  %5446 = vmatprep.subr.mxu0 0.0
  %5447 = vmatpush1.msra.mxu0 0.0
  %5448 = vmatprep.subr.mxu0 0.0
  %5449 = vmatpush1.msra.mxu0 0.0
  %5450 = vmatprep.subr.mxu0 0.0
  %5451 = vmatpush1.msra.mxu0 0.0
  %5452 = vmatprep.subr.mxu0 0.0
  %5453 = vmatpush1.msra.mxu0 0.0
  %5454 = vmatprep.subr.mxu0 0.0
  %5455 = vmatpush1.msra.mxu0 0.0
  %5456 = vmatprep.subr.mxu0 0.0
  %5457 = vmatpush1.msra.mxu0 0.0
  %5458 = vmatprep.subr.mxu0 0.0
  %5459 = vmatpush1.msra.mxu0 0.0
  %5460 = vmatprep.mubr.f32.mxu0 0.0
  %5461 = vmatmul.mubr.f32.gmra.mrb[0].mxu0 %v5394
  %v5462 = vpop.f32.mrb[0].mxu0
  %v5463 = vadd.f32 0.0, %v5462
  %v5464 = vpop.f32.mrb[0].mxu0
  %5465 = vmatprep.mubr.f32.mxu0 0.0
  %5466 = vmatmul.mubr.f32.gmra.mrb[0].mxu0 %v5395
  %v5467 = vpop.f32.mrb[0].mxu0
  %v5468 = vadd.f32 0.0, %v5467
  %v5469 = vpop.f32.mrb[0].mxu0
  %5470 = vdwg.mxu0
  %v5471 = vmul.f32 %v4715, %v5153
  %v5472 = vmul.f32 %v4716, %v5159
  %5473 = vmatprep.subr.mxu0 0.0
  %5474 = vmatpush1.msra.mxu0 %v48
  %5475 = vmatprep.subr.mxu0 0.0
  %5476 = vmatpush1.msra.mxu0 %v49
  %5477 = vmatprep.subr.mxu0 0.0
  %5478 = vmatpush1.msra.mxu0 %v50
  %5479 = vmatprep.subr.mxu0 0.0
  %5480 = vmatpush1.msra.mxu0 %v51
  %5481 = vmatprep.subr.mxu0 0.0
  %5482 = vmatpush1.msra.mxu0 %v52
  %5483 = vmatprep.subr.mxu0 0.0
  %5484 = vmatpush1.msra.mxu0 %v53
  %5485 = vmatprep.subr.mxu0 0.0
  %5486 = vmatpush1.msra.mxu0 %v54
  %5487 = vmatprep.subr.mxu0 0.0
  %5488 = vmatpush1.msra.mxu0 %v55
  %5489 = vmatprep.subr.mxu0 0.0
  %5490 = vmatpush1.msra.mxu0 %v56
  %5491 = vmatprep.subr.mxu0 0.0
  %5492 = vmatpush1.msra.mxu0 %v57
  %5493 = vmatprep.subr.mxu0 0.0
  %5494 = vmatpush1.msra.mxu0 %v58
  %5495 = vmatprep.subr.mxu0 0.0
  %5496 = vmatpush1.msra.mxu0 %v59
  %5497 = vmatprep.subr.mxu0 0.0
  %5498 = vmatpush1.msra.mxu0 %v60
  %5499 = vmatprep.subr.mxu0 0.0
  %5500 = vmatpush1.msra.mxu0 %v61
  %5501 = vmatprep.subr.mxu0 0.0
  %5502 = vmatpush1.msra.mxu0 %v62
  %5503 = vmatprep.subr.mxu0 0.0
  %5504 = vmatpush1.msra.mxu0 %v63
  %5505 = vmatprep.subr.mxu0 0.0
  %5506 = vmatpush1.msra.mxu0 0.0
  %5507 = vmatprep.subr.mxu0 0.0
  %5508 = vmatpush1.msra.mxu0 0.0
  %5509 = vmatprep.subr.mxu0 0.0
  %5510 = vmatpush1.msra.mxu0 0.0
  %5511 = vmatprep.subr.mxu0 0.0
  %5512 = vmatpush1.msra.mxu0 0.0
  %5513 = vmatprep.subr.mxu0 0.0
  %5514 = vmatpush1.msra.mxu0 0.0
  %5515 = vmatprep.subr.mxu0 0.0
  %5516 = vmatpush1.msra.mxu0 0.0
  %5517 = vmatprep.subr.mxu0 0.0
  %5518 = vmatpush1.msra.mxu0 0.0
  %5519 = vmatprep.subr.mxu0 0.0
  %5520 = vmatpush1.msra.mxu0 0.0
  %5521 = vmatprep.subr.mxu0 0.0
  %5522 = vmatpush1.msra.mxu0 0.0
  %5523 = vmatprep.subr.mxu0 0.0
  %5524 = vmatpush1.msra.mxu0 0.0
  %5525 = vmatprep.subr.mxu0 0.0
  %5526 = vmatpush1.msra.mxu0 0.0
  %5527 = vmatprep.subr.mxu0 0.0
  %5528 = vmatpush1.msra.mxu0 0.0
  %5529 = vmatprep.subr.mxu0 0.0
  %5530 = vmatpush1.msra.mxu0 0.0
  %5531 = vmatprep.subr.mxu0 0.0
  %5532 = vmatpush1.msra.mxu0 0.0
  %5533 = vmatprep.subr.mxu0 0.0
  %5534 = vmatpush1.msra.mxu0 0.0
  %5535 = vmatprep.subr.mxu0 0.0
  %5536 = vmatpush1.msra.mxu0 0.0
  %5537 = vmatprep.mubr.f32.mxu0 0.0
  %5538 = vmatmul.mubr.f32.gmra.mrb[0].mxu0 %v5471
  %v5539 = vpop.f32.mrb[0].mxu0
  %v5540 = vadd.f32 0.0, %v5539
  %v5541 = vpop.f32.mrb[0].mxu0
  %5542 = vmatprep.mubr.f32.mxu0 0.0
  %5543 = vmatmul.mubr.f32.gmra.mrb[0].mxu0 %v5472
  %v5544 = vpop.f32.mrb[0].mxu0
  %v5545 = vadd.f32 0.0, %v5544
  %v5546 = vpop.f32.mrb[0].mxu0
  %5547 = vdwg.mxu0
  %5550 = vrot.lane.b32.xlu0 %v5309, 32
  %v5551 = vpop.permute.xlu0 %5550
  %5552 = vrot.lane.b32.xlu0 %v5314, 32
  %v5553 = vpop.permute.xlu0 %5552
  %5558 = vrot.lane.b32.xlu0 %v5386, 64
  %v5559 = vpop.permute.xlu0 %5558
  %5560 = vrot.lane.b32.xlu0 %v5391, 64
  %v5561 = vpop.permute.xlu0 %5560
  %5566 = vrot.lane.b32.xlu0 %v5463, 96
  %v5567 = vpop.permute.xlu0 %5566
  %5568 = vrot.lane.b32.xlu0 %v5468, 96
  %v5569 = vpop.permute.xlu0 %5568
  %v5572 = vsel %vm1025, %v5232, %v5551
  %v5573 = vsel %vm1025, %v5237, %v5553
  %v5574 = vsel %vm1028, %v5572, %v5559
  %v5575 = vsel %vm1028, %v5573, %v5561
  %v5576 = vsel %vm1031, %v5574, %v5567
  %v5577 = vsel %vm1031, %v5575, %v5569
  %v5578 = vmul.f32 %v5540, %v5540
  %v5579 = vmul.f32 %v5545, %v5545
  %v5581 = vsel %vm1025, %v5578, 0
  %v5584 = vsel %vm1025, %v5579, 0
  %5586 = vmatprep.subr.mxu0 0.0
  %5587 = vmatpush1.msra.mxu0 %v1041
  %5588 = vmatprep.subr.mxu0 0.0
  %5589 = vmatpush1.msra.mxu0 %v1043
  %5590 = vmatprep.subr.mxu0 0.0
  %5591 = vmatpush1.msra.mxu0 %v1045
  %5592 = vmatprep.subr.mxu0 0.0
  %5593 = vmatpush1.msra.mxu0 %v1047
  %5594 = vmatprep.subr.mxu0 0.0
  %5595 = vmatpush1.msra.mxu0 0.0
  %5596 = vmatprep.subr.mxu0 0.0
  %5597 = vmatpush1.msra.mxu0 0.0
  %5598 = vmatprep.subr.mxu0 0.0
  %5599 = vmatpush1.msra.mxu0 0.0
  %5600 = vmatprep.subr.mxu0 0.0
  %5601 = vmatpush1.msra.mxu0 0.0
  %5602 = vmatprep.subr.mxu0 0.0
  %5603 = vmatpush1.msra.mxu0 0.0
  %5604 = vmatprep.subr.mxu0 0.0
  %5605 = vmatpush1.msra.mxu0 0.0
  %5606 = vmatprep.subr.mxu0 0.0
  %5607 = vmatpush1.msra.mxu0 0.0
  %5608 = vmatprep.subr.mxu0 0.0
  %5609 = vmatpush1.msra.mxu0 0.0
  %5610 = vmatprep.subr.mxu0 0.0
  %5611 = vmatpush1.msra.mxu0 0.0
  %5612 = vmatprep.subr.mxu0 0.0
  %5613 = vmatpush1.msra.mxu0 0.0
  %5614 = vmatprep.subr.mxu0 0.0
  %5615 = vmatpush1.msra.mxu0 0.0
  %5616 = vmatprep.subr.mxu0 0.0
  %5617 = vmatpush1.msra.mxu0 0.0
  %5618 = vmatprep.subr.mxu0 0.0
  %5619 = vmatpush1.msra.mxu0 0.0
  %5620 = vmatprep.subr.mxu0 0.0
  %5621 = vmatpush1.msra.mxu0 0.0
  %5622 = vmatprep.subr.mxu0 0.0
  %5623 = vmatpush1.msra.mxu0 0.0
  %5624 = vmatprep.subr.mxu0 0.0
  %5625 = vmatpush1.msra.mxu0 0.0
  %5626 = vmatprep.subr.mxu0 0.0
  %5627 = vmatpush1.msra.mxu0 0.0
  %5628 = vmatprep.subr.mxu0 0.0
  %5629 = vmatpush1.msra.mxu0 0.0
  %5630 = vmatprep.subr.mxu0 0.0
  %5631 = vmatpush1.msra.mxu0 0.0
  %5632 = vmatprep.subr.mxu0 0.0
  %5633 = vmatpush1.msra.mxu0 0.0
  %5634 = vmatprep.subr.mxu0 0.0
  %5635 = vmatpush1.msra.mxu0 0.0
  %5636 = vmatprep.subr.mxu0 0.0
  %5637 = vmatpush1.msra.mxu0 0.0
  %5638 = vmatprep.subr.mxu0 0.0
  %5639 = vmatpush1.msra.mxu0 0.0
  %5640 = vmatprep.subr.mxu0 0.0
  %5641 = vmatpush1.msra.mxu0 0.0
  %5642 = vmatprep.subr.mxu0 0.0
  %5643 = vmatpush1.msra.mxu0 0.0
  %5644 = vmatprep.subr.mxu0 0.0
  %5645 = vmatpush1.msra.mxu0 0.0
  %5646 = vmatprep.subr.mxu0 0.0
  %5647 = vmatpush1.msra.mxu0 0.0
  %5648 = vmatprep.subr.mxu0 0.0
  %5649 = vmatpush1.msra.mxu0 0.0
  %5650 = vmatprep.mubr.f32.mxu0 0.0
  %5651 = vmatmul.mubr.f32.gmra.mrb[0].mxu0 %v5581
  %v5652 = vpop.f32.mrb[0].mxu0
  %v5653 = vadd.f32 1.1920929e-07, %v5652
  %v5654 = vpop.f32.mrb[0].mxu0
  %5655 = vmatprep.mubr.f32.mxu0 0.0
  %5656 = vmatmul.mubr.f32.gmra.mrb[0].mxu0 %v5584
  %v5657 = vpop.f32.mrb[0].mxu0
  %v5658 = vadd.f32 1.1920929e-07, %v5657
  %v5659 = vpop.f32.mrb[0].mxu0
  %5660 = vdwg.mxu0
  %v5661 = vrsqrt.pop %v5653
  %v5662 = vrsqrt.pop %v5658
  %v5663 = vmul.f32 %v5540, %v5661
  %v5664 = vmul.f32 %v5545, %v5662
  %v5665 = vlaneseq
  %v5666 = vshrl.u32 %v5665, 7
  %v5667 = vsub.s32 1, %v5666
  %v5668 = vrot.slane %v4718, %v5667
  %v5669 = vmul.f32 %v5663, %v5668
  %v5670 = vmul.f32 %v5664, %v5668
  %v5671 = vlaneseq
  %v5672 = vshrl.u32 %v5671, 7
  %v5673 = vsub.s32 4, %v5672
  %v5674 = vrot.slane %v4718, %v5673
  %v5676 = vsel %vm1025, %v5669, 0
  %v5679 = vsel %vm1025, %v5670, 0
  %5681 = vmatprep.subr.mxu0 0.0
  %5682 = vmatpush1.msra.mxu0 %v4737
  %5683 = vmatprep.subr.mxu0 0.0
  %5684 = vmatpush1.msra.mxu0 %v4738
  %5685 = vmatprep.subr.mxu0 0.0
  %5686 = vmatpush1.msra.mxu0 %v4739
  %5687 = vmatprep.subr.mxu0 0.0
  %5688 = vmatpush1.msra.mxu0 %v4740
  %5689 = vmatprep.subr.mxu0 0.0
  %5690 = vmatpush1.msra.mxu0 0.0
  %5691 = vmatprep.subr.mxu0 0.0
  %5692 = vmatpush1.msra.mxu0 0.0
  %5693 = vmatprep.subr.mxu0 0.0
  %5694 = vmatpush1.msra.mxu0 0.0
  %5695 = vmatprep.subr.mxu0 0.0
  %5696 = vmatpush1.msra.mxu0 0.0
  %5697 = vmatprep.subr.mxu0 0.0
  %5698 = vmatpush1.msra.mxu0 0.0
  %5699 = vmatprep.subr.mxu0 0.0
  %5700 = vmatpush1.msra.mxu0 0.0
  %5701 = vmatprep.subr.mxu0 0.0
  %5702 = vmatpush1.msra.mxu0 0.0
  %5703 = vmatprep.subr.mxu0 0.0
  %5704 = vmatpush1.msra.mxu0 0.0
  %5705 = vmatprep.subr.mxu0 0.0
  %5706 = vmatpush1.msra.mxu0 0.0
  %5707 = vmatprep.subr.mxu0 0.0
  %5708 = vmatpush1.msra.mxu0 0.0
  %5709 = vmatprep.subr.mxu0 0.0
  %5710 = vmatpush1.msra.mxu0 0.0
  %5711 = vmatprep.subr.mxu0 0.0
  %5712 = vmatpush1.msra.mxu0 0.0
  %5713 = vmatprep.subr.mxu0 0.0
  %5714 = vmatpush1.msra.mxu0 0.0
  %5715 = vmatprep.subr.mxu0 0.0
  %5716 = vmatpush1.msra.mxu0 0.0
  %5717 = vmatprep.subr.mxu0 0.0
  %5718 = vmatpush1.msra.mxu0 0.0
  %5719 = vmatprep.subr.mxu0 0.0
  %5720 = vmatpush1.msra.mxu0 0.0
  %5721 = vmatprep.subr.mxu0 0.0
  %5722 = vmatpush1.msra.mxu0 0.0
  %5723 = vmatprep.subr.mxu0 0.0
  %5724 = vmatpush1.msra.mxu0 0.0
  %5725 = vmatprep.subr.mxu0 0.0
  %5726 = vmatpush1.msra.mxu0 0.0
  %5727 = vmatprep.subr.mxu0 0.0
  %5728 = vmatpush1.msra.mxu0 0.0
  %5729 = vmatprep.subr.mxu0 0.0
  %5730 = vmatpush1.msra.mxu0 0.0
  %5731 = vmatprep.subr.mxu0 0.0
  %5732 = vmatpush1.msra.mxu0 0.0
  %5733 = vmatprep.subr.mxu0 0.0
  %5734 = vmatpush1.msra.mxu0 0.0
  %5735 = vmatprep.subr.mxu0 0.0
  %5736 = vmatpush1.msra.mxu0 0.0
  %5737 = vmatprep.subr.mxu0 0.0
  %5738 = vmatpush1.msra.mxu0 0.0
  %5739 = vmatprep.subr.mxu0 0.0
  %5740 = vmatpush1.msra.mxu0 0.0
  %5741 = vmatprep.subr.mxu0 0.0
  %5742 = vmatpush1.msra.mxu0 0.0
  %5743 = vmatprep.subr.mxu0 0.0
  %5744 = vmatpush1.msra.mxu0 0.0
  %5745 = vmatprep.mubr.f32.mxu0 0.0
  %5746 = vmatmul.mubr.f32.gmra.mrb[0].mxu0 %v5676
  %v5747 = vpop.f32.mrb[0].mxu0
  %v5748 = vadd.f32 %v5674, %v5747
  %v5749 = vpop.f32.mrb[0].mxu0
  %5750 = vmatprep.mubr.f32.mxu0 0.0
  %5751 = vmatmul.mubr.f32.gmra.mrb[0].mxu0 %v5679
  %v5752 = vpop.f32.mrb[0].mxu0
  %v5753 = vadd.f32 %v5674, %v5752
  %v5754 = vpop.f32.mrb[0].mxu0
  %5755 = vdwg.mxu0
  %v5756 = vmax.f32 %v5748, 0.0
  %v5757 = vmax.f32 %v5753, 0.0
  %v5758 = vmul.f32 %v5756, %v5756
  %v5759 = vmul.f32 %v5757, %v5757
  %v5760 = vlaneseq
  %v5761 = vshrl.u32 %v5760, 7
  %v5762 = vsub.s32 5, %v5761
  %v5763 = vrot.slane %v4718, %v5762
  %v5765 = vsel %vm1028, %v5758, 0
  %v5768 = vsel %vm1028, %v5759, 0
  %5770 = vmatprep.subr.mxu0 0.0
  %5771 = vmatpush1.msra.mxu0 %v4742
  %5772 = vmatprep.subr.mxu0 0.0
  %5773 = vmatpush1.msra.mxu0 %v4743
  %5774 = vmatprep.subr.mxu0 0.0
  %5775 = vmatpush1.msra.mxu0 %v4744
  %5776 = vmatprep.subr.mxu0 0.0
  %5777 = vmatpush1.msra.mxu0 %v4745
  %5778 = vmatprep.subr.mxu0 0.0
  %5779 = vmatpush1.msra.mxu0 %v4746
  %5780 = vmatprep.subr.mxu0 0.0
  %5781 = vmatpush1.msra.mxu0 %v4747
  %5782 = vmatprep.subr.mxu0 0.0
  %5783 = vmatpush1.msra.mxu0 %v4748
  %5784 = vmatprep.subr.mxu0 0.0
  %5785 = vmatpush1.msra.mxu0 %v4749
  %5786 = vmatprep.subr.mxu0 0.0
  %5787 = vmatpush1.msra.mxu0 0.0
  %5788 = vmatprep.subr.mxu0 0.0
  %5789 = vmatpush1.msra.mxu0 0.0
  %5790 = vmatprep.subr.mxu0 0.0
  %5791 = vmatpush1.msra.mxu0 0.0
  %5792 = vmatprep.subr.mxu0 0.0
  %5793 = vmatpush1.msra.mxu0 0.0
  %5794 = vmatprep.subr.mxu0 0.0
  %5795 = vmatpush1.msra.mxu0 0.0
  %5796 = vmatprep.subr.mxu0 0.0
  %5797 = vmatpush1.msra.mxu0 0.0
  %5798 = vmatprep.subr.mxu0 0.0
  %5799 = vmatpush1.msra.mxu0 0.0
  %5800 = vmatprep.subr.mxu0 0.0
  %5801 = vmatpush1.msra.mxu0 0.0
  %5802 = vmatprep.subr.mxu0 0.0
  %5803 = vmatpush1.msra.mxu0 0.0
  %5804 = vmatprep.subr.mxu0 0.0
  %5805 = vmatpush1.msra.mxu0 0.0
  %5806 = vmatprep.subr.mxu0 0.0
  %5807 = vmatpush1.msra.mxu0 0.0
  %5808 = vmatprep.subr.mxu0 0.0
  %5809 = vmatpush1.msra.mxu0 0.0
  %5810 = vmatprep.subr.mxu0 0.0
  %5811 = vmatpush1.msra.mxu0 0.0
  %5812 = vmatprep.subr.mxu0 0.0
  %5813 = vmatpush1.msra.mxu0 0.0
  %5814 = vmatprep.subr.mxu0 0.0
  %5815 = vmatpush1.msra.mxu0 0.0
  %5816 = vmatprep.subr.mxu0 0.0
  %5817 = vmatpush1.msra.mxu0 0.0
  %5818 = vmatprep.subr.mxu0 0.0
  %5819 = vmatpush1.msra.mxu0 0.0
  %5820 = vmatprep.subr.mxu0 0.0
  %5821 = vmatpush1.msra.mxu0 0.0
  %5822 = vmatprep.subr.mxu0 0.0
  %5823 = vmatpush1.msra.mxu0 0.0
  %5824 = vmatprep.subr.mxu0 0.0
  %5825 = vmatpush1.msra.mxu0 0.0
  %5826 = vmatprep.subr.mxu0 0.0
  %5827 = vmatpush1.msra.mxu0 0.0
  %5828 = vmatprep.subr.mxu0 0.0
  %5829 = vmatpush1.msra.mxu0 0.0
  %5830 = vmatprep.subr.mxu0 0.0
  %5831 = vmatpush1.msra.mxu0 0.0
  %5832 = vmatprep.subr.mxu0 0.0
  %5833 = vmatpush1.msra.mxu0 0.0
  %5834 = vmatprep.mubr.f32.mxu0 0.0
  %5835 = vmatmul.mubr.f32.gmra.mrb[0].mxu0 %v5765
  %v5836 = vpop.f32.mrb[0].mxu0
  %v5837 = vadd.f32 %v5763, %v5836
  %v5838 = vpop.f32.mrb[0].mxu0
  %5839 = vmatprep.mubr.f32.mxu0 0.0
  %5840 = vmatmul.mubr.f32.gmra.mrb[0].mxu0 %v5768
  %v5841 = vpop.f32.mrb[0].mxu0
  %v5842 = vadd.f32 %v5763, %v5841
  %v5843 = vpop.f32.mrb[0].mxu0
  %5844 = vdwg.mxu0
  %v5845 = vmul.f32 %v5837, %v5155
  %v5846 = vmul.f32 %v5842, %v5161
  %v5847 = vadd.f32 %v5576, %v5845
  %v5848 = vadd.f32 %v5577, %v5846
  %s5849 = scalar_lea.vmem %s8, 40
  %v5850 = vld [vmem:[%s5849] sm:$0x3f]
  %s5851 = scalar_lea.vmem %s5, 640
  %v5852 = vld [vmem:[%s5851] sm:$0xff]
  %v5853 = vld [vmem:[%s5851 + $0x8] sm:$0xff]
  %v5854 = vld [vmem:[%s5851 + $0x10] sm:$0xff]
  %v5855 = vld [vmem:[%s5851 + $0x18] sm:$0xff]
  %v5856 = vld [vmem:[%s5851 + $0x20] sm:$0xff]
  %v5857 = vld [vmem:[%s5851 + $0x28] sm:$0xff]
  %v5858 = vld [vmem:[%s5851 + $0x30] sm:$0xff]
  %v5859 = vld [vmem:[%s5851 + $0x38] sm:$0xff]
  %v5860 = vld [vmem:[%s5851 + $0x40] sm:$0xff]
  %v5861 = vld [vmem:[%s5851 + $0x48] sm:$0xff]
  %v5862 = vld [vmem:[%s5851 + $0x50] sm:$0xff]
  %v5863 = vld [vmem:[%s5851 + $0x58] sm:$0xff]
  %v5864 = vld [vmem:[%s5851 + $0x60] sm:$0xff]
  %v5865 = vld [vmem:[%s5851 + $0x68] sm:$0xff]
  %v5866 = vld [vmem:[%s5851 + $0x70] sm:$0xff]
  %v5867 = vld [vmem:[%s5851 + $0x78] sm:$0xff]
  %s5868 = scalar_lea.vmem %s6, 160
  %v5869 = vld [vmem:[%s5868] sm:$0xff]
  %v5870 = vld [vmem:[%s5868 + $0x8] sm:$0xff]
  %v5871 = vld [vmem:[%s5868 + $0x10] sm:$0xff]
  %v5872 = vld [vmem:[%s5868 + $0x18] sm:$0xff]
  %s5873 = scalar_lea.vmem %s7, 320
  %v5874 = vld [vmem:[%s5873] sm:$0xff]
  %v5875 = vld [vmem:[%s5873 + $0x8] sm:$0xff]
  %v5876 = vld [vmem:[%s5873 + $0x10] sm:$0xff]
  %v5877 = vld [vmem:[%s5873 + $0x18] sm:$0xff]
  %v5878 = vld [vmem:[%s5873 + $0x20] sm:$0xff]
  %v5879 = vld [vmem:[%s5873 + $0x28] sm:$0xff]
  %v5880 = vld [vmem:[%s5873 + $0x30] sm:$0xff]
  %v5881 = vld [vmem:[%s5873 + $0x38] sm:$0xff]
  %v5882 = vmul.f32 %v5847, %v5847
  %v5883 = vmul.f32 %v5848, %v5848
  %5884 = vmatprep.subr.mxu0 0.0
  %5885 = vmatpush1.msra.mxu0 %v32
  %5886 = vmatprep.subr.mxu0 0.0
  %5887 = vmatpush1.msra.mxu0 %v33
  %5888 = vmatprep.subr.mxu0 0.0
  %5889 = vmatpush1.msra.mxu0 %v34
  %5890 = vmatprep.subr.mxu0 0.0
  %5891 = vmatpush1.msra.mxu0 %v35
  %5892 = vmatprep.subr.mxu0 0.0
  %5893 = vmatpush1.msra.mxu0 %v36
  %5894 = vmatprep.subr.mxu0 0.0
  %5895 = vmatpush1.msra.mxu0 %v37
  %5896 = vmatprep.subr.mxu0 0.0
  %5897 = vmatpush1.msra.mxu0 %v38
  %5898 = vmatprep.subr.mxu0 0.0
  %5899 = vmatpush1.msra.mxu0 %v39
  %5900 = vmatprep.subr.mxu0 0.0
  %5901 = vmatpush1.msra.mxu0 %v40
  %5902 = vmatprep.subr.mxu0 0.0
  %5903 = vmatpush1.msra.mxu0 %v41
  %5904 = vmatprep.subr.mxu0 0.0
  %5905 = vmatpush1.msra.mxu0 %v42
  %5906 = vmatprep.subr.mxu0 0.0
  %5907 = vmatpush1.msra.mxu0 %v43
  %5908 = vmatprep.subr.mxu0 0.0
  %5909 = vmatpush1.msra.mxu0 %v44
  %5910 = vmatprep.subr.mxu0 0.0
  %5911 = vmatpush1.msra.mxu0 %v45
  %5912 = vmatprep.subr.mxu0 0.0
  %5913 = vmatpush1.msra.mxu0 %v46
  %5914 = vmatprep.subr.mxu0 0.0
  %5915 = vmatpush1.msra.mxu0 %v47
  %5916 = vmatprep.subr.mxu0 0.0
  %5917 = vmatpush1.msra.mxu0 0.0
  %5918 = vmatprep.subr.mxu0 0.0
  %5919 = vmatpush1.msra.mxu0 0.0
  %5920 = vmatprep.subr.mxu0 0.0
  %5921 = vmatpush1.msra.mxu0 0.0
  %5922 = vmatprep.subr.mxu0 0.0
  %5923 = vmatpush1.msra.mxu0 0.0
  %5924 = vmatprep.subr.mxu0 0.0
  %5925 = vmatpush1.msra.mxu0 0.0
  %5926 = vmatprep.subr.mxu0 0.0
  %5927 = vmatpush1.msra.mxu0 0.0
  %5928 = vmatprep.subr.mxu0 0.0
  %5929 = vmatpush1.msra.mxu0 0.0
  %5930 = vmatprep.subr.mxu0 0.0
  %5931 = vmatpush1.msra.mxu0 0.0
  %5932 = vmatprep.subr.mxu0 0.0
  %5933 = vmatpush1.msra.mxu0 0.0
  %5934 = vmatprep.subr.mxu0 0.0
  %5935 = vmatpush1.msra.mxu0 0.0
  %5936 = vmatprep.subr.mxu0 0.0
  %5937 = vmatpush1.msra.mxu0 0.0
  %5938 = vmatprep.subr.mxu0 0.0
  %5939 = vmatpush1.msra.mxu0 0.0
  %5940 = vmatprep.subr.mxu0 0.0
  %5941 = vmatpush1.msra.mxu0 0.0
  %5942 = vmatprep.subr.mxu0 0.0
  %5943 = vmatpush1.msra.mxu0 0.0
  %5944 = vmatprep.subr.mxu0 0.0
  %5945 = vmatpush1.msra.mxu0 0.0
  %5946 = vmatprep.subr.mxu0 0.0
  %5947 = vmatpush1.msra.mxu0 0.0
  %5948 = vmatprep.mubr.f32.mxu0 0.0
  %5949 = vmatmul.mubr.f32.gmra.mrb[0].mxu0 %v5882
  %v5950 = vpop.f32.mrb[0].mxu0
  %v5951 = vadd.f32 1.1920929e-07, %v5950
  %v5952 = vpop.f32.mrb[0].mxu0
  %5953 = vmatprep.mubr.f32.mxu0 0.0
  %5954 = vmatmul.mubr.f32.gmra.mrb[0].mxu0 %v5883
  %v5955 = vpop.f32.mrb[0].mxu0
  %v5956 = vadd.f32 1.1920929e-07, %v5955
  %v5957 = vpop.f32.mrb[0].mxu0
  %5958 = vdwg.mxu0
  %v5959 = vrsqrt.pop %v5951
  %v5960 = vrsqrt.pop %v5956
  %v5961 = vmul.f32 %v5847, %v5959
  %v5962 = vmul.f32 %v5848, %v5960
  %v5963 = vlaneseq
  %v5964 = vshrl.u32 %v5963, 7
  %v5965 = vsub.s32 0, %v5964
  %v5966 = vrot.slane %v5850, %v5965
  %v5967 = vmul.f32 %v5961, %v5966
  %v5968 = vmul.f32 %v5962, %v5966
  %5969 = vmatprep.subr.mxu0 0.0
  %5970 = vmatpush1.msra.mxu0 %v5852
  %5971 = vmatprep.subr.mxu0 0.0
  %5972 = vmatpush1.msra.mxu0 %v5853
  %5973 = vmatprep.subr.mxu0 0.0
  %5974 = vmatpush1.msra.mxu0 %v5854
  %5975 = vmatprep.subr.mxu0 0.0
  %5976 = vmatpush1.msra.mxu0 %v5855
  %5977 = vmatprep.subr.mxu0 0.0
  %5978 = vmatpush1.msra.mxu0 %v5856
  %5979 = vmatprep.subr.mxu0 0.0
  %5980 = vmatpush1.msra.mxu0 %v5857
  %5981 = vmatprep.subr.mxu0 0.0
  %5982 = vmatpush1.msra.mxu0 %v5858
  %5983 = vmatprep.subr.mxu0 0.0
  %5984 = vmatpush1.msra.mxu0 %v5859
  %5985 = vmatprep.subr.mxu0 0.0
  %5986 = vmatpush1.msra.mxu0 %v5860
  %5987 = vmatprep.subr.mxu0 0.0
  %5988 = vmatpush1.msra.mxu0 %v5861
  %5989 = vmatprep.subr.mxu0 0.0
  %5990 = vmatpush1.msra.mxu0 %v5862
  %5991 = vmatprep.subr.mxu0 0.0
  %5992 = vmatpush1.msra.mxu0 %v5863
  %5993 = vmatprep.subr.mxu0 0.0
  %5994 = vmatpush1.msra.mxu0 %v5864
  %5995 = vmatprep.subr.mxu0 0.0
  %5996 = vmatpush1.msra.mxu0 %v5865
  %5997 = vmatprep.subr.mxu0 0.0
  %5998 = vmatpush1.msra.mxu0 %v5866
  %5999 = vmatprep.subr.mxu0 0.0
  %6000 = vmatpush1.msra.mxu0 %v5867
  %6001 = vmatprep.subr.mxu0 0.0
  %6002 = vmatpush1.msra.mxu0 0.0
  %6003 = vmatprep.subr.mxu0 0.0
  %6004 = vmatpush1.msra.mxu0 0.0
  %6005 = vmatprep.subr.mxu0 0.0
  %6006 = vmatpush1.msra.mxu0 0.0
  %6007 = vmatprep.subr.mxu0 0.0
  %6008 = vmatpush1.msra.mxu0 0.0
  %6009 = vmatprep.subr.mxu0 0.0
  %6010 = vmatpush1.msra.mxu0 0.0
  %6011 = vmatprep.subr.mxu0 0.0
  %6012 = vmatpush1.msra.mxu0 0.0
  %6013 = vmatprep.subr.mxu0 0.0
  %6014 = vmatpush1.msra.mxu0 0.0
  %6015 = vmatprep.subr.mxu0 0.0
  %6016 = vmatpush1.msra.mxu0 0.0
  %6017 = vmatprep.subr.mxu0 0.0
  %6018 = vmatpush1.msra.mxu0 0.0
  %6019 = vmatprep.subr.mxu0 0.0
  %6020 = vmatpush1.msra.mxu0 0.0
  %6021 = vmatprep.subr.mxu0 0.0
  %6022 = vmatpush1.msra.mxu0 0.0
  %6023 = vmatprep.subr.mxu0 0.0
  %6024 = vmatpush1.msra.mxu0 0.0
  %6025 = vmatprep.subr.mxu0 0.0
  %6026 = vmatpush1.msra.mxu0 0.0
  %6027 = vmatprep.subr.mxu0 0.0
  %6028 = vmatpush1.msra.mxu0 0.0
  %6029 = vmatprep.subr.mxu0 0.0
  %6030 = vmatpush1.msra.mxu0 0.0
  %6031 = vmatprep.subr.mxu0 0.0
  %6032 = vmatpush1.msra.mxu0 0.0
  %6033 = vmatprep.mubr.f32.mxu0 0.0
  %6034 = vmatmul.mubr.f32.gmra.mrb[0].mxu0 %v5967
  %v6035 = vpop.f32.mrb[0].mxu0
  %v6036 = vadd.f32 0.0, %v6035
  %v6037 = vpop.f32.mrb[0].mxu0
  %6038 = vmatprep.mubr.f32.mxu0 0.0
  %6039 = vmatmul.mubr.f32.gmra.mrb[0].mxu0 %v5968
  %v6040 = vpop.f32.mrb[0].mxu0
  %v6041 = vadd.f32 0.0, %v6040
  %v6042 = vpop.f32.mrb[0].mxu0
  %6043 = vdwg.mxu0
  %v6044 = vtanh.pop %v6036
  %v6045 = vtanh.pop %v6041
  %v6046 = vlaneseq
  %v6047 = vshrl.u32 %v6046, 7
  %v6048 = vsub.s32 2, %v6047
  %v6049 = vrot.slane %v5850, %v6048
  %v6050 = vmul.f32 %v6044, %v6049
  %v6051 = vmul.f32 %v6045, %v6049
  %v6052 = vlaneseq
  %v6053 = vshrl.u32 %v6052, 7
  %v6054 = vsub.s32 3, %v6053
  %v6055 = vrot.slane %v5850, %v6054
  %v6056 = vadd.f32 %v6050, %v6055
  %v6057 = vadd.f32 %v6051, %v6055
  %v6059 = vsel %vm378, %v6056, 0
  %v6062 = vsel %vm378, %v6057, 0
  %6064 = vmatprep.subr.mxu0 %v65
  %6065 = vmatpush1.msra.mxu0 %v64
  %6066 = vmatprep.subr.mxu0 %v71
  %6067 = vmatpush1.msra.mxu0 %v70
  %6068 = vmatprep.subr.mxu0 %v77
  %6069 = vmatpush1.msra.mxu0 %v76
  %6070 = vmatprep.subr.mxu0 0.0
  %6071 = vmatpush1.msra.mxu0 0.0
  %6072 = vmatprep.subr.mxu0 0.0
  %6073 = vmatpush1.msra.mxu0 0.0
  %6074 = vmatprep.subr.mxu0 0.0
  %6075 = vmatpush1.msra.mxu0 0.0
  %6076 = vmatprep.subr.mxu0 0.0
  %6077 = vmatpush1.msra.mxu0 0.0
  %6078 = vmatprep.subr.mxu0 0.0
  %6079 = vmatpush1.msra.mxu0 0.0
  %6080 = vmatprep.subr.mxu0 0.0
  %6081 = vmatpush1.msra.mxu0 0.0
  %6082 = vmatprep.subr.mxu0 0.0
  %6083 = vmatpush1.msra.mxu0 0.0
  %6084 = vmatprep.subr.mxu0 0.0
  %6085 = vmatpush1.msra.mxu0 0.0
  %6086 = vmatprep.subr.mxu0 0.0
  %6087 = vmatpush1.msra.mxu0 0.0
  %6088 = vmatprep.subr.mxu0 0.0
  %6089 = vmatpush1.msra.mxu0 0.0
  %6090 = vmatprep.subr.mxu0 0.0
  %6091 = vmatpush1.msra.mxu0 0.0
  %6092 = vmatprep.subr.mxu0 0.0
  %6093 = vmatpush1.msra.mxu0 0.0
  %6094 = vmatprep.subr.mxu0 0.0
  %6095 = vmatpush1.msra.mxu0 0.0
  %6096 = vmatprep.subr.mxu0 0.0
  %6097 = vmatpush1.msra.mxu0 0.0
  %6098 = vmatprep.subr.mxu0 0.0
  %6099 = vmatpush1.msra.mxu0 0.0
  %6100 = vmatprep.subr.mxu0 0.0
  %6101 = vmatpush1.msra.mxu0 0.0
  %6102 = vmatprep.subr.mxu0 0.0
  %6103 = vmatpush1.msra.mxu0 0.0
  %6104 = vmatprep.subr.mxu0 0.0
  %6105 = vmatpush1.msra.mxu0 0.0
  %6106 = vmatprep.subr.mxu0 0.0
  %6107 = vmatpush1.msra.mxu0 0.0
  %6108 = vmatprep.subr.mxu0 0.0
  %6109 = vmatpush1.msra.mxu0 0.0
  %6110 = vmatprep.subr.mxu0 0.0
  %6111 = vmatpush1.msra.mxu0 0.0
  %6112 = vmatprep.subr.mxu0 0.0
  %6113 = vmatpush1.msra.mxu0 0.0
  %6114 = vmatprep.subr.mxu0 0.0
  %6115 = vmatpush1.msra.mxu0 0.0
  %6116 = vmatprep.subr.mxu0 0.0
  %6117 = vmatpush1.msra.mxu0 0.0
  %6118 = vmatprep.subr.mxu0 0.0
  %6119 = vmatpush1.msra.mxu0 0.0
  %6120 = vmatprep.subr.mxu0 0.0
  %6121 = vmatpush1.msra.mxu0 0.0
  %6122 = vmatprep.subr.mxu0 0.0
  %6123 = vmatpush1.msra.mxu0 0.0
  %6124 = vmatprep.subr.mxu0 0.0
  %6125 = vmatpush1.msra.mxu0 0.0
  %6126 = vmatprep.subr.mxu0 0.0
  %6127 = vmatpush1.msra.mxu0 0.0
  %6128 = vmatprep.mubr.f32.mxu0 0.0
  %6129 = vmatmul.mubr.f32.gmra.mrb[0].mxu0 %v6059
  %v6130 = vpop.f32.mrb[0].mxu0
  %v6131 = vadd.f32 0.0, %v6130
  %v6132 = vpop.f32.mrb[0].mxu0
  %v6133 = vadd.f32 0.0, %v6132
  %6134 = vmatprep.mubr.f32.mxu0 0.0
  %6135 = vmatmul.mubr.f32.gmra.mrb[0].mxu0 %v6062
  %v6136 = vpop.f32.mrb[0].mxu0
  %v6137 = vadd.f32 0.0, %v6136
  %v6138 = vpop.f32.mrb[0].mxu0
  %v6139 = vadd.f32 0.0, %v6138
  %6140 = vdwg.mxu0
  %6141 = vmatprep.subr.mxu0 %v67
  %6142 = vmatpush1.msra.mxu0 %v66
  %6143 = vmatprep.subr.mxu0 %v73
  %6144 = vmatpush1.msra.mxu0 %v72
  %6145 = vmatprep.subr.mxu0 %v79
  %6146 = vmatpush1.msra.mxu0 %v78
  %6147 = vmatprep.subr.mxu0 0.0
  %6148 = vmatpush1.msra.mxu0 0.0
  %6149 = vmatprep.subr.mxu0 0.0
  %6150 = vmatpush1.msra.mxu0 0.0
  %6151 = vmatprep.subr.mxu0 0.0
  %6152 = vmatpush1.msra.mxu0 0.0
  %6153 = vmatprep.subr.mxu0 0.0
  %6154 = vmatpush1.msra.mxu0 0.0
  %6155 = vmatprep.subr.mxu0 0.0
  %6156 = vmatpush1.msra.mxu0 0.0
  %6157 = vmatprep.subr.mxu0 0.0
  %6158 = vmatpush1.msra.mxu0 0.0
  %6159 = vmatprep.subr.mxu0 0.0
  %6160 = vmatpush1.msra.mxu0 0.0
  %6161 = vmatprep.subr.mxu0 0.0
  %6162 = vmatpush1.msra.mxu0 0.0
  %6163 = vmatprep.subr.mxu0 0.0
  %6164 = vmatpush1.msra.mxu0 0.0
  %6165 = vmatprep.subr.mxu0 0.0
  %6166 = vmatpush1.msra.mxu0 0.0
  %6167 = vmatprep.subr.mxu0 0.0
  %6168 = vmatpush1.msra.mxu0 0.0
  %6169 = vmatprep.subr.mxu0 0.0
  %6170 = vmatpush1.msra.mxu0 0.0
  %6171 = vmatprep.subr.mxu0 0.0
  %6172 = vmatpush1.msra.mxu0 0.0
  %6173 = vmatprep.subr.mxu0 0.0
  %6174 = vmatpush1.msra.mxu0 0.0
  %6175 = vmatprep.subr.mxu0 0.0
  %6176 = vmatpush1.msra.mxu0 0.0
  %6177 = vmatprep.subr.mxu0 0.0
  %6178 = vmatpush1.msra.mxu0 0.0
  %6179 = vmatprep.subr.mxu0 0.0
  %6180 = vmatpush1.msra.mxu0 0.0
  %6181 = vmatprep.subr.mxu0 0.0
  %6182 = vmatpush1.msra.mxu0 0.0
  %6183 = vmatprep.subr.mxu0 0.0
  %6184 = vmatpush1.msra.mxu0 0.0
  %6185 = vmatprep.subr.mxu0 0.0
  %6186 = vmatpush1.msra.mxu0 0.0
  %6187 = vmatprep.subr.mxu0 0.0
  %6188 = vmatpush1.msra.mxu0 0.0
  %6189 = vmatprep.subr.mxu0 0.0
  %6190 = vmatpush1.msra.mxu0 0.0
  %6191 = vmatprep.subr.mxu0 0.0
  %6192 = vmatpush1.msra.mxu0 0.0
  %6193 = vmatprep.subr.mxu0 0.0
  %6194 = vmatpush1.msra.mxu0 0.0
  %6195 = vmatprep.subr.mxu0 0.0
  %6196 = vmatpush1.msra.mxu0 0.0
  %6197 = vmatprep.subr.mxu0 0.0
  %6198 = vmatpush1.msra.mxu0 0.0
  %6199 = vmatprep.subr.mxu0 0.0
  %6200 = vmatpush1.msra.mxu0 0.0
  %6201 = vmatprep.subr.mxu0 0.0
  %6202 = vmatpush1.msra.mxu0 0.0
  %6203 = vmatprep.subr.mxu0 0.0
  %6204 = vmatpush1.msra.mxu0 0.0
  %6205 = vmatprep.mubr.f32.mxu0 0.0
  %6206 = vmatmul.mubr.f32.gmra.mrb[0].mxu0 %v6059
  %v6207 = vpop.f32.mrb[0].mxu0
  %v6208 = vadd.f32 0.0, %v6207
  %v6209 = vpop.f32.mrb[0].mxu0
  %v6210 = vadd.f32 0.0, %v6209
  %6211 = vmatprep.mubr.f32.mxu0 0.0
  %6212 = vmatmul.mubr.f32.gmra.mrb[0].mxu0 %v6062
  %v6213 = vpop.f32.mrb[0].mxu0
  %v6214 = vadd.f32 0.0, %v6213
  %v6215 = vpop.f32.mrb[0].mxu0
  %v6216 = vadd.f32 0.0, %v6215
  %6217 = vdwg.mxu0
  %6218 = vmatprep.subr.mxu0 %v69
  %6219 = vmatpush1.msra.mxu0 %v68
  %6220 = vmatprep.subr.mxu0 %v75
  %6221 = vmatpush1.msra.mxu0 %v74
  %6222 = vmatprep.subr.mxu0 %v81
  %6223 = vmatpush1.msra.mxu0 %v80
  %6224 = vmatprep.subr.mxu0 0.0
  %6225 = vmatpush1.msra.mxu0 0.0
  %6226 = vmatprep.subr.mxu0 0.0
  %6227 = vmatpush1.msra.mxu0 0.0
  %6228 = vmatprep.subr.mxu0 0.0
  %6229 = vmatpush1.msra.mxu0 0.0
  %6230 = vmatprep.subr.mxu0 0.0
  %6231 = vmatpush1.msra.mxu0 0.0
  %6232 = vmatprep.subr.mxu0 0.0
  %6233 = vmatpush1.msra.mxu0 0.0
  %6234 = vmatprep.subr.mxu0 0.0
  %6235 = vmatpush1.msra.mxu0 0.0
  %6236 = vmatprep.subr.mxu0 0.0
  %6237 = vmatpush1.msra.mxu0 0.0
  %6238 = vmatprep.subr.mxu0 0.0
  %6239 = vmatpush1.msra.mxu0 0.0
  %6240 = vmatprep.subr.mxu0 0.0
  %6241 = vmatpush1.msra.mxu0 0.0
  %6242 = vmatprep.subr.mxu0 0.0
  %6243 = vmatpush1.msra.mxu0 0.0
  %6244 = vmatprep.subr.mxu0 0.0
  %6245 = vmatpush1.msra.mxu0 0.0
  %6246 = vmatprep.subr.mxu0 0.0
  %6247 = vmatpush1.msra.mxu0 0.0
  %6248 = vmatprep.subr.mxu0 0.0
  %6249 = vmatpush1.msra.mxu0 0.0
  %6250 = vmatprep.subr.mxu0 0.0
  %6251 = vmatpush1.msra.mxu0 0.0
  %6252 = vmatprep.subr.mxu0 0.0
  %6253 = vmatpush1.msra.mxu0 0.0
  %6254 = vmatprep.subr.mxu0 0.0
  %6255 = vmatpush1.msra.mxu0 0.0
  %6256 = vmatprep.subr.mxu0 0.0
  %6257 = vmatpush1.msra.mxu0 0.0
  %6258 = vmatprep.subr.mxu0 0.0
  %6259 = vmatpush1.msra.mxu0 0.0
  %6260 = vmatprep.subr.mxu0 0.0
  %6261 = vmatpush1.msra.mxu0 0.0
  %6262 = vmatprep.subr.mxu0 0.0
  %6263 = vmatpush1.msra.mxu0 0.0
  %6264 = vmatprep.subr.mxu0 0.0
  %6265 = vmatpush1.msra.mxu0 0.0
  %6266 = vmatprep.subr.mxu0 0.0
  %6267 = vmatpush1.msra.mxu0 0.0
  %6268 = vmatprep.subr.mxu0 0.0
  %6269 = vmatpush1.msra.mxu0 0.0
  %6270 = vmatprep.subr.mxu0 0.0
  %6271 = vmatpush1.msra.mxu0 0.0
  %6272 = vmatprep.subr.mxu0 0.0
  %6273 = vmatpush1.msra.mxu0 0.0
  %6274 = vmatprep.subr.mxu0 0.0
  %6275 = vmatpush1.msra.mxu0 0.0
  %6276 = vmatprep.subr.mxu0 0.0
  %6277 = vmatpush1.msra.mxu0 0.0
  %6278 = vmatprep.subr.mxu0 0.0
  %6279 = vmatpush1.msra.mxu0 0.0
  %6280 = vmatprep.subr.mxu0 0.0
  %6281 = vmatpush1.msra.mxu0 0.0
  %6282 = vmatprep.mubr.f32.mxu0 0.0
  %6283 = vmatmul.mubr.f32.gmra.mrb[0].mxu0 %v6059
  %v6284 = vpop.f32.mrb[0].mxu0
  %v6285 = vadd.f32 0.0, %v6284
  %v6286 = vpop.f32.mrb[0].mxu0
  %v6287 = vadd.f32 0.0, %v6286
  %6288 = vmatprep.mubr.f32.mxu0 0.0
  %6289 = vmatmul.mubr.f32.gmra.mrb[0].mxu0 %v6062
  %v6290 = vpop.f32.mrb[0].mxu0
  %v6291 = vadd.f32 0.0, %v6290
  %v6292 = vpop.f32.mrb[0].mxu0
  %v6293 = vadd.f32 0.0, %v6292
  %6294 = vdwg.mxu0
  %v6295 = vmul.f32 %v5847, %v6131
  %v6296 = vmul.f32 %v5848, %v6137
  %6297 = vmatprep.subr.mxu0 0.0
  %6298 = vmatpush1.msra.mxu0 %v48
  %6299 = vmatprep.subr.mxu0 0.0
  %6300 = vmatpush1.msra.mxu0 %v49
  %6301 = vmatprep.subr.mxu0 0.0
  %6302 = vmatpush1.msra.mxu0 %v50
  %6303 = vmatprep.subr.mxu0 0.0
  %6304 = vmatpush1.msra.mxu0 %v51
  %6305 = vmatprep.subr.mxu0 0.0
  %6306 = vmatpush1.msra.mxu0 %v52
  %6307 = vmatprep.subr.mxu0 0.0
  %6308 = vmatpush1.msra.mxu0 %v53
  %6309 = vmatprep.subr.mxu0 0.0
  %6310 = vmatpush1.msra.mxu0 %v54
  %6311 = vmatprep.subr.mxu0 0.0
  %6312 = vmatpush1.msra.mxu0 %v55
  %6313 = vmatprep.subr.mxu0 0.0
  %6314 = vmatpush1.msra.mxu0 %v56
  %6315 = vmatprep.subr.mxu0 0.0
  %6316 = vmatpush1.msra.mxu0 %v57
  %6317 = vmatprep.subr.mxu0 0.0
  %6318 = vmatpush1.msra.mxu0 %v58
  %6319 = vmatprep.subr.mxu0 0.0
  %6320 = vmatpush1.msra.mxu0 %v59
  %6321 = vmatprep.subr.mxu0 0.0
  %6322 = vmatpush1.msra.mxu0 %v60
  %6323 = vmatprep.subr.mxu0 0.0
  %6324 = vmatpush1.msra.mxu0 %v61
  %6325 = vmatprep.subr.mxu0 0.0
  %6326 = vmatpush1.msra.mxu0 %v62
  %6327 = vmatprep.subr.mxu0 0.0
  %6328 = vmatpush1.msra.mxu0 %v63
  %6329 = vmatprep.subr.mxu0 0.0
  %6330 = vmatpush1.msra.mxu0 0.0
  %6331 = vmatprep.subr.mxu0 0.0
  %6332 = vmatpush1.msra.mxu0 0.0
  %6333 = vmatprep.subr.mxu0 0.0
  %6334 = vmatpush1.msra.mxu0 0.0
  %6335 = vmatprep.subr.mxu0 0.0
  %6336 = vmatpush1.msra.mxu0 0.0
  %6337 = vmatprep.subr.mxu0 0.0
  %6338 = vmatpush1.msra.mxu0 0.0
  %6339 = vmatprep.subr.mxu0 0.0
  %6340 = vmatpush1.msra.mxu0 0.0
  %6341 = vmatprep.subr.mxu0 0.0
  %6342 = vmatpush1.msra.mxu0 0.0
  %6343 = vmatprep.subr.mxu0 0.0
  %6344 = vmatpush1.msra.mxu0 0.0
  %6345 = vmatprep.subr.mxu0 0.0
  %6346 = vmatpush1.msra.mxu0 0.0
  %6347 = vmatprep.subr.mxu0 0.0
  %6348 = vmatpush1.msra.mxu0 0.0
  %6349 = vmatprep.subr.mxu0 0.0
  %6350 = vmatpush1.msra.mxu0 0.0
  %6351 = vmatprep.subr.mxu0 0.0
  %6352 = vmatpush1.msra.mxu0 0.0
  %6353 = vmatprep.subr.mxu0 0.0
  %6354 = vmatpush1.msra.mxu0 0.0
  %6355 = vmatprep.subr.mxu0 0.0
  %6356 = vmatpush1.msra.mxu0 0.0
  %6357 = vmatprep.subr.mxu0 0.0
  %6358 = vmatpush1.msra.mxu0 0.0
  %6359 = vmatprep.subr.mxu0 0.0
  %6360 = vmatpush1.msra.mxu0 0.0
  %6361 = vmatprep.mubr.f32.mxu0 0.0
  %6362 = vmatmul.mubr.f32.gmra.mrb[0].mxu0 %v6295
  %v6363 = vpop.f32.mrb[0].mxu0
  %v6364 = vadd.f32 0.0, %v6363
  %v6365 = vpop.f32.mrb[0].mxu0
  %6366 = vmatprep.mubr.f32.mxu0 0.0
  %6367 = vmatmul.mubr.f32.gmra.mrb[0].mxu0 %v6296
  %v6368 = vpop.f32.mrb[0].mxu0
  %v6369 = vadd.f32 0.0, %v6368
  %v6370 = vpop.f32.mrb[0].mxu0
  %6371 = vdwg.mxu0
  %v6372 = vmul.f32 %v5847, %v6133
  %v6373 = vmul.f32 %v5848, %v6139
  %6374 = vmatprep.subr.mxu0 0.0
  %6375 = vmatpush1.msra.mxu0 %v48
  %6376 = vmatprep.subr.mxu0 0.0
  %6377 = vmatpush1.msra.mxu0 %v49
  %6378 = vmatprep.subr.mxu0 0.0
  %6379 = vmatpush1.msra.mxu0 %v50
  %6380 = vmatprep.subr.mxu0 0.0
  %6381 = vmatpush1.msra.mxu0 %v51
  %6382 = vmatprep.subr.mxu0 0.0
  %6383 = vmatpush1.msra.mxu0 %v52
  %6384 = vmatprep.subr.mxu0 0.0
  %6385 = vmatpush1.msra.mxu0 %v53
  %6386 = vmatprep.subr.mxu0 0.0
  %6387 = vmatpush1.msra.mxu0 %v54
  %6388 = vmatprep.subr.mxu0 0.0
  %6389 = vmatpush1.msra.mxu0 %v55
  %6390 = vmatprep.subr.mxu0 0.0
  %6391 = vmatpush1.msra.mxu0 %v56
  %6392 = vmatprep.subr.mxu0 0.0
  %6393 = vmatpush1.msra.mxu0 %v57
  %6394 = vmatprep.subr.mxu0 0.0
  %6395 = vmatpush1.msra.mxu0 %v58
  %6396 = vmatprep.subr.mxu0 0.0
  %6397 = vmatpush1.msra.mxu0 %v59
  %6398 = vmatprep.subr.mxu0 0.0
  %6399 = vmatpush1.msra.mxu0 %v60
  %6400 = vmatprep.subr.mxu0 0.0
  %6401 = vmatpush1.msra.mxu0 %v61
  %6402 = vmatprep.subr.mxu0 0.0
  %6403 = vmatpush1.msra.mxu0 %v62
  %6404 = vmatprep.subr.mxu0 0.0
  %6405 = vmatpush1.msra.mxu0 %v63
  %6406 = vmatprep.subr.mxu0 0.0
  %6407 = vmatpush1.msra.mxu0 0.0
  %6408 = vmatprep.subr.mxu0 0.0
  %6409 = vmatpush1.msra.mxu0 0.0
  %6410 = vmatprep.subr.mxu0 0.0
  %6411 = vmatpush1.msra.mxu0 0.0
  %6412 = vmatprep.subr.mxu0 0.0
  %6413 = vmatpush1.msra.mxu0 0.0
  %6414 = vmatprep.subr.mxu0 0.0
  %6415 = vmatpush1.msra.mxu0 0.0
  %6416 = vmatprep.subr.mxu0 0.0
  %6417 = vmatpush1.msra.mxu0 0.0
  %6418 = vmatprep.subr.mxu0 0.0
  %6419 = vmatpush1.msra.mxu0 0.0
  %6420 = vmatprep.subr.mxu0 0.0
  %6421 = vmatpush1.msra.mxu0 0.0
  %6422 = vmatprep.subr.mxu0 0.0
  %6423 = vmatpush1.msra.mxu0 0.0
  %6424 = vmatprep.subr.mxu0 0.0
  %6425 = vmatpush1.msra.mxu0 0.0
  %6426 = vmatprep.subr.mxu0 0.0
  %6427 = vmatpush1.msra.mxu0 0.0
  %6428 = vmatprep.subr.mxu0 0.0
  %6429 = vmatpush1.msra.mxu0 0.0
  %6430 = vmatprep.subr.mxu0 0.0
  %6431 = vmatpush1.msra.mxu0 0.0
  %6432 = vmatprep.subr.mxu0 0.0
  %6433 = vmatpush1.msra.mxu0 0.0
  %6434 = vmatprep.subr.mxu0 0.0
  %6435 = vmatpush1.msra.mxu0 0.0
  %6436 = vmatprep.subr.mxu0 0.0
  %6437 = vmatpush1.msra.mxu0 0.0
  %6438 = vmatprep.mubr.f32.mxu0 0.0
  %6439 = vmatmul.mubr.f32.gmra.mrb[0].mxu0 %v6372
  %v6440 = vpop.f32.mrb[0].mxu0
  %v6441 = vadd.f32 0.0, %v6440
  %v6442 = vpop.f32.mrb[0].mxu0
  %6443 = vmatprep.mubr.f32.mxu0 0.0
  %6444 = vmatmul.mubr.f32.gmra.mrb[0].mxu0 %v6373
  %v6445 = vpop.f32.mrb[0].mxu0
  %v6446 = vadd.f32 0.0, %v6445
  %v6447 = vpop.f32.mrb[0].mxu0
  %6448 = vdwg.mxu0
  %v6449 = vmul.f32 %v5847, %v6208
  %v6450 = vmul.f32 %v5848, %v6214
  %6451 = vmatprep.subr.mxu0 0.0
  %6452 = vmatpush1.msra.mxu0 %v48
  %6453 = vmatprep.subr.mxu0 0.0
  %6454 = vmatpush1.msra.mxu0 %v49
  %6455 = vmatprep.subr.mxu0 0.0
  %6456 = vmatpush1.msra.mxu0 %v50
  %6457 = vmatprep.subr.mxu0 0.0
  %6458 = vmatpush1.msra.mxu0 %v51
  %6459 = vmatprep.subr.mxu0 0.0
  %6460 = vmatpush1.msra.mxu0 %v52
  %6461 = vmatprep.subr.mxu0 0.0
  %6462 = vmatpush1.msra.mxu0 %v53
  %6463 = vmatprep.subr.mxu0 0.0
  %6464 = vmatpush1.msra.mxu0 %v54
  %6465 = vmatprep.subr.mxu0 0.0
  %6466 = vmatpush1.msra.mxu0 %v55
  %6467 = vmatprep.subr.mxu0 0.0
  %6468 = vmatpush1.msra.mxu0 %v56
  %6469 = vmatprep.subr.mxu0 0.0
  %6470 = vmatpush1.msra.mxu0 %v57
  %6471 = vmatprep.subr.mxu0 0.0
  %6472 = vmatpush1.msra.mxu0 %v58
  %6473 = vmatprep.subr.mxu0 0.0
  %6474 = vmatpush1.msra.mxu0 %v59
  %6475 = vmatprep.subr.mxu0 0.0
  %6476 = vmatpush1.msra.mxu0 %v60
  %6477 = vmatprep.subr.mxu0 0.0
  %6478 = vmatpush1.msra.mxu0 %v61
  %6479 = vmatprep.subr.mxu0 0.0
  %6480 = vmatpush1.msra.mxu0 %v62
  %6481 = vmatprep.subr.mxu0 0.0
  %6482 = vmatpush1.msra.mxu0 %v63
  %6483 = vmatprep.subr.mxu0 0.0
  %6484 = vmatpush1.msra.mxu0 0.0
  %6485 = vmatprep.subr.mxu0 0.0
  %6486 = vmatpush1.msra.mxu0 0.0
  %6487 = vmatprep.subr.mxu0 0.0
  %6488 = vmatpush1.msra.mxu0 0.0
  %6489 = vmatprep.subr.mxu0 0.0
  %6490 = vmatpush1.msra.mxu0 0.0
  %6491 = vmatprep.subr.mxu0 0.0
  %6492 = vmatpush1.msra.mxu0 0.0
  %6493 = vmatprep.subr.mxu0 0.0
  %6494 = vmatpush1.msra.mxu0 0.0
  %6495 = vmatprep.subr.mxu0 0.0
  %6496 = vmatpush1.msra.mxu0 0.0
  %6497 = vmatprep.subr.mxu0 0.0
  %6498 = vmatpush1.msra.mxu0 0.0
  %6499 = vmatprep.subr.mxu0 0.0
  %6500 = vmatpush1.msra.mxu0 0.0
  %6501 = vmatprep.subr.mxu0 0.0
  %6502 = vmatpush1.msra.mxu0 0.0
  %6503 = vmatprep.subr.mxu0 0.0
  %6504 = vmatpush1.msra.mxu0 0.0
  %6505 = vmatprep.subr.mxu0 0.0
  %6506 = vmatpush1.msra.mxu0 0.0
  %6507 = vmatprep.subr.mxu0 0.0
  %6508 = vmatpush1.msra.mxu0 0.0
  %6509 = vmatprep.subr.mxu0 0.0
  %6510 = vmatpush1.msra.mxu0 0.0
  %6511 = vmatprep.subr.mxu0 0.0
  %6512 = vmatpush1.msra.mxu0 0.0
  %6513 = vmatprep.subr.mxu0 0.0
  %6514 = vmatpush1.msra.mxu0 0.0
  %6515 = vmatprep.mubr.f32.mxu0 0.0
  %6516 = vmatmul.mubr.f32.gmra.mrb[0].mxu0 %v6449
  %v6517 = vpop.f32.mrb[0].mxu0
  %v6518 = vadd.f32 0.0, %v6517
  %v6519 = vpop.f32.mrb[0].mxu0
  %6520 = vmatprep.mubr.f32.mxu0 0.0
  %6521 = vmatmul.mubr.f32.gmra.mrb[0].mxu0 %v6450
  %v6522 = vpop.f32.mrb[0].mxu0
  %v6523 = vadd.f32 0.0, %v6522
  %v6524 = vpop.f32.mrb[0].mxu0
  %6525 = vdwg.mxu0
  %v6526 = vmul.f32 %v5847, %v6210
  %v6527 = vmul.f32 %v5848, %v6216
  %6528 = vmatprep.subr.mxu0 0.0
  %6529 = vmatpush1.msra.mxu0 %v48
  %6530 = vmatprep.subr.mxu0 0.0
  %6531 = vmatpush1.msra.mxu0 %v49
  %6532 = vmatprep.subr.mxu0 0.0
  %6533 = vmatpush1.msra.mxu0 %v50
  %6534 = vmatprep.subr.mxu0 0.0
  %6535 = vmatpush1.msra.mxu0 %v51
  %6536 = vmatprep.subr.mxu0 0.0
  %6537 = vmatpush1.msra.mxu0 %v52
  %6538 = vmatprep.subr.mxu0 0.0
  %6539 = vmatpush1.msra.mxu0 %v53
  %6540 = vmatprep.subr.mxu0 0.0
  %6541 = vmatpush1.msra.mxu0 %v54
  %6542 = vmatprep.subr.mxu0 0.0
  %6543 = vmatpush1.msra.mxu0 %v55
  %6544 = vmatprep.subr.mxu0 0.0
  %6545 = vmatpush1.msra.mxu0 %v56
  %6546 = vmatprep.subr.mxu0 0.0
  %6547 = vmatpush1.msra.mxu0 %v57
  %6548 = vmatprep.subr.mxu0 0.0
  %6549 = vmatpush1.msra.mxu0 %v58
  %6550 = vmatprep.subr.mxu0 0.0
  %6551 = vmatpush1.msra.mxu0 %v59
  %6552 = vmatprep.subr.mxu0 0.0
  %6553 = vmatpush1.msra.mxu0 %v60
  %6554 = vmatprep.subr.mxu0 0.0
  %6555 = vmatpush1.msra.mxu0 %v61
  %6556 = vmatprep.subr.mxu0 0.0
  %6557 = vmatpush1.msra.mxu0 %v62
  %6558 = vmatprep.subr.mxu0 0.0
  %6559 = vmatpush1.msra.mxu0 %v63
  %6560 = vmatprep.subr.mxu0 0.0
  %6561 = vmatpush1.msra.mxu0 0.0
  %6562 = vmatprep.subr.mxu0 0.0
  %6563 = vmatpush1.msra.mxu0 0.0
  %6564 = vmatprep.subr.mxu0 0.0
  %6565 = vmatpush1.msra.mxu0 0.0
  %6566 = vmatprep.subr.mxu0 0.0
  %6567 = vmatpush1.msra.mxu0 0.0
  %6568 = vmatprep.subr.mxu0 0.0
  %6569 = vmatpush1.msra.mxu0 0.0
  %6570 = vmatprep.subr.mxu0 0.0
  %6571 = vmatpush1.msra.mxu0 0.0
  %6572 = vmatprep.subr.mxu0 0.0
  %6573 = vmatpush1.msra.mxu0 0.0
  %6574 = vmatprep.subr.mxu0 0.0
  %6575 = vmatpush1.msra.mxu0 0.0
  %6576 = vmatprep.subr.mxu0 0.0
  %6577 = vmatpush1.msra.mxu0 0.0
  %6578 = vmatprep.subr.mxu0 0.0
  %6579 = vmatpush1.msra.mxu0 0.0
  %6580 = vmatprep.subr.mxu0 0.0
  %6581 = vmatpush1.msra.mxu0 0.0
  %6582 = vmatprep.subr.mxu0 0.0
  %6583 = vmatpush1.msra.mxu0 0.0
  %6584 = vmatprep.subr.mxu0 0.0
  %6585 = vmatpush1.msra.mxu0 0.0
  %6586 = vmatprep.subr.mxu0 0.0
  %6587 = vmatpush1.msra.mxu0 0.0
  %6588 = vmatprep.subr.mxu0 0.0
  %6589 = vmatpush1.msra.mxu0 0.0
  %6590 = vmatprep.subr.mxu0 0.0
  %6591 = vmatpush1.msra.mxu0 0.0
  %6592 = vmatprep.mubr.f32.mxu0 0.0
  %6593 = vmatmul.mubr.f32.gmra.mrb[0].mxu0 %v6526
  %v6594 = vpop.f32.mrb[0].mxu0
  %v6595 = vadd.f32 0.0, %v6594
  %v6596 = vpop.f32.mrb[0].mxu0
  %6597 = vmatprep.mubr.f32.mxu0 0.0
  %6598 = vmatmul.mubr.f32.gmra.mrb[0].mxu0 %v6527
  %v6599 = vpop.f32.mrb[0].mxu0
  %v6600 = vadd.f32 0.0, %v6599
  %v6601 = vpop.f32.mrb[0].mxu0
  %6602 = vdwg.mxu0
  %v6603 = vmul.f32 %v5847, %v6285
  %v6604 = vmul.f32 %v5848, %v6291
  %6605 = vmatprep.subr.mxu0 0.0
  %6606 = vmatpush1.msra.mxu0 %v48
  %6607 = vmatprep.subr.mxu0 0.0
  %6608 = vmatpush1.msra.mxu0 %v49
  %6609 = vmatprep.subr.mxu0 0.0
  %6610 = vmatpush1.msra.mxu0 %v50
  %6611 = vmatprep.subr.mxu0 0.0
  %6612 = vmatpush1.msra.mxu0 %v51
  %6613 = vmatprep.subr.mxu0 0.0
  %6614 = vmatpush1.msra.mxu0 %v52
  %6615 = vmatprep.subr.mxu0 0.0
  %6616 = vmatpush1.msra.mxu0 %v53
  %6617 = vmatprep.subr.mxu0 0.0
  %6618 = vmatpush1.msra.mxu0 %v54
  %6619 = vmatprep.subr.mxu0 0.0
  %6620 = vmatpush1.msra.mxu0 %v55
  %6621 = vmatprep.subr.mxu0 0.0
  %6622 = vmatpush1.msra.mxu0 %v56
  %6623 = vmatprep.subr.mxu0 0.0
  %6624 = vmatpush1.msra.mxu0 %v57
  %6625 = vmatprep.subr.mxu0 0.0
  %6626 = vmatpush1.msra.mxu0 %v58
  %6627 = vmatprep.subr.mxu0 0.0
  %6628 = vmatpush1.msra.mxu0 %v59
  %6629 = vmatprep.subr.mxu0 0.0
  %6630 = vmatpush1.msra.mxu0 %v60
  %6631 = vmatprep.subr.mxu0 0.0
  %6632 = vmatpush1.msra.mxu0 %v61
  %6633 = vmatprep.subr.mxu0 0.0
  %6634 = vmatpush1.msra.mxu0 %v62
  %6635 = vmatprep.subr.mxu0 0.0
  %6636 = vmatpush1.msra.mxu0 %v63
  %6637 = vmatprep.subr.mxu0 0.0
  %6638 = vmatpush1.msra.mxu0 0.0
  %6639 = vmatprep.subr.mxu0 0.0
  %6640 = vmatpush1.msra.mxu0 0.0
  %6641 = vmatprep.subr.mxu0 0.0
  %6642 = vmatpush1.msra.mxu0 0.0
  %6643 = vmatprep.subr.mxu0 0.0
  %6644 = vmatpush1.msra.mxu0 0.0
  %6645 = vmatprep.subr.mxu0 0.0
  %6646 = vmatpush1.msra.mxu0 0.0
  %6647 = vmatprep.subr.mxu0 0.0
  %6648 = vmatpush1.msra.mxu0 0.0
  %6649 = vmatprep.subr.mxu0 0.0
  %6650 = vmatpush1.msra.mxu0 0.0
  %6651 = vmatprep.subr.mxu0 0.0
  %6652 = vmatpush1.msra.mxu0 0.0
  %6653 = vmatprep.subr.mxu0 0.0
  %6654 = vmatpush1.msra.mxu0 0.0
  %6655 = vmatprep.subr.mxu0 0.0
  %6656 = vmatpush1.msra.mxu0 0.0
  %6657 = vmatprep.subr.mxu0 0.0
  %6658 = vmatpush1.msra.mxu0 0.0
  %6659 = vmatprep.subr.mxu0 0.0
  %6660 = vmatpush1.msra.mxu0 0.0
  %6661 = vmatprep.subr.mxu0 0.0
  %6662 = vmatpush1.msra.mxu0 0.0
  %6663 = vmatprep.subr.mxu0 0.0
  %6664 = vmatpush1.msra.mxu0 0.0
  %6665 = vmatprep.subr.mxu0 0.0
  %6666 = vmatpush1.msra.mxu0 0.0
  %6667 = vmatprep.subr.mxu0 0.0
  %6668 = vmatpush1.msra.mxu0 0.0
  %6669 = vmatprep.mubr.f32.mxu0 0.0
  %6670 = vmatmul.mubr.f32.gmra.mrb[0].mxu0 %v6603
  %v6671 = vpop.f32.mrb[0].mxu0
  %v6672 = vadd.f32 0.0, %v6671
  %v6673 = vpop.f32.mrb[0].mxu0
  %6674 = vmatprep.mubr.f32.mxu0 0.0
  %6675 = vmatmul.mubr.f32.gmra.mrb[0].mxu0 %v6604
  %v6676 = vpop.f32.mrb[0].mxu0
  %v6677 = vadd.f32 0.0, %v6676
  %v6678 = vpop.f32.mrb[0].mxu0
  %6679 = vdwg.mxu0
  %6682 = vrot.lane.b32.xlu0 %v6441, 32
  %v6683 = vpop.permute.xlu0 %6682
  %6684 = vrot.lane.b32.xlu0 %v6446, 32
  %v6685 = vpop.permute.xlu0 %6684
  %6690 = vrot.lane.b32.xlu0 %v6518, 64
  %v6691 = vpop.permute.xlu0 %6690
  %6692 = vrot.lane.b32.xlu0 %v6523, 64
  %v6693 = vpop.permute.xlu0 %6692
  %6698 = vrot.lane.b32.xlu0 %v6595, 96
  %v6699 = vpop.permute.xlu0 %6698
  %6700 = vrot.lane.b32.xlu0 %v6600, 96
  %v6701 = vpop.permute.xlu0 %6700
  %v6704 = vsel %vm1025, %v6364, %v6683
  %v6705 = vsel %vm1025, %v6369, %v6685
  %v6706 = vsel %vm1028, %v6704, %v6691
  %v6707 = vsel %vm1028, %v6705, %v6693
  %v6708 = vsel %vm1031, %v6706, %v6699
  %v6709 = vsel %vm1031, %v6707, %v6701
  %v6710 = vmul.f32 %v6672, %v6672
  %v6711 = vmul.f32 %v6677, %v6677
  %v6713 = vsel %vm1025, %v6710, 0
  %v6716 = vsel %vm1025, %v6711, 0
  %6718 = vmatprep.subr.mxu0 0.0
  %6719 = vmatpush1.msra.mxu0 %v1041
  %6720 = vmatprep.subr.mxu0 0.0
  %6721 = vmatpush1.msra.mxu0 %v1043
  %6722 = vmatprep.subr.mxu0 0.0
  %6723 = vmatpush1.msra.mxu0 %v1045
  %6724 = vmatprep.subr.mxu0 0.0
  %6725 = vmatpush1.msra.mxu0 %v1047
  %6726 = vmatprep.subr.mxu0 0.0
  %6727 = vmatpush1.msra.mxu0 0.0
  %6728 = vmatprep.subr.mxu0 0.0
  %6729 = vmatpush1.msra.mxu0 0.0
  %6730 = vmatprep.subr.mxu0 0.0
  %6731 = vmatpush1.msra.mxu0 0.0
  %6732 = vmatprep.subr.mxu0 0.0
  %6733 = vmatpush1.msra.mxu0 0.0
  %6734 = vmatprep.subr.mxu0 0.0
  %6735 = vmatpush1.msra.mxu0 0.0
  %6736 = vmatprep.subr.mxu0 0.0
  %6737 = vmatpush1.msra.mxu0 0.0
  %6738 = vmatprep.subr.mxu0 0.0
  %6739 = vmatpush1.msra.mxu0 0.0
  %6740 = vmatprep.subr.mxu0 0.0
  %6741 = vmatpush1.msra.mxu0 0.0
  %6742 = vmatprep.subr.mxu0 0.0
  %6743 = vmatpush1.msra.mxu0 0.0
  %6744 = vmatprep.subr.mxu0 0.0
  %6745 = vmatpush1.msra.mxu0 0.0
  %6746 = vmatprep.subr.mxu0 0.0
  %6747 = vmatpush1.msra.mxu0 0.0
  %6748 = vmatprep.subr.mxu0 0.0
  %6749 = vmatpush1.msra.mxu0 0.0
  %6750 = vmatprep.subr.mxu0 0.0
  %6751 = vmatpush1.msra.mxu0 0.0
  %6752 = vmatprep.subr.mxu0 0.0
  %6753 = vmatpush1.msra.mxu0 0.0
  %6754 = vmatprep.subr.mxu0 0.0
  %6755 = vmatpush1.msra.mxu0 0.0
  %6756 = vmatprep.subr.mxu0 0.0
  %6757 = vmatpush1.msra.mxu0 0.0
  %6758 = vmatprep.subr.mxu0 0.0
  %6759 = vmatpush1.msra.mxu0 0.0
  %6760 = vmatprep.subr.mxu0 0.0
  %6761 = vmatpush1.msra.mxu0 0.0
  %6762 = vmatprep.subr.mxu0 0.0
  %6763 = vmatpush1.msra.mxu0 0.0
  %6764 = vmatprep.subr.mxu0 0.0
  %6765 = vmatpush1.msra.mxu0 0.0
  %6766 = vmatprep.subr.mxu0 0.0
  %6767 = vmatpush1.msra.mxu0 0.0
  %6768 = vmatprep.subr.mxu0 0.0
  %6769 = vmatpush1.msra.mxu0 0.0
  %6770 = vmatprep.subr.mxu0 0.0
  %6771 = vmatpush1.msra.mxu0 0.0
  %6772 = vmatprep.subr.mxu0 0.0
  %6773 = vmatpush1.msra.mxu0 0.0
  %6774 = vmatprep.subr.mxu0 0.0
  %6775 = vmatpush1.msra.mxu0 0.0
  %6776 = vmatprep.subr.mxu0 0.0
  %6777 = vmatpush1.msra.mxu0 0.0
  %6778 = vmatprep.subr.mxu0 0.0
  %6779 = vmatpush1.msra.mxu0 0.0
  %6780 = vmatprep.subr.mxu0 0.0
  %6781 = vmatpush1.msra.mxu0 0.0
  %6782 = vmatprep.mubr.f32.mxu0 0.0
  %6783 = vmatmul.mubr.f32.gmra.mrb[0].mxu0 %v6713
  %v6784 = vpop.f32.mrb[0].mxu0
  %v6785 = vadd.f32 1.1920929e-07, %v6784
  %v6786 = vpop.f32.mrb[0].mxu0
  %6787 = vmatprep.mubr.f32.mxu0 0.0
  %6788 = vmatmul.mubr.f32.gmra.mrb[0].mxu0 %v6716
  %v6789 = vpop.f32.mrb[0].mxu0
  %v6790 = vadd.f32 1.1920929e-07, %v6789
  %v6791 = vpop.f32.mrb[0].mxu0
  %6792 = vdwg.mxu0
  %v6793 = vrsqrt.pop %v6785
  %v6794 = vrsqrt.pop %v6790
  %v6795 = vmul.f32 %v6672, %v6793
  %v6796 = vmul.f32 %v6677, %v6794
  %v6797 = vlaneseq
  %v6798 = vshrl.u32 %v6797, 7
  %v6799 = vsub.s32 1, %v6798
  %v6800 = vrot.slane %v5850, %v6799
  %v6801 = vmul.f32 %v6795, %v6800
  %v6802 = vmul.f32 %v6796, %v6800
  %v6803 = vlaneseq
  %v6804 = vshrl.u32 %v6803, 7
  %v6805 = vsub.s32 4, %v6804
  %v6806 = vrot.slane %v5850, %v6805
  %v6808 = vsel %vm1025, %v6801, 0
  %v6811 = vsel %vm1025, %v6802, 0
  %6813 = vmatprep.subr.mxu0 0.0
  %6814 = vmatpush1.msra.mxu0 %v5869
  %6815 = vmatprep.subr.mxu0 0.0
  %6816 = vmatpush1.msra.mxu0 %v5870
  %6817 = vmatprep.subr.mxu0 0.0
  %6818 = vmatpush1.msra.mxu0 %v5871
  %6819 = vmatprep.subr.mxu0 0.0
  %6820 = vmatpush1.msra.mxu0 %v5872
  %6821 = vmatprep.subr.mxu0 0.0
  %6822 = vmatpush1.msra.mxu0 0.0
  %6823 = vmatprep.subr.mxu0 0.0
  %6824 = vmatpush1.msra.mxu0 0.0
  %6825 = vmatprep.subr.mxu0 0.0
  %6826 = vmatpush1.msra.mxu0 0.0
  %6827 = vmatprep.subr.mxu0 0.0
  %6828 = vmatpush1.msra.mxu0 0.0
  %6829 = vmatprep.subr.mxu0 0.0
  %6830 = vmatpush1.msra.mxu0 0.0
  %6831 = vmatprep.subr.mxu0 0.0
  %6832 = vmatpush1.msra.mxu0 0.0
  %6833 = vmatprep.subr.mxu0 0.0
  %6834 = vmatpush1.msra.mxu0 0.0
  %6835 = vmatprep.subr.mxu0 0.0
  %6836 = vmatpush1.msra.mxu0 0.0
  %6837 = vmatprep.subr.mxu0 0.0
  %6838 = vmatpush1.msra.mxu0 0.0
  %6839 = vmatprep.subr.mxu0 0.0
  %6840 = vmatpush1.msra.mxu0 0.0
  %6841 = vmatprep.subr.mxu0 0.0
  %6842 = vmatpush1.msra.mxu0 0.0
  %6843 = vmatprep.subr.mxu0 0.0
  %6844 = vmatpush1.msra.mxu0 0.0
  %6845 = vmatprep.subr.mxu0 0.0
  %6846 = vmatpush1.msra.mxu0 0.0
  %6847 = vmatprep.subr.mxu0 0.0
  %6848 = vmatpush1.msra.mxu0 0.0
  %6849 = vmatprep.subr.mxu0 0.0
  %6850 = vmatpush1.msra.mxu0 0.0
  %6851 = vmatprep.subr.mxu0 0.0
  %6852 = vmatpush1.msra.mxu0 0.0
  %6853 = vmatprep.subr.mxu0 0.0
  %6854 = vmatpush1.msra.mxu0 0.0
  %6855 = vmatprep.subr.mxu0 0.0
  %6856 = vmatpush1.msra.mxu0 0.0
  %6857 = vmatprep.subr.mxu0 0.0
  %6858 = vmatpush1.msra.mxu0 0.0
  %6859 = vmatprep.subr.mxu0 0.0
  %6860 = vmatpush1.msra.mxu0 0.0
  %6861 = vmatprep.subr.mxu0 0.0
  %6862 = vmatpush1.msra.mxu0 0.0
  %6863 = vmatprep.subr.mxu0 0.0
  %6864 = vmatpush1.msra.mxu0 0.0
  %6865 = vmatprep.subr.mxu0 0.0
  %6866 = vmatpush1.msra.mxu0 0.0
  %6867 = vmatprep.subr.mxu0 0.0
  %6868 = vmatpush1.msra.mxu0 0.0
  %6869 = vmatprep.subr.mxu0 0.0
  %6870 = vmatpush1.msra.mxu0 0.0
  %6871 = vmatprep.subr.mxu0 0.0
  %6872 = vmatpush1.msra.mxu0 0.0
  %6873 = vmatprep.subr.mxu0 0.0
  %6874 = vmatpush1.msra.mxu0 0.0
  %6875 = vmatprep.subr.mxu0 0.0
  %6876 = vmatpush1.msra.mxu0 0.0
  %6877 = vmatprep.mubr.f32.mxu0 0.0
  %6878 = vmatmul.mubr.f32.gmra.mrb[0].mxu0 %v6808
  %v6879 = vpop.f32.mrb[0].mxu0
  %v6880 = vadd.f32 %v6806, %v6879
  %v6881 = vpop.f32.mrb[0].mxu0
  %6882 = vmatprep.mubr.f32.mxu0 0.0
  %6883 = vmatmul.mubr.f32.gmra.mrb[0].mxu0 %v6811
  %v6884 = vpop.f32.mrb[0].mxu0
  %v6885 = vadd.f32 %v6806, %v6884
  %v6886 = vpop.f32.mrb[0].mxu0
  %6887 = vdwg.mxu0
  %v6888 = vmax.f32 %v6880, 0.0
  %v6889 = vmax.f32 %v6885, 0.0
  %v6890 = vmul.f32 %v6888, %v6888
  %v6891 = vmul.f32 %v6889, %v6889
  %v6892 = vlaneseq
  %v6893 = vshrl.u32 %v6892, 7
  %v6894 = vsub.s32 5, %v6893
  %v6895 = vrot.slane %v5850, %v6894
  %v6897 = vsel %vm1028, %v6890, 0
  %v6900 = vsel %vm1028, %v6891, 0
  %6902 = vmatprep.subr.mxu0 0.0
  %6903 = vmatpush1.msra.mxu0 %v5874
  %6904 = vmatprep.subr.mxu0 0.0
  %6905 = vmatpush1.msra.mxu0 %v5875
  %6906 = vmatprep.subr.mxu0 0.0
  %6907 = vmatpush1.msra.mxu0 %v5876
  %6908 = vmatprep.subr.mxu0 0.0
  %6909 = vmatpush1.msra.mxu0 %v5877
  %6910 = vmatprep.subr.mxu0 0.0
  %6911 = vmatpush1.msra.mxu0 %v5878
  %6912 = vmatprep.subr.mxu0 0.0
  %6913 = vmatpush1.msra.mxu0 %v5879
  %6914 = vmatprep.subr.mxu0 0.0
  %6915 = vmatpush1.msra.mxu0 %v5880
  %6916 = vmatprep.subr.mxu0 0.0
  %6917 = vmatpush1.msra.mxu0 %v5881
  %6918 = vmatprep.subr.mxu0 0.0
  %6919 = vmatpush1.msra.mxu0 0.0
  %6920 = vmatprep.subr.mxu0 0.0
  %6921 = vmatpush1.msra.mxu0 0.0
  %6922 = vmatprep.subr.mxu0 0.0
  %6923 = vmatpush1.msra.mxu0 0.0
  %6924 = vmatprep.subr.mxu0 0.0
  %6925 = vmatpush1.msra.mxu0 0.0
  %6926 = vmatprep.subr.mxu0 0.0
  %6927 = vmatpush1.msra.mxu0 0.0
  %6928 = vmatprep.subr.mxu0 0.0
  %6929 = vmatpush1.msra.mxu0 0.0
  %6930 = vmatprep.subr.mxu0 0.0
  %6931 = vmatpush1.msra.mxu0 0.0
  %6932 = vmatprep.subr.mxu0 0.0
  %6933 = vmatpush1.msra.mxu0 0.0
  %6934 = vmatprep.subr.mxu0 0.0
  %6935 = vmatpush1.msra.mxu0 0.0
  %6936 = vmatprep.subr.mxu0 0.0
  %6937 = vmatpush1.msra.mxu0 0.0
  %6938 = vmatprep.subr.mxu0 0.0
  %6939 = vmatpush1.msra.mxu0 0.0
  %6940 = vmatprep.subr.mxu0 0.0
  %6941 = vmatpush1.msra.mxu0 0.0
  %6942 = vmatprep.subr.mxu0 0.0
  %6943 = vmatpush1.msra.mxu0 0.0
  %6944 = vmatprep.subr.mxu0 0.0
  %6945 = vmatpush1.msra.mxu0 0.0
  %6946 = vmatprep.subr.mxu0 0.0
  %6947 = vmatpush1.msra.mxu0 0.0
  %6948 = vmatprep.subr.mxu0 0.0
  %6949 = vmatpush1.msra.mxu0 0.0
  %6950 = vmatprep.subr.mxu0 0.0
  %6951 = vmatpush1.msra.mxu0 0.0
  %6952 = vmatprep.subr.mxu0 0.0
  %6953 = vmatpush1.msra.mxu0 0.0
  %6954 = vmatprep.subr.mxu0 0.0
  %6955 = vmatpush1.msra.mxu0 0.0
  %6956 = vmatprep.subr.mxu0 0.0
  %6957 = vmatpush1.msra.mxu0 0.0
  %6958 = vmatprep.subr.mxu0 0.0
  %6959 = vmatpush1.msra.mxu0 0.0
  %6960 = vmatprep.subr.mxu0 0.0
  %6961 = vmatpush1.msra.mxu0 0.0
  %6962 = vmatprep.subr.mxu0 0.0
  %6963 = vmatpush1.msra.mxu0 0.0
  %6964 = vmatprep.subr.mxu0 0.0
  %6965 = vmatpush1.msra.mxu0 0.0
  %6966 = vmatprep.mubr.f32.mxu0 0.0
  %6967 = vmatmul.mubr.f32.gmra.mrb[0].mxu0 %v6897
  %v6968 = vpop.f32.mrb[0].mxu0
  %v6969 = vadd.f32 %v6895, %v6968
  %v6970 = vpop.f32.mrb[0].mxu0
  %6971 = vmatprep.mubr.f32.mxu0 0.0
  %6972 = vmatmul.mubr.f32.gmra.mrb[0].mxu0 %v6900
  %v6973 = vpop.f32.mrb[0].mxu0
  %v6974 = vadd.f32 %v6895, %v6973
  %v6975 = vpop.f32.mrb[0].mxu0
  %6976 = vdwg.mxu0
  %v6977 = vmul.f32 %v6969, %v6287
  %v6978 = vmul.f32 %v6974, %v6293
  %v6979 = vadd.f32 %v6708, %v6977
  %v6980 = vadd.f32 %v6709, %v6978
  %6981 = vmatprep.subr.mxu0 0.0
  %6982 = vmatpush1.msra.mxu0 %v48
  %6983 = vmatprep.subr.mxu0 0.0
  %6984 = vmatpush1.msra.mxu0 %v49
  %6985 = vmatprep.subr.mxu0 0.0
  %6986 = vmatpush1.msra.mxu0 %v50
  %6987 = vmatprep.subr.mxu0 0.0
  %6988 = vmatpush1.msra.mxu0 %v51
  %6989 = vmatprep.subr.mxu0 0.0
  %6990 = vmatpush1.msra.mxu0 %v52
  %6991 = vmatprep.subr.mxu0 0.0
  %6992 = vmatpush1.msra.mxu0 %v53
  %6993 = vmatprep.subr.mxu0 0.0
  %6994 = vmatpush1.msra.mxu0 %v54
  %6995 = vmatprep.subr.mxu0 0.0
  %6996 = vmatpush1.msra.mxu0 %v55
  %6997 = vmatprep.subr.mxu0 0.0
  %6998 = vmatpush1.msra.mxu0 %v56
  %6999 = vmatprep.subr.mxu0 0.0
  %7000 = vmatpush1.msra.mxu0 %v57
  %7001 = vmatprep.subr.mxu0 0.0
  %7002 = vmatpush1.msra.mxu0 %v58
  %7003 = vmatprep.subr.mxu0 0.0
  %7004 = vmatpush1.msra.mxu0 %v59
  %7005 = vmatprep.subr.mxu0 0.0
  %7006 = vmatpush1.msra.mxu0 %v60
  %7007 = vmatprep.subr.mxu0 0.0
  %7008 = vmatpush1.msra.mxu0 %v61
  %7009 = vmatprep.subr.mxu0 0.0
  %7010 = vmatpush1.msra.mxu0 %v62
  %7011 = vmatprep.subr.mxu0 0.0
  %7012 = vmatpush1.msra.mxu0 %v63
  %7013 = vmatprep.subr.mxu0 0.0
  %7014 = vmatpush1.msra.mxu0 0.0
  %7015 = vmatprep.subr.mxu0 0.0
  %7016 = vmatpush1.msra.mxu0 0.0
  %7017 = vmatprep.subr.mxu0 0.0
  %7018 = vmatpush1.msra.mxu0 0.0
  %7019 = vmatprep.subr.mxu0 0.0
  %7020 = vmatpush1.msra.mxu0 0.0
  %7021 = vmatprep.subr.mxu0 0.0
  %7022 = vmatpush1.msra.mxu0 0.0
  %7023 = vmatprep.subr.mxu0 0.0
  %7024 = vmatpush1.msra.mxu0 0.0
  %7025 = vmatprep.subr.mxu0 0.0
  %7026 = vmatpush1.msra.mxu0 0.0
  %7027 = vmatprep.subr.mxu0 0.0
  %7028 = vmatpush1.msra.mxu0 0.0
  %7029 = vmatprep.subr.mxu0 0.0
  %7030 = vmatpush1.msra.mxu0 0.0
  %7031 = vmatprep.subr.mxu0 0.0
  %7032 = vmatpush1.msra.mxu0 0.0
  %7033 = vmatprep.subr.mxu0 0.0
  %7034 = vmatpush1.msra.mxu0 0.0
  %7035 = vmatprep.subr.mxu0 0.0
  %7036 = vmatpush1.msra.mxu0 0.0
  %7037 = vmatprep.subr.mxu0 0.0
  %7038 = vmatpush1.msra.mxu0 0.0
  %7039 = vmatprep.subr.mxu0 0.0
  %7040 = vmatpush1.msra.mxu0 0.0
  %7041 = vmatprep.subr.mxu0 0.0
  %7042 = vmatpush1.msra.mxu0 0.0
  %7043 = vmatprep.subr.mxu0 0.0
  %7044 = vmatpush1.msra.mxu0 0.0
  %7045 = vmatprep.mubr.f32.mxu0 0.0
  %7046 = vmatmul.mubr.f32.gmra.mrb[0].mxu0 %v6979
  %v7047 = vpop.f32.mrb[0].mxu0
  %v7048 = vadd.f32 0.0, %v7047
  %v7049 = vpop.f32.mrb[0].mxu0
  %7050 = vmatprep.mubr.f32.mxu0 0.0
  %7051 = vmatmul.mubr.f32.gmra.mrb[0].mxu0 %v6980
  %v7052 = vpop.f32.mrb[0].mxu0
  %v7053 = vadd.f32 0.0, %v7052
  %v7054 = vpop.f32.mrb[0].mxu0
  %7055 = vdwg.mxu0
  %v7056 = vmul.f32 %v7048, %v7048
  %v7057 = vmul.f32 %v7053, %v7053
  %v7059 = vsel %vm1025, %v7056, 0
  %v7062 = vsel %vm1025, %v7057, 0
  %7064 = vmatprep.subr.mxu0 0.0
  %7065 = vmatpush1.msra.mxu0 %v1041
  %7066 = vmatprep.subr.mxu0 0.0
  %7067 = vmatpush1.msra.mxu0 %v1043
  %7068 = vmatprep.subr.mxu0 0.0
  %7069 = vmatpush1.msra.mxu0 %v1045
  %7070 = vmatprep.subr.mxu0 0.0
  %7071 = vmatpush1.msra.mxu0 %v1047
  %7072 = vmatprep.subr.mxu0 0.0
  %7073 = vmatpush1.msra.mxu0 0.0
  %7074 = vmatprep.subr.mxu0 0.0
  %7075 = vmatpush1.msra.mxu0 0.0
  %7076 = vmatprep.subr.mxu0 0.0
  %7077 = vmatpush1.msra.mxu0 0.0
  %7078 = vmatprep.subr.mxu0 0.0
  %7079 = vmatpush1.msra.mxu0 0.0
  %7080 = vmatprep.subr.mxu0 0.0
  %7081 = vmatpush1.msra.mxu0 0.0
  %7082 = vmatprep.subr.mxu0 0.0
  %7083 = vmatpush1.msra.mxu0 0.0
  %7084 = vmatprep.subr.mxu0 0.0
  %7085 = vmatpush1.msra.mxu0 0.0
  %7086 = vmatprep.subr.mxu0 0.0
  %7087 = vmatpush1.msra.mxu0 0.0
  %7088 = vmatprep.subr.mxu0 0.0
  %7089 = vmatpush1.msra.mxu0 0.0
  %7090 = vmatprep.subr.mxu0 0.0
  %7091 = vmatpush1.msra.mxu0 0.0
  %7092 = vmatprep.subr.mxu0 0.0
  %7093 = vmatpush1.msra.mxu0 0.0
  %7094 = vmatprep.subr.mxu0 0.0
  %7095 = vmatpush1.msra.mxu0 0.0
  %7096 = vmatprep.subr.mxu0 0.0
  %7097 = vmatpush1.msra.mxu0 0.0
  %7098 = vmatprep.subr.mxu0 0.0
  %7099 = vmatpush1.msra.mxu0 0.0
  %7100 = vmatprep.subr.mxu0 0.0
  %7101 = vmatpush1.msra.mxu0 0.0
  %7102 = vmatprep.subr.mxu0 0.0
  %7103 = vmatpush1.msra.mxu0 0.0
  %7104 = vmatprep.subr.mxu0 0.0
  %7105 = vmatpush1.msra.mxu0 0.0
  %7106 = vmatprep.subr.mxu0 0.0
  %7107 = vmatpush1.msra.mxu0 0.0
  %7108 = vmatprep.subr.mxu0 0.0
  %7109 = vmatpush1.msra.mxu0 0.0
  %7110 = vmatprep.subr.mxu0 0.0
  %7111 = vmatpush1.msra.mxu0 0.0
  %7112 = vmatprep.subr.mxu0 0.0
  %7113 = vmatpush1.msra.mxu0 0.0
  %7114 = vmatprep.subr.mxu0 0.0
  %7115 = vmatpush1.msra.mxu0 0.0
  %7116 = vmatprep.subr.mxu0 0.0
  %7117 = vmatpush1.msra.mxu0 0.0
  %7118 = vmatprep.subr.mxu0 0.0
  %7119 = vmatpush1.msra.mxu0 0.0
  %7120 = vmatprep.subr.mxu0 0.0
  %7121 = vmatpush1.msra.mxu0 0.0
  %7122 = vmatprep.subr.mxu0 0.0
  %7123 = vmatpush1.msra.mxu0 0.0
  %7124 = vmatprep.subr.mxu0 0.0
  %7125 = vmatpush1.msra.mxu0 0.0
  %7126 = vmatprep.subr.mxu0 0.0
  %7127 = vmatpush1.msra.mxu0 0.0
  %7128 = vmatprep.mubr.f32.mxu0 0.0
  %7129 = vmatmul.mubr.f32.gmra.mrb[0].mxu0 %v7059
  %v7130 = vpop.f32.mrb[0].mxu0
  %v7131 = vadd.f32 1.1920929e-07, %v7130
  %v7132 = vpop.f32.mrb[0].mxu0
  %7133 = vmatprep.mubr.f32.mxu0 0.0
  %7134 = vmatmul.mubr.f32.gmra.mrb[0].mxu0 %v7062
  %v7135 = vpop.f32.mrb[0].mxu0
  %v7136 = vadd.f32 1.1920929e-07, %v7135
  %v7137 = vpop.f32.mrb[0].mxu0
  %7138 = vdwg.mxu0
  %v7139 = vrsqrt.pop %v7131
  %v7140 = vrsqrt.pop %v7136
  %v7141 = vmul.f32 %v7048, %v7139
  %v7142 = vmul.f32 %v7053, %v7140
  %v7143 = vld [vmem:[%s2 + $0x1] sm:$0x1]
  %v7144 = vlaneseq
  %v7145 = vshrl.u32 %v7144, 7
  %v7146 = vsub.s32 0, %v7145
  %v7147 = vrot.slane %v7143, %v7146
  %v7148 = vmul.f32 %v7141, %v7147
  %v7149 = vmul.f32 %v7142, %v7147
  %7151 = vrot.lane.b32.xlu0 %v7147, 96
  %v7152 = vpop.permute.xlu0 %7151
  %v7154 = vmul.f32 %v7148, %v7152
  %v7155 = vmul.f32 %v7149, %v7152
  %v7156 = vsel %vm1025, %v7154, 0.0
  %7157 = vadd.xlane.f32.xlu0 %v7156
  %v7158 = vpop.xlane.xlu0 %7157
  %v7159 = vsel %vm1025, %v7155, 0.0
  %7160 = vadd.xlane.f32.xlu0 %v7159
  %v7161 = vpop.xlane.xlu0 %7160
  %v7162 = vadd.f32 %v7158, %v7147
  %v7163 = vadd.f32 %v7161, %v7147
  %7166 = vrot.lane.b32.xlu0 %v7162, 64
  %v7167 = vpop.permute.xlu0 %7166
  %7168 = vrot.lane.b32.xlu0 %v7163, 64
  %v7169 = vpop.permute.xlu0 %7168
  %vm7172 = vcmask 7168
  %7173 = vst.msk [vmem:[%s9] sm:$0xff] %vm7172, %v7167
  %7174 = vst.msk [vmem:[%s9 + $0x8] sm:$0xff] %vm7172, %v7169
  // Predicated region
  $region38: #{critic_forward.1} parent=0 // pred_check
    _
  $region39: #{critic_forward.1} parent=0 // pred_check_branch
    %7176 = sbr.rel (0) target = $region41
  $region40: #{critic_forward.1} parent=0 // pred_region
    _
  $region41: #{critic_forward.1} parent=0 // pred_fallthru
    _
  // Predicated region
  $region42: #{critic_forward.1} parent=0 // pred_check
    _
  $region43: #{critic_forward.1} parent=0 // pred_check_branch
    %7178 = sbr.rel (0) target = $region45
  $region44: #{critic_forward.1} parent=0 // pred_region
    _
  $region45: #{critic_forward.1} parent=0 // pred_fallthru
    _

</llo_original>
